<compile_context>
chip_gen: v7x
topology: tpu7x:2x2x1
jax: 0.10.0
libtpu: 0.0.40
codegen_flags: <defaults>
</compile_context>

<pallas_src>
import functools
import math

import jax
import jax.numpy as jnp
from jax.experimental import pallas as pl
from jax.experimental.pallas import tpu as pltpu


# ----------------------------- Pallas kernel ---------------------------------

def _phobert_kernel(
    # inputs
    x_ref, mask_ref, eg_ref, eb_ref,
    wq_ref, bq_ref, wk_ref, bk_ref, wv_ref, bv_ref,
    wo_ref, bo_ref, ln1g_ref, ln1b_ref,
    wff1_ref, bff1_ref, wff2_ref, bff2_ref, ln2g_ref, ln2b_ref,
    poolw_ref, poolb_ref, fcw_ref, fcb_ref,
    # outputs
    out_ref,
    # scratch
    attn_scratch,
    *, num_layers, num_heads, batch, seq, hidden, head_dim, eps):
  """Full PhoBERTCustom forward on pre-embedded tokens. All math in f32; MXU in bf16."""
  scale = 1.0 / math.sqrt(head_dim)

  def layer_norm(x, g, b):                       # f32 VPU math
    mu = jnp.mean(x, axis=-1, keepdims=True)
    var = jnp.mean(jnp.square(x - mu), axis=-1, keepdims=True)
    return (x - mu) * jax.lax.rsqrt(var + eps) * g + b

  def mm(a16, w16):                              # a @ w, bf16 in / f32 accumulate
    return jax.lax.dot_general(a16, w16, (((1,), (0,)), ((), ())),
                               preferred_element_type=jnp.float32)

  def mm_t(a16, b16):                            # a @ b.T, bf16 in / f32 accumulate
    return jax.lax.dot_general(a16, b16, (((1,), (1,)), ((), ())),
                               preferred_element_type=jnp.float32)

  # ---- embedding LayerNorm ----
  h = layer_norm(x_ref[...], eg_ref[...], eb_ref[...])          # (B*S, H) f32

  # ---- encoder layers ----
  for l in range(num_layers):
    # --- self attention: loop heads, fold output projection into the per-head sum ---
    for b in range(batch):
      x_b = h[b * seq:(b + 1) * seq, :]                          # (S, H) f32, aligned
      x_b16 = x_b.astype(jnp.bfloat16)
      m_b = mask_ref[b]                                          # (1, S) additive mask
      acc = jnp.zeros((seq, hidden), jnp.float32)
      for hh in range(num_heads):
        idx = l * num_heads + hh
        q = mm(x_b16, wq_ref[idx]) + bq_ref[idx]                 # (S, D)
        k = mm(x_b16, wk_ref[idx]) + bk_ref[idx]
        v = mm(x_b16, wv_ref[idx]) + bv_ref[idx]
        s = mm_t(q.astype(jnp.bfloat16), k.astype(jnp.bfloat16)) * scale
        s = s + m_b                                              # mask padded keys
        s = s - jnp.max(s, axis=-1, keepdims=True)
        p = jnp.exp(s)
        p = p * pl.reciprocal(jnp.sum(p, axis=-1, keepdims=True), approx=True)
        ctx = mm(p.astype(jnp.bfloat16), v.astype(jnp.bfloat16))  # (S, D)
        acc = acc + mm(ctx.astype(jnp.bfloat16), wo_ref[idx])     # (S, H)
      attn_scratch[b * seq:(b + 1) * seq, :] = acc               # tile-aligned store
    attn_out = attn_scratch[...] + bo_ref[l]                     # (B*S, H)
    # fused residual + LayerNorm
    h = layer_norm(attn_out + h, ln1g_ref[l], ln1b_ref[l])

    # --- feed-forward (all B*S tokens in one matmul) ---
    h16 = h.astype(jnp.bfloat16)
    ff = mm(h16, wff1_ref[l]) + bff1_ref[l]
    # TODO(synk): HF RoBERTa uses exact erf-gelu; tanh approximation used here.
    ff = jax.nn.gelu(ff)
    ff = mm(ff.astype(jnp.bfloat16), wff2_ref[l]) + bff2_ref[l]
    h = layer_norm(ff + h, ln2g_ref[l], ln2b_ref[l])             # fused residual + LN

  # ---- pooler (CLS) + dropout(identity at inference) + fc head ----
  for b in range(batch):
    cls16 = h[b * seq:b * seq + 1, :].astype(jnp.bfloat16)       # (1, H)
    pooled = jnp.tanh(mm(cls16, poolw_ref[...]) + poolb_ref[...])
    logits = mm(pooled.astype(jnp.bfloat16), fcw_ref[...]) + fcb_ref[...]
    out_ref[b:b + 1, :] = logits


def _fullspec(shape):
  nd = len(shape)
  return pl.BlockSpec(shape, lambda i, _nd=nd: (0,) * _nd)


# --------------------------- Model (synthetic BERT) ---------------------------

class Config:
  vocab_size = 100
  hidden = 32
  num_heads = 4
  num_layers = 2
  intermediate = 64
  max_pos = 16
  output_size = 3
  eps = 1e-12


def init_params(key, cfg):
  def norm(key, shape, std=0.02):
    return std * jax.random.normal(key, shape, dtype=jnp.float32)

  keys = iter(jax.random.split(key, 64))
  p = {
      "word_emb": norm(next(keys), (cfg.vocab_size, cfg.hidden)),
      "pos_emb": norm(next(keys), (cfg.max_pos, cfg.hidden)),
      "type_emb": norm(next(keys), (1, cfg.hidden)),
      "emb_ln_g": jnp.ones((cfg.hidden,), jnp.float32),
      "emb_ln_b": jnp.zeros((cfg.hidden,), jnp.float32),
      "layers": [],
      "pool_w": norm(next(keys), (cfg.hidden, cfg.hidden)),
      "pool_b": jnp.zeros((cfg.hidden,), jnp.float32),
      # fc: nn.init.normal_(weight, std=0.02); bias normal std=0 -> zeros
      "fc_w": norm(next(keys), (cfg.hidden, cfg.output_size)),
      "fc_b": jnp.zeros((cfg.output_size,), jnp.float32),
  }
  for _ in range(cfg.num_layers):
    layer = {
        "wq": norm(next(keys), (cfg.hidden, cfg.hidden)),
        "bq": jnp.zeros((cfg.hidden,), jnp.float32),
        "wk": norm(next(keys), (cfg.hidden, cfg.hidden)),
        "bk": jnp.zeros((cfg.hidden,), jnp.float32),
        "wv": norm(next(keys), (cfg.hidden, cfg.hidden)),
        "bv": jnp.zeros((cfg.hidden,), jnp.float32),
        "wo": norm(next(keys), (cfg.hidden, cfg.hidden)),
        "bo": jnp.zeros((cfg.hidden,), jnp.float32),
        "attn_ln_g": jnp.ones((cfg.hidden,), jnp.float32),
        "attn_ln_b": jnp.zeros((cfg.hidden,), jnp.float32),
        "w_ff1": norm(next(keys), (cfg.hidden, cfg.intermediate)),
        "b_ff1": jnp.zeros((cfg.intermediate,), jnp.float32),
        "w_ff2": norm(next(keys), (cfg.intermediate, cfg.hidden)),
        "b_ff2": jnp.zeros((cfg.hidden,), jnp.float32),
        "ffn_ln_g": jnp.ones((cfg.hidden,), jnp.float32),
        "ffn_ln_b": jnp.zeros((cfg.hidden,), jnp.float32),
    }
    p["layers"].append(layer)
  return p


def pack_params(params, cfg):
  """One-time packing: stack per-layer weights (head-major for attention), cast MXU
  operands to bf16, keep biases / LN params in f32."""
  L, Hh = cfg.num_layers, cfg.num_heads
  H, I, O = cfg.hidden, cfg.intermediate, cfg.output_size
  D = H // Hh
  layers = params["layers"]

  def head_cols_w(name):   # (H, H), columns head-major -> (L*Hh, H, D) bf16
    return jnp.stack(
        [layers[l][name][:, hh * D:(hh + 1) * D]
         for l in range(L) for hh in range(Hh)], axis=0).astype(jnp.bfloat16)

  def head_cols_b(name):   # (H,) -> (L*Hh, 1, D) f32
    return jnp.stack(
        [layers[l][name][hh * D:(hh + 1) * D].reshape(1, D)
         for l in range(L) for hh in range(Hh)], axis=0).astype(jnp.float32)

  wo_h = jnp.stack(         # rows of wo, head-major -> (L*Hh, D, H) bf16
      [layers[l]["wo"][hh * D:(hh + 1) * D, :]
       for l in range(L) for hh in range(Hh)], axis=0).astype(jnp.bfloat16)

  def stack_w(name):
    return jnp.stack([layers[l][name] for l in range(L)], 0).astype(jnp.bfloat16)

  def stack_v(name, n):
    return jnp.stack([layers[l][name].reshape(1, n) for l in range(L)],
                     0).astype(jnp.float32)

  return {
      "word_emb": params["word_emb"].astype(jnp.float32),
      "pos_emb": params["pos_emb"].astype(jnp.float32),
      "type_emb": params["type_emb"].astype(jnp.float32),
      "emb_ln_g": params["emb_ln_g"].reshape(1, H).astype(jnp.float32),
      "emb_ln_b": params["emb_ln_b"].reshape(1, H).astype(jnp.float32),
      "wq_h": head_cols_w("wq"), "bq_h": head_cols_b("bq"),
      "wk_h": head_cols_w("wk"), "bk_h": head_cols_b("bk"),
      "wv_h": head_cols_w("wv"), "bv_h": head_cols_b("bv"),
      "wo_h": wo_h, "bo": stack_v("bo", H),
      "ln1_g": stack_v("attn_ln_g", H), "ln1_b": stack_v("attn_ln_b", H),
      "wff1": stack_w("w_ff1"), "bff1": stack_v("b_ff1", I),
      "wff2": stack_w("w_ff2"), "bff2": stack_v("b_ff2", H),
      "ln2_g": stack_v("ffn_ln_g", H), "ln2_b": stack_v("ffn_ln_b", H),
      "pool_w": params["pool_w"].astype(jnp.bfloat16),
      "pool_b": params["pool_b"].reshape(1, H).astype(jnp.float32),
      "fc_w": params["fc_w"].astype(jnp.bfloat16),
      "fc_b": params["fc_b"].reshape(1, O).astype(jnp.float32),
  }


def phobert_custom_forward(packed, input_ids, attention_mask, cfg):
  B, S = input_ids.shape
  H, Hh, O = cfg.hidden, cfg.num_heads, cfg.output_size
  D = H // Hh

  # ---- embeddings (gather = glue; no clean Pallas equivalent for a table gather) ----
  # TODO(synk): RoBERTa offsets position ids by padding_idx+1; plain arange used here
  # (irrelevant for synthetic weights).
  word = jnp.take(packed["word_emb"], input_ids, axis=0)          # (B, S, H)
  pos = packed["pos_emb"][:S][None, :, :]                         # (1, S, H)
  typ = packed["type_emb"][0][None, None, :]                      # (1, 1, H)
  x_emb = (word + pos + typ).astype(jnp.float32).reshape(B * S, H)

  # extended additive attention mask: (1 - mask) * -1e9, shaped (B, 1, S)
  add_mask = ((1.0 - attention_mask.astype(jnp.float32)) * -1e9).reshape(B, 1, S)

  kernel = functools.partial(
      _phobert_kernel, num_layers=cfg.num_layers, num_heads=Hh,
      batch=B, seq=S, hidden=H, head_dim=D, eps=cfg.eps)

  operands = [
      x_emb, add_mask, packed["emb_ln_g"], packed["emb_ln_b"],
      packed["wq_h"], packed["bq_h"], packed["wk_h"], packed["bk_h"],
      packed["wv_h"], packed["bv_h"], packed["wo_h"], packed["bo"],
      packed["ln1_g"], packed["ln1_b"],
      packed["wff1"], packed["bff1"], packed["wff2"], packed["bff2"],
      packed["ln2_g"], packed["ln2_b"],
      packed["pool_w"], packed["pool_b"], packed["fc_w"], packed["fc_b"],
  ]

  return pl.pallas_call(
      kernel,
      out_shape=jax.ShapeDtypeStruct((B, O), jnp.float32),
      grid=(1,),
      in_specs=[_fullspec(op.shape) for op in operands],
      out_specs=_fullspec((B, O)),
      scratch_shapes=[pltpu.VMEM((B * S, H), jnp.float32)],
  )(*operands)


# ----------------------------------- main -------------------------------------

if __name__ == "__main__":
  cfg = Config()
  B, S = 2, 8

  key = jax.random.PRNGKey(0)
  k_params, k_ids = jax.random.split(key)
  params = init_params(k_params, cfg)
  packed = pack_params(params, cfg)                 # one-time bf16 packing

  input_ids = jax.random.randint(k_ids, (B, S), 0, cfg.vocab_size, dtype=jnp.int32)
  attention_mask = jnp.ones((B, S), dtype=jnp.int32).at[1, 6:].set(0)  # ragged mask

  fwd = jax.jit(functools.partial(phobert_custom_forward, cfg=cfg))
  logits = fwd(packed, input_ids, attention_mask)
  jax.block_until_ready(logits)

  assert logits.shape == (B, cfg.output_size)
  assert logits.dtype == jnp.float32
  print("KERNEL_OK")
</pallas_src>

<mosaic_0001>
module attributes {stable_mosaic.version = 11 : i64} {
  func.func @_phobert_kernel(%arg0: i32, %arg1: memref<16x32xf32, #tpu.memory_space<vmem>>, %arg2: memref<2x1x8xf32, #tpu.memory_space<vmem>>, %arg3: memref<1x32xf32, #tpu.memory_space<vmem>>, %arg4: memref<1x32xf32, #tpu.memory_space<vmem>>, %arg5: memref<8x32x8xbf16, #tpu.memory_space<vmem>>, %arg6: memref<8x1x8xf32, #tpu.memory_space<vmem>>, %arg7: memref<8x32x8xbf16, #tpu.memory_space<vmem>>, %arg8: memref<8x1x8xf32, #tpu.memory_space<vmem>>, %arg9: memref<8x32x8xbf16, #tpu.memory_space<vmem>>, %arg10: memref<8x1x8xf32, #tpu.memory_space<vmem>>, %arg11: memref<8x8x32xbf16, #tpu.memory_space<vmem>>, %arg12: memref<2x1x32xf32, #tpu.memory_space<vmem>>, %arg13: memref<2x1x32xf32, #tpu.memory_space<vmem>>, %arg14: memref<2x1x32xf32, #tpu.memory_space<vmem>>, %arg15: memref<2x32x64xbf16, #tpu.memory_space<vmem>>, %arg16: memref<2x1x64xf32, #tpu.memory_space<vmem>>, %arg17: memref<2x64x32xbf16, #tpu.memory_space<vmem>>, %arg18: memref<2x1x32xf32, #tpu.memory_space<vmem>>, %arg19: memref<2x1x32xf32, #tpu.memory_space<vmem>>, %arg20: memref<2x1x32xf32, #tpu.memory_space<vmem>>, %arg21: memref<32x32xbf16, #tpu.memory_space<vmem>>, %arg22: memref<1x32xf32, #tpu.memory_space<vmem>>, %arg23: memref<32x3xbf16, #tpu.memory_space<vmem>>, %arg24: memref<1x3xf32, #tpu.memory_space<vmem>>, %arg25: memref<2x3xf32, #tpu.memory_space<vmem>>, %arg26: memref<16x32xf32, #tpu.memory_space<vmem>>) attributes {dimension_semantics = [#tpu.dimension_semantics<arbitrary>], iteration_bounds = array<i64: 1>, scalar_prefetch = 0 : i64, scratch_operands = 1 : i64, tpu.core_type = #tpu.core_type<tc>, window_params = [{pipeline_mode = #tpu.pipeline_mode<synchronous>, transform_indices = @transform_0, window_bounds = array<i64: 16, 32>}, {pipeline_mode = #tpu.pipeline_mode<synchronous>, transform_indices = @transform_1, window_bounds = array<i64: 2, 1, 8>}, {pipeline_mode = #tpu.pipeline_mode<synchronous>, transform_indices = @transform_2, window_bounds = array<i64: 1, 32>}, {pipeline_mode = #tpu.pipeline_mode<synchronous>, transform_indices = @transform_3, window_bounds = array<i64: 1, 32>}, {pipeline_mode = #tpu.pipeline_mode<synchronous>, transform_indices = @transform_4, window_bounds = array<i64: 8, 32, 8>}, {pipeline_mode = #tpu.pipeline_mode<synchronous>, transform_indices = @transform_5, window_bounds = array<i64: 8, 1, 8>}, {pipeline_mode = #tpu.pipeline_mode<synchronous>, transform_indices = @transform_6, window_bounds = array<i64: 8, 32, 8>}, {pipeline_mode = #tpu.pipeline_mode<synchronous>, transform_indices = @transform_7, window_bounds = array<i64: 8, 1, 8>}, {pipeline_mode = #tpu.pipeline_mode<synchronous>, transform_indices = @transform_8, window_bounds = array<i64: 8, 32, 8>}, {pipeline_mode = #tpu.pipeline_mode<synchronous>, transform_indices = @transform_9, window_bounds = array<i64: 8, 1, 8>}, {pipeline_mode = #tpu.pipeline_mode<synchronous>, transform_indices = @transform_10, window_bounds = array<i64: 8, 8, 32>}, {pipeline_mode = #tpu.pipeline_mode<synchronous>, transform_indices = @transform_11, window_bounds = array<i64: 2, 1, 32>}, {pipeline_mode = #tpu.pipeline_mode<synchronous>, transform_indices = @transform_12, window_bounds = array<i64: 2, 1, 32>}, {pipeline_mode = #tpu.pipeline_mode<synchronous>, transform_indices = @transform_13, window_bounds = array<i64: 2, 1, 32>}, {pipeline_mode = #tpu.pipeline_mode<synchronous>, transform_indices = @transform_14, window_bounds = array<i64: 2, 32, 64>}, {pipeline_mode = #tpu.pipeline_mode<synchronous>, transform_indices = @transform_15, window_bounds = array<i64: 2, 1, 64>}, {pipeline_mode = #tpu.pipeline_mode<synchronous>, transform_indices = @transform_16, window_bounds = array<i64: 2, 64, 32>}, {pipeline_mode = #tpu.pipeline_mode<synchronous>, transform_indices = @transform_17, window_bounds = array<i64: 2, 1, 32>}, {pipeline_mode = #tpu.pipeline_mode<synchronous>, transform_indices = @transform_18, window_bounds = array<i64: 2, 1, 32>}, {pipeline_mode = #tpu.pipeline_mode<synchronous>, transform_indices = @transform_19, window_bounds = array<i64: 2, 1, 32>}, {pipeline_mode = #tpu.pipeline_mode<synchronous>, transform_indices = @transform_20, window_bounds = array<i64: 32, 32>}, {pipeline_mode = #tpu.pipeline_mode<synchronous>, transform_indices = @transform_21, window_bounds = array<i64: 1, 32>}, {pipeline_mode = #tpu.pipeline_mode<synchronous>, transform_indices = @transform_22, window_bounds = array<i64: 32, 3>}, {pipeline_mode = #tpu.pipeline_mode<synchronous>, transform_indices = @transform_23, window_bounds = array<i64: 1, 3>}, {pipeline_mode = #tpu.pipeline_mode<synchronous>, transform_indices = @transform_24, window_bounds = array<i64: 2, 3>}]} {
    %c0 = arith.constant 0 : index
    %c0_0 = arith.constant 0 : index
    %0 = vector.load %arg1[%c0, %c0_0] : memref<16x32xf32, #tpu.memory_space<vmem>>, vector<16x32xf32>
    %c0_1 = arith.constant 0 : index
    %c0_2 = arith.constant 0 : index
    %1 = vector.load %arg3[%c0_1, %c0_2] : memref<1x32xf32, #tpu.memory_space<vmem>>, vector<1x32xf32>
    %c0_3 = arith.constant 0 : index
    %c0_4 = arith.constant 0 : index
    %2 = vector.load %arg4[%c0_3, %c0_4] : memref<1x32xf32, #tpu.memory_space<vmem>>, vector<1x32xf32>
    %cst = arith.constant dense<0.000000e+00> : vector<16xf32>
    %3 = vector.multi_reduction <add>, %0, %cst [1] : vector<16x32xf32> to vector<16xf32>
    %4 = vector.shape_cast %3 : vector<16xf32> to vector<16x1xf32>
    %cst_5 = arith.constant 3.200000e+01 : f32
    %5 = vector.broadcast %cst_5 : f32 to vector<16x1xf32>
    %6 = arith.divf %4, %5 : vector<16x1xf32>
    %7 = vector.broadcast %6 : vector<16x1xf32> to vector<16x32xf32>
    %8 = arith.subf %0, %7 : vector<16x32xf32>
    %9 = arith.mulf %8, %8 : vector<16x32xf32>
    %cst_6 = arith.constant dense<0.000000e+00> : vector<16xf32>
    %10 = vector.multi_reduction <add>, %9, %cst_6 [1] : vector<16x32xf32> to vector<16xf32>
    %11 = vector.shape_cast %10 : vector<16xf32> to vector<16x1xf32>
    %cst_7 = arith.constant 3.200000e+01 : f32
    %12 = vector.broadcast %cst_7 : f32 to vector<16x1xf32>
    %13 = arith.divf %11, %12 : vector<16x1xf32>
    %14 = vector.broadcast %6 : vector<16x1xf32> to vector<16x32xf32>
    %15 = arith.subf %0, %14 : vector<16x32xf32>
    %cst_8 = arith.constant 9.99999996E-13 : f32
    %16 = vector.broadcast %cst_8 : f32 to vector<16x1xf32>
    %17 = arith.addf %13, %16 : vector<16x1xf32>
    %18 = math.rsqrt %17 : vector<16x1xf32>
    %19 = vector.broadcast %18 : vector<16x1xf32> to vector<16x32xf32>
    %20 = arith.mulf %15, %19 : vector<16x32xf32>
    %21 = vector.broadcast %1 : vector<1x32xf32> to vector<16x32xf32>
    %22 = arith.mulf %20, %21 : vector<16x32xf32>
    %23 = vector.broadcast %2 : vector<1x32xf32> to vector<16x32xf32>
    %24 = arith.addf %22, %23 : vector<16x32xf32>
    %25 = vector.extract_strided_slice %24 {offsets = [0, 0], sizes = [8, 32], strides = [1, 1]} : vector<16x32xf32> to vector<8x32xf32>
    %26 = arith.truncf %25 : vector<8x32xf32> to vector<8x32xbf16>
    %c0_9 = arith.constant 0 : index
    %c0_10 = arith.constant 0 : index
    %c0_11 = arith.constant 0 : index
    %27 = vector.load %arg2[%c0_9, %c0_10, %c0_11] : memref<2x1x8xf32, #tpu.memory_space<vmem>>, vector<1x1x8xf32>
    %28 = vector.shape_cast %27 : vector<1x1x8xf32> to vector<1x8xf32>
    %cst_12 = arith.constant 0.000000e+00 : f32
    %29 = vector.broadcast %cst_12 : f32 to vector<8x32xf32>
    %c0_13 = arith.constant 0 : index
    %c0_14 = arith.constant 0 : index
    %c0_15 = arith.constant 0 : index
    %30 = vector.load %arg5[%c0_13, %c0_14, %c0_15] : memref<8x32x8xbf16, #tpu.memory_space<vmem>>, vector<1x32x8xbf16>
    %31 = vector.shape_cast %30 : vector<1x32x8xbf16> to vector<32x8xbf16>
    %cst_16 = arith.constant dense<0.000000e+00> : vector<8x8xf32>
    %32 = tpu.matmul %26, %31, %cst_16 {dimension_numbers = #tpu.dot_dimension_numbers<[1], [0], [0], [1], [0, 0, 1, 1], [], []>} : vector<8x32xbf16>, vector<32x8xbf16>, vector<8x8xf32> -> vector<8x8xf32>
    %c0_17 = arith.constant 0 : index
    %c0_18 = arith.constant 0 : index
    %c0_19 = arith.constant 0 : index
    %33 = vector.load %arg6[%c0_17, %c0_18, %c0_19] : memref<8x1x8xf32, #tpu.memory_space<vmem>>, vector<1x1x8xf32>
    %34 = vector.shape_cast %33 : vector<1x1x8xf32> to vector<1x8xf32>
    %35 = vector.broadcast %34 : vector<1x8xf32> to vector<8x8xf32>
    %36 = arith.addf %32, %35 : vector<8x8xf32>
    %c0_20 = arith.constant 0 : index
    %c0_21 = arith.constant 0 : index
    %c0_22 = arith.constant 0 : index
    %37 = vector.load %arg7[%c0_20, %c0_21, %c0_22] : memref<8x32x8xbf16, #tpu.memory_space<vmem>>, vector<1x32x8xbf16>
    %38 = vector.shape_cast %37 : vector<1x32x8xbf16> to vector<32x8xbf16>
    %cst_23 = arith.constant dense<0.000000e+00> : vector<8x8xf32>
    %39 = tpu.matmul %26, %38, %cst_23 {dimension_numbers = #tpu.dot_dimension_numbers<[1], [0], [0], [1], [0, 0, 1, 1], [], []>} : vector<8x32xbf16>, vector<32x8xbf16>, vector<8x8xf32> -> vector<8x8xf32>
    %c0_24 = arith.constant 0 : index
    %c0_25 = arith.constant 0 : index
    %c0_26 = arith.constant 0 : index
    %40 = vector.load %arg8[%c0_24, %c0_25, %c0_26] : memref<8x1x8xf32, #tpu.memory_space<vmem>>, vector<1x1x8xf32>
    %41 = vector.shape_cast %40 : vector<1x1x8xf32> to vector<1x8xf32>
    %42 = vector.broadcast %41 : vector<1x8xf32> to vector<8x8xf32>
    %43 = arith.addf %39, %42 : vector<8x8xf32>
    %c0_27 = arith.constant 0 : index
    %c0_28 = arith.constant 0 : index
    %c0_29 = arith.constant 0 : index
    %44 = vector.load %arg9[%c0_27, %c0_28, %c0_29] : memref<8x32x8xbf16, #tpu.memory_space<vmem>>, vector<1x32x8xbf16>
    %45 = vector.shape_cast %44 : vector<1x32x8xbf16> to vector<32x8xbf16>
    %cst_30 = arith.constant dense<0.000000e+00> : vector<8x8xf32>
    %46 = tpu.matmul %26, %45, %cst_30 {dimension_numbers = #tpu.dot_dimension_numbers<[1], [0], [0], [1], [0, 0, 1, 1], [], []>} : vector<8x32xbf16>, vector<32x8xbf16>, vector<8x8xf32> -> vector<8x8xf32>
    %c0_31 = arith.constant 0 : index
    %c0_32 = arith.constant 0 : index
    %c0_33 = arith.constant 0 : index
    %47 = vector.load %arg10[%c0_31, %c0_32, %c0_33] : memref<8x1x8xf32, #tpu.memory_space<vmem>>, vector<1x1x8xf32>
    %48 = vector.shape_cast %47 : vector<1x1x8xf32> to vector<1x8xf32>
    %49 = vector.broadcast %48 : vector<1x8xf32> to vector<8x8xf32>
    %50 = arith.addf %46, %49 : vector<8x8xf32>
    %51 = arith.truncf %36 : vector<8x8xf32> to vector<8x8xbf16>
    %52 = arith.truncf %43 : vector<8x8xf32> to vector<8x8xbf16>
    %cst_34 = arith.constant dense<0.000000e+00> : vector<8x8xf32>
    %53 = tpu.matmul %51, %52, %cst_34 {dimension_numbers = #tpu.dot_dimension_numbers<[1], [1], [0], [0], [0, 0, 1, 0], [], []>} : vector<8x8xbf16>, vector<8x8xbf16>, vector<8x8xf32> -> vector<8x8xf32>
    %cst_35 = arith.constant 0.353553385 : f32
    %54 = vector.broadcast %cst_35 : f32 to vector<8x8xf32>
    %55 = arith.mulf %53, %54 : vector<8x8xf32>
    %56 = vector.broadcast %28 : vector<1x8xf32> to vector<8x8xf32>
    %57 = arith.addf %55, %56 : vector<8x8xf32>
    %cst_36 = arith.constant dense<0xFF800000> : vector<8xf32>
    %58 = vector.multi_reduction <maximumf>, %57, %cst_36 [1] : vector<8x8xf32> to vector<8xf32>
    %59 = vector.shape_cast %58 : vector<8xf32> to vector<8x1xf32>
    %60 = vector.broadcast %59 : vector<8x1xf32> to vector<8x8xf32>
    %61 = arith.subf %57, %60 : vector<8x8xf32>
    %62 = math.exp %61 : vector<8x8xf32>
    %cst_37 = arith.constant dense<0.000000e+00> : vector<8xf32>
    %63 = vector.multi_reduction <add>, %62, %cst_37 [1] : vector<8x8xf32> to vector<8xf32>
    %64 = vector.shape_cast %63 : vector<8xf32> to vector<8x1xf32>
    %65 = tpu.reciprocal %64 {approx = true} : vector<8x1xf32> -> vector<8x1xf32>
    %66 = vector.broadcast %65 : vector<8x1xf32> to vector<8x8xf32>
    %67 = arith.mulf %62, %66 : vector<8x8xf32>
    %68 = arith.truncf %67 : vector<8x8xf32> to vector<8x8xbf16>
    %69 = arith.truncf %50 : vector<8x8xf32> to vector<8x8xbf16>
    %cst_38 = arith.constant dense<0.000000e+00> : vector<8x8xf32>
    %70 = tpu.matmul %68, %69, %cst_38 {dimension_numbers = #tpu.dot_dimension_numbers<[1], [0], [0], [1], [0, 0, 1, 1], [], []>} : vector<8x8xbf16>, vector<8x8xbf16>, vector<8x8xf32> -> vector<8x8xf32>
    %71 = arith.truncf %70 : vector<8x8xf32> to vector<8x8xbf16>
    %c0_39 = arith.constant 0 : index
    %c0_40 = arith.constant 0 : index
    %c0_41 = arith.constant 0 : index
    %72 = vector.load %arg11[%c0_39, %c0_40, %c0_41] : memref<8x8x32xbf16, #tpu.memory_space<vmem>>, vector<1x8x32xbf16>
    %73 = vector.shape_cast %72 : vector<1x8x32xbf16> to vector<8x32xbf16>
    %cst_42 = arith.constant dense<0.000000e+00> : vector<8x32xf32>
    %74 = tpu.matmul %71, %73, %cst_42 {dimension_numbers = #tpu.dot_dimension_numbers<[1], [0], [0], [1], [0, 0, 1, 1], [], []>} : vector<8x8xbf16>, vector<8x32xbf16>, vector<8x32xf32> -> vector<8x32xf32>
    %75 = arith.addf %29, %74 : vector<8x32xf32>
    %c1 = arith.constant 1 : index
    %c0_43 = arith.constant 0 : index
    %c0_44 = arith.constant 0 : index
    %76 = vector.load %arg5[%c1, %c0_43, %c0_44] : memref<8x32x8xbf16, #tpu.memory_space<vmem>>, vector<1x32x8xbf16>
    %77 = vector.shape_cast %76 : vector<1x32x8xbf16> to vector<32x8xbf16>
    %cst_45 = arith.constant dense<0.000000e+00> : vector<8x8xf32>
    %78 = tpu.matmul %26, %77, %cst_45 {dimension_numbers = #tpu.dot_dimension_numbers<[1], [0], [0], [1], [0, 0, 1, 1], [], []>} : vector<8x32xbf16>, vector<32x8xbf16>, vector<8x8xf32> -> vector<8x8xf32>
    %c1_46 = arith.constant 1 : index
    %c0_47 = arith.constant 0 : index
    %c0_48 = arith.constant 0 : index
    %79 = vector.load %arg6[%c1_46, %c0_47, %c0_48] : memref<8x1x8xf32, #tpu.memory_space<vmem>>, vector<1x1x8xf32>
    %80 = vector.shape_cast %79 : vector<1x1x8xf32> to vector<1x8xf32>
    %81 = vector.broadcast %80 : vector<1x8xf32> to vector<8x8xf32>
    %82 = arith.addf %78, %81 : vector<8x8xf32>
    %c1_49 = arith.constant 1 : index
    %c0_50 = arith.constant 0 : index
    %c0_51 = arith.constant 0 : index
    %83 = vector.load %arg7[%c1_49, %c0_50, %c0_51] : memref<8x32x8xbf16, #tpu.memory_space<vmem>>, vector<1x32x8xbf16>
    %84 = vector.shape_cast %83 : vector<1x32x8xbf16> to vector<32x8xbf16>
    %cst_52 = arith.constant dense<0.000000e+00> : vector<8x8xf32>
    %85 = tpu.matmul %26, %84, %cst_52 {dimension_numbers = #tpu.dot_dimension_numbers<[1], [0], [0], [1], [0, 0, 1, 1], [], []>} : vector<8x32xbf16>, vector<32x8xbf16>, vector<8x8xf32> -> vector<8x8xf32>
    %c1_53 = arith.constant 1 : index
    %c0_54 = arith.constant 0 : index
    %c0_55 = arith.constant 0 : index
    %86 = vector.load %arg8[%c1_53, %c0_54, %c0_55] : memref<8x1x8xf32, #tpu.memory_space<vmem>>, vector<1x1x8xf32>
    %87 = vector.shape_cast %86 : vector<1x1x8xf32> to vector<1x8xf32>
    %88 = vector.broadcast %87 : vector<1x8xf32> to vector<8x8xf32>
    %89 = arith.addf %85, %88 : vector<8x8xf32>
    %c1_56 = arith.constant 1 : index
    %c0_57 = arith.constant 0 : index
    %c0_58 = arith.constant 0 : index
    %90 = vector.load %arg9[%c1_56, %c0_57, %c0_58] : memref<8x32x8xbf16, #tpu.memory_space<vmem>>, vector<1x32x8xbf16>
    %91 = vector.shape_cast %90 : vector<1x32x8xbf16> to vector<32x8xbf16>
    %cst_59 = arith.constant dense<0.000000e+00> : vector<8x8xf32>
    %92 = tpu.matmul %26, %91, %cst_59 {dimension_numbers = #tpu.dot_dimension_numbers<[1], [0], [0], [1], [0, 0, 1, 1], [], []>} : vector<8x32xbf16>, vector<32x8xbf16>, vector<8x8xf32> -> vector<8x8xf32>
    %c1_60 = arith.constant 1 : index
    %c0_61 = arith.constant 0 : index
    %c0_62 = arith.constant 0 : index
    %93 = vector.load %arg10[%c1_60, %c0_61, %c0_62] : memref<8x1x8xf32, #tpu.memory_space<vmem>>, vector<1x1x8xf32>
    %94 = vector.shape_cast %93 : vector<1x1x8xf32> to vector<1x8xf32>
    %95 = vector.broadcast %94 : vector<1x8xf32> to vector<8x8xf32>
    %96 = arith.addf %92, %95 : vector<8x8xf32>
    %97 = arith.truncf %82 : vector<8x8xf32> to vector<8x8xbf16>
    %98 = arith.truncf %89 : vector<8x8xf32> to vector<8x8xbf16>
    %cst_63 = arith.constant dense<0.000000e+00> : vector<8x8xf32>
    %99 = tpu.matmul %97, %98, %cst_63 {dimension_numbers = #tpu.dot_dimension_numbers<[1], [1], [0], [0], [0, 0, 1, 0], [], []>} : vector<8x8xbf16>, vector<8x8xbf16>, vector<8x8xf32> -> vector<8x8xf32>
    %cst_64 = arith.constant 0.353553385 : f32
    %100 = vector.broadcast %cst_64 : f32 to vector<8x8xf32>
    %101 = arith.mulf %99, %100 : vector<8x8xf32>
    %102 = vector.broadcast %28 : vector<1x8xf32> to vector<8x8xf32>
    %103 = arith.addf %101, %102 : vector<8x8xf32>
    %cst_65 = arith.constant dense<0xFF800000> : vector<8xf32>
    %104 = vector.multi_reduction <maximumf>, %103, %cst_65 [1] : vector<8x8xf32> to vector<8xf32>
    %105 = vector.shape_cast %104 : vector<8xf32> to vector<8x1xf32>
    %106 = vector.broadcast %105 : vector<8x1xf32> to vector<8x8xf32>
    %107 = arith.subf %103, %106 : vector<8x8xf32>
    %108 = math.exp %107 : vector<8x8xf32>
    %cst_66 = arith.constant dense<0.000000e+00> : vector<8xf32>
    %109 = vector.multi_reduction <add>, %108, %cst_66 [1] : vector<8x8xf32> to vector<8xf32>
    %110 = vector.shape_cast %109 : vector<8xf32> to vector<8x1xf32>
    %111 = tpu.reciprocal %110 {approx = true} : vector<8x1xf32> -> vector<8x1xf32>
    %112 = vector.broadcast %111 : vector<8x1xf32> to vector<8x8xf32>
    %113 = arith.mulf %108, %112 : vector<8x8xf32>
    %114 = arith.truncf %113 : vector<8x8xf32> to vector<8x8xbf16>
    %115 = arith.truncf %96 : vector<8x8xf32> to vector<8x8xbf16>
    %cst_67 = arith.constant dense<0.000000e+00> : vector<8x8xf32>
    %116 = tpu.matmul %114, %115, %cst_67 {dimension_numbers = #tpu.dot_dimension_numbers<[1], [0], [0], [1], [0, 0, 1, 1], [], []>} : vector<8x8xbf16>, vector<8x8xbf16>, vector<8x8xf32> -> vector<8x8xf32>
    %117 = arith.truncf %116 : vector<8x8xf32> to vector<8x8xbf16>
    %c1_68 = arith.constant 1 : index
    %c0_69 = arith.constant 0 : index
    %c0_70 = arith.constant 0 : index
    %118 = vector.load %arg11[%c1_68, %c0_69, %c0_70] : memref<8x8x32xbf16, #tpu.memory_space<vmem>>, vector<1x8x32xbf16>
    %119 = vector.shape_cast %118 : vector<1x8x32xbf16> to vector<8x32xbf16>
    %cst_71 = arith.constant dense<0.000000e+00> : vector<8x32xf32>
    %120 = tpu.matmul %117, %119, %cst_71 {dimension_numbers = #tpu.dot_dimension_numbers<[1], [0], [0], [1], [0, 0, 1, 1], [], []>} : vector<8x8xbf16>, vector<8x32xbf16>, vector<8x32xf32> -> vector<8x32xf32>
    %121 = arith.addf %75, %120 : vector<8x32xf32>
    %c2 = arith.constant 2 : index
    %c0_72 = arith.constant 0 : index
    %c0_73 = arith.constant 0 : index
    %122 = vector.load %arg5[%c2, %c0_72, %c0_73] : memref<8x32x8xbf16, #tpu.memory_space<vmem>>, vector<1x32x8xbf16>
    %123 = vector.shape_cast %122 : vector<1x32x8xbf16> to vector<32x8xbf16>
    %cst_74 = arith.constant dense<0.000000e+00> : vector<8x8xf32>
    %124 = tpu.matmul %26, %123, %cst_74 {dimension_numbers = #tpu.dot_dimension_numbers<[1], [0], [0], [1], [0, 0, 1, 1], [], []>} : vector<8x32xbf16>, vector<32x8xbf16>, vector<8x8xf32> -> vector<8x8xf32>
    %c2_75 = arith.constant 2 : index
    %c0_76 = arith.constant 0 : index
    %c0_77 = arith.constant 0 : index
    %125 = vector.load %arg6[%c2_75, %c0_76, %c0_77] : memref<8x1x8xf32, #tpu.memory_space<vmem>>, vector<1x1x8xf32>
    %126 = vector.shape_cast %125 : vector<1x1x8xf32> to vector<1x8xf32>
    %127 = vector.broadcast %126 : vector<1x8xf32> to vector<8x8xf32>
    %128 = arith.addf %124, %127 : vector<8x8xf32>
    %c2_78 = arith.constant 2 : index
    %c0_79 = arith.constant 0 : index
    %c0_80 = arith.constant 0 : index
    %129 = vector.load %arg7[%c2_78, %c0_79, %c0_80] : memref<8x32x8xbf16, #tpu.memory_space<vmem>>, vector<1x32x8xbf16>
    %130 = vector.shape_cast %129 : vector<1x32x8xbf16> to vector<32x8xbf16>
    %cst_81 = arith.constant dense<0.000000e+00> : vector<8x8xf32>
    %131 = tpu.matmul %26, %130, %cst_81 {dimension_numbers = #tpu.dot_dimension_numbers<[1], [0], [0], [1], [0, 0, 1, 1], [], []>} : vector<8x32xbf16>, vector<32x8xbf16>, vector<8x8xf32> -> vector<8x8xf32>
    %c2_82 = arith.constant 2 : index
    %c0_83 = arith.constant 0 : index
    %c0_84 = arith.constant 0 : index
    %132 = vector.load %arg8[%c2_82, %c0_83, %c0_84] : memref<8x1x8xf32, #tpu.memory_space<vmem>>, vector<1x1x8xf32>
    %133 = vector.shape_cast %132 : vector<1x1x8xf32> to vector<1x8xf32>
    %134 = vector.broadcast %133 : vector<1x8xf32> to vector<8x8xf32>
    %135 = arith.addf %131, %134 : vector<8x8xf32>
    %c2_85 = arith.constant 2 : index
    %c0_86 = arith.constant 0 : index
    %c0_87 = arith.constant 0 : index
    %136 = vector.load %arg9[%c2_85, %c0_86, %c0_87] : memref<8x32x8xbf16, #tpu.memory_space<vmem>>, vector<1x32x8xbf16>
    %137 = vector.shape_cast %136 : vector<1x32x8xbf16> to vector<32x8xbf16>
    %cst_88 = arith.constant dense<0.000000e+00> : vector<8x8xf32>
    %138 = tpu.matmul %26, %137, %cst_88 {dimension_numbers = #tpu.dot_dimension_numbers<[1], [0], [0], [1], [0, 0, 1, 1], [], []>} : vector<8x32xbf16>, vector<32x8xbf16>, vector<8x8xf32> -> vector<8x8xf32>
    %c2_89 = arith.constant 2 : index
    %c0_90 = arith.constant 0 : index
    %c0_91 = arith.constant 0 : index
    %139 = vector.load %arg10[%c2_89, %c0_90, %c0_91] : memref<8x1x8xf32, #tpu.memory_space<vmem>>, vector<1x1x8xf32>
    %140 = vector.shape_cast %139 : vector<1x1x8xf32> to vector<1x8xf32>
    %141 = vector.broadcast %140 : vector<1x8xf32> to vector<8x8xf32>
    %142 = arith.addf %138, %141 : vector<8x8xf32>
    %143 = arith.truncf %128 : vector<8x8xf32> to vector<8x8xbf16>
    %144 = arith.truncf %135 : vector<8x8xf32> to vector<8x8xbf16>
    %cst_92 = arith.constant dense<0.000000e+00> : vector<8x8xf32>
    %145 = tpu.matmul %143, %144, %cst_92 {dimension_numbers = #tpu.dot_dimension_numbers<[1], [1], [0], [0], [0, 0, 1, 0], [], []>} : vector<8x8xbf16>, vector<8x8xbf16>, vector<8x8xf32> -> vector<8x8xf32>
    %cst_93 = arith.constant 0.353553385 : f32
    %146 = vector.broadcast %cst_93 : f32 to vector<8x8xf32>
    %147 = arith.mulf %145, %146 : vector<8x8xf32>
    %148 = vector.broadcast %28 : vector<1x8xf32> to vector<8x8xf32>
    %149 = arith.addf %147, %148 : vector<8x8xf32>
    %cst_94 = arith.constant dense<0xFF800000> : vector<8xf32>
    %150 = vector.multi_reduction <maximumf>, %149, %cst_94 [1] : vector<8x8xf32> to vector<8xf32>
    %151 = vector.shape_cast %150 : vector<8xf32> to vector<8x1xf32>
    %152 = vector.broadcast %151 : vector<8x1xf32> to vector<8x8xf32>
    %153 = arith.subf %149, %152 : vector<8x8xf32>
    %154 = math.exp %153 : vector<8x8xf32>
    %cst_95 = arith.constant dense<0.000000e+00> : vector<8xf32>
    %155 = vector.multi_reduction <add>, %154, %cst_95 [1] : vector<8x8xf32> to vector<8xf32>
    %156 = vector.shape_cast %155 : vector<8xf32> to vector<8x1xf32>
    %157 = tpu.reciprocal %156 {approx = true} : vector<8x1xf32> -> vector<8x1xf32>
    %158 = vector.broadcast %157 : vector<8x1xf32> to vector<8x8xf32>
    %159 = arith.mulf %154, %158 : vector<8x8xf32>
    %160 = arith.truncf %159 : vector<8x8xf32> to vector<8x8xbf16>
    %161 = arith.truncf %142 : vector<8x8xf32> to vector<8x8xbf16>
    %cst_96 = arith.constant dense<0.000000e+00> : vector<8x8xf32>
    %162 = tpu.matmul %160, %161, %cst_96 {dimension_numbers = #tpu.dot_dimension_numbers<[1], [0], [0], [1], [0, 0, 1, 1], [], []>} : vector<8x8xbf16>, vector<8x8xbf16>, vector<8x8xf32> -> vector<8x8xf32>
    %163 = arith.truncf %162 : vector<8x8xf32> to vector<8x8xbf16>
    %c2_97 = arith.constant 2 : index
    %c0_98 = arith.constant 0 : index
    %c0_99 = arith.constant 0 : index
    %164 = vector.load %arg11[%c2_97, %c0_98, %c0_99] : memref<8x8x32xbf16, #tpu.memory_space<vmem>>, vector<1x8x32xbf16>
    %165 = vector.shape_cast %164 : vector<1x8x32xbf16> to vector<8x32xbf16>
    %cst_100 = arith.constant dense<0.000000e+00> : vector<8x32xf32>
    %166 = tpu.matmul %163, %165, %cst_100 {dimension_numbers = #tpu.dot_dimension_numbers<[1], [0], [0], [1], [0, 0, 1, 1], [], []>} : vector<8x8xbf16>, vector<8x32xbf16>, vector<8x32xf32> -> vector<8x32xf32>
    %167 = arith.addf %121, %166 : vector<8x32xf32>
    %c3 = arith.constant 3 : index
    %c0_101 = arith.constant 0 : index
    %c0_102 = arith.constant 0 : index
    %168 = vector.load %arg5[%c3, %c0_101, %c0_102] : memref<8x32x8xbf16, #tpu.memory_space<vmem>>, vector<1x32x8xbf16>
    %169 = vector.shape_cast %168 : vector<1x32x8xbf16> to vector<32x8xbf16>
    %cst_103 = arith.constant dense<0.000000e+00> : vector<8x8xf32>
    %170 = tpu.matmul %26, %169, %cst_103 {dimension_numbers = #tpu.dot_dimension_numbers<[1], [0], [0], [1], [0, 0, 1, 1], [], []>} : vector<8x32xbf16>, vector<32x8xbf16>, vector<8x8xf32> -> vector<8x8xf32>
    %c3_104 = arith.constant 3 : index
    %c0_105 = arith.constant 0 : index
    %c0_106 = arith.constant 0 : index
    %171 = vector.load %arg6[%c3_104, %c0_105, %c0_106] : memref<8x1x8xf32, #tpu.memory_space<vmem>>, vector<1x1x8xf32>
    %172 = vector.shape_cast %171 : vector<1x1x8xf32> to vector<1x8xf32>
    %173 = vector.broadcast %172 : vector<1x8xf32> to vector<8x8xf32>
    %174 = arith.addf %170, %173 : vector<8x8xf32>
    %c3_107 = arith.constant 3 : index
    %c0_108 = arith.constant 0 : index
    %c0_109 = arith.constant 0 : index
    %175 = vector.load %arg7[%c3_107, %c0_108, %c0_109] : memref<8x32x8xbf16, #tpu.memory_space<vmem>>, vector<1x32x8xbf16>
    %176 = vector.shape_cast %175 : vector<1x32x8xbf16> to vector<32x8xbf16>
    %cst_110 = arith.constant dense<0.000000e+00> : vector<8x8xf32>
    %177 = tpu.matmul %26, %176, %cst_110 {dimension_numbers = #tpu.dot_dimension_numbers<[1], [0], [0], [1], [0, 0, 1, 1], [], []>} : vector<8x32xbf16>, vector<32x8xbf16>, vector<8x8xf32> -> vector<8x8xf32>
    %c3_111 = arith.constant 3 : index
    %c0_112 = arith.constant 0 : index
    %c0_113 = arith.constant 0 : index
    %178 = vector.load %arg8[%c3_111, %c0_112, %c0_113] : memref<8x1x8xf32, #tpu.memory_space<vmem>>, vector<1x1x8xf32>
    %179 = vector.shape_cast %178 : vector<1x1x8xf32> to vector<1x8xf32>
    %180 = vector.broadcast %179 : vector<1x8xf32> to vector<8x8xf32>
    %181 = arith.addf %177, %180 : vector<8x8xf32>
    %c3_114 = arith.constant 3 : index
    %c0_115 = arith.constant 0 : index
    %c0_116 = arith.constant 0 : index
    %182 = vector.load %arg9[%c3_114, %c0_115, %c0_116] : memref<8x32x8xbf16, #tpu.memory_space<vmem>>, vector<1x32x8xbf16>
    %183 = vector.shape_cast %182 : vector<1x32x8xbf16> to vector<32x8xbf16>
    %cst_117 = arith.constant dense<0.000000e+00> : vector<8x8xf32>
    %184 = tpu.matmul %26, %183, %cst_117 {dimension_numbers = #tpu.dot_dimension_numbers<[1], [0], [0], [1], [0, 0, 1, 1], [], []>} : vector<8x32xbf16>, vector<32x8xbf16>, vector<8x8xf32> -> vector<8x8xf32>
    %c3_118 = arith.constant 3 : index
    %c0_119 = arith.constant 0 : index
    %c0_120 = arith.constant 0 : index
    %185 = vector.load %arg10[%c3_118, %c0_119, %c0_120] : memref<8x1x8xf32, #tpu.memory_space<vmem>>, vector<1x1x8xf32>
    %186 = vector.shape_cast %185 : vector<1x1x8xf32> to vector<1x8xf32>
    %187 = vector.broadcast %186 : vector<1x8xf32> to vector<8x8xf32>
    %188 = arith.addf %184, %187 : vector<8x8xf32>
    %189 = arith.truncf %174 : vector<8x8xf32> to vector<8x8xbf16>
    %190 = arith.truncf %181 : vector<8x8xf32> to vector<8x8xbf16>
    %cst_121 = arith.constant dense<0.000000e+00> : vector<8x8xf32>
    %191 = tpu.matmul %189, %190, %cst_121 {dimension_numbers = #tpu.dot_dimension_numbers<[1], [1], [0], [0], [0, 0, 1, 0], [], []>} : vector<8x8xbf16>, vector<8x8xbf16>, vector<8x8xf32> -> vector<8x8xf32>
    %cst_122 = arith.constant 0.353553385 : f32
    %192 = vector.broadcast %cst_122 : f32 to vector<8x8xf32>
    %193 = arith.mulf %191, %192 : vector<8x8xf32>
    %194 = vector.broadcast %28 : vector<1x8xf32> to vector<8x8xf32>
    %195 = arith.addf %193, %194 : vector<8x8xf32>
    %cst_123 = arith.constant dense<0xFF800000> : vector<8xf32>
    %196 = vector.multi_reduction <maximumf>, %195, %cst_123 [1] : vector<8x8xf32> to vector<8xf32>
    %197 = vector.shape_cast %196 : vector<8xf32> to vector<8x1xf32>
    %198 = vector.broadcast %197 : vector<8x1xf32> to vector<8x8xf32>
    %199 = arith.subf %195, %198 : vector<8x8xf32>
    %200 = math.exp %199 : vector<8x8xf32>
    %cst_124 = arith.constant dense<0.000000e+00> : vector<8xf32>
    %201 = vector.multi_reduction <add>, %200, %cst_124 [1] : vector<8x8xf32> to vector<8xf32>
    %202 = vector.shape_cast %201 : vector<8xf32> to vector<8x1xf32>
    %203 = tpu.reciprocal %202 {approx = true} : vector<8x1xf32> -> vector<8x1xf32>
    %204 = vector.broadcast %203 : vector<8x1xf32> to vector<8x8xf32>
    %205 = arith.mulf %200, %204 : vector<8x8xf32>
    %206 = arith.truncf %205 : vector<8x8xf32> to vector<8x8xbf16>
    %207 = arith.truncf %188 : vector<8x8xf32> to vector<8x8xbf16>
    %cst_125 = arith.constant dense<0.000000e+00> : vector<8x8xf32>
    %208 = tpu.matmul %206, %207, %cst_125 {dimension_numbers = #tpu.dot_dimension_numbers<[1], [0], [0], [1], [0, 0, 1, 1], [], []>} : vector<8x8xbf16>, vector<8x8xbf16>, vector<8x8xf32> -> vector<8x8xf32>
    %209 = arith.truncf %208 : vector<8x8xf32> to vector<8x8xbf16>
    %c3_126 = arith.constant 3 : index
    %c0_127 = arith.constant 0 : index
    %c0_128 = arith.constant 0 : index
    %210 = vector.load %arg11[%c3_126, %c0_127, %c0_128] : memref<8x8x32xbf16, #tpu.memory_space<vmem>>, vector<1x8x32xbf16>
    %211 = vector.shape_cast %210 : vector<1x8x32xbf16> to vector<8x32xbf16>
    %cst_129 = arith.constant dense<0.000000e+00> : vector<8x32xf32>
    %212 = tpu.matmul %209, %211, %cst_129 {dimension_numbers = #tpu.dot_dimension_numbers<[1], [0], [0], [1], [0, 0, 1, 1], [], []>} : vector<8x8xbf16>, vector<8x32xbf16>, vector<8x32xf32> -> vector<8x32xf32>
    %213 = arith.addf %167, %212 : vector<8x32xf32>
    %c0_130 = arith.constant 0 : index
    %c0_131 = arith.constant 0 : index
    %214 = vector.load %arg26[%c0_130, %c0_131] : memref<16x32xf32, #tpu.memory_space<vmem>>, vector<8x32xf32>
    tpu.vector_store %arg26[%c0_130, %c0_131], %213 {strides = array<i32>} : memref<16x32xf32, #tpu.memory_space<vmem>>, vector<8x32xf32>,
    %215 = vector.extract_strided_slice %24 {offsets = [8, 0], sizes = [8, 32], strides = [1, 1]} : vector<16x32xf32> to vector<8x32xf32>
    %216 = arith.truncf %215 : vector<8x32xf32> to vector<8x32xbf16>
    %c1_132 = arith.constant 1 : index
    %c0_133 = arith.constant 0 : index
    %c0_134 = arith.constant 0 : index
    %217 = vector.load %arg2[%c1_132, %c0_133, %c0_134] : memref<2x1x8xf32, #tpu.memory_space<vmem>>, vector<1x1x8xf32>
    %218 = vector.shape_cast %217 : vector<1x1x8xf32> to vector<1x8xf32>
    %cst_135 = arith.constant 0.000000e+00 : f32
    %219 = vector.broadcast %cst_135 : f32 to vector<8x32xf32>
    %c0_136 = arith.constant 0 : index
    %c0_137 = arith.constant 0 : index
    %c0_138 = arith.constant 0 : index
    %220 = vector.load %arg5[%c0_136, %c0_137, %c0_138] : memref<8x32x8xbf16, #tpu.memory_space<vmem>>, vector<1x32x8xbf16>
    %221 = vector.shape_cast %220 : vector<1x32x8xbf16> to vector<32x8xbf16>
    %cst_139 = arith.constant dense<0.000000e+00> : vector<8x8xf32>
    %222 = tpu.matmul %216, %221, %cst_139 {dimension_numbers = #tpu.dot_dimension_numbers<[1], [0], [0], [1], [0, 0, 1, 1], [], []>} : vector<8x32xbf16>, vector<32x8xbf16>, vector<8x8xf32> -> vector<8x8xf32>
    %c0_140 = arith.constant 0 : index
    %c0_141 = arith.constant 0 : index
    %c0_142 = arith.constant 0 : index
    %223 = vector.load %arg6[%c0_140, %c0_141, %c0_142] : memref<8x1x8xf32, #tpu.memory_space<vmem>>, vector<1x1x8xf32>
    %224 = vector.shape_cast %223 : vector<1x1x8xf32> to vector<1x8xf32>
    %225 = vector.broadcast %224 : vector<1x8xf32> to vector<8x8xf32>
    %226 = arith.addf %222, %225 : vector<8x8xf32>
    %c0_143 = arith.constant 0 : index
    %c0_144 = arith.constant 0 : index
    %c0_145 = arith.constant 0 : index
    %227 = vector.load %arg7[%c0_143, %c0_144, %c0_145] : memref<8x32x8xbf16, #tpu.memory_space<vmem>>, vector<1x32x8xbf16>
    %228 = vector.shape_cast %227 : vector<1x32x8xbf16> to vector<32x8xbf16>
    %cst_146 = arith.constant dense<0.000000e+00> : vector<8x8xf32>
    %229 = tpu.matmul %216, %228, %cst_146 {dimension_numbers = #tpu.dot_dimension_numbers<[1], [0], [0], [1], [0, 0, 1, 1], [], []>} : vector<8x32xbf16>, vector<32x8xbf16>, vector<8x8xf32> -> vector<8x8xf32>
    %c0_147 = arith.constant 0 : index
    %c0_148 = arith.constant 0 : index
    %c0_149 = arith.constant 0 : index
    %230 = vector.load %arg8[%c0_147, %c0_148, %c0_149] : memref<8x1x8xf32, #tpu.memory_space<vmem>>, vector<1x1x8xf32>
    %231 = vector.shape_cast %230 : vector<1x1x8xf32> to vector<1x8xf32>
    %232 = vector.broadcast %231 : vector<1x8xf32> to vector<8x8xf32>
    %233 = arith.addf %229, %232 : vector<8x8xf32>
    %c0_150 = arith.constant 0 : index
    %c0_151 = arith.constant 0 : index
    %c0_152 = arith.constant 0 : index
    %234 = vector.load %arg9[%c0_150, %c0_151, %c0_152] : memref<8x32x8xbf16, #tpu.memory_space<vmem>>, vector<1x32x8xbf16>
    %235 = vector.shape_cast %234 : vector<1x32x8xbf16> to vector<32x8xbf16>
    %cst_153 = arith.constant dense<0.000000e+00> : vector<8x8xf32>
    %236 = tpu.matmul %216, %235, %cst_153 {dimension_numbers = #tpu.dot_dimension_numbers<[1], [0], [0], [1], [0, 0, 1, 1], [], []>} : vector<8x32xbf16>, vector<32x8xbf16>, vector<8x8xf32> -> vector<8x8xf32>
    %c0_154 = arith.constant 0 : index
    %c0_155 = arith.constant 0 : index
    %c0_156 = arith.constant 0 : index
    %237 = vector.load %arg10[%c0_154, %c0_155, %c0_156] : memref<8x1x8xf32, #tpu.memory_space<vmem>>, vector<1x1x8xf32>
    %238 = vector.shape_cast %237 : vector<1x1x8xf32> to vector<1x8xf32>
    %239 = vector.broadcast %238 : vector<1x8xf32> to vector<8x8xf32>
    %240 = arith.addf %236, %239 : vector<8x8xf32>
    %241 = arith.truncf %226 : vector<8x8xf32> to vector<8x8xbf16>
    %242 = arith.truncf %233 : vector<8x8xf32> to vector<8x8xbf16>
    %cst_157 = arith.constant dense<0.000000e+00> : vector<8x8xf32>
    %243 = tpu.matmul %241, %242, %cst_157 {dimension_numbers = #tpu.dot_dimension_numbers<[1], [1], [0], [0], [0, 0, 1, 0], [], []>} : vector<8x8xbf16>, vector<8x8xbf16>, vector<8x8xf32> -> vector<8x8xf32>
    %cst_158 = arith.constant 0.353553385 : f32
    %244 = vector.broadcast %cst_158 : f32 to vector<8x8xf32>
    %245 = arith.mulf %243, %244 : vector<8x8xf32>
    %246 = vector.broadcast %218 : vector<1x8xf32> to vector<8x8xf32>
    %247 = arith.addf %245, %246 : vector<8x8xf32>
    %cst_159 = arith.constant dense<0xFF800000> : vector<8xf32>
    %248 = vector.multi_reduction <maximumf>, %247, %cst_159 [1] : vector<8x8xf32> to vector<8xf32>
    %249 = vector.shape_cast %248 : vector<8xf32> to vector<8x1xf32>
    %250 = vector.broadcast %249 : vector<8x1xf32> to vector<8x8xf32>
    %251 = arith.subf %247, %250 : vector<8x8xf32>
    %252 = math.exp %251 : vector<8x8xf32>
    %cst_160 = arith.constant dense<0.000000e+00> : vector<8xf32>
    %253 = vector.multi_reduction <add>, %252, %cst_160 [1] : vector<8x8xf32> to vector<8xf32>
    %254 = vector.shape_cast %253 : vector<8xf32> to vector<8x1xf32>
    %255 = tpu.reciprocal %254 {approx = true} : vector<8x1xf32> -> vector<8x1xf32>
    %256 = vector.broadcast %255 : vector<8x1xf32> to vector<8x8xf32>
    %257 = arith.mulf %252, %256 : vector<8x8xf32>
    %258 = arith.truncf %257 : vector<8x8xf32> to vector<8x8xbf16>
    %259 = arith.truncf %240 : vector<8x8xf32> to vector<8x8xbf16>
    %cst_161 = arith.constant dense<0.000000e+00> : vector<8x8xf32>
    %260 = tpu.matmul %258, %259, %cst_161 {dimension_numbers = #tpu.dot_dimension_numbers<[1], [0], [0], [1], [0, 0, 1, 1], [], []>} : vector<8x8xbf16>, vector<8x8xbf16>, vector<8x8xf32> -> vector<8x8xf32>
    %261 = arith.truncf %260 : vector<8x8xf32> to vector<8x8xbf16>
    %c0_162 = arith.constant 0 : index
    %c0_163 = arith.constant 0 : index
    %c0_164 = arith.constant 0 : index
    %262 = vector.load %arg11[%c0_162, %c0_163, %c0_164] : memref<8x8x32xbf16, #tpu.memory_space<vmem>>, vector<1x8x32xbf16>
    %263 = vector.shape_cast %262 : vector<1x8x32xbf16> to vector<8x32xbf16>
    %cst_165 = arith.constant dense<0.000000e+00> : vector<8x32xf32>
    %264 = tpu.matmul %261, %263, %cst_165 {dimension_numbers = #tpu.dot_dimension_numbers<[1], [0], [0], [1], [0, 0, 1, 1], [], []>} : vector<8x8xbf16>, vector<8x32xbf16>, vector<8x32xf32> -> vector<8x32xf32>
    %265 = arith.addf %219, %264 : vector<8x32xf32>
    %c1_166 = arith.constant 1 : index
    %c0_167 = arith.constant 0 : index
    %c0_168 = arith.constant 0 : index
    %266 = vector.load %arg5[%c1_166, %c0_167, %c0_168] : memref<8x32x8xbf16, #tpu.memory_space<vmem>>, vector<1x32x8xbf16>
    %267 = vector.shape_cast %266 : vector<1x32x8xbf16> to vector<32x8xbf16>
    %cst_169 = arith.constant dense<0.000000e+00> : vector<8x8xf32>
    %268 = tpu.matmul %216, %267, %cst_169 {dimension_numbers = #tpu.dot_dimension_numbers<[1], [0], [0], [1], [0, 0, 1, 1], [], []>} : vector<8x32xbf16>, vector<32x8xbf16>, vector<8x8xf32> -> vector<8x8xf32>
    %c1_170 = arith.constant 1 : index
    %c0_171 = arith.constant 0 : index
    %c0_172 = arith.constant 0 : index
    %269 = vector.load %arg6[%c1_170, %c0_171, %c0_172] : memref<8x1x8xf32, #tpu.memory_space<vmem>>, vector<1x1x8xf32>
    %270 = vector.shape_cast %269 : vector<1x1x8xf32> to vector<1x8xf32>
    %271 = vector.broadcast %270 : vector<1x8xf32> to vector<8x8xf32>
    %272 = arith.addf %268, %271 : vector<8x8xf32>
    %c1_173 = arith.constant 1 : index
    %c0_174 = arith.constant 0 : index
    %c0_175 = arith.constant 0 : index
    %273 = vector.load %arg7[%c1_173, %c0_174, %c0_175] : memref<8x32x8xbf16, #tpu.memory_space<vmem>>, vector<1x32x8xbf16>
    %274 = vector.shape_cast %273 : vector<1x32x8xbf16> to vector<32x8xbf16>
    %cst_176 = arith.constant dense<0.000000e+00> : vector<8x8xf32>
    %275 = tpu.matmul %216, %274, %cst_176 {dimension_numbers = #tpu.dot_dimension_numbers<[1], [0], [0], [1], [0, 0, 1, 1], [], []>} : vector<8x32xbf16>, vector<32x8xbf16>, vector<8x8xf32> -> vector<8x8xf32>
    %c1_177 = arith.constant 1 : index
    %c0_178 = arith.constant 0 : index
    %c0_179 = arith.constant 0 : index
    %276 = vector.load %arg8[%c1_177, %c0_178, %c0_179] : memref<8x1x8xf32, #tpu.memory_space<vmem>>, vector<1x1x8xf32>
    %277 = vector.shape_cast %276 : vector<1x1x8xf32> to vector<1x8xf32>
    %278 = vector.broadcast %277 : vector<1x8xf32> to vector<8x8xf32>
    %279 = arith.addf %275, %278 : vector<8x8xf32>
    %c1_180 = arith.constant 1 : index
    %c0_181 = arith.constant 0 : index
    %c0_182 = arith.constant 0 : index
    %280 = vector.load %arg9[%c1_180, %c0_181, %c0_182] : memref<8x32x8xbf16, #tpu.memory_space<vmem>>, vector<1x32x8xbf16>
    %281 = vector.shape_cast %280 : vector<1x32x8xbf16> to vector<32x8xbf16>
    %cst_183 = arith.constant dense<0.000000e+00> : vector<8x8xf32>
    %282 = tpu.matmul %216, %281, %cst_183 {dimension_numbers = #tpu.dot_dimension_numbers<[1], [0], [0], [1], [0, 0, 1, 1], [], []>} : vector<8x32xbf16>, vector<32x8xbf16>, vector<8x8xf32> -> vector<8x8xf32>
    %c1_184 = arith.constant 1 : index
    %c0_185 = arith.constant 0 : index
    %c0_186 = arith.constant 0 : index
    %283 = vector.load %arg10[%c1_184, %c0_185, %c0_186] : memref<8x1x8xf32, #tpu.memory_space<vmem>>, vector<1x1x8xf32>
    %284 = vector.shape_cast %283 : vector<1x1x8xf32> to vector<1x8xf32>
    %285 = vector.broadcast %284 : vector<1x8xf32> to vector<8x8xf32>
    %286 = arith.addf %282, %285 : vector<8x8xf32>
    %287 = arith.truncf %272 : vector<8x8xf32> to vector<8x8xbf16>
    %288 = arith.truncf %279 : vector<8x8xf32> to vector<8x8xbf16>
    %cst_187 = arith.constant dense<0.000000e+00> : vector<8x8xf32>
    %289 = tpu.matmul %287, %288, %cst_187 {dimension_numbers = #tpu.dot_dimension_numbers<[1], [1], [0], [0], [0, 0, 1, 0], [], []>} : vector<8x8xbf16>, vector<8x8xbf16>, vector<8x8xf32> -> vector<8x8xf32>
    %cst_188 = arith.constant 0.353553385 : f32
    %290 = vector.broadcast %cst_188 : f32 to vector<8x8xf32>
    %291 = arith.mulf %289, %290 : vector<8x8xf32>
    %292 = vector.broadcast %218 : vector<1x8xf32> to vector<8x8xf32>
    %293 = arith.addf %291, %292 : vector<8x8xf32>
    %cst_189 = arith.constant dense<0xFF800000> : vector<8xf32>
    %294 = vector.multi_reduction <maximumf>, %293, %cst_189 [1] : vector<8x8xf32> to vector<8xf32>
    %295 = vector.shape_cast %294 : vector<8xf32> to vector<8x1xf32>
    %296 = vector.broadcast %295 : vector<8x1xf32> to vector<8x8xf32>
    %297 = arith.subf %293, %296 : vector<8x8xf32>
    %298 = math.exp %297 : vector<8x8xf32>
    %cst_190 = arith.constant dense<0.000000e+00> : vector<8xf32>
    %299 = vector.multi_reduction <add>, %298, %cst_190 [1] : vector<8x8xf32> to vector<8xf32>
    %300 = vector.shape_cast %299 : vector<8xf32> to vector<8x1xf32>
    %301 = tpu.reciprocal %300 {approx = true} : vector<8x1xf32> -> vector<8x1xf32>
    %302 = vector.broadcast %301 : vector<8x1xf32> to vector<8x8xf32>
    %303 = arith.mulf %298, %302 : vector<8x8xf32>
    %304 = arith.truncf %303 : vector<8x8xf32> to vector<8x8xbf16>
    %305 = arith.truncf %286 : vector<8x8xf32> to vector<8x8xbf16>
    %cst_191 = arith.constant dense<0.000000e+00> : vector<8x8xf32>
    %306 = tpu.matmul %304, %305, %cst_191 {dimension_numbers = #tpu.dot_dimension_numbers<[1], [0], [0], [1], [0, 0, 1, 1], [], []>} : vector<8x8xbf16>, vector<8x8xbf16>, vector<8x8xf32> -> vector<8x8xf32>
    %307 = arith.truncf %306 : vector<8x8xf32> to vector<8x8xbf16>
    %c1_192 = arith.constant 1 : index
    %c0_193 = arith.constant 0 : index
    %c0_194 = arith.constant 0 : index
    %308 = vector.load %arg11[%c1_192, %c0_193, %c0_194] : memref<8x8x32xbf16, #tpu.memory_space<vmem>>, vector<1x8x32xbf16>
    %309 = vector.shape_cast %308 : vector<1x8x32xbf16> to vector<8x32xbf16>
    %cst_195 = arith.constant dense<0.000000e+00> : vector<8x32xf32>
    %310 = tpu.matmul %307, %309, %cst_195 {dimension_numbers = #tpu.dot_dimension_numbers<[1], [0], [0], [1], [0, 0, 1, 1], [], []>} : vector<8x8xbf16>, vector<8x32xbf16>, vector<8x32xf32> -> vector<8x32xf32>
    %311 = arith.addf %265, %310 : vector<8x32xf32>
    %c2_196 = arith.constant 2 : index
    %c0_197 = arith.constant 0 : index
    %c0_198 = arith.constant 0 : index
    %312 = vector.load %arg5[%c2_196, %c0_197, %c0_198] : memref<8x32x8xbf16, #tpu.memory_space<vmem>>, vector<1x32x8xbf16>
    %313 = vector.shape_cast %312 : vector<1x32x8xbf16> to vector<32x8xbf16>
    %cst_199 = arith.constant dense<0.000000e+00> : vector<8x8xf32>
    %314 = tpu.matmul %216, %313, %cst_199 {dimension_numbers = #tpu.dot_dimension_numbers<[1], [0], [0], [1], [0, 0, 1, 1], [], []>} : vector<8x32xbf16>, vector<32x8xbf16>, vector<8x8xf32> -> vector<8x8xf32>
    %c2_200 = arith.constant 2 : index
    %c0_201 = arith.constant 0 : index
    %c0_202 = arith.constant 0 : index
    %315 = vector.load %arg6[%c2_200, %c0_201, %c0_202] : memref<8x1x8xf32, #tpu.memory_space<vmem>>, vector<1x1x8xf32>
    %316 = vector.shape_cast %315 : vector<1x1x8xf32> to vector<1x8xf32>
    %317 = vector.broadcast %316 : vector<1x8xf32> to vector<8x8xf32>
    %318 = arith.addf %314, %317 : vector<8x8xf32>
    %c2_203 = arith.constant 2 : index
    %c0_204 = arith.constant 0 : index
    %c0_205 = arith.constant 0 : index
    %319 = vector.load %arg7[%c2_203, %c0_204, %c0_205] : memref<8x32x8xbf16, #tpu.memory_space<vmem>>, vector<1x32x8xbf16>
    %320 = vector.shape_cast %319 : vector<1x32x8xbf16> to vector<32x8xbf16>
    %cst_206 = arith.constant dense<0.000000e+00> : vector<8x8xf32>
    %321 = tpu.matmul %216, %320, %cst_206 {dimension_numbers = #tpu.dot_dimension_numbers<[1], [0], [0], [1], [0, 0, 1, 1], [], []>} : vector<8x32xbf16>, vector<32x8xbf16>, vector<8x8xf32> -> vector<8x8xf32>
    %c2_207 = arith.constant 2 : index
    %c0_208 = arith.constant 0 : index
    %c0_209 = arith.constant 0 : index
    %322 = vector.load %arg8[%c2_207, %c0_208, %c0_209] : memref<8x1x8xf32, #tpu.memory_space<vmem>>, vector<1x1x8xf32>
    %323 = vector.shape_cast %322 : vector<1x1x8xf32> to vector<1x8xf32>
    %324 = vector.broadcast %323 : vector<1x8xf32> to vector<8x8xf32>
    %325 = arith.addf %321, %324 : vector<8x8xf32>
    %c2_210 = arith.constant 2 : index
    %c0_211 = arith.constant 0 : index
    %c0_212 = arith.constant 0 : index
    %326 = vector.load %arg9[%c2_210, %c0_211, %c0_212] : memref<8x32x8xbf16, #tpu.memory_space<vmem>>, vector<1x32x8xbf16>
    %327 = vector.shape_cast %326 : vector<1x32x8xbf16> to vector<32x8xbf16>
    %cst_213 = arith.constant dense<0.000000e+00> : vector<8x8xf32>
    %328 = tpu.matmul %216, %327, %cst_213 {dimension_numbers = #tpu.dot_dimension_numbers<[1], [0], [0], [1], [0, 0, 1, 1], [], []>} : vector<8x32xbf16>, vector<32x8xbf16>, vector<8x8xf32> -> vector<8x8xf32>
    %c2_214 = arith.constant 2 : index
    %c0_215 = arith.constant 0 : index
    %c0_216 = arith.constant 0 : index
    %329 = vector.load %arg10[%c2_214, %c0_215, %c0_216] : memref<8x1x8xf32, #tpu.memory_space<vmem>>, vector<1x1x8xf32>
    %330 = vector.shape_cast %329 : vector<1x1x8xf32> to vector<1x8xf32>
    %331 = vector.broadcast %330 : vector<1x8xf32> to vector<8x8xf32>
    %332 = arith.addf %328, %331 : vector<8x8xf32>
    %333 = arith.truncf %318 : vector<8x8xf32> to vector<8x8xbf16>
    %334 = arith.truncf %325 : vector<8x8xf32> to vector<8x8xbf16>
    %cst_217 = arith.constant dense<0.000000e+00> : vector<8x8xf32>
    %335 = tpu.matmul %333, %334, %cst_217 {dimension_numbers = #tpu.dot_dimension_numbers<[1], [1], [0], [0], [0, 0, 1, 0], [], []>} : vector<8x8xbf16>, vector<8x8xbf16>, vector<8x8xf32> -> vector<8x8xf32>
    %cst_218 = arith.constant 0.353553385 : f32
    %336 = vector.broadcast %cst_218 : f32 to vector<8x8xf32>
    %337 = arith.mulf %335, %336 : vector<8x8xf32>
    %338 = vector.broadcast %218 : vector<1x8xf32> to vector<8x8xf32>
    %339 = arith.addf %337, %338 : vector<8x8xf32>
    %cst_219 = arith.constant dense<0xFF800000> : vector<8xf32>
    %340 = vector.multi_reduction <maximumf>, %339, %cst_219 [1] : vector<8x8xf32> to vector<8xf32>
    %341 = vector.shape_cast %340 : vector<8xf32> to vector<8x1xf32>
    %342 = vector.broadcast %341 : vector<8x1xf32> to vector<8x8xf32>
    %343 = arith.subf %339, %342 : vector<8x8xf32>
    %344 = math.exp %343 : vector<8x8xf32>
    %cst_220 = arith.constant dense<0.000000e+00> : vector<8xf32>
    %345 = vector.multi_reduction <add>, %344, %cst_220 [1] : vector<8x8xf32> to vector<8xf32>
    %346 = vector.shape_cast %345 : vector<8xf32> to vector<8x1xf32>
    %347 = tpu.reciprocal %346 {approx = true} : vector<8x1xf32> -> vector<8x1xf32>
    %348 = vector.broadcast %347 : vector<8x1xf32> to vector<8x8xf32>
    %349 = arith.mulf %344, %348 : vector<8x8xf32>
    %350 = arith.truncf %349 : vector<8x8xf32> to vector<8x8xbf16>
    %351 = arith.truncf %332 : vector<8x8xf32> to vector<8x8xbf16>
    %cst_221 = arith.constant dense<0.000000e+00> : vector<8x8xf32>
    %352 = tpu.matmul %350, %351, %cst_221 {dimension_numbers = #tpu.dot_dimension_numbers<[1], [0], [0], [1], [0, 0, 1, 1], [], []>} : vector<8x8xbf16>, vector<8x8xbf16>, vector<8x8xf32> -> vector<8x8xf32>
    %353 = arith.truncf %352 : vector<8x8xf32> to vector<8x8xbf16>
    %c2_222 = arith.constant 2 : index
    %c0_223 = arith.constant 0 : index
    %c0_224 = arith.constant 0 : index
    %354 = vector.load %arg11[%c2_222, %c0_223, %c0_224] : memref<8x8x32xbf16, #tpu.memory_space<vmem>>, vector<1x8x32xbf16>
    %355 = vector.shape_cast %354 : vector<1x8x32xbf16> to vector<8x32xbf16>
    %cst_225 = arith.constant dense<0.000000e+00> : vector<8x32xf32>
    %356 = tpu.matmul %353, %355, %cst_225 {dimension_numbers = #tpu.dot_dimension_numbers<[1], [0], [0], [1], [0, 0, 1, 1], [], []>} : vector<8x8xbf16>, vector<8x32xbf16>, vector<8x32xf32> -> vector<8x32xf32>
    %357 = arith.addf %311, %356 : vector<8x32xf32>
    %c3_226 = arith.constant 3 : index
    %c0_227 = arith.constant 0 : index
    %c0_228 = arith.constant 0 : index
    %358 = vector.load %arg5[%c3_226, %c0_227, %c0_228] : memref<8x32x8xbf16, #tpu.memory_space<vmem>>, vector<1x32x8xbf16>
    %359 = vector.shape_cast %358 : vector<1x32x8xbf16> to vector<32x8xbf16>
    %cst_229 = arith.constant dense<0.000000e+00> : vector<8x8xf32>
    %360 = tpu.matmul %216, %359, %cst_229 {dimension_numbers = #tpu.dot_dimension_numbers<[1], [0], [0], [1], [0, 0, 1, 1], [], []>} : vector<8x32xbf16>, vector<32x8xbf16>, vector<8x8xf32> -> vector<8x8xf32>
    %c3_230 = arith.constant 3 : index
    %c0_231 = arith.constant 0 : index
    %c0_232 = arith.constant 0 : index
    %361 = vector.load %arg6[%c3_230, %c0_231, %c0_232] : memref<8x1x8xf32, #tpu.memory_space<vmem>>, vector<1x1x8xf32>
    %362 = vector.shape_cast %361 : vector<1x1x8xf32> to vector<1x8xf32>
    %363 = vector.broadcast %362 : vector<1x8xf32> to vector<8x8xf32>
    %364 = arith.addf %360, %363 : vector<8x8xf32>
    %c3_233 = arith.constant 3 : index
    %c0_234 = arith.constant 0 : index
    %c0_235 = arith.constant 0 : index
    %365 = vector.load %arg7[%c3_233, %c0_234, %c0_235] : memref<8x32x8xbf16, #tpu.memory_space<vmem>>, vector<1x32x8xbf16>
    %366 = vector.shape_cast %365 : vector<1x32x8xbf16> to vector<32x8xbf16>
    %cst_236 = arith.constant dense<0.000000e+00> : vector<8x8xf32>
    %367 = tpu.matmul %216, %366, %cst_236 {dimension_numbers = #tpu.dot_dimension_numbers<[1], [0], [0], [1], [0, 0, 1, 1], [], []>} : vector<8x32xbf16>, vector<32x8xbf16>, vector<8x8xf32> -> vector<8x8xf32>
    %c3_237 = arith.constant 3 : index
    %c0_238 = arith.constant 0 : index
    %c0_239 = arith.constant 0 : index
    %368 = vector.load %arg8[%c3_237, %c0_238, %c0_239] : memref<8x1x8xf32, #tpu.memory_space<vmem>>, vector<1x1x8xf32>
    %369 = vector.shape_cast %368 : vector<1x1x8xf32> to vector<1x8xf32>
    %370 = vector.broadcast %369 : vector<1x8xf32> to vector<8x8xf32>
    %371 = arith.addf %367, %370 : vector<8x8xf32>
    %c3_240 = arith.constant 3 : index
    %c0_241 = arith.constant 0 : index
    %c0_242 = arith.constant 0 : index
    %372 = vector.load %arg9[%c3_240, %c0_241, %c0_242] : memref<8x32x8xbf16, #tpu.memory_space<vmem>>, vector<1x32x8xbf16>
    %373 = vector.shape_cast %372 : vector<1x32x8xbf16> to vector<32x8xbf16>
    %cst_243 = arith.constant dense<0.000000e+00> : vector<8x8xf32>
    %374 = tpu.matmul %216, %373, %cst_243 {dimension_numbers = #tpu.dot_dimension_numbers<[1], [0], [0], [1], [0, 0, 1, 1], [], []>} : vector<8x32xbf16>, vector<32x8xbf16>, vector<8x8xf32> -> vector<8x8xf32>
    %c3_244 = arith.constant 3 : index
    %c0_245 = arith.constant 0 : index
    %c0_246 = arith.constant 0 : index
    %375 = vector.load %arg10[%c3_244, %c0_245, %c0_246] : memref<8x1x8xf32, #tpu.memory_space<vmem>>, vector<1x1x8xf32>
    %376 = vector.shape_cast %375 : vector<1x1x8xf32> to vector<1x8xf32>
    %377 = vector.broadcast %376 : vector<1x8xf32> to vector<8x8xf32>
    %378 = arith.addf %374, %377 : vector<8x8xf32>
    %379 = arith.truncf %364 : vector<8x8xf32> to vector<8x8xbf16>
    %380 = arith.truncf %371 : vector<8x8xf32> to vector<8x8xbf16>
    %cst_247 = arith.constant dense<0.000000e+00> : vector<8x8xf32>
    %381 = tpu.matmul %379, %380, %cst_247 {dimension_numbers = #tpu.dot_dimension_numbers<[1], [1], [0], [0], [0, 0, 1, 0], [], []>} : vector<8x8xbf16>, vector<8x8xbf16>, vector<8x8xf32> -> vector<8x8xf32>
    %cst_248 = arith.constant 0.353553385 : f32
    %382 = vector.broadcast %cst_248 : f32 to vector<8x8xf32>
    %383 = arith.mulf %381, %382 : vector<8x8xf32>
    %384 = vector.broadcast %218 : vector<1x8xf32> to vector<8x8xf32>
    %385 = arith.addf %383, %384 : vector<8x8xf32>
    %cst_249 = arith.constant dense<0xFF800000> : vector<8xf32>
    %386 = vector.multi_reduction <maximumf>, %385, %cst_249 [1] : vector<8x8xf32> to vector<8xf32>
    %387 = vector.shape_cast %386 : vector<8xf32> to vector<8x1xf32>
    %388 = vector.broadcast %387 : vector<8x1xf32> to vector<8x8xf32>
    %389 = arith.subf %385, %388 : vector<8x8xf32>
    %390 = math.exp %389 : vector<8x8xf32>
    %cst_250 = arith.constant dense<0.000000e+00> : vector<8xf32>
    %391 = vector.multi_reduction <add>, %390, %cst_250 [1] : vector<8x8xf32> to vector<8xf32>
    %392 = vector.shape_cast %391 : vector<8xf32> to vector<8x1xf32>
    %393 = tpu.reciprocal %392 {approx = true} : vector<8x1xf32> -> vector<8x1xf32>
    %394 = vector.broadcast %393 : vector<8x1xf32> to vector<8x8xf32>
    %395 = arith.mulf %390, %394 : vector<8x8xf32>
    %396 = arith.truncf %395 : vector<8x8xf32> to vector<8x8xbf16>
    %397 = arith.truncf %378 : vector<8x8xf32> to vector<8x8xbf16>
    %cst_251 = arith.constant dense<0.000000e+00> : vector<8x8xf32>
    %398 = tpu.matmul %396, %397, %cst_251 {dimension_numbers = #tpu.dot_dimension_numbers<[1], [0], [0], [1], [0, 0, 1, 1], [], []>} : vector<8x8xbf16>, vector<8x8xbf16>, vector<8x8xf32> -> vector<8x8xf32>
    %399 = arith.truncf %398 : vector<8x8xf32> to vector<8x8xbf16>
    %c3_252 = arith.constant 3 : index
    %c0_253 = arith.constant 0 : index
    %c0_254 = arith.constant 0 : index
    %400 = vector.load %arg11[%c3_252, %c0_253, %c0_254] : memref<8x8x32xbf16, #tpu.memory_space<vmem>>, vector<1x8x32xbf16>
    %401 = vector.shape_cast %400 : vector<1x8x32xbf16> to vector<8x32xbf16>
    %cst_255 = arith.constant dense<0.000000e+00> : vector<8x32xf32>
    %402 = tpu.matmul %399, %401, %cst_255 {dimension_numbers = #tpu.dot_dimension_numbers<[1], [0], [0], [1], [0, 0, 1, 1], [], []>} : vector<8x8xbf16>, vector<8x32xbf16>, vector<8x32xf32> -> vector<8x32xf32>
    %403 = arith.addf %357, %402 : vector<8x32xf32>
    %c8 = arith.constant 8 : index
    %c0_256 = arith.constant 0 : index
    %404 = vector.load %arg26[%c8, %c0_256] : memref<16x32xf32, #tpu.memory_space<vmem>>, vector<8x32xf32>
    tpu.vector_store %arg26[%c8, %c0_256], %403 {strides = array<i32>} : memref<16x32xf32, #tpu.memory_space<vmem>>, vector<8x32xf32>,
    %c0_257 = arith.constant 0 : index
    %c0_258 = arith.constant 0 : index
    %405 = vector.load %arg26[%c0_257, %c0_258] : memref<16x32xf32, #tpu.memory_space<vmem>>, vector<16x32xf32>
    %c0_259 = arith.constant 0 : index
    %c0_260 = arith.constant 0 : index
    %c0_261 = arith.constant 0 : index
    %406 = vector.load %arg12[%c0_259, %c0_260, %c0_261] : memref<2x1x32xf32, #tpu.memory_space<vmem>>, vector<1x1x32xf32>
    %407 = vector.shape_cast %406 : vector<1x1x32xf32> to vector<1x32xf32>
    %408 = vector.broadcast %407 : vector<1x32xf32> to vector<16x32xf32>
    %409 = arith.addf %405, %408 : vector<16x32xf32>
    %410 = arith.addf %409, %24 : vector<16x32xf32>
    %c0_262 = arith.constant 0 : index
    %c0_263 = arith.constant 0 : index
    %c0_264 = arith.constant 0 : index
    %411 = vector.load %arg13[%c0_262, %c0_263, %c0_264] : memref<2x1x32xf32, #tpu.memory_space<vmem>>, vector<1x1x32xf32>
    %412 = vector.shape_cast %411 : vector<1x1x32xf32> to vector<1x32xf32>
    %c0_265 = arith.constant 0 : index
    %c0_266 = arith.constant 0 : index
    %c0_267 = arith.constant 0 : index
    %413 = vector.load %arg14[%c0_265, %c0_266, %c0_267] : memref<2x1x32xf32, #tpu.memory_space<vmem>>, vector<1x1x32xf32>
    %414 = vector.shape_cast %413 : vector<1x1x32xf32> to vector<1x32xf32>
    %cst_268 = arith.constant dense<0.000000e+00> : vector<16xf32>
    %415 = vector.multi_reduction <add>, %410, %cst_268 [1] : vector<16x32xf32> to vector<16xf32>
    %416 = vector.shape_cast %415 : vector<16xf32> to vector<16x1xf32>
    %cst_269 = arith.constant 3.200000e+01 : f32
    %417 = vector.broadcast %cst_269 : f32 to vector<16x1xf32>
    %418 = arith.divf %416, %417 : vector<16x1xf32>
    %419 = vector.broadcast %418 : vector<16x1xf32> to vector<16x32xf32>
    %420 = arith.subf %410, %419 : vector<16x32xf32>
    %421 = arith.mulf %420, %420 : vector<16x32xf32>
    %cst_270 = arith.constant dense<0.000000e+00> : vector<16xf32>
    %422 = vector.multi_reduction <add>, %421, %cst_270 [1] : vector<16x32xf32> to vector<16xf32>
    %423 = vector.shape_cast %422 : vector<16xf32> to vector<16x1xf32>
    %cst_271 = arith.constant 3.200000e+01 : f32
    %424 = vector.broadcast %cst_271 : f32 to vector<16x1xf32>
    %425 = arith.divf %423, %424 : vector<16x1xf32>
    %426 = vector.broadcast %418 : vector<16x1xf32> to vector<16x32xf32>
    %427 = arith.subf %410, %426 : vector<16x32xf32>
    %cst_272 = arith.constant 9.99999996E-13 : f32
    %428 = vector.broadcast %cst_272 : f32 to vector<16x1xf32>
    %429 = arith.addf %425, %428 : vector<16x1xf32>
    %430 = math.rsqrt %429 : vector<16x1xf32>
    %431 = vector.broadcast %430 : vector<16x1xf32> to vector<16x32xf32>
    %432 = arith.mulf %427, %431 : vector<16x32xf32>
    %433 = vector.broadcast %412 : vector<1x32xf32> to vector<16x32xf32>
    %434 = arith.mulf %432, %433 : vector<16x32xf32>
    %435 = vector.broadcast %414 : vector<1x32xf32> to vector<16x32xf32>
    %436 = arith.addf %434, %435 : vector<16x32xf32>
    %437 = arith.truncf %436 : vector<16x32xf32> to vector<16x32xbf16>
    %c0_273 = arith.constant 0 : index
    %c0_274 = arith.constant 0 : index
    %c0_275 = arith.constant 0 : index
    %438 = vector.load %arg15[%c0_273, %c0_274, %c0_275] : memref<2x32x64xbf16, #tpu.memory_space<vmem>>, vector<1x32x64xbf16>
    %439 = vector.shape_cast %438 : vector<1x32x64xbf16> to vector<32x64xbf16>
    %cst_276 = arith.constant dense<0.000000e+00> : vector<16x64xf32>
    %440 = tpu.matmul %437, %439, %cst_276 {dimension_numbers = #tpu.dot_dimension_numbers<[1], [0], [0], [1], [0, 0, 1, 1], [], []>} : vector<16x32xbf16>, vector<32x64xbf16>, vector<16x64xf32> -> vector<16x64xf32>
    %c0_277 = arith.constant 0 : index
    %c0_278 = arith.constant 0 : index
    %c0_279 = arith.constant 0 : index
    %441 = vector.load %arg16[%c0_277, %c0_278, %c0_279] : memref<2x1x64xf32, #tpu.memory_space<vmem>>, vector<1x1x64xf32>
    %442 = vector.shape_cast %441 : vector<1x1x64xf32> to vector<1x64xf32>
    %443 = vector.broadcast %442 : vector<1x64xf32> to vector<16x64xf32>
    %444 = arith.addf %440, %443 : vector<16x64xf32>
    %445 = arith.mulf %444, %444 : vector<16x64xf32>
    %446 = arith.mulf %444, %445 : vector<16x64xf32>
    %cst_280 = arith.constant 4.471500e-02 : f32
    %447 = vector.broadcast %cst_280 : f32 to vector<16x64xf32>
    %448 = arith.mulf %447, %446 : vector<16x64xf32>
    %449 = arith.addf %444, %448 : vector<16x64xf32>
    %cst_281 = arith.constant 0.797884583 : f32
    %450 = vector.broadcast %cst_281 : f32 to vector<16x64xf32>
    %451 = arith.mulf %450, %449 : vector<16x64xf32>
    %452 = math.tanh %451 : vector<16x64xf32>
    %cst_282 = arith.constant 1.000000e+00 : f32
    %453 = vector.broadcast %cst_282 : f32 to vector<16x64xf32>
    %454 = arith.addf %453, %452 : vector<16x64xf32>
    %cst_283 = arith.constant 5.000000e-01 : f32
    %455 = vector.broadcast %cst_283 : f32 to vector<16x64xf32>
    %456 = arith.mulf %455, %454 : vector<16x64xf32>
    %457 = arith.mulf %444, %456 : vector<16x64xf32>
    %458 = arith.truncf %457 : vector<16x64xf32> to vector<16x64xbf16>
    %c0_284 = arith.constant 0 : index
    %c0_285 = arith.constant 0 : index
    %c0_286 = arith.constant 0 : index
    %459 = vector.load %arg17[%c0_284, %c0_285, %c0_286] : memref<2x64x32xbf16, #tpu.memory_space<vmem>>, vector<1x64x32xbf16>
    %460 = vector.shape_cast %459 : vector<1x64x32xbf16> to vector<64x32xbf16>
    %cst_287 = arith.constant dense<0.000000e+00> : vector<16x32xf32>
    %461 = tpu.matmul %458, %460, %cst_287 {dimension_numbers = #tpu.dot_dimension_numbers<[1], [0], [0], [1], [0, 0, 1, 1], [], []>} : vector<16x64xbf16>, vector<64x32xbf16>, vector<16x32xf32> -> vector<16x32xf32>
    %c0_288 = arith.constant 0 : index
    %c0_289 = arith.constant 0 : index
    %c0_290 = arith.constant 0 : index
    %462 = vector.load %arg18[%c0_288, %c0_289, %c0_290] : memref<2x1x32xf32, #tpu.memory_space<vmem>>, vector<1x1x32xf32>
    %463 = vector.shape_cast %462 : vector<1x1x32xf32> to vector<1x32xf32>
    %464 = vector.broadcast %463 : vector<1x32xf32> to vector<16x32xf32>
    %465 = arith.addf %461, %464 : vector<16x32xf32>
    %466 = arith.addf %465, %436 : vector<16x32xf32>
    %c0_291 = arith.constant 0 : index
    %c0_292 = arith.constant 0 : index
    %c0_293 = arith.constant 0 : index
    %467 = vector.load %arg19[%c0_291, %c0_292, %c0_293] : memref<2x1x32xf32, #tpu.memory_space<vmem>>, vector<1x1x32xf32>
    %468 = vector.shape_cast %467 : vector<1x1x32xf32> to vector<1x32xf32>
    %c0_294 = arith.constant 0 : index
    %c0_295 = arith.constant 0 : index
    %c0_296 = arith.constant 0 : index
    %469 = vector.load %arg20[%c0_294, %c0_295, %c0_296] : memref<2x1x32xf32, #tpu.memory_space<vmem>>, vector<1x1x32xf32>
    %470 = vector.shape_cast %469 : vector<1x1x32xf32> to vector<1x32xf32>
    %cst_297 = arith.constant dense<0.000000e+00> : vector<16xf32>
    %471 = vector.multi_reduction <add>, %466, %cst_297 [1] : vector<16x32xf32> to vector<16xf32>
    %472 = vector.shape_cast %471 : vector<16xf32> to vector<16x1xf32>
    %cst_298 = arith.constant 3.200000e+01 : f32
    %473 = vector.broadcast %cst_298 : f32 to vector<16x1xf32>
    %474 = arith.divf %472, %473 : vector<16x1xf32>
    %475 = vector.broadcast %474 : vector<16x1xf32> to vector<16x32xf32>
    %476 = arith.subf %466, %475 : vector<16x32xf32>
    %477 = arith.mulf %476, %476 : vector<16x32xf32>
    %cst_299 = arith.constant dense<0.000000e+00> : vector<16xf32>
    %478 = vector.multi_reduction <add>, %477, %cst_299 [1] : vector<16x32xf32> to vector<16xf32>
    %479 = vector.shape_cast %478 : vector<16xf32> to vector<16x1xf32>
    %cst_300 = arith.constant 3.200000e+01 : f32
    %480 = vector.broadcast %cst_300 : f32 to vector<16x1xf32>
    %481 = arith.divf %479, %480 : vector<16x1xf32>
    %482 = vector.broadcast %474 : vector<16x1xf32> to vector<16x32xf32>
    %483 = arith.subf %466, %482 : vector<16x32xf32>
    %cst_301 = arith.constant 9.99999996E-13 : f32
    %484 = vector.broadcast %cst_301 : f32 to vector<16x1xf32>
    %485 = arith.addf %481, %484 : vector<16x1xf32>
    %486 = math.rsqrt %485 : vector<16x1xf32>
    %487 = vector.broadcast %486 : vector<16x1xf32> to vector<16x32xf32>
    %488 = arith.mulf %483, %487 : vector<16x32xf32>
    %489 = vector.broadcast %468 : vector<1x32xf32> to vector<16x32xf32>
    %490 = arith.mulf %488, %489 : vector<16x32xf32>
    %491 = vector.broadcast %470 : vector<1x32xf32> to vector<16x32xf32>
    %492 = arith.addf %490, %491 : vector<16x32xf32>
    %493 = vector.extract_strided_slice %492 {offsets = [0, 0], sizes = [8, 32], strides = [1, 1]} : vector<16x32xf32> to vector<8x32xf32>
    %494 = arith.truncf %493 : vector<8x32xf32> to vector<8x32xbf16>
    %c0_302 = arith.constant 0 : index
    %c0_303 = arith.constant 0 : index
    %c0_304 = arith.constant 0 : index
    %495 = vector.load %arg2[%c0_302, %c0_303, %c0_304] : memref<2x1x8xf32, #tpu.memory_space<vmem>>, vector<1x1x8xf32>
    %496 = vector.shape_cast %495 : vector<1x1x8xf32> to vector<1x8xf32>
    %cst_305 = arith.constant 0.000000e+00 : f32
    %497 = vector.broadcast %cst_305 : f32 to vector<8x32xf32>
    %c4 = arith.constant 4 : index
    %c0_306 = arith.constant 0 : index
    %c0_307 = arith.constant 0 : index
    %498 = vector.load %arg5[%c4, %c0_306, %c0_307] : memref<8x32x8xbf16, #tpu.memory_space<vmem>>, vector<1x32x8xbf16>
    %499 = vector.shape_cast %498 : vector<1x32x8xbf16> to vector<32x8xbf16>
    %cst_308 = arith.constant dense<0.000000e+00> : vector<8x8xf32>
    %500 = tpu.matmul %494, %499, %cst_308 {dimension_numbers = #tpu.dot_dimension_numbers<[1], [0], [0], [1], [0, 0, 1, 1], [], []>} : vector<8x32xbf16>, vector<32x8xbf16>, vector<8x8xf32> -> vector<8x8xf32>
    %c4_309 = arith.constant 4 : index
    %c0_310 = arith.constant 0 : index
    %c0_311 = arith.constant 0 : index
    %501 = vector.load %arg6[%c4_309, %c0_310, %c0_311] : memref<8x1x8xf32, #tpu.memory_space<vmem>>, vector<1x1x8xf32>
    %502 = vector.shape_cast %501 : vector<1x1x8xf32> to vector<1x8xf32>
    %503 = vector.broadcast %502 : vector<1x8xf32> to vector<8x8xf32>
    %504 = arith.addf %500, %503 : vector<8x8xf32>
    %c4_312 = arith.constant 4 : index
    %c0_313 = arith.constant 0 : index
    %c0_314 = arith.constant 0 : index
    %505 = vector.load %arg7[%c4_312, %c0_313, %c0_314] : memref<8x32x8xbf16, #tpu.memory_space<vmem>>, vector<1x32x8xbf16>
    %506 = vector.shape_cast %505 : vector<1x32x8xbf16> to vector<32x8xbf16>
    %cst_315 = arith.constant dense<0.000000e+00> : vector<8x8xf32>
    %507 = tpu.matmul %494, %506, %cst_315 {dimension_numbers = #tpu.dot_dimension_numbers<[1], [0], [0], [1], [0, 0, 1, 1], [], []>} : vector<8x32xbf16>, vector<32x8xbf16>, vector<8x8xf32> -> vector<8x8xf32>
    %c4_316 = arith.constant 4 : index
    %c0_317 = arith.constant 0 : index
    %c0_318 = arith.constant 0 : index
    %508 = vector.load %arg8[%c4_316, %c0_317, %c0_318] : memref<8x1x8xf32, #tpu.memory_space<vmem>>, vector<1x1x8xf32>
    %509 = vector.shape_cast %508 : vector<1x1x8xf32> to vector<1x8xf32>
    %510 = vector.broadcast %509 : vector<1x8xf32> to vector<8x8xf32>
    %511 = arith.addf %507, %510 : vector<8x8xf32>
    %c4_319 = arith.constant 4 : index
    %c0_320 = arith.constant 0 : index
    %c0_321 = arith.constant 0 : index
    %512 = vector.load %arg9[%c4_319, %c0_320, %c0_321] : memref<8x32x8xbf16, #tpu.memory_space<vmem>>, vector<1x32x8xbf16>
    %513 = vector.shape_cast %512 : vector<1x32x8xbf16> to vector<32x8xbf16>
    %cst_322 = arith.constant dense<0.000000e+00> : vector<8x8xf32>
    %514 = tpu.matmul %494, %513, %cst_322 {dimension_numbers = #tpu.dot_dimension_numbers<[1], [0], [0], [1], [0, 0, 1, 1], [], []>} : vector<8x32xbf16>, vector<32x8xbf16>, vector<8x8xf32> -> vector<8x8xf32>
    %c4_323 = arith.constant 4 : index
    %c0_324 = arith.constant 0 : index
    %c0_325 = arith.constant 0 : index
    %515 = vector.load %arg10[%c4_323, %c0_324, %c0_325] : memref<8x1x8xf32, #tpu.memory_space<vmem>>, vector<1x1x8xf32>
    %516 = vector.shape_cast %515 : vector<1x1x8xf32> to vector<1x8xf32>
    %517 = vector.broadcast %516 : vector<1x8xf32> to vector<8x8xf32>
    %518 = arith.addf %514, %517 : vector<8x8xf32>
    %519 = arith.truncf %504 : vector<8x8xf32> to vector<8x8xbf16>
    %520 = arith.truncf %511 : vector<8x8xf32> to vector<8x8xbf16>
    %cst_326 = arith.constant dense<0.000000e+00> : vector<8x8xf32>
    %521 = tpu.matmul %519, %520, %cst_326 {dimension_numbers = #tpu.dot_dimension_numbers<[1], [1], [0], [0], [0, 0, 1, 0], [], []>} : vector<8x8xbf16>, vector<8x8xbf16>, vector<8x8xf32> -> vector<8x8xf32>
    %cst_327 = arith.constant 0.353553385 : f32
    %522 = vector.broadcast %cst_327 : f32 to vector<8x8xf32>
    %523 = arith.mulf %521, %522 : vector<8x8xf32>
    %524 = vector.broadcast %496 : vector<1x8xf32> to vector<8x8xf32>
    %525 = arith.addf %523, %524 : vector<8x8xf32>
    %cst_328 = arith.constant dense<0xFF800000> : vector<8xf32>
    %526 = vector.multi_reduction <maximumf>, %525, %cst_328 [1] : vector<8x8xf32> to vector<8xf32>
    %527 = vector.shape_cast %526 : vector<8xf32> to vector<8x1xf32>
    %528 = vector.broadcast %527 : vector<8x1xf32> to vector<8x8xf32>
    %529 = arith.subf %525, %528 : vector<8x8xf32>
    %530 = math.exp %529 : vector<8x8xf32>
    %cst_329 = arith.constant dense<0.000000e+00> : vector<8xf32>
    %531 = vector.multi_reduction <add>, %530, %cst_329 [1] : vector<8x8xf32> to vector<8xf32>
    %532 = vector.shape_cast %531 : vector<8xf32> to vector<8x1xf32>
    %533 = tpu.reciprocal %532 {approx = true} : vector<8x1xf32> -> vector<8x1xf32>
    %534 = vector.broadcast %533 : vector<8x1xf32> to vector<8x8xf32>
    %535 = arith.mulf %530, %534 : vector<8x8xf32>
    %536 = arith.truncf %535 : vector<8x8xf32> to vector<8x8xbf16>
    %537 = arith.truncf %518 : vector<8x8xf32> to vector<8x8xbf16>
    %cst_330 = arith.constant dense<0.000000e+00> : vector<8x8xf32>
    %538 = tpu.matmul %536, %537, %cst_330 {dimension_numbers = #tpu.dot_dimension_numbers<[1], [0], [0], [1], [0, 0, 1, 1], [], []>} : vector<8x8xbf16>, vector<8x8xbf16>, vector<8x8xf32> -> vector<8x8xf32>
    %539 = arith.truncf %538 : vector<8x8xf32> to vector<8x8xbf16>
    %c4_331 = arith.constant 4 : index
    %c0_332 = arith.constant 0 : index
    %c0_333 = arith.constant 0 : index
    %540 = vector.load %arg11[%c4_331, %c0_332, %c0_333] : memref<8x8x32xbf16, #tpu.memory_space<vmem>>, vector<1x8x32xbf16>
    %541 = vector.shape_cast %540 : vector<1x8x32xbf16> to vector<8x32xbf16>
    %cst_334 = arith.constant dense<0.000000e+00> : vector<8x32xf32>
    %542 = tpu.matmul %539, %541, %cst_334 {dimension_numbers = #tpu.dot_dimension_numbers<[1], [0], [0], [1], [0, 0, 1, 1], [], []>} : vector<8x8xbf16>, vector<8x32xbf16>, vector<8x32xf32> -> vector<8x32xf32>
    %543 = arith.addf %497, %542 : vector<8x32xf32>
    %c5 = arith.constant 5 : index
    %c0_335 = arith.constant 0 : index
    %c0_336 = arith.constant 0 : index
    %544 = vector.load %arg5[%c5, %c0_335, %c0_336] : memref<8x32x8xbf16, #tpu.memory_space<vmem>>, vector<1x32x8xbf16>
    %545 = vector.shape_cast %544 : vector<1x32x8xbf16> to vector<32x8xbf16>
    %cst_337 = arith.constant dense<0.000000e+00> : vector<8x8xf32>
    %546 = tpu.matmul %494, %545, %cst_337 {dimension_numbers = #tpu.dot_dimension_numbers<[1], [0], [0], [1], [0, 0, 1, 1], [], []>} : vector<8x32xbf16>, vector<32x8xbf16>, vector<8x8xf32> -> vector<8x8xf32>
    %c5_338 = arith.constant 5 : index
    %c0_339 = arith.constant 0 : index
    %c0_340 = arith.constant 0 : index
    %547 = vector.load %arg6[%c5_338, %c0_339, %c0_340] : memref<8x1x8xf32, #tpu.memory_space<vmem>>, vector<1x1x8xf32>
    %548 = vector.shape_cast %547 : vector<1x1x8xf32> to vector<1x8xf32>
    %549 = vector.broadcast %548 : vector<1x8xf32> to vector<8x8xf32>
    %550 = arith.addf %546, %549 : vector<8x8xf32>
    %c5_341 = arith.constant 5 : index
    %c0_342 = arith.constant 0 : index
    %c0_343 = arith.constant 0 : index
    %551 = vector.load %arg7[%c5_341, %c0_342, %c0_343] : memref<8x32x8xbf16, #tpu.memory_space<vmem>>, vector<1x32x8xbf16>
    %552 = vector.shape_cast %551 : vector<1x32x8xbf16> to vector<32x8xbf16>
    %cst_344 = arith.constant dense<0.000000e+00> : vector<8x8xf32>
    %553 = tpu.matmul %494, %552, %cst_344 {dimension_numbers = #tpu.dot_dimension_numbers<[1], [0], [0], [1], [0, 0, 1, 1], [], []>} : vector<8x32xbf16>, vector<32x8xbf16>, vector<8x8xf32> -> vector<8x8xf32>
    %c5_345 = arith.constant 5 : index
    %c0_346 = arith.constant 0 : index
    %c0_347 = arith.constant 0 : index
    %554 = vector.load %arg8[%c5_345, %c0_346, %c0_347] : memref<8x1x8xf32, #tpu.memory_space<vmem>>, vector<1x1x8xf32>
    %555 = vector.shape_cast %554 : vector<1x1x8xf32> to vector<1x8xf32>
    %556 = vector.broadcast %555 : vector<1x8xf32> to vector<8x8xf32>
    %557 = arith.addf %553, %556 : vector<8x8xf32>
    %c5_348 = arith.constant 5 : index
    %c0_349 = arith.constant 0 : index
    %c0_350 = arith.constant 0 : index
    %558 = vector.load %arg9[%c5_348, %c0_349, %c0_350] : memref<8x32x8xbf16, #tpu.memory_space<vmem>>, vector<1x32x8xbf16>
    %559 = vector.shape_cast %558 : vector<1x32x8xbf16> to vector<32x8xbf16>
    %cst_351 = arith.constant dense<0.000000e+00> : vector<8x8xf32>
    %560 = tpu.matmul %494, %559, %cst_351 {dimension_numbers = #tpu.dot_dimension_numbers<[1], [0], [0], [1], [0, 0, 1, 1], [], []>} : vector<8x32xbf16>, vector<32x8xbf16>, vector<8x8xf32> -> vector<8x8xf32>
    %c5_352 = arith.constant 5 : index
    %c0_353 = arith.constant 0 : index
    %c0_354 = arith.constant 0 : index
    %561 = vector.load %arg10[%c5_352, %c0_353, %c0_354] : memref<8x1x8xf32, #tpu.memory_space<vmem>>, vector<1x1x8xf32>
    %562 = vector.shape_cast %561 : vector<1x1x8xf32> to vector<1x8xf32>
    %563 = vector.broadcast %562 : vector<1x8xf32> to vector<8x8xf32>
    %564 = arith.addf %560, %563 : vector<8x8xf32>
    %565 = arith.truncf %550 : vector<8x8xf32> to vector<8x8xbf16>
    %566 = arith.truncf %557 : vector<8x8xf32> to vector<8x8xbf16>
    %cst_355 = arith.constant dense<0.000000e+00> : vector<8x8xf32>
    %567 = tpu.matmul %565, %566, %cst_355 {dimension_numbers = #tpu.dot_dimension_numbers<[1], [1], [0], [0], [0, 0, 1, 0], [], []>} : vector<8x8xbf16>, vector<8x8xbf16>, vector<8x8xf32> -> vector<8x8xf32>
    %cst_356 = arith.constant 0.353553385 : f32
    %568 = vector.broadcast %cst_356 : f32 to vector<8x8xf32>
    %569 = arith.mulf %567, %568 : vector<8x8xf32>
    %570 = vector.broadcast %496 : vector<1x8xf32> to vector<8x8xf32>
    %571 = arith.addf %569, %570 : vector<8x8xf32>
    %cst_357 = arith.constant dense<0xFF800000> : vector<8xf32>
    %572 = vector.multi_reduction <maximumf>, %571, %cst_357 [1] : vector<8x8xf32> to vector<8xf32>
    %573 = vector.shape_cast %572 : vector<8xf32> to vector<8x1xf32>
    %574 = vector.broadcast %573 : vector<8x1xf32> to vector<8x8xf32>
    %575 = arith.subf %571, %574 : vector<8x8xf32>
    %576 = math.exp %575 : vector<8x8xf32>
    %cst_358 = arith.constant dense<0.000000e+00> : vector<8xf32>
    %577 = vector.multi_reduction <add>, %576, %cst_358 [1] : vector<8x8xf32> to vector<8xf32>
    %578 = vector.shape_cast %577 : vector<8xf32> to vector<8x1xf32>
    %579 = tpu.reciprocal %578 {approx = true} : vector<8x1xf32> -> vector<8x1xf32>
    %580 = vector.broadcast %579 : vector<8x1xf32> to vector<8x8xf32>
    %581 = arith.mulf %576, %580 : vector<8x8xf32>
    %582 = arith.truncf %581 : vector<8x8xf32> to vector<8x8xbf16>
    %583 = arith.truncf %564 : vector<8x8xf32> to vector<8x8xbf16>
    %cst_359 = arith.constant dense<0.000000e+00> : vector<8x8xf32>
    %584 = tpu.matmul %582, %583, %cst_359 {dimension_numbers = #tpu.dot_dimension_numbers<[1], [0], [0], [1], [0, 0, 1, 1], [], []>} : vector<8x8xbf16>, vector<8x8xbf16>, vector<8x8xf32> -> vector<8x8xf32>
    %585 = arith.truncf %584 : vector<8x8xf32> to vector<8x8xbf16>
    %c5_360 = arith.constant 5 : index
    %c0_361 = arith.constant 0 : index
    %c0_362 = arith.constant 0 : index
    %586 = vector.load %arg11[%c5_360, %c0_361, %c0_362] : memref<8x8x32xbf16, #tpu.memory_space<vmem>>, vector<1x8x32xbf16>
    %587 = vector.shape_cast %586 : vector<1x8x32xbf16> to vector<8x32xbf16>
    %cst_363 = arith.constant dense<0.000000e+00> : vector<8x32xf32>
    %588 = tpu.matmul %585, %587, %cst_363 {dimension_numbers = #tpu.dot_dimension_numbers<[1], [0], [0], [1], [0, 0, 1, 1], [], []>} : vector<8x8xbf16>, vector<8x32xbf16>, vector<8x32xf32> -> vector<8x32xf32>
    %589 = arith.addf %543, %588 : vector<8x32xf32>
    %c6 = arith.constant 6 : index
    %c0_364 = arith.constant 0 : index
    %c0_365 = arith.constant 0 : index
    %590 = vector.load %arg5[%c6, %c0_364, %c0_365] : memref<8x32x8xbf16, #tpu.memory_space<vmem>>, vector<1x32x8xbf16>
    %591 = vector.shape_cast %590 : vector<1x32x8xbf16> to vector<32x8xbf16>
    %cst_366 = arith.constant dense<0.000000e+00> : vector<8x8xf32>
    %592 = tpu.matmul %494, %591, %cst_366 {dimension_numbers = #tpu.dot_dimension_numbers<[1], [0], [0], [1], [0, 0, 1, 1], [], []>} : vector<8x32xbf16>, vector<32x8xbf16>, vector<8x8xf32> -> vector<8x8xf32>
    %c6_367 = arith.constant 6 : index
    %c0_368 = arith.constant 0 : index
    %c0_369 = arith.constant 0 : index
    %593 = vector.load %arg6[%c6_367, %c0_368, %c0_369] : memref<8x1x8xf32, #tpu.memory_space<vmem>>, vector<1x1x8xf32>
    %594 = vector.shape_cast %593 : vector<1x1x8xf32> to vector<1x8xf32>
    %595 = vector.broadcast %594 : vector<1x8xf32> to vector<8x8xf32>
    %596 = arith.addf %592, %595 : vector<8x8xf32>
    %c6_370 = arith.constant 6 : index
    %c0_371 = arith.constant 0 : index
    %c0_372 = arith.constant 0 : index
    %597 = vector.load %arg7[%c6_370, %c0_371, %c0_372] : memref<8x32x8xbf16, #tpu.memory_space<vmem>>, vector<1x32x8xbf16>
    %598 = vector.shape_cast %597 : vector<1x32x8xbf16> to vector<32x8xbf16>
    %cst_373 = arith.constant dense<0.000000e+00> : vector<8x8xf32>
    %599 = tpu.matmul %494, %598, %cst_373 {dimension_numbers = #tpu.dot_dimension_numbers<[1], [0], [0], [1], [0, 0, 1, 1], [], []>} : vector<8x32xbf16>, vector<32x8xbf16>, vector<8x8xf32> -> vector<8x8xf32>
    %c6_374 = arith.constant 6 : index
    %c0_375 = arith.constant 0 : index
    %c0_376 = arith.constant 0 : index
    %600 = vector.load %arg8[%c6_374, %c0_375, %c0_376] : memref<8x1x8xf32, #tpu.memory_space<vmem>>, vector<1x1x8xf32>
    %601 = vector.shape_cast %600 : vector<1x1x8xf32> to vector<1x8xf32>
    %602 = vector.broadcast %601 : vector<1x8xf32> to vector<8x8xf32>
    %603 = arith.addf %599, %602 : vector<8x8xf32>
    %c6_377 = arith.constant 6 : index
    %c0_378 = arith.constant 0 : index
    %c0_379 = arith.constant 0 : index
    %604 = vector.load %arg9[%c6_377, %c0_378, %c0_379] : memref<8x32x8xbf16, #tpu.memory_space<vmem>>, vector<1x32x8xbf16>
    %605 = vector.shape_cast %604 : vector<1x32x8xbf16> to vector<32x8xbf16>
    %cst_380 = arith.constant dense<0.000000e+00> : vector<8x8xf32>
    %606 = tpu.matmul %494, %605, %cst_380 {dimension_numbers = #tpu.dot_dimension_numbers<[1], [0], [0], [1], [0, 0, 1, 1], [], []>} : vector<8x32xbf16>, vector<32x8xbf16>, vector<8x8xf32> -> vector<8x8xf32>
    %c6_381 = arith.constant 6 : index
    %c0_382 = arith.constant 0 : index
    %c0_383 = arith.constant 0 : index
    %607 = vector.load %arg10[%c6_381, %c0_382, %c0_383] : memref<8x1x8xf32, #tpu.memory_space<vmem>>, vector<1x1x8xf32>
    %608 = vector.shape_cast %607 : vector<1x1x8xf32> to vector<1x8xf32>
    %609 = vector.broadcast %608 : vector<1x8xf32> to vector<8x8xf32>
    %610 = arith.addf %606, %609 : vector<8x8xf32>
    %611 = arith.truncf %596 : vector<8x8xf32> to vector<8x8xbf16>
    %612 = arith.truncf %603 : vector<8x8xf32> to vector<8x8xbf16>
    %cst_384 = arith.constant dense<0.000000e+00> : vector<8x8xf32>
    %613 = tpu.matmul %611, %612, %cst_384 {dimension_numbers = #tpu.dot_dimension_numbers<[1], [1], [0], [0], [0, 0, 1, 0], [], []>} : vector<8x8xbf16>, vector<8x8xbf16>, vector<8x8xf32> -> vector<8x8xf32>
    %cst_385 = arith.constant 0.353553385 : f32
    %614 = vector.broadcast %cst_385 : f32 to vector<8x8xf32>
    %615 = arith.mulf %613, %614 : vector<8x8xf32>
    %616 = vector.broadcast %496 : vector<1x8xf32> to vector<8x8xf32>
    %617 = arith.addf %615, %616 : vector<8x8xf32>
    %cst_386 = arith.constant dense<0xFF800000> : vector<8xf32>
    %618 = vector.multi_reduction <maximumf>, %617, %cst_386 [1] : vector<8x8xf32> to vector<8xf32>
    %619 = vector.shape_cast %618 : vector<8xf32> to vector<8x1xf32>
    %620 = vector.broadcast %619 : vector<8x1xf32> to vector<8x8xf32>
    %621 = arith.subf %617, %620 : vector<8x8xf32>
    %622 = math.exp %621 : vector<8x8xf32>
    %cst_387 = arith.constant dense<0.000000e+00> : vector<8xf32>
    %623 = vector.multi_reduction <add>, %622, %cst_387 [1] : vector<8x8xf32> to vector<8xf32>
    %624 = vector.shape_cast %623 : vector<8xf32> to vector<8x1xf32>
    %625 = tpu.reciprocal %624 {approx = true} : vector<8x1xf32> -> vector<8x1xf32>
    %626 = vector.broadcast %625 : vector<8x1xf32> to vector<8x8xf32>
    %627 = arith.mulf %622, %626 : vector<8x8xf32>
    %628 = arith.truncf %627 : vector<8x8xf32> to vector<8x8xbf16>
    %629 = arith.truncf %610 : vector<8x8xf32> to vector<8x8xbf16>
    %cst_388 = arith.constant dense<0.000000e+00> : vector<8x8xf32>
    %630 = tpu.matmul %628, %629, %cst_388 {dimension_numbers = #tpu.dot_dimension_numbers<[1], [0], [0], [1], [0, 0, 1, 1], [], []>} : vector<8x8xbf16>, vector<8x8xbf16>, vector<8x8xf32> -> vector<8x8xf32>
    %631 = arith.truncf %630 : vector<8x8xf32> to vector<8x8xbf16>
    %c6_389 = arith.constant 6 : index
    %c0_390 = arith.constant 0 : index
    %c0_391 = arith.constant 0 : index
    %632 = vector.load %arg11[%c6_389, %c0_390, %c0_391] : memref<8x8x32xbf16, #tpu.memory_space<vmem>>, vector<1x8x32xbf16>
    %633 = vector.shape_cast %632 : vector<1x8x32xbf16> to vector<8x32xbf16>
    %cst_392 = arith.constant dense<0.000000e+00> : vector<8x32xf32>
    %634 = tpu.matmul %631, %633, %cst_392 {dimension_numbers = #tpu.dot_dimension_numbers<[1], [0], [0], [1], [0, 0, 1, 1], [], []>} : vector<8x8xbf16>, vector<8x32xbf16>, vector<8x32xf32> -> vector<8x32xf32>
    %635 = arith.addf %589, %634 : vector<8x32xf32>
    %c7 = arith.constant 7 : index
    %c0_393 = arith.constant 0 : index
    %c0_394 = arith.constant 0 : index
    %636 = vector.load %arg5[%c7, %c0_393, %c0_394] : memref<8x32x8xbf16, #tpu.memory_space<vmem>>, vector<1x32x8xbf16>
    %637 = vector.shape_cast %636 : vector<1x32x8xbf16> to vector<32x8xbf16>
    %cst_395 = arith.constant dense<0.000000e+00> : vector<8x8xf32>
    %638 = tpu.matmul %494, %637, %cst_395 {dimension_numbers = #tpu.dot_dimension_numbers<[1], [0], [0], [1], [0, 0, 1, 1], [], []>} : vector<8x32xbf16>, vector<32x8xbf16>, vector<8x8xf32> -> vector<8x8xf32>
    %c7_396 = arith.constant 7 : index
    %c0_397 = arith.constant 0 : index
    %c0_398 = arith.constant 0 : index
    %639 = vector.load %arg6[%c7_396, %c0_397, %c0_398] : memref<8x1x8xf32, #tpu.memory_space<vmem>>, vector<1x1x8xf32>
    %640 = vector.shape_cast %639 : vector<1x1x8xf32> to vector<1x8xf32>
    %641 = vector.broadcast %640 : vector<1x8xf32> to vector<8x8xf32>
    %642 = arith.addf %638, %641 : vector<8x8xf32>
    %c7_399 = arith.constant 7 : index
    %c0_400 = arith.constant 0 : index
    %c0_401 = arith.constant 0 : index
    %643 = vector.load %arg7[%c7_399, %c0_400, %c0_401] : memref<8x32x8xbf16, #tpu.memory_space<vmem>>, vector<1x32x8xbf16>
    %644 = vector.shape_cast %643 : vector<1x32x8xbf16> to vector<32x8xbf16>
    %cst_402 = arith.constant dense<0.000000e+00> : vector<8x8xf32>
    %645 = tpu.matmul %494, %644, %cst_402 {dimension_numbers = #tpu.dot_dimension_numbers<[1], [0], [0], [1], [0, 0, 1, 1], [], []>} : vector<8x32xbf16>, vector<32x8xbf16>, vector<8x8xf32> -> vector<8x8xf32>
    %c7_403 = arith.constant 7 : index
    %c0_404 = arith.constant 0 : index
    %c0_405 = arith.constant 0 : index
    %646 = vector.load %arg8[%c7_403, %c0_404, %c0_405] : memref<8x1x8xf32, #tpu.memory_space<vmem>>, vector<1x1x8xf32>
    %647 = vector.shape_cast %646 : vector<1x1x8xf32> to vector<1x8xf32>
    %648 = vector.broadcast %647 : vector<1x8xf32> to vector<8x8xf32>
    %649 = arith.addf %645, %648 : vector<8x8xf32>
    %c7_406 = arith.constant 7 : index
    %c0_407 = arith.constant 0 : index
    %c0_408 = arith.constant 0 : index
    %650 = vector.load %arg9[%c7_406, %c0_407, %c0_408] : memref<8x32x8xbf16, #tpu.memory_space<vmem>>, vector<1x32x8xbf16>
    %651 = vector.shape_cast %650 : vector<1x32x8xbf16> to vector<32x8xbf16>
    %cst_409 = arith.constant dense<0.000000e+00> : vector<8x8xf32>
    %652 = tpu.matmul %494, %651, %cst_409 {dimension_numbers = #tpu.dot_dimension_numbers<[1], [0], [0], [1], [0, 0, 1, 1], [], []>} : vector<8x32xbf16>, vector<32x8xbf16>, vector<8x8xf32> -> vector<8x8xf32>
    %c7_410 = arith.constant 7 : index
    %c0_411 = arith.constant 0 : index
    %c0_412 = arith.constant 0 : index
    %653 = vector.load %arg10[%c7_410, %c0_411, %c0_412] : memref<8x1x8xf32, #tpu.memory_space<vmem>>, vector<1x1x8xf32>
    %654 = vector.shape_cast %653 : vector<1x1x8xf32> to vector<1x8xf32>
    %655 = vector.broadcast %654 : vector<1x8xf32> to vector<8x8xf32>
    %656 = arith.addf %652, %655 : vector<8x8xf32>
    %657 = arith.truncf %642 : vector<8x8xf32> to vector<8x8xbf16>
    %658 = arith.truncf %649 : vector<8x8xf32> to vector<8x8xbf16>
    %cst_413 = arith.constant dense<0.000000e+00> : vector<8x8xf32>
    %659 = tpu.matmul %657, %658, %cst_413 {dimension_numbers = #tpu.dot_dimension_numbers<[1], [1], [0], [0], [0, 0, 1, 0], [], []>} : vector<8x8xbf16>, vector<8x8xbf16>, vector<8x8xf32> -> vector<8x8xf32>
    %cst_414 = arith.constant 0.353553385 : f32
    %660 = vector.broadcast %cst_414 : f32 to vector<8x8xf32>
    %661 = arith.mulf %659, %660 : vector<8x8xf32>
    %662 = vector.broadcast %496 : vector<1x8xf32> to vector<8x8xf32>
    %663 = arith.addf %661, %662 : vector<8x8xf32>
    %cst_415 = arith.constant dense<0xFF800000> : vector<8xf32>
    %664 = vector.multi_reduction <maximumf>, %663, %cst_415 [1] : vector<8x8xf32> to vector<8xf32>
    %665 = vector.shape_cast %664 : vector<8xf32> to vector<8x1xf32>
    %666 = vector.broadcast %665 : vector<8x1xf32> to vector<8x8xf32>
    %667 = arith.subf %663, %666 : vector<8x8xf32>
    %668 = math.exp %667 : vector<8x8xf32>
    %cst_416 = arith.constant dense<0.000000e+00> : vector<8xf32>
    %669 = vector.multi_reduction <add>, %668, %cst_416 [1] : vector<8x8xf32> to vector<8xf32>
    %670 = vector.shape_cast %669 : vector<8xf32> to vector<8x1xf32>
    %671 = tpu.reciprocal %670 {approx = true} : vector<8x1xf32> -> vector<8x1xf32>
    %672 = vector.broadcast %671 : vector<8x1xf32> to vector<8x8xf32>
    %673 = arith.mulf %668, %672 : vector<8x8xf32>
    %674 = arith.truncf %673 : vector<8x8xf32> to vector<8x8xbf16>
    %675 = arith.truncf %656 : vector<8x8xf32> to vector<8x8xbf16>
    %cst_417 = arith.constant dense<0.000000e+00> : vector<8x8xf32>
    %676 = tpu.matmul %674, %675, %cst_417 {dimension_numbers = #tpu.dot_dimension_numbers<[1], [0], [0], [1], [0, 0, 1, 1], [], []>} : vector<8x8xbf16>, vector<8x8xbf16>, vector<8x8xf32> -> vector<8x8xf32>
    %677 = arith.truncf %676 : vector<8x8xf32> to vector<8x8xbf16>
    %c7_418 = arith.constant 7 : index
    %c0_419 = arith.constant 0 : index
    %c0_420 = arith.constant 0 : index
    %678 = vector.load %arg11[%c7_418, %c0_419, %c0_420] : memref<8x8x32xbf16, #tpu.memory_space<vmem>>, vector<1x8x32xbf16>
    %679 = vector.shape_cast %678 : vector<1x8x32xbf16> to vector<8x32xbf16>
    %cst_421 = arith.constant dense<0.000000e+00> : vector<8x32xf32>
    %680 = tpu.matmul %677, %679, %cst_421 {dimension_numbers = #tpu.dot_dimension_numbers<[1], [0], [0], [1], [0, 0, 1, 1], [], []>} : vector<8x8xbf16>, vector<8x32xbf16>, vector<8x32xf32> -> vector<8x32xf32>
    %681 = arith.addf %635, %680 : vector<8x32xf32>
    %c0_422 = arith.constant 0 : index
    %c0_423 = arith.constant 0 : index
    %682 = vector.load %arg26[%c0_422, %c0_423] : memref<16x32xf32, #tpu.memory_space<vmem>>, vector<8x32xf32>
    tpu.vector_store %arg26[%c0_422, %c0_423], %681 {strides = array<i32>} : memref<16x32xf32, #tpu.memory_space<vmem>>, vector<8x32xf32>,
    %683 = vector.extract_strided_slice %492 {offsets = [8, 0], sizes = [8, 32], strides = [1, 1]} : vector<16x32xf32> to vector<8x32xf32>
    %684 = arith.truncf %683 : vector<8x32xf32> to vector<8x32xbf16>
    %c1_424 = arith.constant 1 : index
    %c0_425 = arith.constant 0 : index
    %c0_426 = arith.constant 0 : index
    %685 = vector.load %arg2[%c1_424, %c0_425, %c0_426] : memref<2x1x8xf32, #tpu.memory_space<vmem>>, vector<1x1x8xf32>
    %686 = vector.shape_cast %685 : vector<1x1x8xf32> to vector<1x8xf32>
    %cst_427 = arith.constant 0.000000e+00 : f32
    %687 = vector.broadcast %cst_427 : f32 to vector<8x32xf32>
    %c4_428 = arith.constant 4 : index
    %c0_429 = arith.constant 0 : index
    %c0_430 = arith.constant 0 : index
    %688 = vector.load %arg5[%c4_428, %c0_429, %c0_430] : memref<8x32x8xbf16, #tpu.memory_space<vmem>>, vector<1x32x8xbf16>
    %689 = vector.shape_cast %688 : vector<1x32x8xbf16> to vector<32x8xbf16>
    %cst_431 = arith.constant dense<0.000000e+00> : vector<8x8xf32>
    %690 = tpu.matmul %684, %689, %cst_431 {dimension_numbers = #tpu.dot_dimension_numbers<[1], [0], [0], [1], [0, 0, 1, 1], [], []>} : vector<8x32xbf16>, vector<32x8xbf16>, vector<8x8xf32> -> vector<8x8xf32>
    %c4_432 = arith.constant 4 : index
    %c0_433 = arith.constant 0 : index
    %c0_434 = arith.constant 0 : index
    %691 = vector.load %arg6[%c4_432, %c0_433, %c0_434] : memref<8x1x8xf32, #tpu.memory_space<vmem>>, vector<1x1x8xf32>
    %692 = vector.shape_cast %691 : vector<1x1x8xf32> to vector<1x8xf32>
    %693 = vector.broadcast %692 : vector<1x8xf32> to vector<8x8xf32>
    %694 = arith.addf %690, %693 : vector<8x8xf32>
    %c4_435 = arith.constant 4 : index
    %c0_436 = arith.constant 0 : index
    %c0_437 = arith.constant 0 : index
    %695 = vector.load %arg7[%c4_435, %c0_436, %c0_437] : memref<8x32x8xbf16, #tpu.memory_space<vmem>>, vector<1x32x8xbf16>
    %696 = vector.shape_cast %695 : vector<1x32x8xbf16> to vector<32x8xbf16>
    %cst_438 = arith.constant dense<0.000000e+00> : vector<8x8xf32>
    %697 = tpu.matmul %684, %696, %cst_438 {dimension_numbers = #tpu.dot_dimension_numbers<[1], [0], [0], [1], [0, 0, 1, 1], [], []>} : vector<8x32xbf16>, vector<32x8xbf16>, vector<8x8xf32> -> vector<8x8xf32>
    %c4_439 = arith.constant 4 : index
    %c0_440 = arith.constant 0 : index
    %c0_441 = arith.constant 0 : index
    %698 = vector.load %arg8[%c4_439, %c0_440, %c0_441] : memref<8x1x8xf32, #tpu.memory_space<vmem>>, vector<1x1x8xf32>
    %699 = vector.shape_cast %698 : vector<1x1x8xf32> to vector<1x8xf32>
    %700 = vector.broadcast %699 : vector<1x8xf32> to vector<8x8xf32>
    %701 = arith.addf %697, %700 : vector<8x8xf32>
    %c4_442 = arith.constant 4 : index
    %c0_443 = arith.constant 0 : index
    %c0_444 = arith.constant 0 : index
    %702 = vector.load %arg9[%c4_442, %c0_443, %c0_444] : memref<8x32x8xbf16, #tpu.memory_space<vmem>>, vector<1x32x8xbf16>
    %703 = vector.shape_cast %702 : vector<1x32x8xbf16> to vector<32x8xbf16>
    %cst_445 = arith.constant dense<0.000000e+00> : vector<8x8xf32>
    %704 = tpu.matmul %684, %703, %cst_445 {dimension_numbers = #tpu.dot_dimension_numbers<[1], [0], [0], [1], [0, 0, 1, 1], [], []>} : vector<8x32xbf16>, vector<32x8xbf16>, vector<8x8xf32> -> vector<8x8xf32>
    %c4_446 = arith.constant 4 : index
    %c0_447 = arith.constant 0 : index
    %c0_448 = arith.constant 0 : index
    %705 = vector.load %arg10[%c4_446, %c0_447, %c0_448] : memref<8x1x8xf32, #tpu.memory_space<vmem>>, vector<1x1x8xf32>
    %706 = vector.shape_cast %705 : vector<1x1x8xf32> to vector<1x8xf32>
    %707 = vector.broadcast %706 : vector<1x8xf32> to vector<8x8xf32>
    %708 = arith.addf %704, %707 : vector<8x8xf32>
    %709 = arith.truncf %694 : vector<8x8xf32> to vector<8x8xbf16>
    %710 = arith.truncf %701 : vector<8x8xf32> to vector<8x8xbf16>
    %cst_449 = arith.constant dense<0.000000e+00> : vector<8x8xf32>
    %711 = tpu.matmul %709, %710, %cst_449 {dimension_numbers = #tpu.dot_dimension_numbers<[1], [1], [0], [0], [0, 0, 1, 0], [], []>} : vector<8x8xbf16>, vector<8x8xbf16>, vector<8x8xf32> -> vector<8x8xf32>
    %cst_450 = arith.constant 0.353553385 : f32
    %712 = vector.broadcast %cst_450 : f32 to vector<8x8xf32>
    %713 = arith.mulf %711, %712 : vector<8x8xf32>
    %714 = vector.broadcast %686 : vector<1x8xf32> to vector<8x8xf32>
    %715 = arith.addf %713, %714 : vector<8x8xf32>
    %cst_451 = arith.constant dense<0xFF800000> : vector<8xf32>
    %716 = vector.multi_reduction <maximumf>, %715, %cst_451 [1] : vector<8x8xf32> to vector<8xf32>
    %717 = vector.shape_cast %716 : vector<8xf32> to vector<8x1xf32>
    %718 = vector.broadcast %717 : vector<8x1xf32> to vector<8x8xf32>
    %719 = arith.subf %715, %718 : vector<8x8xf32>
    %720 = math.exp %719 : vector<8x8xf32>
    %cst_452 = arith.constant dense<0.000000e+00> : vector<8xf32>
    %721 = vector.multi_reduction <add>, %720, %cst_452 [1] : vector<8x8xf32> to vector<8xf32>
    %722 = vector.shape_cast %721 : vector<8xf32> to vector<8x1xf32>
    %723 = tpu.reciprocal %722 {approx = true} : vector<8x1xf32> -> vector<8x1xf32>
    %724 = vector.broadcast %723 : vector<8x1xf32> to vector<8x8xf32>
    %725 = arith.mulf %720, %724 : vector<8x8xf32>
    %726 = arith.truncf %725 : vector<8x8xf32> to vector<8x8xbf16>
    %727 = arith.truncf %708 : vector<8x8xf32> to vector<8x8xbf16>
    %cst_453 = arith.constant dense<0.000000e+00> : vector<8x8xf32>
    %728 = tpu.matmul %726, %727, %cst_453 {dimension_numbers = #tpu.dot_dimension_numbers<[1], [0], [0], [1], [0, 0, 1, 1], [], []>} : vector<8x8xbf16>, vector<8x8xbf16>, vector<8x8xf32> -> vector<8x8xf32>
    %729 = arith.truncf %728 : vector<8x8xf32> to vector<8x8xbf16>
    %c4_454 = arith.constant 4 : index
    %c0_455 = arith.constant 0 : index
    %c0_456 = arith.constant 0 : index
    %730 = vector.load %arg11[%c4_454, %c0_455, %c0_456] : memref<8x8x32xbf16, #tpu.memory_space<vmem>>, vector<1x8x32xbf16>
    %731 = vector.shape_cast %730 : vector<1x8x32xbf16> to vector<8x32xbf16>
    %cst_457 = arith.constant dense<0.000000e+00> : vector<8x32xf32>
    %732 = tpu.matmul %729, %731, %cst_457 {dimension_numbers = #tpu.dot_dimension_numbers<[1], [0], [0], [1], [0, 0, 1, 1], [], []>} : vector<8x8xbf16>, vector<8x32xbf16>, vector<8x32xf32> -> vector<8x32xf32>
    %733 = arith.addf %687, %732 : vector<8x32xf32>
    %c5_458 = arith.constant 5 : index
    %c0_459 = arith.constant 0 : index
    %c0_460 = arith.constant 0 : index
    %734 = vector.load %arg5[%c5_458, %c0_459, %c0_460] : memref<8x32x8xbf16, #tpu.memory_space<vmem>>, vector<1x32x8xbf16>
    %735 = vector.shape_cast %734 : vector<1x32x8xbf16> to vector<32x8xbf16>
    %cst_461 = arith.constant dense<0.000000e+00> : vector<8x8xf32>
    %736 = tpu.matmul %684, %735, %cst_461 {dimension_numbers = #tpu.dot_dimension_numbers<[1], [0], [0], [1], [0, 0, 1, 1], [], []>} : vector<8x32xbf16>, vector<32x8xbf16>, vector<8x8xf32> -> vector<8x8xf32>
    %c5_462 = arith.constant 5 : index
    %c0_463 = arith.constant 0 : index
    %c0_464 = arith.constant 0 : index
    %737 = vector.load %arg6[%c5_462, %c0_463, %c0_464] : memref<8x1x8xf32, #tpu.memory_space<vmem>>, vector<1x1x8xf32>
    %738 = vector.shape_cast %737 : vector<1x1x8xf32> to vector<1x8xf32>
    %739 = vector.broadcast %738 : vector<1x8xf32> to vector<8x8xf32>
    %740 = arith.addf %736, %739 : vector<8x8xf32>
    %c5_465 = arith.constant 5 : index
    %c0_466 = arith.constant 0 : index
    %c0_467 = arith.constant 0 : index
    %741 = vector.load %arg7[%c5_465, %c0_466, %c0_467] : memref<8x32x8xbf16, #tpu.memory_space<vmem>>, vector<1x32x8xbf16>
    %742 = vector.shape_cast %741 : vector<1x32x8xbf16> to vector<32x8xbf16>
    %cst_468 = arith.constant dense<0.000000e+00> : vector<8x8xf32>
    %743 = tpu.matmul %684, %742, %cst_468 {dimension_numbers = #tpu.dot_dimension_numbers<[1], [0], [0], [1], [0, 0, 1, 1], [], []>} : vector<8x32xbf16>, vector<32x8xbf16>, vector<8x8xf32> -> vector<8x8xf32>
    %c5_469 = arith.constant 5 : index
    %c0_470 = arith.constant 0 : index
    %c0_471 = arith.constant 0 : index
    %744 = vector.load %arg8[%c5_469, %c0_470, %c0_471] : memref<8x1x8xf32, #tpu.memory_space<vmem>>, vector<1x1x8xf32>
    %745 = vector.shape_cast %744 : vector<1x1x8xf32> to vector<1x8xf32>
    %746 = vector.broadcast %745 : vector<1x8xf32> to vector<8x8xf32>
    %747 = arith.addf %743, %746 : vector<8x8xf32>
    %c5_472 = arith.constant 5 : index
    %c0_473 = arith.constant 0 : index
    %c0_474 = arith.constant 0 : index
    %748 = vector.load %arg9[%c5_472, %c0_473, %c0_474] : memref<8x32x8xbf16, #tpu.memory_space<vmem>>, vector<1x32x8xbf16>
    %749 = vector.shape_cast %748 : vector<1x32x8xbf16> to vector<32x8xbf16>
    %cst_475 = arith.constant dense<0.000000e+00> : vector<8x8xf32>
    %750 = tpu.matmul %684, %749, %cst_475 {dimension_numbers = #tpu.dot_dimension_numbers<[1], [0], [0], [1], [0, 0, 1, 1], [], []>} : vector<8x32xbf16>, vector<32x8xbf16>, vector<8x8xf32> -> vector<8x8xf32>
    %c5_476 = arith.constant 5 : index
    %c0_477 = arith.constant 0 : index
    %c0_478 = arith.constant 0 : index
    %751 = vector.load %arg10[%c5_476, %c0_477, %c0_478] : memref<8x1x8xf32, #tpu.memory_space<vmem>>, vector<1x1x8xf32>
    %752 = vector.shape_cast %751 : vector<1x1x8xf32> to vector<1x8xf32>
    %753 = vector.broadcast %752 : vector<1x8xf32> to vector<8x8xf32>
    %754 = arith.addf %750, %753 : vector<8x8xf32>
    %755 = arith.truncf %740 : vector<8x8xf32> to vector<8x8xbf16>
    %756 = arith.truncf %747 : vector<8x8xf32> to vector<8x8xbf16>
    %cst_479 = arith.constant dense<0.000000e+00> : vector<8x8xf32>
    %757 = tpu.matmul %755, %756, %cst_479 {dimension_numbers = #tpu.dot_dimension_numbers<[1], [1], [0], [0], [0, 0, 1, 0], [], []>} : vector<8x8xbf16>, vector<8x8xbf16>, vector<8x8xf32> -> vector<8x8xf32>
    %cst_480 = arith.constant 0.353553385 : f32
    %758 = vector.broadcast %cst_480 : f32 to vector<8x8xf32>
    %759 = arith.mulf %757, %758 : vector<8x8xf32>
    %760 = vector.broadcast %686 : vector<1x8xf32> to vector<8x8xf32>
    %761 = arith.addf %759, %760 : vector<8x8xf32>
    %cst_481 = arith.constant dense<0xFF800000> : vector<8xf32>
    %762 = vector.multi_reduction <maximumf>, %761, %cst_481 [1] : vector<8x8xf32> to vector<8xf32>
    %763 = vector.shape_cast %762 : vector<8xf32> to vector<8x1xf32>
    %764 = vector.broadcast %763 : vector<8x1xf32> to vector<8x8xf32>
    %765 = arith.subf %761, %764 : vector<8x8xf32>
    %766 = math.exp %765 : vector<8x8xf32>
    %cst_482 = arith.constant dense<0.000000e+00> : vector<8xf32>
    %767 = vector.multi_reduction <add>, %766, %cst_482 [1] : vector<8x8xf32> to vector<8xf32>
    %768 = vector.shape_cast %767 : vector<8xf32> to vector<8x1xf32>
    %769 = tpu.reciprocal %768 {approx = true} : vector<8x1xf32> -> vector<8x1xf32>
    %770 = vector.broadcast %769 : vector<8x1xf32> to vector<8x8xf32>
    %771 = arith.mulf %766, %770 : vector<8x8xf32>
    %772 = arith.truncf %771 : vector<8x8xf32> to vector<8x8xbf16>
    %773 = arith.truncf %754 : vector<8x8xf32> to vector<8x8xbf16>
    %cst_483 = arith.constant dense<0.000000e+00> : vector<8x8xf32>
    %774 = tpu.matmul %772, %773, %cst_483 {dimension_numbers = #tpu.dot_dimension_numbers<[1], [0], [0], [1], [0, 0, 1, 1], [], []>} : vector<8x8xbf16>, vector<8x8xbf16>, vector<8x8xf32> -> vector<8x8xf32>
    %775 = arith.truncf %774 : vector<8x8xf32> to vector<8x8xbf16>
    %c5_484 = arith.constant 5 : index
    %c0_485 = arith.constant 0 : index
    %c0_486 = arith.constant 0 : index
    %776 = vector.load %arg11[%c5_484, %c0_485, %c0_486] : memref<8x8x32xbf16, #tpu.memory_space<vmem>>, vector<1x8x32xbf16>
    %777 = vector.shape_cast %776 : vector<1x8x32xbf16> to vector<8x32xbf16>
    %cst_487 = arith.constant dense<0.000000e+00> : vector<8x32xf32>
    %778 = tpu.matmul %775, %777, %cst_487 {dimension_numbers = #tpu.dot_dimension_numbers<[1], [0], [0], [1], [0, 0, 1, 1], [], []>} : vector<8x8xbf16>, vector<8x32xbf16>, vector<8x32xf32> -> vector<8x32xf32>
    %779 = arith.addf %733, %778 : vector<8x32xf32>
    %c6_488 = arith.constant 6 : index
    %c0_489 = arith.constant 0 : index
    %c0_490 = arith.constant 0 : index
    %780 = vector.load %arg5[%c6_488, %c0_489, %c0_490] : memref<8x32x8xbf16, #tpu.memory_space<vmem>>, vector<1x32x8xbf16>
    %781 = vector.shape_cast %780 : vector<1x32x8xbf16> to vector<32x8xbf16>
    %cst_491 = arith.constant dense<0.000000e+00> : vector<8x8xf32>
    %782 = tpu.matmul %684, %781, %cst_491 {dimension_numbers = #tpu.dot_dimension_numbers<[1], [0], [0], [1], [0, 0, 1, 1], [], []>} : vector<8x32xbf16>, vector<32x8xbf16>, vector<8x8xf32> -> vector<8x8xf32>
    %c6_492 = arith.constant 6 : index
    %c0_493 = arith.constant 0 : index
    %c0_494 = arith.constant 0 : index
    %783 = vector.load %arg6[%c6_492, %c0_493, %c0_494] : memref<8x1x8xf32, #tpu.memory_space<vmem>>, vector<1x1x8xf32>
    %784 = vector.shape_cast %783 : vector<1x1x8xf32> to vector<1x8xf32>
    %785 = vector.broadcast %784 : vector<1x8xf32> to vector<8x8xf32>
    %786 = arith.addf %782, %785 : vector<8x8xf32>
    %c6_495 = arith.constant 6 : index
    %c0_496 = arith.constant 0 : index
    %c0_497 = arith.constant 0 : index
    %787 = vector.load %arg7[%c6_495, %c0_496, %c0_497] : memref<8x32x8xbf16, #tpu.memory_space<vmem>>, vector<1x32x8xbf16>
    %788 = vector.shape_cast %787 : vector<1x32x8xbf16> to vector<32x8xbf16>
    %cst_498 = arith.constant dense<0.000000e+00> : vector<8x8xf32>
    %789 = tpu.matmul %684, %788, %cst_498 {dimension_numbers = #tpu.dot_dimension_numbers<[1], [0], [0], [1], [0, 0, 1, 1], [], []>} : vector<8x32xbf16>, vector<32x8xbf16>, vector<8x8xf32> -> vector<8x8xf32>
    %c6_499 = arith.constant 6 : index
    %c0_500 = arith.constant 0 : index
    %c0_501 = arith.constant 0 : index
    %790 = vector.load %arg8[%c6_499, %c0_500, %c0_501] : memref<8x1x8xf32, #tpu.memory_space<vmem>>, vector<1x1x8xf32>
    %791 = vector.shape_cast %790 : vector<1x1x8xf32> to vector<1x8xf32>
    %792 = vector.broadcast %791 : vector<1x8xf32> to vector<8x8xf32>
    %793 = arith.addf %789, %792 : vector<8x8xf32>
    %c6_502 = arith.constant 6 : index
    %c0_503 = arith.constant 0 : index
    %c0_504 = arith.constant 0 : index
    %794 = vector.load %arg9[%c6_502, %c0_503, %c0_504] : memref<8x32x8xbf16, #tpu.memory_space<vmem>>, vector<1x32x8xbf16>
    %795 = vector.shape_cast %794 : vector<1x32x8xbf16> to vector<32x8xbf16>
    %cst_505 = arith.constant dense<0.000000e+00> : vector<8x8xf32>
    %796 = tpu.matmul %684, %795, %cst_505 {dimension_numbers = #tpu.dot_dimension_numbers<[1], [0], [0], [1], [0, 0, 1, 1], [], []>} : vector<8x32xbf16>, vector<32x8xbf16>, vector<8x8xf32> -> vector<8x8xf32>
    %c6_506 = arith.constant 6 : index
    %c0_507 = arith.constant 0 : index
    %c0_508 = arith.constant 0 : index
    %797 = vector.load %arg10[%c6_506, %c0_507, %c0_508] : memref<8x1x8xf32, #tpu.memory_space<vmem>>, vector<1x1x8xf32>
    %798 = vector.shape_cast %797 : vector<1x1x8xf32> to vector<1x8xf32>
    %799 = vector.broadcast %798 : vector<1x8xf32> to vector<8x8xf32>
    %800 = arith.addf %796, %799 : vector<8x8xf32>
    %801 = arith.truncf %786 : vector<8x8xf32> to vector<8x8xbf16>
    %802 = arith.truncf %793 : vector<8x8xf32> to vector<8x8xbf16>
    %cst_509 = arith.constant dense<0.000000e+00> : vector<8x8xf32>
    %803 = tpu.matmul %801, %802, %cst_509 {dimension_numbers = #tpu.dot_dimension_numbers<[1], [1], [0], [0], [0, 0, 1, 0], [], []>} : vector<8x8xbf16>, vector<8x8xbf16>, vector<8x8xf32> -> vector<8x8xf32>
    %cst_510 = arith.constant 0.353553385 : f32
    %804 = vector.broadcast %cst_510 : f32 to vector<8x8xf32>
    %805 = arith.mulf %803, %804 : vector<8x8xf32>
    %806 = vector.broadcast %686 : vector<1x8xf32> to vector<8x8xf32>
    %807 = arith.addf %805, %806 : vector<8x8xf32>
    %cst_511 = arith.constant dense<0xFF800000> : vector<8xf32>
    %808 = vector.multi_reduction <maximumf>, %807, %cst_511 [1] : vector<8x8xf32> to vector<8xf32>
    %809 = vector.shape_cast %808 : vector<8xf32> to vector<8x1xf32>
    %810 = vector.broadcast %809 : vector<8x1xf32> to vector<8x8xf32>
    %811 = arith.subf %807, %810 : vector<8x8xf32>
    %812 = math.exp %811 : vector<8x8xf32>
    %cst_512 = arith.constant dense<0.000000e+00> : vector<8xf32>
    %813 = vector.multi_reduction <add>, %812, %cst_512 [1] : vector<8x8xf32> to vector<8xf32>
    %814 = vector.shape_cast %813 : vector<8xf32> to vector<8x1xf32>
    %815 = tpu.reciprocal %814 {approx = true} : vector<8x1xf32> -> vector<8x1xf32>
    %816 = vector.broadcast %815 : vector<8x1xf32> to vector<8x8xf32>
    %817 = arith.mulf %812, %816 : vector<8x8xf32>
    %818 = arith.truncf %817 : vector<8x8xf32> to vector<8x8xbf16>
    %819 = arith.truncf %800 : vector<8x8xf32> to vector<8x8xbf16>
    %cst_513 = arith.constant dense<0.000000e+00> : vector<8x8xf32>
    %820 = tpu.matmul %818, %819, %cst_513 {dimension_numbers = #tpu.dot_dimension_numbers<[1], [0], [0], [1], [0, 0, 1, 1], [], []>} : vector<8x8xbf16>, vector<8x8xbf16>, vector<8x8xf32> -> vector<8x8xf32>
    %821 = arith.truncf %820 : vector<8x8xf32> to vector<8x8xbf16>
    %c6_514 = arith.constant 6 : index
    %c0_515 = arith.constant 0 : index
    %c0_516 = arith.constant 0 : index
    %822 = vector.load %arg11[%c6_514, %c0_515, %c0_516] : memref<8x8x32xbf16, #tpu.memory_space<vmem>>, vector<1x8x32xbf16>
    %823 = vector.shape_cast %822 : vector<1x8x32xbf16> to vector<8x32xbf16>
    %cst_517 = arith.constant dense<0.000000e+00> : vector<8x32xf32>
    %824 = tpu.matmul %821, %823, %cst_517 {dimension_numbers = #tpu.dot_dimension_numbers<[1], [0], [0], [1], [0, 0, 1, 1], [], []>} : vector<8x8xbf16>, vector<8x32xbf16>, vector<8x32xf32> -> vector<8x32xf32>
    %825 = arith.addf %779, %824 : vector<8x32xf32>
    %c7_518 = arith.constant 7 : index
    %c0_519 = arith.constant 0 : index
    %c0_520 = arith.constant 0 : index
    %826 = vector.load %arg5[%c7_518, %c0_519, %c0_520] : memref<8x32x8xbf16, #tpu.memory_space<vmem>>, vector<1x32x8xbf16>
    %827 = vector.shape_cast %826 : vector<1x32x8xbf16> to vector<32x8xbf16>
    %cst_521 = arith.constant dense<0.000000e+00> : vector<8x8xf32>
    %828 = tpu.matmul %684, %827, %cst_521 {dimension_numbers = #tpu.dot_dimension_numbers<[1], [0], [0], [1], [0, 0, 1, 1], [], []>} : vector<8x32xbf16>, vector<32x8xbf16>, vector<8x8xf32> -> vector<8x8xf32>
    %c7_522 = arith.constant 7 : index
    %c0_523 = arith.constant 0 : index
    %c0_524 = arith.constant 0 : index
    %829 = vector.load %arg6[%c7_522, %c0_523, %c0_524] : memref<8x1x8xf32, #tpu.memory_space<vmem>>, vector<1x1x8xf32>
    %830 = vector.shape_cast %829 : vector<1x1x8xf32> to vector<1x8xf32>
    %831 = vector.broadcast %830 : vector<1x8xf32> to vector<8x8xf32>
    %832 = arith.addf %828, %831 : vector<8x8xf32>
    %c7_525 = arith.constant 7 : index
    %c0_526 = arith.constant 0 : index
    %c0_527 = arith.constant 0 : index
    %833 = vector.load %arg7[%c7_525, %c0_526, %c0_527] : memref<8x32x8xbf16, #tpu.memory_space<vmem>>, vector<1x32x8xbf16>
    %834 = vector.shape_cast %833 : vector<1x32x8xbf16> to vector<32x8xbf16>
    %cst_528 = arith.constant dense<0.000000e+00> : vector<8x8xf32>
    %835 = tpu.matmul %684, %834, %cst_528 {dimension_numbers = #tpu.dot_dimension_numbers<[1], [0], [0], [1], [0, 0, 1, 1], [], []>} : vector<8x32xbf16>, vector<32x8xbf16>, vector<8x8xf32> -> vector<8x8xf32>
    %c7_529 = arith.constant 7 : index
    %c0_530 = arith.constant 0 : index
    %c0_531 = arith.constant 0 : index
    %836 = vector.load %arg8[%c7_529, %c0_530, %c0_531] : memref<8x1x8xf32, #tpu.memory_space<vmem>>, vector<1x1x8xf32>
    %837 = vector.shape_cast %836 : vector<1x1x8xf32> to vector<1x8xf32>
    %838 = vector.broadcast %837 : vector<1x8xf32> to vector<8x8xf32>
    %839 = arith.addf %835, %838 : vector<8x8xf32>
    %c7_532 = arith.constant 7 : index
    %c0_533 = arith.constant 0 : index
    %c0_534 = arith.constant 0 : index
    %840 = vector.load %arg9[%c7_532, %c0_533, %c0_534] : memref<8x32x8xbf16, #tpu.memory_space<vmem>>, vector<1x32x8xbf16>
    %841 = vector.shape_cast %840 : vector<1x32x8xbf16> to vector<32x8xbf16>
    %cst_535 = arith.constant dense<0.000000e+00> : vector<8x8xf32>
    %842 = tpu.matmul %684, %841, %cst_535 {dimension_numbers = #tpu.dot_dimension_numbers<[1], [0], [0], [1], [0, 0, 1, 1], [], []>} : vector<8x32xbf16>, vector<32x8xbf16>, vector<8x8xf32> -> vector<8x8xf32>
    %c7_536 = arith.constant 7 : index
    %c0_537 = arith.constant 0 : index
    %c0_538 = arith.constant 0 : index
    %843 = vector.load %arg10[%c7_536, %c0_537, %c0_538] : memref<8x1x8xf32, #tpu.memory_space<vmem>>, vector<1x1x8xf32>
    %844 = vector.shape_cast %843 : vector<1x1x8xf32> to vector<1x8xf32>
    %845 = vector.broadcast %844 : vector<1x8xf32> to vector<8x8xf32>
    %846 = arith.addf %842, %845 : vector<8x8xf32>
    %847 = arith.truncf %832 : vector<8x8xf32> to vector<8x8xbf16>
    %848 = arith.truncf %839 : vector<8x8xf32> to vector<8x8xbf16>
    %cst_539 = arith.constant dense<0.000000e+00> : vector<8x8xf32>
    %849 = tpu.matmul %847, %848, %cst_539 {dimension_numbers = #tpu.dot_dimension_numbers<[1], [1], [0], [0], [0, 0, 1, 0], [], []>} : vector<8x8xbf16>, vector<8x8xbf16>, vector<8x8xf32> -> vector<8x8xf32>
    %cst_540 = arith.constant 0.353553385 : f32
    %850 = vector.broadcast %cst_540 : f32 to vector<8x8xf32>
    %851 = arith.mulf %849, %850 : vector<8x8xf32>
    %852 = vector.broadcast %686 : vector<1x8xf32> to vector<8x8xf32>
    %853 = arith.addf %851, %852 : vector<8x8xf32>
    %cst_541 = arith.constant dense<0xFF800000> : vector<8xf32>
    %854 = vector.multi_reduction <maximumf>, %853, %cst_541 [1] : vector<8x8xf32> to vector<8xf32>
    %855 = vector.shape_cast %854 : vector<8xf32> to vector<8x1xf32>
    %856 = vector.broadcast %855 : vector<8x1xf32> to vector<8x8xf32>
    %857 = arith.subf %853, %856 : vector<8x8xf32>
    %858 = math.exp %857 : vector<8x8xf32>
    %cst_542 = arith.constant dense<0.000000e+00> : vector<8xf32>
    %859 = vector.multi_reduction <add>, %858, %cst_542 [1] : vector<8x8xf32> to vector<8xf32>
    %860 = vector.shape_cast %859 : vector<8xf32> to vector<8x1xf32>
    %861 = tpu.reciprocal %860 {approx = true} : vector<8x1xf32> -> vector<8x1xf32>
    %862 = vector.broadcast %861 : vector<8x1xf32> to vector<8x8xf32>
    %863 = arith.mulf %858, %862 : vector<8x8xf32>
    %864 = arith.truncf %863 : vector<8x8xf32> to vector<8x8xbf16>
    %865 = arith.truncf %846 : vector<8x8xf32> to vector<8x8xbf16>
    %cst_543 = arith.constant dense<0.000000e+00> : vector<8x8xf32>
    %866 = tpu.matmul %864, %865, %cst_543 {dimension_numbers = #tpu.dot_dimension_numbers<[1], [0], [0], [1], [0, 0, 1, 1], [], []>} : vector<8x8xbf16>, vector<8x8xbf16>, vector<8x8xf32> -> vector<8x8xf32>
    %867 = arith.truncf %866 : vector<8x8xf32> to vector<8x8xbf16>
    %c7_544 = arith.constant 7 : index
    %c0_545 = arith.constant 0 : index
    %c0_546 = arith.constant 0 : index
    %868 = vector.load %arg11[%c7_544, %c0_545, %c0_546] : memref<8x8x32xbf16, #tpu.memory_space<vmem>>, vector<1x8x32xbf16>
    %869 = vector.shape_cast %868 : vector<1x8x32xbf16> to vector<8x32xbf16>
    %cst_547 = arith.constant dense<0.000000e+00> : vector<8x32xf32>
    %870 = tpu.matmul %867, %869, %cst_547 {dimension_numbers = #tpu.dot_dimension_numbers<[1], [0], [0], [1], [0, 0, 1, 1], [], []>} : vector<8x8xbf16>, vector<8x32xbf16>, vector<8x32xf32> -> vector<8x32xf32>
    %871 = arith.addf %825, %870 : vector<8x32xf32>
    %c8_548 = arith.constant 8 : index
    %c0_549 = arith.constant 0 : index
    %872 = vector.load %arg26[%c8_548, %c0_549] : memref<16x32xf32, #tpu.memory_space<vmem>>, vector<8x32xf32>
    tpu.vector_store %arg26[%c8_548, %c0_549], %871 {strides = array<i32>} : memref<16x32xf32, #tpu.memory_space<vmem>>, vector<8x32xf32>,
    %c0_550 = arith.constant 0 : index
    %c0_551 = arith.constant 0 : index
    %873 = vector.load %arg26[%c0_550, %c0_551] : memref<16x32xf32, #tpu.memory_space<vmem>>, vector<16x32xf32>
    %c1_552 = arith.constant 1 : index
    %c0_553 = arith.constant 0 : index
    %c0_554 = arith.constant 0 : index
    %874 = vector.load %arg12[%c1_552, %c0_553, %c0_554] : memref<2x1x32xf32, #tpu.memory_space<vmem>>, vector<1x1x32xf32>
    %875 = vector.shape_cast %874 : vector<1x1x32xf32> to vector<1x32xf32>
    %876 = vector.broadcast %875 : vector<1x32xf32> to vector<16x32xf32>
    %877 = arith.addf %873, %876 : vector<16x32xf32>
    %878 = arith.addf %877, %492 : vector<16x32xf32>
    %c1_555 = arith.constant 1 : index
    %c0_556 = arith.constant 0 : index
    %c0_557 = arith.constant 0 : index
    %879 = vector.load %arg13[%c1_555, %c0_556, %c0_557] : memref<2x1x32xf32, #tpu.memory_space<vmem>>, vector<1x1x32xf32>
    %880 = vector.shape_cast %879 : vector<1x1x32xf32> to vector<1x32xf32>
    %c1_558 = arith.constant 1 : index
    %c0_559 = arith.constant 0 : index
    %c0_560 = arith.constant 0 : index
    %881 = vector.load %arg14[%c1_558, %c0_559, %c0_560] : memref<2x1x32xf32, #tpu.memory_space<vmem>>, vector<1x1x32xf32>
    %882 = vector.shape_cast %881 : vector<1x1x32xf32> to vector<1x32xf32>
    %cst_561 = arith.constant dense<0.000000e+00> : vector<16xf32>
    %883 = vector.multi_reduction <add>, %878, %cst_561 [1] : vector<16x32xf32> to vector<16xf32>
    %884 = vector.shape_cast %883 : vector<16xf32> to vector<16x1xf32>
    %cst_562 = arith.constant 3.200000e+01 : f32
    %885 = vector.broadcast %cst_562 : f32 to vector<16x1xf32>
    %886 = arith.divf %884, %885 : vector<16x1xf32>
    %887 = vector.broadcast %886 : vector<16x1xf32> to vector<16x32xf32>
    %888 = arith.subf %878, %887 : vector<16x32xf32>
    %889 = arith.mulf %888, %888 : vector<16x32xf32>
    %cst_563 = arith.constant dense<0.000000e+00> : vector<16xf32>
    %890 = vector.multi_reduction <add>, %889, %cst_563 [1] : vector<16x32xf32> to vector<16xf32>
    %891 = vector.shape_cast %890 : vector<16xf32> to vector<16x1xf32>
    %cst_564 = arith.constant 3.200000e+01 : f32
    %892 = vector.broadcast %cst_564 : f32 to vector<16x1xf32>
    %893 = arith.divf %891, %892 : vector<16x1xf32>
    %894 = vector.broadcast %886 : vector<16x1xf32> to vector<16x32xf32>
    %895 = arith.subf %878, %894 : vector<16x32xf32>
    %cst_565 = arith.constant 9.99999996E-13 : f32
    %896 = vector.broadcast %cst_565 : f32 to vector<16x1xf32>
    %897 = arith.addf %893, %896 : vector<16x1xf32>
    %898 = math.rsqrt %897 : vector<16x1xf32>
    %899 = vector.broadcast %898 : vector<16x1xf32> to vector<16x32xf32>
    %900 = arith.mulf %895, %899 : vector<16x32xf32>
    %901 = vector.broadcast %880 : vector<1x32xf32> to vector<16x32xf32>
    %902 = arith.mulf %900, %901 : vector<16x32xf32>
    %903 = vector.broadcast %882 : vector<1x32xf32> to vector<16x32xf32>
    %904 = arith.addf %902, %903 : vector<16x32xf32>
    %905 = arith.truncf %904 : vector<16x32xf32> to vector<16x32xbf16>
    %c1_566 = arith.constant 1 : index
    %c0_567 = arith.constant 0 : index
    %c0_568 = arith.constant 0 : index
    %906 = vector.load %arg15[%c1_566, %c0_567, %c0_568] : memref<2x32x64xbf16, #tpu.memory_space<vmem>>, vector<1x32x64xbf16>
    %907 = vector.shape_cast %906 : vector<1x32x64xbf16> to vector<32x64xbf16>
    %cst_569 = arith.constant dense<0.000000e+00> : vector<16x64xf32>
    %908 = tpu.matmul %905, %907, %cst_569 {dimension_numbers = #tpu.dot_dimension_numbers<[1], [0], [0], [1], [0, 0, 1, 1], [], []>} : vector<16x32xbf16>, vector<32x64xbf16>, vector<16x64xf32> -> vector<16x64xf32>
    %c1_570 = arith.constant 1 : index
    %c0_571 = arith.constant 0 : index
    %c0_572 = arith.constant 0 : index
    %909 = vector.load %arg16[%c1_570, %c0_571, %c0_572] : memref<2x1x64xf32, #tpu.memory_space<vmem>>, vector<1x1x64xf32>
    %910 = vector.shape_cast %909 : vector<1x1x64xf32> to vector<1x64xf32>
    %911 = vector.broadcast %910 : vector<1x64xf32> to vector<16x64xf32>
    %912 = arith.addf %908, %911 : vector<16x64xf32>
    %913 = arith.mulf %912, %912 : vector<16x64xf32>
    %914 = arith.mulf %912, %913 : vector<16x64xf32>
    %cst_573 = arith.constant 4.471500e-02 : f32
    %915 = vector.broadcast %cst_573 : f32 to vector<16x64xf32>
    %916 = arith.mulf %915, %914 : vector<16x64xf32>
    %917 = arith.addf %912, %916 : vector<16x64xf32>
    %cst_574 = arith.constant 0.797884583 : f32
    %918 = vector.broadcast %cst_574 : f32 to vector<16x64xf32>
    %919 = arith.mulf %918, %917 : vector<16x64xf32>
    %920 = math.tanh %919 : vector<16x64xf32>
    %cst_575 = arith.constant 1.000000e+00 : f32
    %921 = vector.broadcast %cst_575 : f32 to vector<16x64xf32>
    %922 = arith.addf %921, %920 : vector<16x64xf32>
    %cst_576 = arith.constant 5.000000e-01 : f32
    %923 = vector.broadcast %cst_576 : f32 to vector<16x64xf32>
    %924 = arith.mulf %923, %922 : vector<16x64xf32>
    %925 = arith.mulf %912, %924 : vector<16x64xf32>
    %926 = arith.truncf %925 : vector<16x64xf32> to vector<16x64xbf16>
    %c1_577 = arith.constant 1 : index
    %c0_578 = arith.constant 0 : index
    %c0_579 = arith.constant 0 : index
    %927 = vector.load %arg17[%c1_577, %c0_578, %c0_579] : memref<2x64x32xbf16, #tpu.memory_space<vmem>>, vector<1x64x32xbf16>
    %928 = vector.shape_cast %927 : vector<1x64x32xbf16> to vector<64x32xbf16>
    %cst_580 = arith.constant dense<0.000000e+00> : vector<16x32xf32>
    %929 = tpu.matmul %926, %928, %cst_580 {dimension_numbers = #tpu.dot_dimension_numbers<[1], [0], [0], [1], [0, 0, 1, 1], [], []>} : vector<16x64xbf16>, vector<64x32xbf16>, vector<16x32xf32> -> vector<16x32xf32>
    %c1_581 = arith.constant 1 : index
    %c0_582 = arith.constant 0 : index
    %c0_583 = arith.constant 0 : index
    %930 = vector.load %arg18[%c1_581, %c0_582, %c0_583] : memref<2x1x32xf32, #tpu.memory_space<vmem>>, vector<1x1x32xf32>
    %931 = vector.shape_cast %930 : vector<1x1x32xf32> to vector<1x32xf32>
    %932 = vector.broadcast %931 : vector<1x32xf32> to vector<16x32xf32>
    %933 = arith.addf %929, %932 : vector<16x32xf32>
    %934 = arith.addf %933, %904 : vector<16x32xf32>
    %c1_584 = arith.constant 1 : index
    %c0_585 = arith.constant 0 : index
    %c0_586 = arith.constant 0 : index
    %935 = vector.load %arg19[%c1_584, %c0_585, %c0_586] : memref<2x1x32xf32, #tpu.memory_space<vmem>>, vector<1x1x32xf32>
    %936 = vector.shape_cast %935 : vector<1x1x32xf32> to vector<1x32xf32>
    %c1_587 = arith.constant 1 : index
    %c0_588 = arith.constant 0 : index
    %c0_589 = arith.constant 0 : index
    %937 = vector.load %arg20[%c1_587, %c0_588, %c0_589] : memref<2x1x32xf32, #tpu.memory_space<vmem>>, vector<1x1x32xf32>
    %938 = vector.shape_cast %937 : vector<1x1x32xf32> to vector<1x32xf32>
    %cst_590 = arith.constant dense<0.000000e+00> : vector<16xf32>
    %939 = vector.multi_reduction <add>, %934, %cst_590 [1] : vector<16x32xf32> to vector<16xf32>
    %940 = vector.shape_cast %939 : vector<16xf32> to vector<16x1xf32>
    %cst_591 = arith.constant 3.200000e+01 : f32
    %941 = vector.broadcast %cst_591 : f32 to vector<16x1xf32>
    %942 = arith.divf %940, %941 : vector<16x1xf32>
    %943 = vector.broadcast %942 : vector<16x1xf32> to vector<16x32xf32>
    %944 = arith.subf %934, %943 : vector<16x32xf32>
    %945 = arith.mulf %944, %944 : vector<16x32xf32>
    %cst_592 = arith.constant dense<0.000000e+00> : vector<16xf32>
    %946 = vector.multi_reduction <add>, %945, %cst_592 [1] : vector<16x32xf32> to vector<16xf32>
    %947 = vector.shape_cast %946 : vector<16xf32> to vector<16x1xf32>
    %cst_593 = arith.constant 3.200000e+01 : f32
    %948 = vector.broadcast %cst_593 : f32 to vector<16x1xf32>
    %949 = arith.divf %947, %948 : vector<16x1xf32>
    %950 = vector.broadcast %942 : vector<16x1xf32> to vector<16x32xf32>
    %951 = arith.subf %934, %950 : vector<16x32xf32>
    %cst_594 = arith.constant 9.99999996E-13 : f32
    %952 = vector.broadcast %cst_594 : f32 to vector<16x1xf32>
    %953 = arith.addf %949, %952 : vector<16x1xf32>
    %954 = math.rsqrt %953 : vector<16x1xf32>
    %955 = vector.broadcast %954 : vector<16x1xf32> to vector<16x32xf32>
    %956 = arith.mulf %951, %955 : vector<16x32xf32>
    %957 = vector.broadcast %936 : vector<1x32xf32> to vector<16x32xf32>
    %958 = arith.mulf %956, %957 : vector<16x32xf32>
    %959 = vector.broadcast %938 : vector<1x32xf32> to vector<16x32xf32>
    %960 = arith.addf %958, %959 : vector<16x32xf32>
    %961 = vector.extract_strided_slice %960 {offsets = [0, 0], sizes = [1, 32], strides = [1, 1]} : vector<16x32xf32> to vector<1x32xf32>
    %962 = arith.truncf %961 : vector<1x32xf32> to vector<1x32xbf16>
    %c0_595 = arith.constant 0 : index
    %c0_596 = arith.constant 0 : index
    %963 = vector.load %arg21[%c0_595, %c0_596] : memref<32x32xbf16, #tpu.memory_space<vmem>>, vector<32x32xbf16>
    %cst_597 = arith.constant dense<0.000000e+00> : vector<1x32xf32>
    %964 = tpu.matmul %962, %963, %cst_597 {dimension_numbers = #tpu.dot_dimension_numbers<[1], [0], [0], [1], [0, 0, 1, 1], [], []>} : vector<1x32xbf16>, vector<32x32xbf16>, vector<1x32xf32> -> vector<1x32xf32>
    %c0_598 = arith.constant 0 : index
    %c0_599 = arith.constant 0 : index
    %965 = vector.load %arg22[%c0_598, %c0_599] : memref<1x32xf32, #tpu.memory_space<vmem>>, vector<1x32xf32>
    %966 = arith.addf %964, %965 : vector<1x32xf32>
    %967 = math.tanh %966 : vector<1x32xf32>
    %968 = arith.truncf %967 : vector<1x32xf32> to vector<1x32xbf16>
    %c0_600 = arith.constant 0 : index
    %c0_601 = arith.constant 0 : index
    %969 = vector.load %arg23[%c0_600, %c0_601] : memref<32x3xbf16, #tpu.memory_space<vmem>>, vector<32x3xbf16>
    %cst_602 = arith.constant dense<0.000000e+00> : vector<1x3xf32>
    %970 = tpu.matmul %968, %969, %cst_602 {dimension_numbers = #tpu.dot_dimension_numbers<[1], [0], [0], [1], [0, 0, 1, 1], [], []>} : vector<1x32xbf16>, vector<32x3xbf16>, vector<1x3xf32> -> vector<1x3xf32>
    %c0_603 = arith.constant 0 : index
    %c0_604 = arith.constant 0 : index
    %971 = vector.load %arg24[%c0_603, %c0_604] : memref<1x3xf32, #tpu.memory_space<vmem>>, vector<1x3xf32>
    %972 = arith.addf %970, %971 : vector<1x3xf32>
    %c0_605 = arith.constant 0 : index
    %c0_606 = arith.constant 0 : index
    %973 = vector.load %arg25[%c0_605, %c0_606] : memref<2x3xf32, #tpu.memory_space<vmem>>, vector<1x3xf32>
    tpu.vector_store %arg25[%c0_605, %c0_606], %972 {strides = array<i32>} : memref<2x3xf32, #tpu.memory_space<vmem>>, vector<1x3xf32>,
    %974 = vector.extract_strided_slice %960 {offsets = [8, 0], sizes = [1, 32], strides = [1, 1]} : vector<16x32xf32> to vector<1x32xf32>
    %975 = arith.truncf %974 : vector<1x32xf32> to vector<1x32xbf16>
    %c0_607 = arith.constant 0 : index
    %c0_608 = arith.constant 0 : index
    %976 = vector.load %arg21[%c0_607, %c0_608] : memref<32x32xbf16, #tpu.memory_space<vmem>>, vector<32x32xbf16>
    %cst_609 = arith.constant dense<0.000000e+00> : vector<1x32xf32>
    %977 = tpu.matmul %975, %976, %cst_609 {dimension_numbers = #tpu.dot_dimension_numbers<[1], [0], [0], [1], [0, 0, 1, 1], [], []>} : vector<1x32xbf16>, vector<32x32xbf16>, vector<1x32xf32> -> vector<1x32xf32>
    %c0_610 = arith.constant 0 : index
    %c0_611 = arith.constant 0 : index
    %978 = vector.load %arg22[%c0_610, %c0_611] : memref<1x32xf32, #tpu.memory_space<vmem>>, vector<1x32xf32>
    %979 = arith.addf %977, %978 : vector<1x32xf32>
    %980 = math.tanh %979 : vector<1x32xf32>
    %981 = arith.truncf %980 : vector<1x32xf32> to vector<1x32xbf16>
    %c0_612 = arith.constant 0 : index
    %c0_613 = arith.constant 0 : index
    %982 = vector.load %arg23[%c0_612, %c0_613] : memref<32x3xbf16, #tpu.memory_space<vmem>>, vector<32x3xbf16>
    %cst_614 = arith.constant dense<0.000000e+00> : vector<1x3xf32>
    %983 = tpu.matmul %981, %982, %cst_614 {dimension_numbers = #tpu.dot_dimension_numbers<[1], [0], [0], [1], [0, 0, 1, 1], [], []>} : vector<1x32xbf16>, vector<32x3xbf16>, vector<1x3xf32> -> vector<1x3xf32>
    %c0_615 = arith.constant 0 : index
    %c0_616 = arith.constant 0 : index
    %984 = vector.load %arg24[%c0_615, %c0_616] : memref<1x3xf32, #tpu.memory_space<vmem>>, vector<1x3xf32>
    %985 = arith.addf %983, %984 : vector<1x3xf32>
    %c1_617 = arith.constant 1 : index
    %c0_618 = arith.constant 0 : index
    %986 = vector.load %arg25[%c1_617, %c0_618] : memref<2x3xf32, #tpu.memory_space<vmem>>, vector<1x3xf32>
    tpu.vector_store %arg25[%c1_617, %c0_618], %985 {strides = array<i32>} : memref<2x3xf32, #tpu.memory_space<vmem>>, vector<1x3xf32>,
    return
  }
  func.func @transform_0(%arg0: i32) -> (i32, i32) {
    %c0_i32 = arith.constant 0 : i32
    %c0_i32_0 = arith.constant 0 : i32
    %c0_i32_1 = arith.constant 0 : i32
    return %c0_i32, %c0_i32_0 : i32, i32
  }
  func.func @transform_1(%arg0: i32) -> (i32, i32, i32) {
    %c0_i32 = arith.constant 0 : i32
    %c0_i32_0 = arith.constant 0 : i32
    %c0_i32_1 = arith.constant 0 : i32
    %c0_i32_2 = arith.constant 0 : i32
    return %c0_i32, %c0_i32_0, %c0_i32_1 : i32, i32, i32
  }
  func.func @transform_2(%arg0: i32) -> (i32, i32) {
    %c0_i32 = arith.constant 0 : i32
    %c0_i32_0 = arith.constant 0 : i32
    %c0_i32_1 = arith.constant 0 : i32
    return %c0_i32, %c0_i32_0 : i32, i32
  }
  func.func @transform_3(%arg0: i32) -> (i32, i32) {
    %c0_i32 = arith.constant 0 : i32
    %c0_i32_0 = arith.constant 0 : i32
    %c0_i32_1 = arith.constant 0 : i32
    return %c0_i32, %c0_i32_0 : i32, i32
  }
  func.func @transform_4(%arg0: i32) -> (i32, i32, i32) {
    %c0_i32 = arith.constant 0 : i32
    %c0_i32_0 = arith.constant 0 : i32
    %c0_i32_1 = arith.constant 0 : i32
    %c0_i32_2 = arith.constant 0 : i32
    return %c0_i32, %c0_i32_0, %c0_i32_1 : i32, i32, i32
  }
  func.func @transform_5(%arg0: i32) -> (i32, i32, i32) {
    %c0_i32 = arith.constant 0 : i32
    %c0_i32_0 = arith.constant 0 : i32
    %c0_i32_1 = arith.constant 0 : i32
    %c0_i32_2 = arith.constant 0 : i32
    return %c0_i32, %c0_i32_0, %c0_i32_1 : i32, i32, i32
  }
  func.func @transform_6(%arg0: i32) -> (i32, i32, i32) {
    %c0_i32 = arith.constant 0 : i32
    %c0_i32_0 = arith.constant 0 : i32
    %c0_i32_1 = arith.constant 0 : i32
    %c0_i32_2 = arith.constant 0 : i32
    return %c0_i32, %c0_i32_0, %c0_i32_1 : i32, i32, i32
  }
  func.func @transform_7(%arg0: i32) -> (i32, i32, i32) {
    %c0_i32 = arith.constant 0 : i32
    %c0_i32_0 = arith.constant 0 : i32
    %c0_i32_1 = arith.constant 0 : i32
    %c0_i32_2 = arith.constant 0 : i32
    return %c0_i32, %c0_i32_0, %c0_i32_1 : i32, i32, i32
  }
  func.func @transform_8(%arg0: i32) -> (i32, i32, i32) {
    %c0_i32 = arith.constant 0 : i32
    %c0_i32_0 = arith.constant 0 : i32
    %c0_i32_1 = arith.constant 0 : i32
    %c0_i32_2 = arith.constant 0 : i32
    return %c0_i32, %c0_i32_0, %c0_i32_1 : i32, i32, i32
  }
  func.func @transform_9(%arg0: i32) -> (i32, i32, i32) {
    %c0_i32 = arith.constant 0 : i32
    %c0_i32_0 = arith.constant 0 : i32
    %c0_i32_1 = arith.constant 0 : i32
    %c0_i32_2 = arith.constant 0 : i32
    return %c0_i32, %c0_i32_0, %c0_i32_1 : i32, i32, i32
  }
  func.func @transform_10(%arg0: i32) -> (i32, i32, i32) {
    %c0_i32 = arith.constant 0 : i32
    %c0_i32_0 = arith.constant 0 : i32
    %c0_i32_1 = arith.constant 0 : i32
    %c0_i32_2 = arith.constant 0 : i32
    return %c0_i32, %c0_i32_0, %c0_i32_1 : i32, i32, i32
  }
  func.func @transform_11(%arg0: i32) -> (i32, i32, i32) {
    %c0_i32 = arith.constant 0 : i32
    %c0_i32_0 = arith.constant 0 : i32
    %c0_i32_1 = arith.constant 0 : i32
    %c0_i32_2 = arith.constant 0 : i32
    return %c0_i32, %c0_i32_0, %c0_i32_1 : i32, i32, i32
  }
  func.func @transform_12(%arg0: i32) -> (i32, i32, i32) {
    %c0_i32 = arith.constant 0 : i32
    %c0_i32_0 = arith.constant 0 : i32
    %c0_i32_1 = arith.constant 0 : i32
    %c0_i32_2 = arith.constant 0 : i32
    return %c0_i32, %c0_i32_0, %c0_i32_1 : i32, i32, i32
  }
  func.func @transform_13(%arg0: i32) -> (i32, i32, i32) {
    %c0_i32 = arith.constant 0 : i32
    %c0_i32_0 = arith.constant 0 : i32
    %c0_i32_1 = arith.constant 0 : i32
    %c0_i32_2 = arith.constant 0 : i32
    return %c0_i32, %c0_i32_0, %c0_i32_1 : i32, i32, i32
  }
  func.func @transform_14(%arg0: i32) -> (i32, i32, i32) {
    %c0_i32 = arith.constant 0 : i32
    %c0_i32_0 = arith.constant 0 : i32
    %c0_i32_1 = arith.constant 0 : i32
    %c0_i32_2 = arith.constant 0 : i32
    return %c0_i32, %c0_i32_0, %c0_i32_1 : i32, i32, i32
  }
  func.func @transform_15(%arg0: i32) -> (i32, i32, i32) {
    %c0_i32 = arith.constant 0 : i32
    %c0_i32_0 = arith.constant 0 : i32
    %c0_i32_1 = arith.constant 0 : i32
    %c0_i32_2 = arith.constant 0 : i32
    return %c0_i32, %c0_i32_0, %c0_i32_1 : i32, i32, i32
  }
  func.func @transform_16(%arg0: i32) -> (i32, i32, i32) {
    %c0_i32 = arith.constant 0 : i32
    %c0_i32_0 = arith.constant 0 : i32
    %c0_i32_1 = arith.constant 0 : i32
    %c0_i32_2 = arith.constant 0 : i32
    return %c0_i32, %c0_i32_0, %c0_i32_1 : i32, i32, i32
  }
  func.func @transform_17(%arg0: i32) -> (i32, i32, i32) {
    %c0_i32 = arith.constant 0 : i32
    %c0_i32_0 = arith.constant 0 : i32
    %c0_i32_1 = arith.constant 0 : i32
    %c0_i32_2 = arith.constant 0 : i32
    return %c0_i32, %c0_i32_0, %c0_i32_1 : i32, i32, i32
  }
  func.func @transform_18(%arg0: i32) -> (i32, i32, i32) {
    %c0_i32 = arith.constant 0 : i32
    %c0_i32_0 = arith.constant 0 : i32
    %c0_i32_1 = arith.constant 0 : i32
    %c0_i32_2 = arith.constant 0 : i32
    return %c0_i32, %c0_i32_0, %c0_i32_1 : i32, i32, i32
  }
  func.func @transform_19(%arg0: i32) -> (i32, i32, i32) {
    %c0_i32 = arith.constant 0 : i32
    %c0_i32_0 = arith.constant 0 : i32
    %c0_i32_1 = arith.constant 0 : i32
    %c0_i32_2 = arith.constant 0 : i32
    return %c0_i32, %c0_i32_0, %c0_i32_1 : i32, i32, i32
  }
  func.func @transform_20(%arg0: i32) -> (i32, i32) {
    %c0_i32 = arith.constant 0 : i32
    %c0_i32_0 = arith.constant 0 : i32
    %c0_i32_1 = arith.constant 0 : i32
    return %c0_i32, %c0_i32_0 : i32, i32
  }
  func.func @transform_21(%arg0: i32) -> (i32, i32) {
    %c0_i32 = arith.constant 0 : i32
    %c0_i32_0 = arith.constant 0 : i32
    %c0_i32_1 = arith.constant 0 : i32
    return %c0_i32, %c0_i32_0 : i32, i32
  }
  func.func @transform_22(%arg0: i32) -> (i32, i32) {
    %c0_i32 = arith.constant 0 : i32
    %c0_i32_0 = arith.constant 0 : i32
    %c0_i32_1 = arith.constant 0 : i32
    return %c0_i32, %c0_i32_0 : i32, i32
  }
  func.func @transform_23(%arg0: i32) -> (i32, i32) {
    %c0_i32 = arith.constant 0 : i32
    %c0_i32_0 = arith.constant 0 : i32
    %c0_i32_1 = arith.constant 0 : i32
    return %c0_i32, %c0_i32_0 : i32, i32
  }
  func.func @transform_24(%arg0: i32) -> (i32, i32) {
    %c0_i32 = arith.constant 0 : i32
    %c0_i32_0 = arith.constant 0 : i32
    %c0_i32_1 = arith.constant 0 : i32
    return %c0_i32, %c0_i32_0 : i32, i32
  }
}

</mosaic_0001>

<llo_original>
// kernel: phobert_custom_forward.1
$region0: #{phobert_custom_forward.1}
  #allocation0 [shape = 'u32[]', space=smem, size = 0x4, offset = 0x4, fixed_abs, tag = 'smem constant byte address 0x4 - core index']
  #allocation1 [shape = 'u32[144,128]{1,0:T(1,128)}', space=vmem, size = 0x12000, scoped, tag = 'internal scratch']
  #allocation2 [shape = 'f32[16,32]{1,0:T(8,128)}', space=vmem, size = 0x2000, scoped, tag = 'scratch operand']
  %s0 = inlined_call_operand.vmem [shape: f32[16,32], index: 0, kind: input, shape index: {}]
  %s1 = inlined_call_operand.vmem [shape: f32[2,1,8], index: 1, kind: input, shape index: {}]
  %s2 = inlined_call_operand.vmem [shape: f32[1,32], index: 2, kind: input, shape index: {}]
  %s3 = inlined_call_operand.vmem [shape: f32[1,32], index: 3, kind: input, shape index: {}]
  %s4 = inlined_call_operand.vmem [shape: bf16[8,32,8], index: 4, kind: input, shape index: {}]
  %s5 = inlined_call_operand.vmem [shape: f32[8,1,8], index: 5, kind: input, shape index: {}]
  %s6 = inlined_call_operand.vmem [shape: bf16[8,32,8], index: 6, kind: input, shape index: {}]
  %s7 = inlined_call_operand.vmem [shape: f32[8,1,8], index: 7, kind: input, shape index: {}]
  %s8 = inlined_call_operand.vmem [shape: bf16[8,32,8], index: 8, kind: input, shape index: {}]
  %s9 = inlined_call_operand.vmem [shape: f32[8,1,8], index: 9, kind: input, shape index: {}]
  %s10 = inlined_call_operand.vmem [shape: bf16[8,8,32], index: 10, kind: input, shape index: {}]
  %s11 = inlined_call_operand.vmem [shape: f32[2,1,32], index: 11, kind: input, shape index: {}]
  %s12 = inlined_call_operand.vmem [shape: f32[2,1,32], index: 12, kind: input, shape index: {}]
  %s13 = inlined_call_operand.vmem [shape: f32[2,1,32], index: 13, kind: input, shape index: {}]
  %s14 = inlined_call_operand.vmem [shape: bf16[2,32,64], index: 14, kind: input, shape index: {}]
  %s15 = inlined_call_operand.vmem [shape: f32[2,1,64], index: 15, kind: input, shape index: {}]
  %s16 = inlined_call_operand.vmem [shape: bf16[2,64,32], index: 16, kind: input, shape index: {}]
  %s17 = inlined_call_operand.vmem [shape: f32[2,1,32], index: 17, kind: input, shape index: {}]
  %s18 = inlined_call_operand.vmem [shape: f32[2,1,32], index: 18, kind: input, shape index: {}]
  %s19 = inlined_call_operand.vmem [shape: f32[2,1,32], index: 19, kind: input, shape index: {}]
  %s20 = inlined_call_operand.vmem [shape: bf16[32,32], index: 20, kind: input, shape index: {}]
  %s21 = inlined_call_operand.vmem [shape: f32[1,32], index: 21, kind: input, shape index: {}]
  %s22 = inlined_call_operand.vmem [shape: bf16[32,3], index: 22, kind: input, shape index: {}]
  %s23 = inlined_call_operand.vmem [shape: f32[1,3], index: 23, kind: input, shape index: {}]
  %s24 = inlined_call_operand.hbm [shape: f32[2,3], index: 24, kind: output, shape index: {}]
  %s25 = sld [smem:[#allocation0]]
  $region106: #{phobert_custom_forward.1} parent=0
    _
  %s27 = ssub.s32 1, %s25
  %s28 = scalar_select 0, %s27, %s25
  $region1: #{phobert_custom_forward.1} parent=0
    #allocation3 [shape = 'u8[1024]{0}', space=vmem, size = 0x400, scoped, tag = 'output window, operand 0, single buffered']
    #allocation4 [shape = 's32[1]{0}', space=sflag, size = 0x4, scoped, tag = 'scoped memory for phobert_custom_forward.1']
    %29 = vsyncpa [#allocation4], 0
    // Predicated region
    $region2: #{phobert_custom_forward.1} parent=1 // pred_check
      _
    $region3: #{phobert_custom_forward.1} parent=1 // pred_check_branch
      %31 = sbr.rel (0) target = $region5
    $region4: #{phobert_custom_forward.1} parent=1 // pred_region
      _
    $region5: #{phobert_custom_forward.1} parent=1 // pred_fallthru
      _
    // Predicated region
    $region6: #{phobert_custom_forward.1} parent=1 // pred_check
      _
    $region7: #{phobert_custom_forward.1} parent=1 // pred_check_branch
      %33 = sbr.rel (0) target = $region9
    $region8: #{phobert_custom_forward.1} parent=1 // pred_region
      _
    $region9: #{phobert_custom_forward.1} parent=1 // pred_fallthru
      _
    // Predicated region
    $region10: #{phobert_custom_forward.1} parent=1 // pred_check
      _
    $region11: #{phobert_custom_forward.1} parent=1 // pred_check_branch
      %35 = sbr.rel (0) target = $region13
    $region12: #{phobert_custom_forward.1} parent=1 // pred_region
      _
    $region13: #{phobert_custom_forward.1} parent=1 // pred_fallthru
      _
    // Predicated region
    $region14: #{phobert_custom_forward.1} parent=1 // pred_check
      _
    $region15: #{phobert_custom_forward.1} parent=1 // pred_check_branch
      %37 = sbr.rel (0) target = $region17
    $region16: #{phobert_custom_forward.1} parent=1 // pred_region
      _
    $region17: #{phobert_custom_forward.1} parent=1 // pred_fallthru
      _
    // Predicated region
    $region18: #{phobert_custom_forward.1} parent=1 // pred_check
      _
    $region19: #{phobert_custom_forward.1} parent=1 // pred_check_branch
      %39 = sbr.rel (0) target = $region21
    $region20: #{phobert_custom_forward.1} parent=1 // pred_region
      _
    $region21: #{phobert_custom_forward.1} parent=1 // pred_fallthru
      _
    // Predicated region
    $region22: #{phobert_custom_forward.1} parent=1 // pred_check
      _
    $region23: #{phobert_custom_forward.1} parent=1 // pred_check_branch
      %41 = sbr.rel (0) target = $region25
    $region24: #{phobert_custom_forward.1} parent=1 // pred_region
      _
    $region25: #{phobert_custom_forward.1} parent=1 // pred_fallthru
      _
    // Predicated region
    $region26: #{phobert_custom_forward.1} parent=1 // pred_check
      _
    $region27: #{phobert_custom_forward.1} parent=1 // pred_check_branch
      %43 = sbr.rel (0) target = $region29
    $region28: #{phobert_custom_forward.1} parent=1 // pred_region
      _
    $region29: #{phobert_custom_forward.1} parent=1 // pred_fallthru
      _
    // Predicated region
    $region30: #{phobert_custom_forward.1} parent=1 // pred_check
      _
    $region31: #{phobert_custom_forward.1} parent=1 // pred_check_branch
      %45 = sbr.rel (0) target = $region33
    $region32: #{phobert_custom_forward.1} parent=1 // pred_region
      _
    $region33: #{phobert_custom_forward.1} parent=1 // pred_fallthru
      _
    // Predicated region
    $region34: #{phobert_custom_forward.1} parent=1 // pred_check
      _
    $region35: #{phobert_custom_forward.1} parent=1 // pred_check_branch
      %47 = sbr.rel (0) target = $region37
    $region36: #{phobert_custom_forward.1} parent=1 // pred_region
      _
    $region37: #{phobert_custom_forward.1} parent=1 // pred_fallthru
      _
    // Predicated region
    $region38: #{phobert_custom_forward.1} parent=1 // pred_check
      _
    $region39: #{phobert_custom_forward.1} parent=1 // pred_check_branch
      %49 = sbr.rel (0) target = $region41
    $region40: #{phobert_custom_forward.1} parent=1 // pred_region
      _
    $region41: #{phobert_custom_forward.1} parent=1 // pred_fallthru
      _
    // Predicated region
    $region42: #{phobert_custom_forward.1} parent=1 // pred_check
      _
    $region43: #{phobert_custom_forward.1} parent=1 // pred_check_branch
      %51 = sbr.rel (0) target = $region45
    $region44: #{phobert_custom_forward.1} parent=1 // pred_region
      _
    $region45: #{phobert_custom_forward.1} parent=1 // pred_fallthru
      _
    // Predicated region
    $region46: #{phobert_custom_forward.1} parent=1 // pred_check
      _
    $region47: #{phobert_custom_forward.1} parent=1 // pred_check_branch
      %53 = sbr.rel (0) target = $region49
    $region48: #{phobert_custom_forward.1} parent=1 // pred_region
      _
    $region49: #{phobert_custom_forward.1} parent=1 // pred_fallthru
      _
    // Predicated region
    $region50: #{phobert_custom_forward.1} parent=1 // pred_check
      _
    $region51: #{phobert_custom_forward.1} parent=1 // pred_check_branch
      %55 = sbr.rel (0) target = $region53
    $region52: #{phobert_custom_forward.1} parent=1 // pred_region
      _
    $region53: #{phobert_custom_forward.1} parent=1 // pred_fallthru
      _
    // Predicated region
    $region54: #{phobert_custom_forward.1} parent=1 // pred_check
      _
    $region55: #{phobert_custom_forward.1} parent=1 // pred_check_branch
      %57 = sbr.rel (0) target = $region57
    $region56: #{phobert_custom_forward.1} parent=1 // pred_region
      _
    $region57: #{phobert_custom_forward.1} parent=1 // pred_fallthru
      _
    // Predicated region
    $region58: #{phobert_custom_forward.1} parent=1 // pred_check
      _
    $region59: #{phobert_custom_forward.1} parent=1 // pred_check_branch
      %59 = sbr.rel (0) target = $region61
    $region60: #{phobert_custom_forward.1} parent=1 // pred_region
      _
    $region61: #{phobert_custom_forward.1} parent=1 // pred_fallthru
      _
    // Predicated region
    $region62: #{phobert_custom_forward.1} parent=1 // pred_check
      _
    $region63: #{phobert_custom_forward.1} parent=1 // pred_check_branch
      %61 = sbr.rel (0) target = $region65
    $region64: #{phobert_custom_forward.1} parent=1 // pred_region
      _
    $region65: #{phobert_custom_forward.1} parent=1 // pred_fallthru
      _
    // Predicated region
    $region66: #{phobert_custom_forward.1} parent=1 // pred_check
      _
    $region67: #{phobert_custom_forward.1} parent=1 // pred_check_branch
      %63 = sbr.rel (0) target = $region69
    $region68: #{phobert_custom_forward.1} parent=1 // pred_region
      _
    $region69: #{phobert_custom_forward.1} parent=1 // pred_fallthru
      _
    // Predicated region
    $region70: #{phobert_custom_forward.1} parent=1 // pred_check
      _
    $region71: #{phobert_custom_forward.1} parent=1 // pred_check_branch
      %65 = sbr.rel (0) target = $region73
    $region72: #{phobert_custom_forward.1} parent=1 // pred_region
      _
    $region73: #{phobert_custom_forward.1} parent=1 // pred_fallthru
      _
    // Predicated region
    $region74: #{phobert_custom_forward.1} parent=1 // pred_check
      _
    $region75: #{phobert_custom_forward.1} parent=1 // pred_check_branch
      %67 = sbr.rel (0) target = $region77
    $region76: #{phobert_custom_forward.1} parent=1 // pred_region
      _
    $region77: #{phobert_custom_forward.1} parent=1 // pred_fallthru
      _
    // Predicated region
    $region78: #{phobert_custom_forward.1} parent=1 // pred_check
      _
    $region79: #{phobert_custom_forward.1} parent=1 // pred_check_branch
      %69 = sbr.rel (0) target = $region81
    $region80: #{phobert_custom_forward.1} parent=1 // pred_region
      _
    $region81: #{phobert_custom_forward.1} parent=1 // pred_fallthru
      _
    // Predicated region
    $region82: #{phobert_custom_forward.1} parent=1 // pred_check
      _
    $region83: #{phobert_custom_forward.1} parent=1 // pred_check_branch
      %71 = sbr.rel (0) target = $region85
    $region84: #{phobert_custom_forward.1} parent=1 // pred_region
      _
    $region85: #{phobert_custom_forward.1} parent=1 // pred_fallthru
      _
    // Predicated region
    $region86: #{phobert_custom_forward.1} parent=1 // pred_check
      _
    $region87: #{phobert_custom_forward.1} parent=1 // pred_check_branch
      %73 = sbr.rel (0) target = $region89
    $region88: #{phobert_custom_forward.1} parent=1 // pred_region
      _
    $region89: #{phobert_custom_forward.1} parent=1 // pred_fallthru
      _
    // Predicated region
    $region90: #{phobert_custom_forward.1} parent=1 // pred_check
      _
    $region91: #{phobert_custom_forward.1} parent=1 // pred_check_branch
      %75 = sbr.rel (0) target = $region93
    $region92: #{phobert_custom_forward.1} parent=1 // pred_region
      _
    $region93: #{phobert_custom_forward.1} parent=1 // pred_fallthru
      _
    // Predicated region
    $region94: #{phobert_custom_forward.1} parent=1 // pred_check
      _
    $region95: #{phobert_custom_forward.1} parent=1 // pred_check_branch
      %77 = sbr.rel (0) target = $region97
    $region96: #{phobert_custom_forward.1} parent=1 // pred_region
      _
    $region97: #{phobert_custom_forward.1} parent=1 // pred_fallthru
      _
    %v79 = vld [vmem:[%s0] sm:$0xff]
    %v80 = vld [vmem:[%s0 + $0x8] sm:$0xff]
    %v81 = vld [vmem:[%s2] sm:$0x1]
    %v82 = vld [vmem:[%s3] sm:$0x1]
    %vm83 = vcmask 261120
    %v84 = vsel %vm83, %v79, 0.0
    %85 = vadd.xlane.f32.xlu0 %v84
    %v86 = vpop.xlane.xlu0 %85
    %v87 = vsel %vm83, %v80, 0.0
    %88 = vadd.xlane.f32.xlu0 %v87
    %v89 = vpop.xlane.xlu0 %88
    %v90 = vrcp.pop 32.0
    %v91 = vmul.f32 %v86, %v90
    %v92 = vmul.f32 %v89, %v90
    %v93 = vsub.f32 %v79, %v91
    %v94 = vsub.f32 %v80, %v92
    %v95 = vmul.f32 %v93, %v93
    %v96 = vmul.f32 %v94, %v94
    %v97 = vsel %vm83, %v95, 0.0
    %98 = vadd.xlane.f32.xlu0 %v97
    %v99 = vpop.xlane.xlu0 %98
    %v100 = vsel %vm83, %v96, 0.0
    %101 = vadd.xlane.f32.xlu0 %v100
    %v102 = vpop.xlane.xlu0 %101
    %v103 = vmul.f32 %v99, %v90
    %v104 = vmul.f32 %v102, %v90
    %v105 = vadd.f32 %v103, 1e-12
    %v106 = vadd.f32 %v104, 1e-12
    %v107 = vrsqrt.pop %v105
    %v108 = vrsqrt.pop %v106
    %v109 = vmul.f32 %v93, %v107
    %v110 = vmul.f32 %v94, %v108
    %v112 = vlaneseq
    %v113 = vshrl.u32 %v112, 7
    %v114 = vsub.s32 0, %v113
    %v115 = vrot.slane %v81, %v114
    %v117 = vmul.f32 %v109, %v115
    %v118 = vmul.f32 %v110, %v115
    %v120 = vlaneseq
    %v121 = vshrl.u32 %v120, 7
    %v122 = vsub.s32 0, %v121
    %v123 = vrot.slane %v82, %v122
    %v125 = vadd.f32 %v117, %v123
    %v126 = vadd.f32 %v118, %v123
    %v127 = vpack.c.bf16 %v125, %v125
    %v128 = vld [vmem:[%s1] sm:$0x1]
    %v129 = vld [vmem:[%s4] sm:$0xf]
    %v130 = vld [vmem:[%s4 + $0x4] sm:$0xf]
    %v131 = vld [vmem:[%s4 + $0x8] sm:$0xf]
    %v132 = vld [vmem:[%s4 + $0xc] sm:$0xf]
    %v133 = vld [vmem:[%s5] sm:$0x1]
    %v135 = vlaneseq
    %v136 = vshrl.u32 %v135, 7
    %v137 = vsub.s32 0, %v136
    %v138 = vrot.slane %v133, %v137
    %v144 = vunpack.c.l.b16 %v129
    %v145 = vunpack.c.l.b16 %v130
    %v146 = vunpack.c.l.b16 %v131
    %v147 = vunpack.c.l.b16 %v132
    %v148 = vpack.c.b16 %v145, %v144
    %v149 = vpack.c.b16 %v147, %v146
    %v153 = vsel %vm83, %v127, 0
    %155 = vmatprep.subr.bf16.mxu0 0
    %156 = vmatpush1.bf16.msra.mxu0 %v148
    %157 = vmatprep.subr.bf16.mxu0 0
    %158 = vmatpush1.bf16.msra.mxu0 %v149
    %159 = vmatprep.subr.bf16.mxu0 0
    %160 = vmatpush1.bf16.msra.mxu0 0
    %161 = vmatprep.subr.bf16.mxu0 0
    %162 = vmatpush1.bf16.msra.mxu0 0
    %163 = vmatprep.subr.bf16.mxu0 0
    %164 = vmatpush1.bf16.msra.mxu0 0
    %165 = vmatprep.subr.bf16.mxu0 0
    %166 = vmatpush1.bf16.msra.mxu0 0
    %167 = vmatprep.subr.bf16.mxu0 0
    %168 = vmatpush1.bf16.msra.mxu0 0
    %169 = vmatprep.subr.bf16.mxu0 0
    %170 = vmatpush1.bf16.msra.mxu0 0
    %171 = vmatprep.subr.bf16.mxu0 0
    %172 = vmatpush1.bf16.msra.mxu0 0
    %173 = vmatprep.subr.bf16.mxu0 0
    %174 = vmatpush1.bf16.msra.mxu0 0
    %175 = vmatprep.subr.bf16.mxu0 0
    %176 = vmatpush1.bf16.msra.mxu0 0
    %177 = vmatprep.subr.bf16.mxu0 0
    %178 = vmatpush1.bf16.msra.mxu0 0
    %179 = vmatprep.subr.bf16.mxu0 0
    %180 = vmatpush1.bf16.msra.mxu0 0
    %181 = vmatprep.subr.bf16.mxu0 0
    %182 = vmatpush1.bf16.msra.mxu0 0
    %183 = vmatprep.subr.bf16.mxu0 0
    %184 = vmatpush1.bf16.msra.mxu0 0
    %185 = vmatprep.subr.bf16.mxu0 0
    %186 = vmatpush1.bf16.msra.mxu0 0
    %187 = vmatprep.mubr.bf16.mxu0 0
    %188 = vmatmul.mubr.bf16.gmra.mrb[0].mxu0 %v153
    %v189 = vpop.f32.mrb[0].mxu0
    %v190 = vadd.f32 %v138, %v189
    %v191 = vpop.f32.mrb[0].mxu0
    %v192 = vpop.f32.mrb[0].mxu0
    %v193 = vpop.f32.mrb[0].mxu0
    %194 = vdwg.mxu0
    %v195 = vld [vmem:[%s6] sm:$0xf]
    %v196 = vld [vmem:[%s6 + $0x4] sm:$0xf]
    %v197 = vld [vmem:[%s6 + $0x8] sm:$0xf]
    %v198 = vld [vmem:[%s6 + $0xc] sm:$0xf]
    %v199 = vld [vmem:[%s7] sm:$0x1]
    %v201 = vlaneseq
    %v202 = vshrl.u32 %v201, 7
    %v203 = vsub.s32 0, %v202
    %v204 = vrot.slane %v199, %v203
    %v210 = vunpack.c.l.b16 %v195
    %v211 = vunpack.c.l.b16 %v196
    %v212 = vunpack.c.l.b16 %v197
    %v213 = vunpack.c.l.b16 %v198
    %v214 = vpack.c.b16 %v211, %v210
    %v215 = vpack.c.b16 %v213, %v212
    %218 = vmatprep.subr.bf16.mxu0 0
    %219 = vmatpush1.bf16.msra.mxu0 %v214
    %220 = vmatprep.subr.bf16.mxu0 0
    %221 = vmatpush1.bf16.msra.mxu0 %v215
    %222 = vmatprep.subr.bf16.mxu0 0
    %223 = vmatpush1.bf16.msra.mxu0 0
    %224 = vmatprep.subr.bf16.mxu0 0
    %225 = vmatpush1.bf16.msra.mxu0 0
    %226 = vmatprep.subr.bf16.mxu0 0
    %227 = vmatpush1.bf16.msra.mxu0 0
    %228 = vmatprep.subr.bf16.mxu0 0
    %229 = vmatpush1.bf16.msra.mxu0 0
    %230 = vmatprep.subr.bf16.mxu0 0
    %231 = vmatpush1.bf16.msra.mxu0 0
    %232 = vmatprep.subr.bf16.mxu0 0
    %233 = vmatpush1.bf16.msra.mxu0 0
    %234 = vmatprep.subr.bf16.mxu0 0
    %235 = vmatpush1.bf16.msra.mxu0 0
    %236 = vmatprep.subr.bf16.mxu0 0
    %237 = vmatpush1.bf16.msra.mxu0 0
    %238 = vmatprep.subr.bf16.mxu0 0
    %239 = vmatpush1.bf16.msra.mxu0 0
    %240 = vmatprep.subr.bf16.mxu0 0
    %241 = vmatpush1.bf16.msra.mxu0 0
    %242 = vmatprep.subr.bf16.mxu0 0
    %243 = vmatpush1.bf16.msra.mxu0 0
    %244 = vmatprep.subr.bf16.mxu0 0
    %245 = vmatpush1.bf16.msra.mxu0 0
    %246 = vmatprep.subr.bf16.mxu0 0
    %247 = vmatpush1.bf16.msra.mxu0 0
    %248 = vmatprep.subr.bf16.mxu0 0
    %249 = vmatpush1.bf16.msra.mxu0 0
    %250 = vmatprep.mubr.bf16.mxu0 0
    %251 = vmatmul.mubr.bf16.gmra.mrb[0].mxu0 %v153
    %v252 = vpop.f32.mrb[0].mxu0
    %v253 = vadd.f32 %v204, %v252
    %v254 = vpop.f32.mrb[0].mxu0
    %v255 = vpop.f32.mrb[0].mxu0
    %v256 = vpop.f32.mrb[0].mxu0
    %257 = vdwg.mxu0
    %v258 = vld [vmem:[%s8] sm:$0xf]
    %v259 = vld [vmem:[%s8 + $0x4] sm:$0xf]
    %v260 = vld [vmem:[%s8 + $0x8] sm:$0xf]
    %v261 = vld [vmem:[%s8 + $0xc] sm:$0xf]
    %v262 = vld [vmem:[%s9] sm:$0x1]
    %v264 = vlaneseq
    %v265 = vshrl.u32 %v264, 7
    %v266 = vsub.s32 0, %v265
    %v267 = vrot.slane %v262, %v266
    %v273 = vunpack.c.l.b16 %v258
    %v274 = vunpack.c.l.b16 %v259
    %v275 = vunpack.c.l.b16 %v260
    %v276 = vunpack.c.l.b16 %v261
    %v277 = vpack.c.b16 %v274, %v273
    %v278 = vpack.c.b16 %v276, %v275
    %281 = vmatprep.subr.bf16.mxu0 0
    %282 = vmatpush1.bf16.msra.mxu0 %v277
    %283 = vmatprep.subr.bf16.mxu0 0
    %284 = vmatpush1.bf16.msra.mxu0 %v278
    %285 = vmatprep.subr.bf16.mxu0 0
    %286 = vmatpush1.bf16.msra.mxu0 0
    %287 = vmatprep.subr.bf16.mxu0 0
    %288 = vmatpush1.bf16.msra.mxu0 0
    %289 = vmatprep.subr.bf16.mxu0 0
    %290 = vmatpush1.bf16.msra.mxu0 0
    %291 = vmatprep.subr.bf16.mxu0 0
    %292 = vmatpush1.bf16.msra.mxu0 0
    %293 = vmatprep.subr.bf16.mxu0 0
    %294 = vmatpush1.bf16.msra.mxu0 0
    %295 = vmatprep.subr.bf16.mxu0 0
    %296 = vmatpush1.bf16.msra.mxu0 0
    %297 = vmatprep.subr.bf16.mxu0 0
    %298 = vmatpush1.bf16.msra.mxu0 0
    %299 = vmatprep.subr.bf16.mxu0 0
    %300 = vmatpush1.bf16.msra.mxu0 0
    %301 = vmatprep.subr.bf16.mxu0 0
    %302 = vmatpush1.bf16.msra.mxu0 0
    %303 = vmatprep.subr.bf16.mxu0 0
    %304 = vmatpush1.bf16.msra.mxu0 0
    %305 = vmatprep.subr.bf16.mxu0 0
    %306 = vmatpush1.bf16.msra.mxu0 0
    %307 = vmatprep.subr.bf16.mxu0 0
    %308 = vmatpush1.bf16.msra.mxu0 0
    %309 = vmatprep.subr.bf16.mxu0 0
    %310 = vmatpush1.bf16.msra.mxu0 0
    %311 = vmatprep.subr.bf16.mxu0 0
    %312 = vmatpush1.bf16.msra.mxu0 0
    %313 = vmatprep.mubr.bf16.mxu0 0
    %314 = vmatmul.mubr.bf16.gmra.mrb[0].mxu0 %v153
    %v315 = vpop.f32.mrb[0].mxu0
    %v316 = vadd.f32 %v267, %v315
    %v317 = vpop.f32.mrb[0].mxu0
    %v318 = vpop.f32.mrb[0].mxu0
    %v319 = vpop.f32.mrb[0].mxu0
    %320 = vdwg.mxu0
    %v321 = vpack.c.bf16 %v190, %v190
    %v322 = vpack.c.bf16 %v253, %v253
    %vm323 = vcmask 64512
    %v325 = vsel %vm323, %v321, 0
    %v328 = vsel %vm323, %v322, 0
    %330 = vmatprep.subr.bf16.mxu0 0
    %331 = vmatpush1.bf16.xpose.msra.mxu0 %v328
    %332 = vmatprep.subr.bf16.mxu0 0
    %333 = vmatpush1.bf16.xpose.msra.mxu0 0
    %334 = vmatprep.subr.bf16.mxu0 0
    %335 = vmatpush1.bf16.xpose.msra.mxu0 0
    %336 = vmatprep.subr.bf16.mxu0 0
    %337 = vmatpush1.bf16.xpose.msra.mxu0 0
    %338 = vmatprep.subr.bf16.mxu0 0
    %339 = vmatpush1.bf16.xpose.msra.mxu0 0
    %340 = vmatprep.subr.bf16.mxu0 0
    %341 = vmatpush1.bf16.xpose.msra.mxu0 0
    %342 = vmatprep.subr.bf16.mxu0 0
    %343 = vmatpush1.bf16.xpose.msra.mxu0 0
    %344 = vmatprep.subr.bf16.mxu0 0
    %345 = vmatpush1.bf16.xpose.msra.mxu0 0
    %346 = vmatprep.subr.bf16.mxu0 0
    %347 = vmatpush1.bf16.xpose.msra.mxu0 0
    %348 = vmatprep.subr.bf16.mxu0 0
    %349 = vmatpush1.bf16.xpose.msra.mxu0 0
    %350 = vmatprep.subr.bf16.mxu0 0
    %351 = vmatpush1.bf16.xpose.msra.mxu0 0
    %352 = vmatprep.subr.bf16.mxu0 0
    %353 = vmatpush1.bf16.xpose.msra.mxu0 0
    %354 = vmatprep.subr.bf16.mxu0 0
    %355 = vmatpush1.bf16.xpose.msra.mxu0 0
    %356 = vmatprep.subr.bf16.mxu0 0
    %357 = vmatpush1.bf16.xpose.msra.mxu0 0
    %358 = vmatprep.subr.bf16.mxu0 0
    %359 = vmatpush1.bf16.xpose.msra.mxu0 0
    %360 = vmatprep.subr.bf16.mxu0 0
    %361 = vmatpush1.bf16.xpose.msra.mxu0 0
    %362 = vmatprep.mubr.bf16.mxu0 0
    %363 = vmatmul.mubr.bf16.gmra.mrb[0].mxu0 %v325
    %v364 = vpop.f32.mrb[0].mxu0
    %v365 = vadd.f32 0.0, %v364
    %v366 = vpop.f32.mrb[0].mxu0
    %v367 = vpop.f32.mrb[0].mxu0
    %v368 = vpop.f32.mrb[0].mxu0
    %369 = vdwg.mxu0
    %v370 = vmul.f32 %v365, 0.35355338
    %v372 = vlaneseq
    %v373 = vshrl.u32 %v372, 7
    %v374 = vsub.s32 0, %v373
    %v375 = vrot.slane %v128, %v374
    %v377 = vadd.f32 %v370, %v375
    %v378 = vsel %vm323, %v377, -inf
    %379 = vmax.xlane.f32.xlu0 %v378
    %v380 = vpop.xlane.xlu0 %379
    %v381 = vsub.f32 %v377, %v380
    %v382 = vmul.f32 %v381, 1.442695
    %v383 = vpow.pop %v382
    %v384 = vsel %vm323, %v383, 0.0
    %385 = vadd.xlane.f32.xlu0 %v384
    %v386 = vpop.xlane.xlu0 %385
    %v387 = vrcp.pop %v386
    %v388 = vmul.f32 %v383, %v387
    %v389 = vpack.c.bf16 %v388, %v388
    %v390 = vpack.c.bf16 %v316, %v316
    %v392 = vsel %vm323, %v389, 0
    %vm394 = vcmask 1043456
    %v396 = vsel %vm394, %v390, 0
    %398 = vmatprep.subr.bf16.mxu0 0
    %399 = vmatpush1.bf16.msra.mxu0 %v396
    %400 = vmatprep.subr.bf16.mxu0 0
    %401 = vmatpush1.bf16.msra.mxu0 0
    %402 = vmatprep.subr.bf16.mxu0 0
    %403 = vmatpush1.bf16.msra.mxu0 0
    %404 = vmatprep.subr.bf16.mxu0 0
    %405 = vmatpush1.bf16.msra.mxu0 0
    %406 = vmatprep.subr.bf16.mxu0 0
    %407 = vmatpush1.bf16.msra.mxu0 0
    %408 = vmatprep.subr.bf16.mxu0 0
    %409 = vmatpush1.bf16.msra.mxu0 0
    %410 = vmatprep.subr.bf16.mxu0 0
    %411 = vmatpush1.bf16.msra.mxu0 0
    %412 = vmatprep.subr.bf16.mxu0 0
    %413 = vmatpush1.bf16.msra.mxu0 0
    %414 = vmatprep.subr.bf16.mxu0 0
    %415 = vmatpush1.bf16.msra.mxu0 0
    %416 = vmatprep.subr.bf16.mxu0 0
    %417 = vmatpush1.bf16.msra.mxu0 0
    %418 = vmatprep.subr.bf16.mxu0 0
    %419 = vmatpush1.bf16.msra.mxu0 0
    %420 = vmatprep.subr.bf16.mxu0 0
    %421 = vmatpush1.bf16.msra.mxu0 0
    %422 = vmatprep.subr.bf16.mxu0 0
    %423 = vmatpush1.bf16.msra.mxu0 0
    %424 = vmatprep.subr.bf16.mxu0 0
    %425 = vmatpush1.bf16.msra.mxu0 0
    %426 = vmatprep.subr.bf16.mxu0 0
    %427 = vmatpush1.bf16.msra.mxu0 0
    %428 = vmatprep.subr.bf16.mxu0 0
    %429 = vmatpush1.bf16.msra.mxu0 0
    %430 = vmatprep.mubr.bf16.mxu0 0
    %431 = vmatmul.mubr.bf16.gmra.mrb[0].mxu0 %v392
    %v432 = vpop.f32.mrb[0].mxu0
    %v433 = vadd.f32 0.0, %v432
    %v434 = vpop.f32.mrb[0].mxu0
    %v435 = vpop.f32.mrb[0].mxu0
    %v436 = vpop.f32.mrb[0].mxu0
    %437 = vdwg.mxu0
    %v438 = vpack.c.bf16 %v433, %v433
    %v439 = vld [vmem:[%s10] sm:$0xf]
    %s440 = scalar_lea.vmem %s4, 16
    %v441 = vld [vmem:[%s440] sm:$0xf]
    %v442 = vld [vmem:[%s440 + $0x4] sm:$0xf]
    %v443 = vld [vmem:[%s440 + $0x8] sm:$0xf]
    %v444 = vld [vmem:[%s440 + $0xc] sm:$0xf]
    %s445 = scalar_lea.vmem %s5, 1
    %v446 = vld [vmem:[%s445] sm:$0x1]
    %v448 = vlaneseq
    %v449 = vshrl.u32 %v448, 7
    %v450 = vsub.s32 0, %v449
    %v451 = vrot.slane %v446, %v450
    %v457 = vunpack.c.l.b16 %v441
    %v458 = vunpack.c.l.b16 %v442
    %v459 = vunpack.c.l.b16 %v443
    %v460 = vunpack.c.l.b16 %v444
    %v461 = vpack.c.b16 %v458, %v457
    %v462 = vpack.c.b16 %v460, %v459
    %465 = vmatprep.subr.bf16.mxu0 0
    %466 = vmatpush1.bf16.msra.mxu0 %v461
    %467 = vmatprep.subr.bf16.mxu0 0
    %468 = vmatpush1.bf16.msra.mxu0 %v462
    %469 = vmatprep.subr.bf16.mxu0 0
    %470 = vmatpush1.bf16.msra.mxu0 0
    %471 = vmatprep.subr.bf16.mxu0 0
    %472 = vmatpush1.bf16.msra.mxu0 0
    %473 = vmatprep.subr.bf16.mxu0 0
    %474 = vmatpush1.bf16.msra.mxu0 0
    %475 = vmatprep.subr.bf16.mxu0 0
    %476 = vmatpush1.bf16.msra.mxu0 0
    %477 = vmatprep.subr.bf16.mxu0 0
    %478 = vmatpush1.bf16.msra.mxu0 0
    %479 = vmatprep.subr.bf16.mxu0 0
    %480 = vmatpush1.bf16.msra.mxu0 0
    %481 = vmatprep.subr.bf16.mxu0 0
    %482 = vmatpush1.bf16.msra.mxu0 0
    %483 = vmatprep.subr.bf16.mxu0 0
    %484 = vmatpush1.bf16.msra.mxu0 0
    %485 = vmatprep.subr.bf16.mxu0 0
    %486 = vmatpush1.bf16.msra.mxu0 0
    %487 = vmatprep.subr.bf16.mxu0 0
    %488 = vmatpush1.bf16.msra.mxu0 0
    %489 = vmatprep.subr.bf16.mxu0 0
    %490 = vmatpush1.bf16.msra.mxu0 0
    %491 = vmatprep.subr.bf16.mxu0 0
    %492 = vmatpush1.bf16.msra.mxu0 0
    %493 = vmatprep.subr.bf16.mxu0 0
    %494 = vmatpush1.bf16.msra.mxu0 0
    %495 = vmatprep.subr.bf16.mxu0 0
    %496 = vmatpush1.bf16.msra.mxu0 0
    %497 = vmatprep.mubr.bf16.mxu0 0
    %498 = vmatmul.mubr.bf16.gmra.mrb[0].mxu0 %v153
    %v499 = vpop.f32.mrb[0].mxu0
    %v500 = vadd.f32 %v451, %v499
    %v501 = vpop.f32.mrb[0].mxu0
    %v502 = vpop.f32.mrb[0].mxu0
    %v503 = vpop.f32.mrb[0].mxu0
    %504 = vdwg.mxu0
    %s505 = scalar_lea.vmem %s6, 16
    %v506 = vld [vmem:[%s505] sm:$0xf]
    %v507 = vld [vmem:[%s505 + $0x4] sm:$0xf]
    %v508 = vld [vmem:[%s505 + $0x8] sm:$0xf]
    %v509 = vld [vmem:[%s505 + $0xc] sm:$0xf]
    %s510 = scalar_lea.vmem %s7, 1
    %v511 = vld [vmem:[%s510] sm:$0x1]
    %v513 = vlaneseq
    %v514 = vshrl.u32 %v513, 7
    %v515 = vsub.s32 0, %v514
    %v516 = vrot.slane %v511, %v515
    %v522 = vunpack.c.l.b16 %v506
    %v523 = vunpack.c.l.b16 %v507
    %v524 = vunpack.c.l.b16 %v508
    %v525 = vunpack.c.l.b16 %v509
    %v526 = vpack.c.b16 %v523, %v522
    %v527 = vpack.c.b16 %v525, %v524
    %530 = vmatprep.subr.bf16.mxu0 0
    %531 = vmatpush1.bf16.msra.mxu0 %v526
    %532 = vmatprep.subr.bf16.mxu0 0
    %533 = vmatpush1.bf16.msra.mxu0 %v527
    %534 = vmatprep.subr.bf16.mxu0 0
    %535 = vmatpush1.bf16.msra.mxu0 0
    %536 = vmatprep.subr.bf16.mxu0 0
    %537 = vmatpush1.bf16.msra.mxu0 0
    %538 = vmatprep.subr.bf16.mxu0 0
    %539 = vmatpush1.bf16.msra.mxu0 0
    %540 = vmatprep.subr.bf16.mxu0 0
    %541 = vmatpush1.bf16.msra.mxu0 0
    %542 = vmatprep.subr.bf16.mxu0 0
    %543 = vmatpush1.bf16.msra.mxu0 0
    %544 = vmatprep.subr.bf16.mxu0 0
    %545 = vmatpush1.bf16.msra.mxu0 0
    %546 = vmatprep.subr.bf16.mxu0 0
    %547 = vmatpush1.bf16.msra.mxu0 0
    %548 = vmatprep.subr.bf16.mxu0 0
    %549 = vmatpush1.bf16.msra.mxu0 0
    %550 = vmatprep.subr.bf16.mxu0 0
    %551 = vmatpush1.bf16.msra.mxu0 0
    %552 = vmatprep.subr.bf16.mxu0 0
    %553 = vmatpush1.bf16.msra.mxu0 0
    %554 = vmatprep.subr.bf16.mxu0 0
    %555 = vmatpush1.bf16.msra.mxu0 0
    %556 = vmatprep.subr.bf16.mxu0 0
    %557 = vmatpush1.bf16.msra.mxu0 0
    %558 = vmatprep.subr.bf16.mxu0 0
    %559 = vmatpush1.bf16.msra.mxu0 0
    %560 = vmatprep.subr.bf16.mxu0 0
    %561 = vmatpush1.bf16.msra.mxu0 0
    %562 = vmatprep.mubr.bf16.mxu0 0
    %563 = vmatmul.mubr.bf16.gmra.mrb[0].mxu0 %v153
    %v564 = vpop.f32.mrb[0].mxu0
    %v565 = vadd.f32 %v516, %v564
    %v566 = vpop.f32.mrb[0].mxu0
    %v567 = vpop.f32.mrb[0].mxu0
    %v568 = vpop.f32.mrb[0].mxu0
    %569 = vdwg.mxu0
    %s570 = scalar_lea.vmem %s8, 16
    %v571 = vld [vmem:[%s570] sm:$0xf]
    %v572 = vld [vmem:[%s570 + $0x4] sm:$0xf]
    %v573 = vld [vmem:[%s570 + $0x8] sm:$0xf]
    %v574 = vld [vmem:[%s570 + $0xc] sm:$0xf]
    %s575 = scalar_lea.vmem %s9, 1
    %v576 = vld [vmem:[%s575] sm:$0x1]
    %v578 = vlaneseq
    %v579 = vshrl.u32 %v578, 7
    %v580 = vsub.s32 0, %v579
    %v581 = vrot.slane %v576, %v580
    %v587 = vunpack.c.l.b16 %v571
    %v588 = vunpack.c.l.b16 %v572
    %v589 = vunpack.c.l.b16 %v573
    %v590 = vunpack.c.l.b16 %v574
    %v591 = vpack.c.b16 %v588, %v587
    %v592 = vpack.c.b16 %v590, %v589
    %595 = vmatprep.subr.bf16.mxu0 0
    %596 = vmatpush1.bf16.msra.mxu0 %v591
    %597 = vmatprep.subr.bf16.mxu0 0
    %598 = vmatpush1.bf16.msra.mxu0 %v592
    %599 = vmatprep.subr.bf16.mxu0 0
    %600 = vmatpush1.bf16.msra.mxu0 0
    %601 = vmatprep.subr.bf16.mxu0 0
    %602 = vmatpush1.bf16.msra.mxu0 0
    %603 = vmatprep.subr.bf16.mxu0 0
    %604 = vmatpush1.bf16.msra.mxu0 0
    %605 = vmatprep.subr.bf16.mxu0 0
    %606 = vmatpush1.bf16.msra.mxu0 0
    %607 = vmatprep.subr.bf16.mxu0 0
    %608 = vmatpush1.bf16.msra.mxu0 0
    %609 = vmatprep.subr.bf16.mxu0 0
    %610 = vmatpush1.bf16.msra.mxu0 0
    %611 = vmatprep.subr.bf16.mxu0 0
    %612 = vmatpush1.bf16.msra.mxu0 0
    %613 = vmatprep.subr.bf16.mxu0 0
    %614 = vmatpush1.bf16.msra.mxu0 0
    %615 = vmatprep.subr.bf16.mxu0 0
    %616 = vmatpush1.bf16.msra.mxu0 0
    %617 = vmatprep.subr.bf16.mxu0 0
    %618 = vmatpush1.bf16.msra.mxu0 0
    %619 = vmatprep.subr.bf16.mxu0 0
    %620 = vmatpush1.bf16.msra.mxu0 0
    %621 = vmatprep.subr.bf16.mxu0 0
    %622 = vmatpush1.bf16.msra.mxu0 0
    %623 = vmatprep.subr.bf16.mxu0 0
    %624 = vmatpush1.bf16.msra.mxu0 0
    %625 = vmatprep.subr.bf16.mxu0 0
    %626 = vmatpush1.bf16.msra.mxu0 0
    %627 = vmatprep.mubr.bf16.mxu0 0
    %628 = vmatmul.mubr.bf16.gmra.mrb[0].mxu0 %v153
    %v629 = vpop.f32.mrb[0].mxu0
    %v630 = vadd.f32 %v581, %v629
    %v631 = vpop.f32.mrb[0].mxu0
    %v632 = vpop.f32.mrb[0].mxu0
    %v633 = vpop.f32.mrb[0].mxu0
    %634 = vdwg.mxu0
    %v635 = vpack.c.bf16 %v500, %v500
    %v636 = vpack.c.bf16 %v565, %v565
    %v638 = vsel %vm323, %v635, 0
    %v641 = vsel %vm323, %v636, 0
    %643 = vmatprep.subr.bf16.mxu0 0
    %644 = vmatpush1.bf16.xpose.msra.mxu0 %v641
    %645 = vmatprep.subr.bf16.mxu0 0
    %646 = vmatpush1.bf16.xpose.msra.mxu0 0
    %647 = vmatprep.subr.bf16.mxu0 0
    %648 = vmatpush1.bf16.xpose.msra.mxu0 0
    %649 = vmatprep.subr.bf16.mxu0 0
    %650 = vmatpush1.bf16.xpose.msra.mxu0 0
    %651 = vmatprep.subr.bf16.mxu0 0
    %652 = vmatpush1.bf16.xpose.msra.mxu0 0
    %653 = vmatprep.subr.bf16.mxu0 0
    %654 = vmatpush1.bf16.xpose.msra.mxu0 0
    %655 = vmatprep.subr.bf16.mxu0 0
    %656 = vmatpush1.bf16.xpose.msra.mxu0 0
    %657 = vmatprep.subr.bf16.mxu0 0
    %658 = vmatpush1.bf16.xpose.msra.mxu0 0
    %659 = vmatprep.subr.bf16.mxu0 0
    %660 = vmatpush1.bf16.xpose.msra.mxu0 0
    %661 = vmatprep.subr.bf16.mxu0 0
    %662 = vmatpush1.bf16.xpose.msra.mxu0 0
    %663 = vmatprep.subr.bf16.mxu0 0
    %664 = vmatpush1.bf16.xpose.msra.mxu0 0
    %665 = vmatprep.subr.bf16.mxu0 0
    %666 = vmatpush1.bf16.xpose.msra.mxu0 0
    %667 = vmatprep.subr.bf16.mxu0 0
    %668 = vmatpush1.bf16.xpose.msra.mxu0 0
    %669 = vmatprep.subr.bf16.mxu0 0
    %670 = vmatpush1.bf16.xpose.msra.mxu0 0
    %671 = vmatprep.subr.bf16.mxu0 0
    %672 = vmatpush1.bf16.xpose.msra.mxu0 0
    %673 = vmatprep.subr.bf16.mxu0 0
    %674 = vmatpush1.bf16.xpose.msra.mxu0 0
    %675 = vmatprep.mubr.bf16.mxu0 0
    %676 = vmatmul.mubr.bf16.gmra.mrb[0].mxu0 %v638
    %v677 = vpop.f32.mrb[0].mxu0
    %v678 = vadd.f32 0.0, %v677
    %v679 = vpop.f32.mrb[0].mxu0
    %v680 = vpop.f32.mrb[0].mxu0
    %v681 = vpop.f32.mrb[0].mxu0
    %682 = vdwg.mxu0
    %v683 = vmul.f32 %v678, 0.35355338
    %v684 = vadd.f32 %v683, %v375
    %v685 = vsel %vm323, %v684, -inf
    %686 = vmax.xlane.f32.xlu0 %v685
    %v687 = vpop.xlane.xlu0 %686
    %v688 = vsub.f32 %v684, %v687
    %v689 = vmul.f32 %v688, 1.442695
    %v690 = vpow.pop %v689
    %v691 = vsel %vm323, %v690, 0.0
    %692 = vadd.xlane.f32.xlu0 %v691
    %v693 = vpop.xlane.xlu0 %692
    %v694 = vrcp.pop %v693
    %v695 = vmul.f32 %v690, %v694
    %v696 = vpack.c.bf16 %v695, %v695
    %v697 = vpack.c.bf16 %v630, %v630
    %v699 = vsel %vm323, %v696, 0
    %v702 = vsel %vm394, %v697, 0
    %704 = vmatprep.subr.bf16.mxu0 0
    %705 = vmatpush1.bf16.msra.mxu0 %v702
    %706 = vmatprep.subr.bf16.mxu0 0
    %707 = vmatpush1.bf16.msra.mxu0 0
    %708 = vmatprep.subr.bf16.mxu0 0
    %709 = vmatpush1.bf16.msra.mxu0 0
    %710 = vmatprep.subr.bf16.mxu0 0
    %711 = vmatpush1.bf16.msra.mxu0 0
    %712 = vmatprep.subr.bf16.mxu0 0
    %713 = vmatpush1.bf16.msra.mxu0 0
    %714 = vmatprep.subr.bf16.mxu0 0
    %715 = vmatpush1.bf16.msra.mxu0 0
    %716 = vmatprep.subr.bf16.mxu0 0
    %717 = vmatpush1.bf16.msra.mxu0 0
    %718 = vmatprep.subr.bf16.mxu0 0
    %719 = vmatpush1.bf16.msra.mxu0 0
    %720 = vmatprep.subr.bf16.mxu0 0
    %721 = vmatpush1.bf16.msra.mxu0 0
    %722 = vmatprep.subr.bf16.mxu0 0
    %723 = vmatpush1.bf16.msra.mxu0 0
    %724 = vmatprep.subr.bf16.mxu0 0
    %725 = vmatpush1.bf16.msra.mxu0 0
    %726 = vmatprep.subr.bf16.mxu0 0
    %727 = vmatpush1.bf16.msra.mxu0 0
    %728 = vmatprep.subr.bf16.mxu0 0
    %729 = vmatpush1.bf16.msra.mxu0 0
    %730 = vmatprep.subr.bf16.mxu0 0
    %731 = vmatpush1.bf16.msra.mxu0 0
    %732 = vmatprep.subr.bf16.mxu0 0
    %733 = vmatpush1.bf16.msra.mxu0 0
    %734 = vmatprep.subr.bf16.mxu0 0
    %735 = vmatpush1.bf16.msra.mxu0 0
    %736 = vmatprep.mubr.bf16.mxu0 0
    %737 = vmatmul.mubr.bf16.gmra.mrb[0].mxu0 %v699
    %v738 = vpop.f32.mrb[0].mxu0
    %v739 = vadd.f32 0.0, %v738
    %v740 = vpop.f32.mrb[0].mxu0
    %v741 = vpop.f32.mrb[0].mxu0
    %v742 = vpop.f32.mrb[0].mxu0
    %743 = vdwg.mxu0
    %v744 = vpack.c.bf16 %v739, %v739
    %s745 = scalar_lea.vmem %s10, 4
    %v746 = vld [vmem:[%s745] sm:$0xf]
    %v748 = vsel %vm323, %v744, 0
    %v751 = vsel %vm394, %v746, 0
    %753 = vmatprep.subr.bf16.mxu0 0
    %754 = vmatpush1.bf16.msra.mxu0 %v751
    %755 = vmatprep.subr.bf16.mxu0 0
    %756 = vmatpush1.bf16.msra.mxu0 0
    %757 = vmatprep.subr.bf16.mxu0 0
    %758 = vmatpush1.bf16.msra.mxu0 0
    %759 = vmatprep.subr.bf16.mxu0 0
    %760 = vmatpush1.bf16.msra.mxu0 0
    %761 = vmatprep.subr.bf16.mxu0 0
    %762 = vmatpush1.bf16.msra.mxu0 0
    %763 = vmatprep.subr.bf16.mxu0 0
    %764 = vmatpush1.bf16.msra.mxu0 0
    %765 = vmatprep.subr.bf16.mxu0 0
    %766 = vmatpush1.bf16.msra.mxu0 0
    %767 = vmatprep.subr.bf16.mxu0 0
    %768 = vmatpush1.bf16.msra.mxu0 0
    %769 = vmatprep.subr.bf16.mxu0 0
    %770 = vmatpush1.bf16.msra.mxu0 0
    %771 = vmatprep.subr.bf16.mxu0 0
    %772 = vmatpush1.bf16.msra.mxu0 0
    %773 = vmatprep.subr.bf16.mxu0 0
    %774 = vmatpush1.bf16.msra.mxu0 0
    %775 = vmatprep.subr.bf16.mxu0 0
    %776 = vmatpush1.bf16.msra.mxu0 0
    %777 = vmatprep.subr.bf16.mxu0 0
    %778 = vmatpush1.bf16.msra.mxu0 0
    %779 = vmatprep.subr.bf16.mxu0 0
    %780 = vmatpush1.bf16.msra.mxu0 0
    %781 = vmatprep.subr.bf16.mxu0 0
    %782 = vmatpush1.bf16.msra.mxu0 0
    %783 = vmatprep.subr.bf16.mxu0 0
    %784 = vmatpush1.bf16.msra.mxu0 0
    %785 = vmatprep.mubr.bf16.mxu0 0
    %786 = vmatmul.mubr.bf16.gmra.mrb[0].mxu0 %v748
    %v787 = vpop.f32.mrb[0].mxu0
    %v788 = vadd.f32 0.0, %v787
    %v789 = vpop.f32.mrb[0].mxu0
    %v790 = vpop.f32.mrb[0].mxu0
    %v791 = vpop.f32.mrb[0].mxu0
    %792 = vdwg.mxu0
    %v794 = vsel %vm323, %v438, 0
    %v797 = vsel %vm394, %v439, 0
    %799 = vmatprep.subr.bf16.mxu0 0
    %800 = vmatpush1.bf16.msra.mxu0 %v797
    %801 = vmatprep.subr.bf16.mxu0 0
    %802 = vmatpush1.bf16.msra.mxu0 0
    %803 = vmatprep.subr.bf16.mxu0 0
    %804 = vmatpush1.bf16.msra.mxu0 0
    %805 = vmatprep.subr.bf16.mxu0 0
    %806 = vmatpush1.bf16.msra.mxu0 0
    %807 = vmatprep.subr.bf16.mxu0 0
    %808 = vmatpush1.bf16.msra.mxu0 0
    %809 = vmatprep.subr.bf16.mxu0 0
    %810 = vmatpush1.bf16.msra.mxu0 0
    %811 = vmatprep.subr.bf16.mxu0 0
    %812 = vmatpush1.bf16.msra.mxu0 0
    %813 = vmatprep.subr.bf16.mxu0 0
    %814 = vmatpush1.bf16.msra.mxu0 0
    %815 = vmatprep.subr.bf16.mxu0 0
    %816 = vmatpush1.bf16.msra.mxu0 0
    %817 = vmatprep.subr.bf16.mxu0 0
    %818 = vmatpush1.bf16.msra.mxu0 0
    %819 = vmatprep.subr.bf16.mxu0 0
    %820 = vmatpush1.bf16.msra.mxu0 0
    %821 = vmatprep.subr.bf16.mxu0 0
    %822 = vmatpush1.bf16.msra.mxu0 0
    %823 = vmatprep.subr.bf16.mxu0 0
    %824 = vmatpush1.bf16.msra.mxu0 0
    %825 = vmatprep.subr.bf16.mxu0 0
    %826 = vmatpush1.bf16.msra.mxu0 0
    %827 = vmatprep.subr.bf16.mxu0 0
    %828 = vmatpush1.bf16.msra.mxu0 0
    %829 = vmatprep.subr.bf16.mxu0 0
    %830 = vmatpush1.bf16.msra.mxu0 0
    %831 = vmatprep.mubr.bf16.mxu0 0
    %832 = vmatmul.mubr.bf16.gmra.mrb[0].mxu0 %v794
    %v833 = vpop.f32.mrb[0].mxu0
    %v834 = vadd.f32 %v788, %v833
    %v835 = vpop.f32.mrb[0].mxu0
    %v836 = vpop.f32.mrb[0].mxu0
    %v837 = vpop.f32.mrb[0].mxu0
    %838 = vdwg.mxu0
    %s839 = scalar_lea.vmem %s4, 32
    %v840 = vld [vmem:[%s839] sm:$0xf]
    %v841 = vld [vmem:[%s839 + $0x4] sm:$0xf]
    %v842 = vld [vmem:[%s839 + $0x8] sm:$0xf]
    %v843 = vld [vmem:[%s839 + $0xc] sm:$0xf]
    %s844 = scalar_lea.vmem %s5, 2
    %v845 = vld [vmem:[%s844] sm:$0x1]
    %v847 = vlaneseq
    %v848 = vshrl.u32 %v847, 7
    %v849 = vsub.s32 0, %v848
    %v850 = vrot.slane %v845, %v849
    %v856 = vunpack.c.l.b16 %v840
    %v857 = vunpack.c.l.b16 %v841
    %v858 = vunpack.c.l.b16 %v842
    %v859 = vunpack.c.l.b16 %v843
    %v860 = vpack.c.b16 %v857, %v856
    %v861 = vpack.c.b16 %v859, %v858
    %864 = vmatprep.subr.bf16.mxu0 0
    %865 = vmatpush1.bf16.msra.mxu0 %v860
    %866 = vmatprep.subr.bf16.mxu0 0
    %867 = vmatpush1.bf16.msra.mxu0 %v861
    %868 = vmatprep.subr.bf16.mxu0 0
    %869 = vmatpush1.bf16.msra.mxu0 0
    %870 = vmatprep.subr.bf16.mxu0 0
    %871 = vmatpush1.bf16.msra.mxu0 0
    %872 = vmatprep.subr.bf16.mxu0 0
    %873 = vmatpush1.bf16.msra.mxu0 0
    %874 = vmatprep.subr.bf16.mxu0 0
    %875 = vmatpush1.bf16.msra.mxu0 0
    %876 = vmatprep.subr.bf16.mxu0 0
    %877 = vmatpush1.bf16.msra.mxu0 0
    %878 = vmatprep.subr.bf16.mxu0 0
    %879 = vmatpush1.bf16.msra.mxu0 0
    %880 = vmatprep.subr.bf16.mxu0 0
    %881 = vmatpush1.bf16.msra.mxu0 0
    %882 = vmatprep.subr.bf16.mxu0 0
    %883 = vmatpush1.bf16.msra.mxu0 0
    %884 = vmatprep.subr.bf16.mxu0 0
    %885 = vmatpush1.bf16.msra.mxu0 0
    %886 = vmatprep.subr.bf16.mxu0 0
    %887 = vmatpush1.bf16.msra.mxu0 0
    %888 = vmatprep.subr.bf16.mxu0 0
    %889 = vmatpush1.bf16.msra.mxu0 0
    %890 = vmatprep.subr.bf16.mxu0 0
    %891 = vmatpush1.bf16.msra.mxu0 0
    %892 = vmatprep.subr.bf16.mxu0 0
    %893 = vmatpush1.bf16.msra.mxu0 0
    %894 = vmatprep.subr.bf16.mxu0 0
    %895 = vmatpush1.bf16.msra.mxu0 0
    %896 = vmatprep.mubr.bf16.mxu0 0
    %897 = vmatmul.mubr.bf16.gmra.mrb[0].mxu0 %v153
    %v898 = vpop.f32.mrb[0].mxu0
    %v899 = vadd.f32 %v850, %v898
    %v900 = vpop.f32.mrb[0].mxu0
    %v901 = vpop.f32.mrb[0].mxu0
    %v902 = vpop.f32.mrb[0].mxu0
    %903 = vdwg.mxu0
    %s904 = scalar_lea.vmem %s6, 32
    %v905 = vld [vmem:[%s904] sm:$0xf]
    %v906 = vld [vmem:[%s904 + $0x4] sm:$0xf]
    %v907 = vld [vmem:[%s904 + $0x8] sm:$0xf]
    %v908 = vld [vmem:[%s904 + $0xc] sm:$0xf]
    %s909 = scalar_lea.vmem %s7, 2
    %v910 = vld [vmem:[%s909] sm:$0x1]
    %v912 = vlaneseq
    %v913 = vshrl.u32 %v912, 7
    %v914 = vsub.s32 0, %v913
    %v915 = vrot.slane %v910, %v914
    %v921 = vunpack.c.l.b16 %v905
    %v922 = vunpack.c.l.b16 %v906
    %v923 = vunpack.c.l.b16 %v907
    %v924 = vunpack.c.l.b16 %v908
    %v925 = vpack.c.b16 %v922, %v921
    %v926 = vpack.c.b16 %v924, %v923
    %929 = vmatprep.subr.bf16.mxu0 0
    %930 = vmatpush1.bf16.msra.mxu0 %v925
    %931 = vmatprep.subr.bf16.mxu0 0
    %932 = vmatpush1.bf16.msra.mxu0 %v926
    %933 = vmatprep.subr.bf16.mxu0 0
    %934 = vmatpush1.bf16.msra.mxu0 0
    %935 = vmatprep.subr.bf16.mxu0 0
    %936 = vmatpush1.bf16.msra.mxu0 0
    %937 = vmatprep.subr.bf16.mxu0 0
    %938 = vmatpush1.bf16.msra.mxu0 0
    %939 = vmatprep.subr.bf16.mxu0 0
    %940 = vmatpush1.bf16.msra.mxu0 0
    %941 = vmatprep.subr.bf16.mxu0 0
    %942 = vmatpush1.bf16.msra.mxu0 0
    %943 = vmatprep.subr.bf16.mxu0 0
    %944 = vmatpush1.bf16.msra.mxu0 0
    %945 = vmatprep.subr.bf16.mxu0 0
    %946 = vmatpush1.bf16.msra.mxu0 0
    %947 = vmatprep.subr.bf16.mxu0 0
    %948 = vmatpush1.bf16.msra.mxu0 0
    %949 = vmatprep.subr.bf16.mxu0 0
    %950 = vmatpush1.bf16.msra.mxu0 0
    %951 = vmatprep.subr.bf16.mxu0 0
    %952 = vmatpush1.bf16.msra.mxu0 0
    %953 = vmatprep.subr.bf16.mxu0 0
    %954 = vmatpush1.bf16.msra.mxu0 0
    %955 = vmatprep.subr.bf16.mxu0 0
    %956 = vmatpush1.bf16.msra.mxu0 0
    %957 = vmatprep.subr.bf16.mxu0 0
    %958 = vmatpush1.bf16.msra.mxu0 0
    %959 = vmatprep.subr.bf16.mxu0 0
    %960 = vmatpush1.bf16.msra.mxu0 0
    %961 = vmatprep.mubr.bf16.mxu0 0
    %962 = vmatmul.mubr.bf16.gmra.mrb[0].mxu0 %v153
    %v963 = vpop.f32.mrb[0].mxu0
    %v964 = vadd.f32 %v915, %v963
    %v965 = vpop.f32.mrb[0].mxu0
    %v966 = vpop.f32.mrb[0].mxu0
    %v967 = vpop.f32.mrb[0].mxu0
    %968 = vdwg.mxu0
    %s969 = scalar_lea.vmem %s8, 32
    %v970 = vld [vmem:[%s969] sm:$0xf]
    %v971 = vld [vmem:[%s969 + $0x4] sm:$0xf]
    %v972 = vld [vmem:[%s969 + $0x8] sm:$0xf]
    %v973 = vld [vmem:[%s969 + $0xc] sm:$0xf]
    %s974 = scalar_lea.vmem %s9, 2
    %v975 = vld [vmem:[%s974] sm:$0x1]
    %v977 = vlaneseq
    %v978 = vshrl.u32 %v977, 7
    %v979 = vsub.s32 0, %v978
    %v980 = vrot.slane %v975, %v979
    %v986 = vunpack.c.l.b16 %v970
    %v987 = vunpack.c.l.b16 %v971
    %v988 = vunpack.c.l.b16 %v972
    %v989 = vunpack.c.l.b16 %v973
    %v990 = vpack.c.b16 %v987, %v986
    %v991 = vpack.c.b16 %v989, %v988
    %994 = vmatprep.subr.bf16.mxu0 0
    %995 = vmatpush1.bf16.msra.mxu0 %v990
    %996 = vmatprep.subr.bf16.mxu0 0
    %997 = vmatpush1.bf16.msra.mxu0 %v991
    %998 = vmatprep.subr.bf16.mxu0 0
    %999 = vmatpush1.bf16.msra.mxu0 0
    %1000 = vmatprep.subr.bf16.mxu0 0
    %1001 = vmatpush1.bf16.msra.mxu0 0
    %1002 = vmatprep.subr.bf16.mxu0 0
    %1003 = vmatpush1.bf16.msra.mxu0 0
    %1004 = vmatprep.subr.bf16.mxu0 0
    %1005 = vmatpush1.bf16.msra.mxu0 0
    %1006 = vmatprep.subr.bf16.mxu0 0
    %1007 = vmatpush1.bf16.msra.mxu0 0
    %1008 = vmatprep.subr.bf16.mxu0 0
    %1009 = vmatpush1.bf16.msra.mxu0 0
    %1010 = vmatprep.subr.bf16.mxu0 0
    %1011 = vmatpush1.bf16.msra.mxu0 0
    %1012 = vmatprep.subr.bf16.mxu0 0
    %1013 = vmatpush1.bf16.msra.mxu0 0
    %1014 = vmatprep.subr.bf16.mxu0 0
    %1015 = vmatpush1.bf16.msra.mxu0 0
    %1016 = vmatprep.subr.bf16.mxu0 0
    %1017 = vmatpush1.bf16.msra.mxu0 0
    %1018 = vmatprep.subr.bf16.mxu0 0
    %1019 = vmatpush1.bf16.msra.mxu0 0
    %1020 = vmatprep.subr.bf16.mxu0 0
    %1021 = vmatpush1.bf16.msra.mxu0 0
    %1022 = vmatprep.subr.bf16.mxu0 0
    %1023 = vmatpush1.bf16.msra.mxu0 0
    %1024 = vmatprep.subr.bf16.mxu0 0
    %1025 = vmatpush1.bf16.msra.mxu0 0
    %1026 = vmatprep.mubr.bf16.mxu0 0
    %1027 = vmatmul.mubr.bf16.gmra.mrb[0].mxu0 %v153
    %v1028 = vpop.f32.mrb[0].mxu0
    %v1029 = vadd.f32 %v980, %v1028
    %v1030 = vpop.f32.mrb[0].mxu0
    %v1031 = vpop.f32.mrb[0].mxu0
    %v1032 = vpop.f32.mrb[0].mxu0
    %1033 = vdwg.mxu0
    %v1034 = vpack.c.bf16 %v899, %v899
    %v1035 = vpack.c.bf16 %v964, %v964
    %v1037 = vsel %vm323, %v1034, 0
    %v1040 = vsel %vm323, %v1035, 0
    %1042 = vmatprep.subr.bf16.mxu0 0
    %1043 = vmatpush1.bf16.xpose.msra.mxu0 %v1040
    %1044 = vmatprep.subr.bf16.mxu0 0
    %1045 = vmatpush1.bf16.xpose.msra.mxu0 0
    %1046 = vmatprep.subr.bf16.mxu0 0
    %1047 = vmatpush1.bf16.xpose.msra.mxu0 0
    %1048 = vmatprep.subr.bf16.mxu0 0
    %1049 = vmatpush1.bf16.xpose.msra.mxu0 0
    %1050 = vmatprep.subr.bf16.mxu0 0
    %1051 = vmatpush1.bf16.xpose.msra.mxu0 0
    %1052 = vmatprep.subr.bf16.mxu0 0
    %1053 = vmatpush1.bf16.xpose.msra.mxu0 0
    %1054 = vmatprep.subr.bf16.mxu0 0
    %1055 = vmatpush1.bf16.xpose.msra.mxu0 0
    %1056 = vmatprep.subr.bf16.mxu0 0
    %1057 = vmatpush1.bf16.xpose.msra.mxu0 0
    %1058 = vmatprep.subr.bf16.mxu0 0
    %1059 = vmatpush1.bf16.xpose.msra.mxu0 0
    %1060 = vmatprep.subr.bf16.mxu0 0
    %1061 = vmatpush1.bf16.xpose.msra.mxu0 0
    %1062 = vmatprep.subr.bf16.mxu0 0
    %1063 = vmatpush1.bf16.xpose.msra.mxu0 0
    %1064 = vmatprep.subr.bf16.mxu0 0
    %1065 = vmatpush1.bf16.xpose.msra.mxu0 0
    %1066 = vmatprep.subr.bf16.mxu0 0
    %1067 = vmatpush1.bf16.xpose.msra.mxu0 0
    %1068 = vmatprep.subr.bf16.mxu0 0
    %1069 = vmatpush1.bf16.xpose.msra.mxu0 0
    %1070 = vmatprep.subr.bf16.mxu0 0
    %1071 = vmatpush1.bf16.xpose.msra.mxu0 0
    %1072 = vmatprep.subr.bf16.mxu0 0
    %1073 = vmatpush1.bf16.xpose.msra.mxu0 0
    %1074 = vmatprep.mubr.bf16.mxu0 0
    %1075 = vmatmul.mubr.bf16.gmra.mrb[0].mxu0 %v1037
    %v1076 = vpop.f32.mrb[0].mxu0
    %v1077 = vadd.f32 0.0, %v1076
    %v1078 = vpop.f32.mrb[0].mxu0
    %v1079 = vpop.f32.mrb[0].mxu0
    %v1080 = vpop.f32.mrb[0].mxu0
    %1081 = vdwg.mxu0
    %v1082 = vmul.f32 %v1077, 0.35355338
    %v1083 = vadd.f32 %v1082, %v375
    %v1084 = vsel %vm323, %v1083, -inf
    %1085 = vmax.xlane.f32.xlu0 %v1084
    %v1086 = vpop.xlane.xlu0 %1085
    %v1087 = vsub.f32 %v1083, %v1086
    %v1088 = vmul.f32 %v1087, 1.442695
    %v1089 = vpow.pop %v1088
    %v1090 = vsel %vm323, %v1089, 0.0
    %1091 = vadd.xlane.f32.xlu0 %v1090
    %v1092 = vpop.xlane.xlu0 %1091
    %v1093 = vrcp.pop %v1092
    %v1094 = vmul.f32 %v1089, %v1093
    %v1095 = vpack.c.bf16 %v1094, %v1094
    %v1096 = vpack.c.bf16 %v1029, %v1029
    %v1098 = vsel %vm323, %v1095, 0
    %v1101 = vsel %vm394, %v1096, 0
    %1103 = vmatprep.subr.bf16.mxu0 0
    %1104 = vmatpush1.bf16.msra.mxu0 %v1101
    %1105 = vmatprep.subr.bf16.mxu0 0
    %1106 = vmatpush1.bf16.msra.mxu0 0
    %1107 = vmatprep.subr.bf16.mxu0 0
    %1108 = vmatpush1.bf16.msra.mxu0 0
    %1109 = vmatprep.subr.bf16.mxu0 0
    %1110 = vmatpush1.bf16.msra.mxu0 0
    %1111 = vmatprep.subr.bf16.mxu0 0
    %1112 = vmatpush1.bf16.msra.mxu0 0
    %1113 = vmatprep.subr.bf16.mxu0 0
    %1114 = vmatpush1.bf16.msra.mxu0 0
    %1115 = vmatprep.subr.bf16.mxu0 0
    %1116 = vmatpush1.bf16.msra.mxu0 0
    %1117 = vmatprep.subr.bf16.mxu0 0
    %1118 = vmatpush1.bf16.msra.mxu0 0
    %1119 = vmatprep.subr.bf16.mxu0 0
    %1120 = vmatpush1.bf16.msra.mxu0 0
    %1121 = vmatprep.subr.bf16.mxu0 0
    %1122 = vmatpush1.bf16.msra.mxu0 0
    %1123 = vmatprep.subr.bf16.mxu0 0
    %1124 = vmatpush1.bf16.msra.mxu0 0
    %1125 = vmatprep.subr.bf16.mxu0 0
    %1126 = vmatpush1.bf16.msra.mxu0 0
    %1127 = vmatprep.subr.bf16.mxu0 0
    %1128 = vmatpush1.bf16.msra.mxu0 0
    %1129 = vmatprep.subr.bf16.mxu0 0
    %1130 = vmatpush1.bf16.msra.mxu0 0
    %1131 = vmatprep.subr.bf16.mxu0 0
    %1132 = vmatpush1.bf16.msra.mxu0 0
    %1133 = vmatprep.subr.bf16.mxu0 0
    %1134 = vmatpush1.bf16.msra.mxu0 0
    %1135 = vmatprep.mubr.bf16.mxu0 0
    %1136 = vmatmul.mubr.bf16.gmra.mrb[0].mxu0 %v1098
    %v1137 = vpop.f32.mrb[0].mxu0
    %v1138 = vadd.f32 0.0, %v1137
    %v1139 = vpop.f32.mrb[0].mxu0
    %v1140 = vpop.f32.mrb[0].mxu0
    %v1141 = vpop.f32.mrb[0].mxu0
    %1142 = vdwg.mxu0
    %v1143 = vpack.c.bf16 %v1138, %v1138
    %s1144 = scalar_lea.vmem %s10, 8
    %v1145 = vld [vmem:[%s1144] sm:$0xf]
    %v1147 = vsel %vm323, %v1143, 0
    %v1150 = vsel %vm394, %v1145, 0
    %1152 = vmatprep.subr.bf16.mxu0 0
    %1153 = vmatpush1.bf16.msra.mxu0 %v1150
    %1154 = vmatprep.subr.bf16.mxu0 0
    %1155 = vmatpush1.bf16.msra.mxu0 0
    %1156 = vmatprep.subr.bf16.mxu0 0
    %1157 = vmatpush1.bf16.msra.mxu0 0
    %1158 = vmatprep.subr.bf16.mxu0 0
    %1159 = vmatpush1.bf16.msra.mxu0 0
    %1160 = vmatprep.subr.bf16.mxu0 0
    %1161 = vmatpush1.bf16.msra.mxu0 0
    %1162 = vmatprep.subr.bf16.mxu0 0
    %1163 = vmatpush1.bf16.msra.mxu0 0
    %1164 = vmatprep.subr.bf16.mxu0 0
    %1165 = vmatpush1.bf16.msra.mxu0 0
    %1166 = vmatprep.subr.bf16.mxu0 0
    %1167 = vmatpush1.bf16.msra.mxu0 0
    %1168 = vmatprep.subr.bf16.mxu0 0
    %1169 = vmatpush1.bf16.msra.mxu0 0
    %1170 = vmatprep.subr.bf16.mxu0 0
    %1171 = vmatpush1.bf16.msra.mxu0 0
    %1172 = vmatprep.subr.bf16.mxu0 0
    %1173 = vmatpush1.bf16.msra.mxu0 0
    %1174 = vmatprep.subr.bf16.mxu0 0
    %1175 = vmatpush1.bf16.msra.mxu0 0
    %1176 = vmatprep.subr.bf16.mxu0 0
    %1177 = vmatpush1.bf16.msra.mxu0 0
    %1178 = vmatprep.subr.bf16.mxu0 0
    %1179 = vmatpush1.bf16.msra.mxu0 0
    %1180 = vmatprep.subr.bf16.mxu0 0
    %1181 = vmatpush1.bf16.msra.mxu0 0
    %1182 = vmatprep.subr.bf16.mxu0 0
    %1183 = vmatpush1.bf16.msra.mxu0 0
    %1184 = vmatprep.mubr.bf16.mxu0 0
    %1185 = vmatmul.mubr.bf16.gmra.mrb[0].mxu0 %v1147
    %v1186 = vpop.f32.mrb[0].mxu0
    %v1187 = vadd.f32 0.0, %v1186
    %v1188 = vpop.f32.mrb[0].mxu0
    %v1189 = vpop.f32.mrb[0].mxu0
    %v1190 = vpop.f32.mrb[0].mxu0
    %1191 = vdwg.mxu0
    %v1192 = vadd.f32 %v834, %v1187
    %s1193 = scalar_lea.vmem %s4, 48
    %v1194 = vld [vmem:[%s1193] sm:$0xf]
    %v1195 = vld [vmem:[%s1193 + $0x4] sm:$0xf]
    %v1196 = vld [vmem:[%s1193 + $0x8] sm:$0xf]
    %v1197 = vld [vmem:[%s1193 + $0xc] sm:$0xf]
    %s1198 = scalar_lea.vmem %s5, 3
    %v1199 = vld [vmem:[%s1198] sm:$0x1]
    %v1201 = vlaneseq
    %v1202 = vshrl.u32 %v1201, 7
    %v1203 = vsub.s32 0, %v1202
    %v1204 = vrot.slane %v1199, %v1203
    %v1210 = vunpack.c.l.b16 %v1194
    %v1211 = vunpack.c.l.b16 %v1195
    %v1212 = vunpack.c.l.b16 %v1196
    %v1213 = vunpack.c.l.b16 %v1197
    %v1214 = vpack.c.b16 %v1211, %v1210
    %v1215 = vpack.c.b16 %v1213, %v1212
    %1218 = vmatprep.subr.bf16.mxu0 0
    %1219 = vmatpush1.bf16.msra.mxu0 %v1214
    %1220 = vmatprep.subr.bf16.mxu0 0
    %1221 = vmatpush1.bf16.msra.mxu0 %v1215
    %1222 = vmatprep.subr.bf16.mxu0 0
    %1223 = vmatpush1.bf16.msra.mxu0 0
    %1224 = vmatprep.subr.bf16.mxu0 0
    %1225 = vmatpush1.bf16.msra.mxu0 0
    %1226 = vmatprep.subr.bf16.mxu0 0
    %1227 = vmatpush1.bf16.msra.mxu0 0
    %1228 = vmatprep.subr.bf16.mxu0 0
    %1229 = vmatpush1.bf16.msra.mxu0 0
    %1230 = vmatprep.subr.bf16.mxu0 0
    %1231 = vmatpush1.bf16.msra.mxu0 0
    %1232 = vmatprep.subr.bf16.mxu0 0
    %1233 = vmatpush1.bf16.msra.mxu0 0
    %1234 = vmatprep.subr.bf16.mxu0 0
    %1235 = vmatpush1.bf16.msra.mxu0 0
    %1236 = vmatprep.subr.bf16.mxu0 0
    %1237 = vmatpush1.bf16.msra.mxu0 0
    %1238 = vmatprep.subr.bf16.mxu0 0
    %1239 = vmatpush1.bf16.msra.mxu0 0
    %1240 = vmatprep.subr.bf16.mxu0 0
    %1241 = vmatpush1.bf16.msra.mxu0 0
    %1242 = vmatprep.subr.bf16.mxu0 0
    %1243 = vmatpush1.bf16.msra.mxu0 0
    %1244 = vmatprep.subr.bf16.mxu0 0
    %1245 = vmatpush1.bf16.msra.mxu0 0
    %1246 = vmatprep.subr.bf16.mxu0 0
    %1247 = vmatpush1.bf16.msra.mxu0 0
    %1248 = vmatprep.subr.bf16.mxu0 0
    %1249 = vmatpush1.bf16.msra.mxu0 0
    %1250 = vmatprep.mubr.bf16.mxu0 0
    %1251 = vmatmul.mubr.bf16.gmra.mrb[0].mxu0 %v153
    %v1252 = vpop.f32.mrb[0].mxu0
    %v1253 = vadd.f32 %v1204, %v1252
    %v1254 = vpop.f32.mrb[0].mxu0
    %v1255 = vpop.f32.mrb[0].mxu0
    %v1256 = vpop.f32.mrb[0].mxu0
    %1257 = vdwg.mxu0
    %s1258 = scalar_lea.vmem %s6, 48
    %v1259 = vld [vmem:[%s1258] sm:$0xf]
    %v1260 = vld [vmem:[%s1258 + $0x4] sm:$0xf]
    %v1261 = vld [vmem:[%s1258 + $0x8] sm:$0xf]
    %v1262 = vld [vmem:[%s1258 + $0xc] sm:$0xf]
    %s1263 = scalar_lea.vmem %s7, 3
    %v1264 = vld [vmem:[%s1263] sm:$0x1]
    %v1266 = vlaneseq
    %v1267 = vshrl.u32 %v1266, 7
    %v1268 = vsub.s32 0, %v1267
    %v1269 = vrot.slane %v1264, %v1268
    %v1275 = vunpack.c.l.b16 %v1259
    %v1276 = vunpack.c.l.b16 %v1260
    %v1277 = vunpack.c.l.b16 %v1261
    %v1278 = vunpack.c.l.b16 %v1262
    %v1279 = vpack.c.b16 %v1276, %v1275
    %v1280 = vpack.c.b16 %v1278, %v1277
    %1283 = vmatprep.subr.bf16.mxu0 0
    %1284 = vmatpush1.bf16.msra.mxu0 %v1279
    %1285 = vmatprep.subr.bf16.mxu0 0
    %1286 = vmatpush1.bf16.msra.mxu0 %v1280
    %1287 = vmatprep.subr.bf16.mxu0 0
    %1288 = vmatpush1.bf16.msra.mxu0 0
    %1289 = vmatprep.subr.bf16.mxu0 0
    %1290 = vmatpush1.bf16.msra.mxu0 0
    %1291 = vmatprep.subr.bf16.mxu0 0
    %1292 = vmatpush1.bf16.msra.mxu0 0
    %1293 = vmatprep.subr.bf16.mxu0 0
    %1294 = vmatpush1.bf16.msra.mxu0 0
    %1295 = vmatprep.subr.bf16.mxu0 0
    %1296 = vmatpush1.bf16.msra.mxu0 0
    %1297 = vmatprep.subr.bf16.mxu0 0
    %1298 = vmatpush1.bf16.msra.mxu0 0
    %1299 = vmatprep.subr.bf16.mxu0 0
    %1300 = vmatpush1.bf16.msra.mxu0 0
    %1301 = vmatprep.subr.bf16.mxu0 0
    %1302 = vmatpush1.bf16.msra.mxu0 0
    %1303 = vmatprep.subr.bf16.mxu0 0
    %1304 = vmatpush1.bf16.msra.mxu0 0
    %1305 = vmatprep.subr.bf16.mxu0 0
    %1306 = vmatpush1.bf16.msra.mxu0 0
    %1307 = vmatprep.subr.bf16.mxu0 0
    %1308 = vmatpush1.bf16.msra.mxu0 0
    %1309 = vmatprep.subr.bf16.mxu0 0
    %1310 = vmatpush1.bf16.msra.mxu0 0
    %1311 = vmatprep.subr.bf16.mxu0 0
    %1312 = vmatpush1.bf16.msra.mxu0 0
    %1313 = vmatprep.subr.bf16.mxu0 0
    %1314 = vmatpush1.bf16.msra.mxu0 0
    %1315 = vmatprep.mubr.bf16.mxu0 0
    %1316 = vmatmul.mubr.bf16.gmra.mrb[0].mxu0 %v153
    %v1317 = vpop.f32.mrb[0].mxu0
    %v1318 = vadd.f32 %v1269, %v1317
    %v1319 = vpop.f32.mrb[0].mxu0
    %v1320 = vpop.f32.mrb[0].mxu0
    %v1321 = vpop.f32.mrb[0].mxu0
    %1322 = vdwg.mxu0
    %s1323 = scalar_lea.vmem %s8, 48
    %v1324 = vld [vmem:[%s1323] sm:$0xf]
    %v1325 = vld [vmem:[%s1323 + $0x4] sm:$0xf]
    %v1326 = vld [vmem:[%s1323 + $0x8] sm:$0xf]
    %v1327 = vld [vmem:[%s1323 + $0xc] sm:$0xf]
    %s1328 = scalar_lea.vmem %s9, 3
    %v1329 = vld [vmem:[%s1328] sm:$0x1]
    %v1331 = vlaneseq
    %v1332 = vshrl.u32 %v1331, 7
    %v1333 = vsub.s32 0, %v1332
    %v1334 = vrot.slane %v1329, %v1333
    %v1340 = vunpack.c.l.b16 %v1324
    %v1341 = vunpack.c.l.b16 %v1325
    %v1342 = vunpack.c.l.b16 %v1326
    %v1343 = vunpack.c.l.b16 %v1327
    %v1344 = vpack.c.b16 %v1341, %v1340
    %v1345 = vpack.c.b16 %v1343, %v1342
    %1348 = vmatprep.subr.bf16.mxu0 0
    %1349 = vmatpush1.bf16.msra.mxu0 %v1344
    %1350 = vmatprep.subr.bf16.mxu0 0
    %1351 = vmatpush1.bf16.msra.mxu0 %v1345
    %1352 = vmatprep.subr.bf16.mxu0 0
    %1353 = vmatpush1.bf16.msra.mxu0 0
    %1354 = vmatprep.subr.bf16.mxu0 0
    %1355 = vmatpush1.bf16.msra.mxu0 0
    %1356 = vmatprep.subr.bf16.mxu0 0
    %1357 = vmatpush1.bf16.msra.mxu0 0
    %1358 = vmatprep.subr.bf16.mxu0 0
    %1359 = vmatpush1.bf16.msra.mxu0 0
    %1360 = vmatprep.subr.bf16.mxu0 0
    %1361 = vmatpush1.bf16.msra.mxu0 0
    %1362 = vmatprep.subr.bf16.mxu0 0
    %1363 = vmatpush1.bf16.msra.mxu0 0
    %1364 = vmatprep.subr.bf16.mxu0 0
    %1365 = vmatpush1.bf16.msra.mxu0 0
    %1366 = vmatprep.subr.bf16.mxu0 0
    %1367 = vmatpush1.bf16.msra.mxu0 0
    %1368 = vmatprep.subr.bf16.mxu0 0
    %1369 = vmatpush1.bf16.msra.mxu0 0
    %1370 = vmatprep.subr.bf16.mxu0 0
    %1371 = vmatpush1.bf16.msra.mxu0 0
    %1372 = vmatprep.subr.bf16.mxu0 0
    %1373 = vmatpush1.bf16.msra.mxu0 0
    %1374 = vmatprep.subr.bf16.mxu0 0
    %1375 = vmatpush1.bf16.msra.mxu0 0
    %1376 = vmatprep.subr.bf16.mxu0 0
    %1377 = vmatpush1.bf16.msra.mxu0 0
    %1378 = vmatprep.subr.bf16.mxu0 0
    %1379 = vmatpush1.bf16.msra.mxu0 0
    %1380 = vmatprep.mubr.bf16.mxu0 0
    %1381 = vmatmul.mubr.bf16.gmra.mrb[0].mxu0 %v153
    %v1382 = vpop.f32.mrb[0].mxu0
    %v1383 = vadd.f32 %v1334, %v1382
    %v1384 = vpop.f32.mrb[0].mxu0
    %v1385 = vpop.f32.mrb[0].mxu0
    %v1386 = vpop.f32.mrb[0].mxu0
    %1387 = vdwg.mxu0
    %v1388 = vpack.c.bf16 %v1253, %v1253
    %v1389 = vpack.c.bf16 %v1318, %v1318
    %v1391 = vsel %vm323, %v1388, 0
    %v1394 = vsel %vm323, %v1389, 0
    %1396 = vmatprep.subr.bf16.mxu0 0
    %1397 = vmatpush1.bf16.xpose.msra.mxu0 %v1394
    %1398 = vmatprep.subr.bf16.mxu0 0
    %1399 = vmatpush1.bf16.xpose.msra.mxu0 0
    %1400 = vmatprep.subr.bf16.mxu0 0
    %1401 = vmatpush1.bf16.xpose.msra.mxu0 0
    %1402 = vmatprep.subr.bf16.mxu0 0
    %1403 = vmatpush1.bf16.xpose.msra.mxu0 0
    %1404 = vmatprep.subr.bf16.mxu0 0
    %1405 = vmatpush1.bf16.xpose.msra.mxu0 0
    %1406 = vmatprep.subr.bf16.mxu0 0
    %1407 = vmatpush1.bf16.xpose.msra.mxu0 0
    %1408 = vmatprep.subr.bf16.mxu0 0
    %1409 = vmatpush1.bf16.xpose.msra.mxu0 0
    %1410 = vmatprep.subr.bf16.mxu0 0
    %1411 = vmatpush1.bf16.xpose.msra.mxu0 0
    %1412 = vmatprep.subr.bf16.mxu0 0
    %1413 = vmatpush1.bf16.xpose.msra.mxu0 0
    %1414 = vmatprep.subr.bf16.mxu0 0
    %1415 = vmatpush1.bf16.xpose.msra.mxu0 0
    %1416 = vmatprep.subr.bf16.mxu0 0
    %1417 = vmatpush1.bf16.xpose.msra.mxu0 0
    %1418 = vmatprep.subr.bf16.mxu0 0
    %1419 = vmatpush1.bf16.xpose.msra.mxu0 0
    %1420 = vmatprep.subr.bf16.mxu0 0
    %1421 = vmatpush1.bf16.xpose.msra.mxu0 0
    %1422 = vmatprep.subr.bf16.mxu0 0
    %1423 = vmatpush1.bf16.xpose.msra.mxu0 0
    %1424 = vmatprep.subr.bf16.mxu0 0
    %1425 = vmatpush1.bf16.xpose.msra.mxu0 0
    %1426 = vmatprep.subr.bf16.mxu0 0
    %1427 = vmatpush1.bf16.xpose.msra.mxu0 0
    %1428 = vmatprep.mubr.bf16.mxu0 0
    %1429 = vmatmul.mubr.bf16.gmra.mrb[0].mxu0 %v1391
    %v1430 = vpop.f32.mrb[0].mxu0
    %v1431 = vadd.f32 0.0, %v1430
    %v1432 = vpop.f32.mrb[0].mxu0
    %v1433 = vpop.f32.mrb[0].mxu0
    %v1434 = vpop.f32.mrb[0].mxu0
    %1435 = vdwg.mxu0
    %v1436 = vmul.f32 %v1431, 0.35355338
    %v1437 = vadd.f32 %v1436, %v375
    %v1438 = vsel %vm323, %v1437, -inf
    %1439 = vmax.xlane.f32.xlu0 %v1438
    %v1440 = vpop.xlane.xlu0 %1439
    %v1441 = vsub.f32 %v1437, %v1440
    %v1442 = vmul.f32 %v1441, 1.442695
    %v1443 = vpow.pop %v1442
    %v1444 = vsel %vm323, %v1443, 0.0
    %1445 = vadd.xlane.f32.xlu0 %v1444
    %v1446 = vpop.xlane.xlu0 %1445
    %v1447 = vrcp.pop %v1446
    %v1448 = vmul.f32 %v1443, %v1447
    %v1449 = vpack.c.bf16 %v1448, %v1448
    %v1450 = vpack.c.bf16 %v1383, %v1383
    %v1452 = vsel %vm323, %v1449, 0
    %v1455 = vsel %vm394, %v1450, 0
    %1457 = vmatprep.subr.bf16.mxu0 0
    %1458 = vmatpush1.bf16.msra.mxu0 %v1455
    %1459 = vmatprep.subr.bf16.mxu0 0
    %1460 = vmatpush1.bf16.msra.mxu0 0
    %1461 = vmatprep.subr.bf16.mxu0 0
    %1462 = vmatpush1.bf16.msra.mxu0 0
    %1463 = vmatprep.subr.bf16.mxu0 0
    %1464 = vmatpush1.bf16.msra.mxu0 0
    %1465 = vmatprep.subr.bf16.mxu0 0
    %1466 = vmatpush1.bf16.msra.mxu0 0
    %1467 = vmatprep.subr.bf16.mxu0 0
    %1468 = vmatpush1.bf16.msra.mxu0 0
    %1469 = vmatprep.subr.bf16.mxu0 0
    %1470 = vmatpush1.bf16.msra.mxu0 0
    %1471 = vmatprep.subr.bf16.mxu0 0
    %1472 = vmatpush1.bf16.msra.mxu0 0
    %1473 = vmatprep.subr.bf16.mxu0 0
    %1474 = vmatpush1.bf16.msra.mxu0 0
    %1475 = vmatprep.subr.bf16.mxu0 0
    %1476 = vmatpush1.bf16.msra.mxu0 0
    %1477 = vmatprep.subr.bf16.mxu0 0
    %1478 = vmatpush1.bf16.msra.mxu0 0
    %1479 = vmatprep.subr.bf16.mxu0 0
    %1480 = vmatpush1.bf16.msra.mxu0 0
    %1481 = vmatprep.subr.bf16.mxu0 0
    %1482 = vmatpush1.bf16.msra.mxu0 0
    %1483 = vmatprep.subr.bf16.mxu0 0
    %1484 = vmatpush1.bf16.msra.mxu0 0
    %1485 = vmatprep.subr.bf16.mxu0 0
    %1486 = vmatpush1.bf16.msra.mxu0 0
    %1487 = vmatprep.subr.bf16.mxu0 0
    %1488 = vmatpush1.bf16.msra.mxu0 0
    %1489 = vmatprep.mubr.bf16.mxu0 0
    %1490 = vmatmul.mubr.bf16.gmra.mrb[0].mxu0 %v1452
    %v1491 = vpop.f32.mrb[0].mxu0
    %v1492 = vadd.f32 0.0, %v1491
    %v1493 = vpop.f32.mrb[0].mxu0
    %v1494 = vpop.f32.mrb[0].mxu0
    %v1495 = vpop.f32.mrb[0].mxu0
    %1496 = vdwg.mxu0
    %v1497 = vpack.c.bf16 %v1492, %v1492
    %s1498 = scalar_lea.vmem %s10, 12
    %v1499 = vld [vmem:[%s1498] sm:$0xf]
    %v1501 = vsel %vm323, %v1497, 0
    %v1504 = vsel %vm394, %v1499, 0
    %1506 = vmatprep.subr.bf16.mxu0 0
    %1507 = vmatpush1.bf16.msra.mxu0 %v1504
    %1508 = vmatprep.subr.bf16.mxu0 0
    %1509 = vmatpush1.bf16.msra.mxu0 0
    %1510 = vmatprep.subr.bf16.mxu0 0
    %1511 = vmatpush1.bf16.msra.mxu0 0
    %1512 = vmatprep.subr.bf16.mxu0 0
    %1513 = vmatpush1.bf16.msra.mxu0 0
    %1514 = vmatprep.subr.bf16.mxu0 0
    %1515 = vmatpush1.bf16.msra.mxu0 0
    %1516 = vmatprep.subr.bf16.mxu0 0
    %1517 = vmatpush1.bf16.msra.mxu0 0
    %1518 = vmatprep.subr.bf16.mxu0 0
    %1519 = vmatpush1.bf16.msra.mxu0 0
    %1520 = vmatprep.subr.bf16.mxu0 0
    %1521 = vmatpush1.bf16.msra.mxu0 0
    %1522 = vmatprep.subr.bf16.mxu0 0
    %1523 = vmatpush1.bf16.msra.mxu0 0
    %1524 = vmatprep.subr.bf16.mxu0 0
    %1525 = vmatpush1.bf16.msra.mxu0 0
    %1526 = vmatprep.subr.bf16.mxu0 0
    %1527 = vmatpush1.bf16.msra.mxu0 0
    %1528 = vmatprep.subr.bf16.mxu0 0
    %1529 = vmatpush1.bf16.msra.mxu0 0
    %1530 = vmatprep.subr.bf16.mxu0 0
    %1531 = vmatpush1.bf16.msra.mxu0 0
    %1532 = vmatprep.subr.bf16.mxu0 0
    %1533 = vmatpush1.bf16.msra.mxu0 0
    %1534 = vmatprep.subr.bf16.mxu0 0
    %1535 = vmatpush1.bf16.msra.mxu0 0
    %1536 = vmatprep.subr.bf16.mxu0 0
    %1537 = vmatpush1.bf16.msra.mxu0 0
    %1538 = vmatprep.mubr.bf16.mxu0 0
    %1539 = vmatmul.mubr.bf16.gmra.mrb[0].mxu0 %v1501
    %v1540 = vpop.f32.mrb[0].mxu0
    %v1541 = vadd.f32 0.0, %v1540
    %v1542 = vpop.f32.mrb[0].mxu0
    %v1543 = vpop.f32.mrb[0].mxu0
    %v1544 = vpop.f32.mrb[0].mxu0
    %1545 = vdwg.mxu0
    %v1546 = vadd.f32 %v1192, %v1541
    %1547 = vst.msk [vmem:[#allocation2] sm:$0xff] %vm83, %v1546
    %v1548 = vpack.c.bf16 %v126, %v126
    %s1549 = scalar_lea.vmem %s1, 1
    %v1550 = vld [vmem:[%s1549] sm:$0x1]
    %v1551 = vld [vmem:[%s4] sm:$0xf]
    %v1552 = vld [vmem:[%s4 + $0x4] sm:$0xf]
    %v1553 = vld [vmem:[%s4 + $0x8] sm:$0xf]
    %v1554 = vld [vmem:[%s4 + $0xc] sm:$0xf]
    %v1555 = vld [vmem:[%s5] sm:$0x1]
    %v1557 = vlaneseq
    %v1558 = vshrl.u32 %v1557, 7
    %v1559 = vsub.s32 0, %v1558
    %v1560 = vrot.slane %v1555, %v1559
    %v1566 = vunpack.c.l.b16 %v1551
    %v1567 = vunpack.c.l.b16 %v1552
    %v1568 = vunpack.c.l.b16 %v1553
    %v1569 = vunpack.c.l.b16 %v1554
    %v1570 = vpack.c.b16 %v1567, %v1566
    %v1571 = vpack.c.b16 %v1569, %v1568
    %v1575 = vsel %vm83, %v1548, 0
    %1577 = vmatprep.subr.bf16.mxu0 0
    %1578 = vmatpush1.bf16.msra.mxu0 %v1570
    %1579 = vmatprep.subr.bf16.mxu0 0
    %1580 = vmatpush1.bf16.msra.mxu0 %v1571
    %1581 = vmatprep.subr.bf16.mxu0 0
    %1582 = vmatpush1.bf16.msra.mxu0 0
    %1583 = vmatprep.subr.bf16.mxu0 0
    %1584 = vmatpush1.bf16.msra.mxu0 0
    %1585 = vmatprep.subr.bf16.mxu0 0
    %1586 = vmatpush1.bf16.msra.mxu0 0
    %1587 = vmatprep.subr.bf16.mxu0 0
    %1588 = vmatpush1.bf16.msra.mxu0 0
    %1589 = vmatprep.subr.bf16.mxu0 0
    %1590 = vmatpush1.bf16.msra.mxu0 0
    %1591 = vmatprep.subr.bf16.mxu0 0
    %1592 = vmatpush1.bf16.msra.mxu0 0
    %1593 = vmatprep.subr.bf16.mxu0 0
    %1594 = vmatpush1.bf16.msra.mxu0 0
    %1595 = vmatprep.subr.bf16.mxu0 0
    %1596 = vmatpush1.bf16.msra.mxu0 0
    %1597 = vmatprep.subr.bf16.mxu0 0
    %1598 = vmatpush1.bf16.msra.mxu0 0
    %1599 = vmatprep.subr.bf16.mxu0 0
    %1600 = vmatpush1.bf16.msra.mxu0 0
    %1601 = vmatprep.subr.bf16.mxu0 0
    %1602 = vmatpush1.bf16.msra.mxu0 0
    %1603 = vmatprep.subr.bf16.mxu0 0
    %1604 = vmatpush1.bf16.msra.mxu0 0
    %1605 = vmatprep.subr.bf16.mxu0 0
    %1606 = vmatpush1.bf16.msra.mxu0 0
    %1607 = vmatprep.subr.bf16.mxu0 0
    %1608 = vmatpush1.bf16.msra.mxu0 0
    %1609 = vmatprep.mubr.bf16.mxu0 0
    %1610 = vmatmul.mubr.bf16.gmra.mrb[0].mxu0 %v1575
    %v1611 = vpop.f32.mrb[0].mxu0
    %v1612 = vadd.f32 %v1560, %v1611
    %v1613 = vpop.f32.mrb[0].mxu0
    %v1614 = vpop.f32.mrb[0].mxu0
    %v1615 = vpop.f32.mrb[0].mxu0
    %1616 = vdwg.mxu0
    %v1617 = vld [vmem:[%s6] sm:$0xf]
    %v1618 = vld [vmem:[%s6 + $0x4] sm:$0xf]
    %v1619 = vld [vmem:[%s6 + $0x8] sm:$0xf]
    %v1620 = vld [vmem:[%s6 + $0xc] sm:$0xf]
    %v1621 = vld [vmem:[%s7] sm:$0x1]
    %v1623 = vlaneseq
    %v1624 = vshrl.u32 %v1623, 7
    %v1625 = vsub.s32 0, %v1624
    %v1626 = vrot.slane %v1621, %v1625
    %v1632 = vunpack.c.l.b16 %v1617
    %v1633 = vunpack.c.l.b16 %v1618
    %v1634 = vunpack.c.l.b16 %v1619
    %v1635 = vunpack.c.l.b16 %v1620
    %v1636 = vpack.c.b16 %v1633, %v1632
    %v1637 = vpack.c.b16 %v1635, %v1634
    %1640 = vmatprep.subr.bf16.mxu0 0
    %1641 = vmatpush1.bf16.msra.mxu0 %v1636
    %1642 = vmatprep.subr.bf16.mxu0 0
    %1643 = vmatpush1.bf16.msra.mxu0 %v1637
    %1644 = vmatprep.subr.bf16.mxu0 0
    %1645 = vmatpush1.bf16.msra.mxu0 0
    %1646 = vmatprep.subr.bf16.mxu0 0
    %1647 = vmatpush1.bf16.msra.mxu0 0
    %1648 = vmatprep.subr.bf16.mxu0 0
    %1649 = vmatpush1.bf16.msra.mxu0 0
    %1650 = vmatprep.subr.bf16.mxu0 0
    %1651 = vmatpush1.bf16.msra.mxu0 0
    %1652 = vmatprep.subr.bf16.mxu0 0
    %1653 = vmatpush1.bf16.msra.mxu0 0
    %1654 = vmatprep.subr.bf16.mxu0 0
    %1655 = vmatpush1.bf16.msra.mxu0 0
    %1656 = vmatprep.subr.bf16.mxu0 0
    %1657 = vmatpush1.bf16.msra.mxu0 0
    %1658 = vmatprep.subr.bf16.mxu0 0
    %1659 = vmatpush1.bf16.msra.mxu0 0
    %1660 = vmatprep.subr.bf16.mxu0 0
    %1661 = vmatpush1.bf16.msra.mxu0 0
    %1662 = vmatprep.subr.bf16.mxu0 0
    %1663 = vmatpush1.bf16.msra.mxu0 0
    %1664 = vmatprep.subr.bf16.mxu0 0
    %1665 = vmatpush1.bf16.msra.mxu0 0
    %1666 = vmatprep.subr.bf16.mxu0 0
    %1667 = vmatpush1.bf16.msra.mxu0 0
    %1668 = vmatprep.subr.bf16.mxu0 0
    %1669 = vmatpush1.bf16.msra.mxu0 0
    %1670 = vmatprep.subr.bf16.mxu0 0
    %1671 = vmatpush1.bf16.msra.mxu0 0
    %1672 = vmatprep.mubr.bf16.mxu0 0
    %1673 = vmatmul.mubr.bf16.gmra.mrb[0].mxu0 %v1575
    %v1674 = vpop.f32.mrb[0].mxu0
    %v1675 = vadd.f32 %v1626, %v1674
    %v1676 = vpop.f32.mrb[0].mxu0
    %v1677 = vpop.f32.mrb[0].mxu0
    %v1678 = vpop.f32.mrb[0].mxu0
    %1679 = vdwg.mxu0
    %v1680 = vld [vmem:[%s8] sm:$0xf]
    %v1681 = vld [vmem:[%s8 + $0x4] sm:$0xf]
    %v1682 = vld [vmem:[%s8 + $0x8] sm:$0xf]
    %v1683 = vld [vmem:[%s8 + $0xc] sm:$0xf]
    %v1684 = vld [vmem:[%s9] sm:$0x1]
    %v1686 = vlaneseq
    %v1687 = vshrl.u32 %v1686, 7
    %v1688 = vsub.s32 0, %v1687
    %v1689 = vrot.slane %v1684, %v1688
    %v1695 = vunpack.c.l.b16 %v1680
    %v1696 = vunpack.c.l.b16 %v1681
    %v1697 = vunpack.c.l.b16 %v1682
    %v1698 = vunpack.c.l.b16 %v1683
    %v1699 = vpack.c.b16 %v1696, %v1695
    %v1700 = vpack.c.b16 %v1698, %v1697
    %1703 = vmatprep.subr.bf16.mxu0 0
    %1704 = vmatpush1.bf16.msra.mxu0 %v1699
    %1705 = vmatprep.subr.bf16.mxu0 0
    %1706 = vmatpush1.bf16.msra.mxu0 %v1700
    %1707 = vmatprep.subr.bf16.mxu0 0
    %1708 = vmatpush1.bf16.msra.mxu0 0
    %1709 = vmatprep.subr.bf16.mxu0 0
    %1710 = vmatpush1.bf16.msra.mxu0 0
    %1711 = vmatprep.subr.bf16.mxu0 0
    %1712 = vmatpush1.bf16.msra.mxu0 0
    %1713 = vmatprep.subr.bf16.mxu0 0
    %1714 = vmatpush1.bf16.msra.mxu0 0
    %1715 = vmatprep.subr.bf16.mxu0 0
    %1716 = vmatpush1.bf16.msra.mxu0 0
    %1717 = vmatprep.subr.bf16.mxu0 0
    %1718 = vmatpush1.bf16.msra.mxu0 0
    %1719 = vmatprep.subr.bf16.mxu0 0
    %1720 = vmatpush1.bf16.msra.mxu0 0
    %1721 = vmatprep.subr.bf16.mxu0 0
    %1722 = vmatpush1.bf16.msra.mxu0 0
    %1723 = vmatprep.subr.bf16.mxu0 0
    %1724 = vmatpush1.bf16.msra.mxu0 0
    %1725 = vmatprep.subr.bf16.mxu0 0
    %1726 = vmatpush1.bf16.msra.mxu0 0
    %1727 = vmatprep.subr.bf16.mxu0 0
    %1728 = vmatpush1.bf16.msra.mxu0 0
    %1729 = vmatprep.subr.bf16.mxu0 0
    %1730 = vmatpush1.bf16.msra.mxu0 0
    %1731 = vmatprep.subr.bf16.mxu0 0
    %1732 = vmatpush1.bf16.msra.mxu0 0
    %1733 = vmatprep.subr.bf16.mxu0 0
    %1734 = vmatpush1.bf16.msra.mxu0 0
    %1735 = vmatprep.mubr.bf16.mxu0 0
    %1736 = vmatmul.mubr.bf16.gmra.mrb[0].mxu0 %v1575
    %v1737 = vpop.f32.mrb[0].mxu0
    %v1738 = vadd.f32 %v1689, %v1737
    %v1739 = vpop.f32.mrb[0].mxu0
    %v1740 = vpop.f32.mrb[0].mxu0
    %v1741 = vpop.f32.mrb[0].mxu0
    %1742 = vdwg.mxu0
    %v1743 = vpack.c.bf16 %v1612, %v1612
    %v1744 = vpack.c.bf16 %v1675, %v1675
    %v1746 = vsel %vm323, %v1743, 0
    %v1749 = vsel %vm323, %v1744, 0
    %1751 = vmatprep.subr.bf16.mxu0 0
    %1752 = vmatpush1.bf16.xpose.msra.mxu0 %v1749
    %1753 = vmatprep.subr.bf16.mxu0 0
    %1754 = vmatpush1.bf16.xpose.msra.mxu0 0
    %1755 = vmatprep.subr.bf16.mxu0 0
    %1756 = vmatpush1.bf16.xpose.msra.mxu0 0
    %1757 = vmatprep.subr.bf16.mxu0 0
    %1758 = vmatpush1.bf16.xpose.msra.mxu0 0
    %1759 = vmatprep.subr.bf16.mxu0 0
    %1760 = vmatpush1.bf16.xpose.msra.mxu0 0
    %1761 = vmatprep.subr.bf16.mxu0 0
    %1762 = vmatpush1.bf16.xpose.msra.mxu0 0
    %1763 = vmatprep.subr.bf16.mxu0 0
    %1764 = vmatpush1.bf16.xpose.msra.mxu0 0
    %1765 = vmatprep.subr.bf16.mxu0 0
    %1766 = vmatpush1.bf16.xpose.msra.mxu0 0
    %1767 = vmatprep.subr.bf16.mxu0 0
    %1768 = vmatpush1.bf16.xpose.msra.mxu0 0
    %1769 = vmatprep.subr.bf16.mxu0 0
    %1770 = vmatpush1.bf16.xpose.msra.mxu0 0
    %1771 = vmatprep.subr.bf16.mxu0 0
    %1772 = vmatpush1.bf16.xpose.msra.mxu0 0
    %1773 = vmatprep.subr.bf16.mxu0 0
    %1774 = vmatpush1.bf16.xpose.msra.mxu0 0
    %1775 = vmatprep.subr.bf16.mxu0 0
    %1776 = vmatpush1.bf16.xpose.msra.mxu0 0
    %1777 = vmatprep.subr.bf16.mxu0 0
    %1778 = vmatpush1.bf16.xpose.msra.mxu0 0
    %1779 = vmatprep.subr.bf16.mxu0 0
    %1780 = vmatpush1.bf16.xpose.msra.mxu0 0
    %1781 = vmatprep.subr.bf16.mxu0 0
    %1782 = vmatpush1.bf16.xpose.msra.mxu0 0
    %1783 = vmatprep.mubr.bf16.mxu0 0
    %1784 = vmatmul.mubr.bf16.gmra.mrb[0].mxu0 %v1746
    %v1785 = vpop.f32.mrb[0].mxu0
    %v1786 = vadd.f32 0.0, %v1785
    %v1787 = vpop.f32.mrb[0].mxu0
    %v1788 = vpop.f32.mrb[0].mxu0
    %v1789 = vpop.f32.mrb[0].mxu0
    %1790 = vdwg.mxu0
    %v1791 = vmul.f32 %v1786, 0.35355338
    %v1793 = vlaneseq
    %v1794 = vshrl.u32 %v1793, 7
    %v1795 = vsub.s32 0, %v1794
    %v1796 = vrot.slane %v1550, %v1795
    %v1798 = vadd.f32 %v1791, %v1796
    %v1799 = vsel %vm323, %v1798, -inf
    %1800 = vmax.xlane.f32.xlu0 %v1799
    %v1801 = vpop.xlane.xlu0 %1800
    %v1802 = vsub.f32 %v1798, %v1801
    %v1803 = vmul.f32 %v1802, 1.442695
    %v1804 = vpow.pop %v1803
    %v1805 = vsel %vm323, %v1804, 0.0
    %1806 = vadd.xlane.f32.xlu0 %v1805
    %v1807 = vpop.xlane.xlu0 %1806
    %v1808 = vrcp.pop %v1807
    %v1809 = vmul.f32 %v1804, %v1808
    %v1810 = vpack.c.bf16 %v1809, %v1809
    %v1811 = vpack.c.bf16 %v1738, %v1738
    %v1813 = vsel %vm323, %v1810, 0
    %v1816 = vsel %vm394, %v1811, 0
    %1818 = vmatprep.subr.bf16.mxu0 0
    %1819 = vmatpush1.bf16.msra.mxu0 %v1816
    %1820 = vmatprep.subr.bf16.mxu0 0
    %1821 = vmatpush1.bf16.msra.mxu0 0
    %1822 = vmatprep.subr.bf16.mxu0 0
    %1823 = vmatpush1.bf16.msra.mxu0 0
    %1824 = vmatprep.subr.bf16.mxu0 0
    %1825 = vmatpush1.bf16.msra.mxu0 0
    %1826 = vmatprep.subr.bf16.mxu0 0
    %1827 = vmatpush1.bf16.msra.mxu0 0
    %1828 = vmatprep.subr.bf16.mxu0 0
    %1829 = vmatpush1.bf16.msra.mxu0 0
    %1830 = vmatprep.subr.bf16.mxu0 0
    %1831 = vmatpush1.bf16.msra.mxu0 0
    %1832 = vmatprep.subr.bf16.mxu0 0
    %1833 = vmatpush1.bf16.msra.mxu0 0
    %1834 = vmatprep.subr.bf16.mxu0 0
    %1835 = vmatpush1.bf16.msra.mxu0 0
    %1836 = vmatprep.subr.bf16.mxu0 0
    %1837 = vmatpush1.bf16.msra.mxu0 0
    %1838 = vmatprep.subr.bf16.mxu0 0
    %1839 = vmatpush1.bf16.msra.mxu0 0
    %1840 = vmatprep.subr.bf16.mxu0 0
    %1841 = vmatpush1.bf16.msra.mxu0 0
    %1842 = vmatprep.subr.bf16.mxu0 0
    %1843 = vmatpush1.bf16.msra.mxu0 0
    %1844 = vmatprep.subr.bf16.mxu0 0
    %1845 = vmatpush1.bf16.msra.mxu0 0
    %1846 = vmatprep.subr.bf16.mxu0 0
    %1847 = vmatpush1.bf16.msra.mxu0 0
    %1848 = vmatprep.subr.bf16.mxu0 0
    %1849 = vmatpush1.bf16.msra.mxu0 0
    %1850 = vmatprep.mubr.bf16.mxu0 0
    %1851 = vmatmul.mubr.bf16.gmra.mrb[0].mxu0 %v1813
    %v1852 = vpop.f32.mrb[0].mxu0
    %v1853 = vadd.f32 0.0, %v1852
    %v1854 = vpop.f32.mrb[0].mxu0
    %v1855 = vpop.f32.mrb[0].mxu0
    %v1856 = vpop.f32.mrb[0].mxu0
    %1857 = vdwg.mxu0
    %v1858 = vpack.c.bf16 %v1853, %v1853
    %v1859 = vld [vmem:[%s10] sm:$0xf]
    %v1860 = vld [vmem:[%s440] sm:$0xf]
    %v1861 = vld [vmem:[%s440 + $0x4] sm:$0xf]
    %v1862 = vld [vmem:[%s440 + $0x8] sm:$0xf]
    %v1863 = vld [vmem:[%s440 + $0xc] sm:$0xf]
    %v1864 = vld [vmem:[%s445] sm:$0x1]
    %v1866 = vlaneseq
    %v1867 = vshrl.u32 %v1866, 7
    %v1868 = vsub.s32 0, %v1867
    %v1869 = vrot.slane %v1864, %v1868
    %v1875 = vunpack.c.l.b16 %v1860
    %v1876 = vunpack.c.l.b16 %v1861
    %v1877 = vunpack.c.l.b16 %v1862
    %v1878 = vunpack.c.l.b16 %v1863
    %v1879 = vpack.c.b16 %v1876, %v1875
    %v1880 = vpack.c.b16 %v1878, %v1877
    %1883 = vmatprep.subr.bf16.mxu0 0
    %1884 = vmatpush1.bf16.msra.mxu0 %v1879
    %1885 = vmatprep.subr.bf16.mxu0 0
    %1886 = vmatpush1.bf16.msra.mxu0 %v1880
    %1887 = vmatprep.subr.bf16.mxu0 0
    %1888 = vmatpush1.bf16.msra.mxu0 0
    %1889 = vmatprep.subr.bf16.mxu0 0
    %1890 = vmatpush1.bf16.msra.mxu0 0
    %1891 = vmatprep.subr.bf16.mxu0 0
    %1892 = vmatpush1.bf16.msra.mxu0 0
    %1893 = vmatprep.subr.bf16.mxu0 0
    %1894 = vmatpush1.bf16.msra.mxu0 0
    %1895 = vmatprep.subr.bf16.mxu0 0
    %1896 = vmatpush1.bf16.msra.mxu0 0
    %1897 = vmatprep.subr.bf16.mxu0 0
    %1898 = vmatpush1.bf16.msra.mxu0 0
    %1899 = vmatprep.subr.bf16.mxu0 0
    %1900 = vmatpush1.bf16.msra.mxu0 0
    %1901 = vmatprep.subr.bf16.mxu0 0
    %1902 = vmatpush1.bf16.msra.mxu0 0
    %1903 = vmatprep.subr.bf16.mxu0 0
    %1904 = vmatpush1.bf16.msra.mxu0 0
    %1905 = vmatprep.subr.bf16.mxu0 0
    %1906 = vmatpush1.bf16.msra.mxu0 0
    %1907 = vmatprep.subr.bf16.mxu0 0
    %1908 = vmatpush1.bf16.msra.mxu0 0
    %1909 = vmatprep.subr.bf16.mxu0 0
    %1910 = vmatpush1.bf16.msra.mxu0 0
    %1911 = vmatprep.subr.bf16.mxu0 0
    %1912 = vmatpush1.bf16.msra.mxu0 0
    %1913 = vmatprep.subr.bf16.mxu0 0
    %1914 = vmatpush1.bf16.msra.mxu0 0
    %1915 = vmatprep.mubr.bf16.mxu0 0
    %1916 = vmatmul.mubr.bf16.gmra.mrb[0].mxu0 %v1575
    %v1917 = vpop.f32.mrb[0].mxu0
    %v1918 = vadd.f32 %v1869, %v1917
    %v1919 = vpop.f32.mrb[0].mxu0
    %v1920 = vpop.f32.mrb[0].mxu0
    %v1921 = vpop.f32.mrb[0].mxu0
    %1922 = vdwg.mxu0
    %v1923 = vld [vmem:[%s505] sm:$0xf]
    %v1924 = vld [vmem:[%s505 + $0x4] sm:$0xf]
    %v1925 = vld [vmem:[%s505 + $0x8] sm:$0xf]
    %v1926 = vld [vmem:[%s505 + $0xc] sm:$0xf]
    %v1927 = vld [vmem:[%s510] sm:$0x1]
    %v1929 = vlaneseq
    %v1930 = vshrl.u32 %v1929, 7
    %v1931 = vsub.s32 0, %v1930
    %v1932 = vrot.slane %v1927, %v1931
    %v1938 = vunpack.c.l.b16 %v1923
    %v1939 = vunpack.c.l.b16 %v1924
    %v1940 = vunpack.c.l.b16 %v1925
    %v1941 = vunpack.c.l.b16 %v1926
    %v1942 = vpack.c.b16 %v1939, %v1938
    %v1943 = vpack.c.b16 %v1941, %v1940
    %1946 = vmatprep.subr.bf16.mxu0 0
    %1947 = vmatpush1.bf16.msra.mxu0 %v1942
    %1948 = vmatprep.subr.bf16.mxu0 0
    %1949 = vmatpush1.bf16.msra.mxu0 %v1943
    %1950 = vmatprep.subr.bf16.mxu0 0
    %1951 = vmatpush1.bf16.msra.mxu0 0
    %1952 = vmatprep.subr.bf16.mxu0 0
    %1953 = vmatpush1.bf16.msra.mxu0 0
    %1954 = vmatprep.subr.bf16.mxu0 0
    %1955 = vmatpush1.bf16.msra.mxu0 0
    %1956 = vmatprep.subr.bf16.mxu0 0
    %1957 = vmatpush1.bf16.msra.mxu0 0
    %1958 = vmatprep.subr.bf16.mxu0 0
    %1959 = vmatpush1.bf16.msra.mxu0 0
    %1960 = vmatprep.subr.bf16.mxu0 0
    %1961 = vmatpush1.bf16.msra.mxu0 0
    %1962 = vmatprep.subr.bf16.mxu0 0
    %1963 = vmatpush1.bf16.msra.mxu0 0
    %1964 = vmatprep.subr.bf16.mxu0 0
    %1965 = vmatpush1.bf16.msra.mxu0 0
    %1966 = vmatprep.subr.bf16.mxu0 0
    %1967 = vmatpush1.bf16.msra.mxu0 0
    %1968 = vmatprep.subr.bf16.mxu0 0
    %1969 = vmatpush1.bf16.msra.mxu0 0
    %1970 = vmatprep.subr.bf16.mxu0 0
    %1971 = vmatpush1.bf16.msra.mxu0 0
    %1972 = vmatprep.subr.bf16.mxu0 0
    %1973 = vmatpush1.bf16.msra.mxu0 0
    %1974 = vmatprep.subr.bf16.mxu0 0
    %1975 = vmatpush1.bf16.msra.mxu0 0
    %1976 = vmatprep.subr.bf16.mxu0 0
    %1977 = vmatpush1.bf16.msra.mxu0 0
    %1978 = vmatprep.mubr.bf16.mxu0 0
    %1979 = vmatmul.mubr.bf16.gmra.mrb[0].mxu0 %v1575
    %v1980 = vpop.f32.mrb[0].mxu0
    %v1981 = vadd.f32 %v1932, %v1980
    %v1982 = vpop.f32.mrb[0].mxu0
    %v1983 = vpop.f32.mrb[0].mxu0
    %v1984 = vpop.f32.mrb[0].mxu0
    %1985 = vdwg.mxu0
    %v1986 = vld [vmem:[%s570] sm:$0xf]
    %v1987 = vld [vmem:[%s570 + $0x4] sm:$0xf]
    %v1988 = vld [vmem:[%s570 + $0x8] sm:$0xf]
    %v1989 = vld [vmem:[%s570 + $0xc] sm:$0xf]
    %v1990 = vld [vmem:[%s575] sm:$0x1]
    %v1992 = vlaneseq
    %v1993 = vshrl.u32 %v1992, 7
    %v1994 = vsub.s32 0, %v1993
    %v1995 = vrot.slane %v1990, %v1994
    %v2001 = vunpack.c.l.b16 %v1986
    %v2002 = vunpack.c.l.b16 %v1987
    %v2003 = vunpack.c.l.b16 %v1988
    %v2004 = vunpack.c.l.b16 %v1989
    %v2005 = vpack.c.b16 %v2002, %v2001
    %v2006 = vpack.c.b16 %v2004, %v2003
    %2009 = vmatprep.subr.bf16.mxu0 0
    %2010 = vmatpush1.bf16.msra.mxu0 %v2005
    %2011 = vmatprep.subr.bf16.mxu0 0
    %2012 = vmatpush1.bf16.msra.mxu0 %v2006
    %2013 = vmatprep.subr.bf16.mxu0 0
    %2014 = vmatpush1.bf16.msra.mxu0 0
    %2015 = vmatprep.subr.bf16.mxu0 0
    %2016 = vmatpush1.bf16.msra.mxu0 0
    %2017 = vmatprep.subr.bf16.mxu0 0
    %2018 = vmatpush1.bf16.msra.mxu0 0
    %2019 = vmatprep.subr.bf16.mxu0 0
    %2020 = vmatpush1.bf16.msra.mxu0 0
    %2021 = vmatprep.subr.bf16.mxu0 0
    %2022 = vmatpush1.bf16.msra.mxu0 0
    %2023 = vmatprep.subr.bf16.mxu0 0
    %2024 = vmatpush1.bf16.msra.mxu0 0
    %2025 = vmatprep.subr.bf16.mxu0 0
    %2026 = vmatpush1.bf16.msra.mxu0 0
    %2027 = vmatprep.subr.bf16.mxu0 0
    %2028 = vmatpush1.bf16.msra.mxu0 0
    %2029 = vmatprep.subr.bf16.mxu0 0
    %2030 = vmatpush1.bf16.msra.mxu0 0
    %2031 = vmatprep.subr.bf16.mxu0 0
    %2032 = vmatpush1.bf16.msra.mxu0 0
    %2033 = vmatprep.subr.bf16.mxu0 0
    %2034 = vmatpush1.bf16.msra.mxu0 0
    %2035 = vmatprep.subr.bf16.mxu0 0
    %2036 = vmatpush1.bf16.msra.mxu0 0
    %2037 = vmatprep.subr.bf16.mxu0 0
    %2038 = vmatpush1.bf16.msra.mxu0 0
    %2039 = vmatprep.subr.bf16.mxu0 0
    %2040 = vmatpush1.bf16.msra.mxu0 0
    %2041 = vmatprep.mubr.bf16.mxu0 0
    %2042 = vmatmul.mubr.bf16.gmra.mrb[0].mxu0 %v1575
    %v2043 = vpop.f32.mrb[0].mxu0
    %v2044 = vadd.f32 %v1995, %v2043
    %v2045 = vpop.f32.mrb[0].mxu0
    %v2046 = vpop.f32.mrb[0].mxu0
    %v2047 = vpop.f32.mrb[0].mxu0
    %2048 = vdwg.mxu0
    %v2049 = vpack.c.bf16 %v1918, %v1918
    %v2050 = vpack.c.bf16 %v1981, %v1981
    %v2052 = vsel %vm323, %v2049, 0
    %v2055 = vsel %vm323, %v2050, 0
    %2057 = vmatprep.subr.bf16.mxu0 0
    %2058 = vmatpush1.bf16.xpose.msra.mxu0 %v2055
    %2059 = vmatprep.subr.bf16.mxu0 0
    %2060 = vmatpush1.bf16.xpose.msra.mxu0 0
    %2061 = vmatprep.subr.bf16.mxu0 0
    %2062 = vmatpush1.bf16.xpose.msra.mxu0 0
    %2063 = vmatprep.subr.bf16.mxu0 0
    %2064 = vmatpush1.bf16.xpose.msra.mxu0 0
    %2065 = vmatprep.subr.bf16.mxu0 0
    %2066 = vmatpush1.bf16.xpose.msra.mxu0 0
    %2067 = vmatprep.subr.bf16.mxu0 0
    %2068 = vmatpush1.bf16.xpose.msra.mxu0 0
    %2069 = vmatprep.subr.bf16.mxu0 0
    %2070 = vmatpush1.bf16.xpose.msra.mxu0 0
    %2071 = vmatprep.subr.bf16.mxu0 0
    %2072 = vmatpush1.bf16.xpose.msra.mxu0 0
    %2073 = vmatprep.subr.bf16.mxu0 0
    %2074 = vmatpush1.bf16.xpose.msra.mxu0 0
    %2075 = vmatprep.subr.bf16.mxu0 0
    %2076 = vmatpush1.bf16.xpose.msra.mxu0 0
    %2077 = vmatprep.subr.bf16.mxu0 0
    %2078 = vmatpush1.bf16.xpose.msra.mxu0 0
    %2079 = vmatprep.subr.bf16.mxu0 0
    %2080 = vmatpush1.bf16.xpose.msra.mxu0 0
    %2081 = vmatprep.subr.bf16.mxu0 0
    %2082 = vmatpush1.bf16.xpose.msra.mxu0 0
    %2083 = vmatprep.subr.bf16.mxu0 0
    %2084 = vmatpush1.bf16.xpose.msra.mxu0 0
    %2085 = vmatprep.subr.bf16.mxu0 0
    %2086 = vmatpush1.bf16.xpose.msra.mxu0 0
    %2087 = vmatprep.subr.bf16.mxu0 0
    %2088 = vmatpush1.bf16.xpose.msra.mxu0 0
    %2089 = vmatprep.mubr.bf16.mxu0 0
    %2090 = vmatmul.mubr.bf16.gmra.mrb[0].mxu0 %v2052
    %v2091 = vpop.f32.mrb[0].mxu0
    %v2092 = vadd.f32 0.0, %v2091
    %v2093 = vpop.f32.mrb[0].mxu0
    %v2094 = vpop.f32.mrb[0].mxu0
    %v2095 = vpop.f32.mrb[0].mxu0
    %2096 = vdwg.mxu0
    %v2097 = vmul.f32 %v2092, 0.35355338
    %v2098 = vadd.f32 %v2097, %v1796
    %v2099 = vsel %vm323, %v2098, -inf
    %2100 = vmax.xlane.f32.xlu0 %v2099
    %v2101 = vpop.xlane.xlu0 %2100
    %v2102 = vsub.f32 %v2098, %v2101
    %v2103 = vmul.f32 %v2102, 1.442695
    %v2104 = vpow.pop %v2103
    %v2105 = vsel %vm323, %v2104, 0.0
    %2106 = vadd.xlane.f32.xlu0 %v2105
    %v2107 = vpop.xlane.xlu0 %2106
    %v2108 = vrcp.pop %v2107
    %v2109 = vmul.f32 %v2104, %v2108
    %v2110 = vpack.c.bf16 %v2109, %v2109
    %v2111 = vpack.c.bf16 %v2044, %v2044
    %v2113 = vsel %vm323, %v2110, 0
    %v2116 = vsel %vm394, %v2111, 0
    %2118 = vmatprep.subr.bf16.mxu0 0
    %2119 = vmatpush1.bf16.msra.mxu0 %v2116
    %2120 = vmatprep.subr.bf16.mxu0 0
    %2121 = vmatpush1.bf16.msra.mxu0 0
    %2122 = vmatprep.subr.bf16.mxu0 0
    %2123 = vmatpush1.bf16.msra.mxu0 0
    %2124 = vmatprep.subr.bf16.mxu0 0
    %2125 = vmatpush1.bf16.msra.mxu0 0
    %2126 = vmatprep.subr.bf16.mxu0 0
    %2127 = vmatpush1.bf16.msra.mxu0 0
    %2128 = vmatprep.subr.bf16.mxu0 0
    %2129 = vmatpush1.bf16.msra.mxu0 0
    %2130 = vmatprep.subr.bf16.mxu0 0
    %2131 = vmatpush1.bf16.msra.mxu0 0
    %2132 = vmatprep.subr.bf16.mxu0 0
    %2133 = vmatpush1.bf16.msra.mxu0 0
    %2134 = vmatprep.subr.bf16.mxu0 0
    %2135 = vmatpush1.bf16.msra.mxu0 0
    %2136 = vmatprep.subr.bf16.mxu0 0
    %2137 = vmatpush1.bf16.msra.mxu0 0
    %2138 = vmatprep.subr.bf16.mxu0 0
    %2139 = vmatpush1.bf16.msra.mxu0 0
    %2140 = vmatprep.subr.bf16.mxu0 0
    %2141 = vmatpush1.bf16.msra.mxu0 0
    %2142 = vmatprep.subr.bf16.mxu0 0
    %2143 = vmatpush1.bf16.msra.mxu0 0
    %2144 = vmatprep.subr.bf16.mxu0 0
    %2145 = vmatpush1.bf16.msra.mxu0 0
    %2146 = vmatprep.subr.bf16.mxu0 0
    %2147 = vmatpush1.bf16.msra.mxu0 0
    %2148 = vmatprep.subr.bf16.mxu0 0
    %2149 = vmatpush1.bf16.msra.mxu0 0
    %2150 = vmatprep.mubr.bf16.mxu0 0
    %2151 = vmatmul.mubr.bf16.gmra.mrb[0].mxu0 %v2113
    %v2152 = vpop.f32.mrb[0].mxu0
    %v2153 = vadd.f32 0.0, %v2152
    %v2154 = vpop.f32.mrb[0].mxu0
    %v2155 = vpop.f32.mrb[0].mxu0
    %v2156 = vpop.f32.mrb[0].mxu0
    %2157 = vdwg.mxu0
    %v2158 = vpack.c.bf16 %v2153, %v2153
    %v2159 = vld [vmem:[%s745] sm:$0xf]
    %v2161 = vsel %vm323, %v2158, 0
    %v2164 = vsel %vm394, %v2159, 0
    %2166 = vmatprep.subr.bf16.mxu0 0
    %2167 = vmatpush1.bf16.msra.mxu0 %v2164
    %2168 = vmatprep.subr.bf16.mxu0 0
    %2169 = vmatpush1.bf16.msra.mxu0 0
    %2170 = vmatprep.subr.bf16.mxu0 0
    %2171 = vmatpush1.bf16.msra.mxu0 0
    %2172 = vmatprep.subr.bf16.mxu0 0
    %2173 = vmatpush1.bf16.msra.mxu0 0
    %2174 = vmatprep.subr.bf16.mxu0 0
    %2175 = vmatpush1.bf16.msra.mxu0 0
    %2176 = vmatprep.subr.bf16.mxu0 0
    %2177 = vmatpush1.bf16.msra.mxu0 0
    %2178 = vmatprep.subr.bf16.mxu0 0
    %2179 = vmatpush1.bf16.msra.mxu0 0
    %2180 = vmatprep.subr.bf16.mxu0 0
    %2181 = vmatpush1.bf16.msra.mxu0 0
    %2182 = vmatprep.subr.bf16.mxu0 0
    %2183 = vmatpush1.bf16.msra.mxu0 0
    %2184 = vmatprep.subr.bf16.mxu0 0
    %2185 = vmatpush1.bf16.msra.mxu0 0
    %2186 = vmatprep.subr.bf16.mxu0 0
    %2187 = vmatpush1.bf16.msra.mxu0 0
    %2188 = vmatprep.subr.bf16.mxu0 0
    %2189 = vmatpush1.bf16.msra.mxu0 0
    %2190 = vmatprep.subr.bf16.mxu0 0
    %2191 = vmatpush1.bf16.msra.mxu0 0
    %2192 = vmatprep.subr.bf16.mxu0 0
    %2193 = vmatpush1.bf16.msra.mxu0 0
    %2194 = vmatprep.subr.bf16.mxu0 0
    %2195 = vmatpush1.bf16.msra.mxu0 0
    %2196 = vmatprep.subr.bf16.mxu0 0
    %2197 = vmatpush1.bf16.msra.mxu0 0
    %2198 = vmatprep.mubr.bf16.mxu0 0
    %2199 = vmatmul.mubr.bf16.gmra.mrb[0].mxu0 %v2161
    %v2200 = vpop.f32.mrb[0].mxu0
    %v2201 = vadd.f32 0.0, %v2200
    %v2202 = vpop.f32.mrb[0].mxu0
    %v2203 = vpop.f32.mrb[0].mxu0
    %v2204 = vpop.f32.mrb[0].mxu0
    %2205 = vdwg.mxu0
    %v2207 = vsel %vm323, %v1858, 0
    %v2210 = vsel %vm394, %v1859, 0
    %2212 = vmatprep.subr.bf16.mxu0 0
    %2213 = vmatpush1.bf16.msra.mxu0 %v2210
    %2214 = vmatprep.subr.bf16.mxu0 0
    %2215 = vmatpush1.bf16.msra.mxu0 0
    %2216 = vmatprep.subr.bf16.mxu0 0
    %2217 = vmatpush1.bf16.msra.mxu0 0
    %2218 = vmatprep.subr.bf16.mxu0 0
    %2219 = vmatpush1.bf16.msra.mxu0 0
    %2220 = vmatprep.subr.bf16.mxu0 0
    %2221 = vmatpush1.bf16.msra.mxu0 0
    %2222 = vmatprep.subr.bf16.mxu0 0
    %2223 = vmatpush1.bf16.msra.mxu0 0
    %2224 = vmatprep.subr.bf16.mxu0 0
    %2225 = vmatpush1.bf16.msra.mxu0 0
    %2226 = vmatprep.subr.bf16.mxu0 0
    %2227 = vmatpush1.bf16.msra.mxu0 0
    %2228 = vmatprep.subr.bf16.mxu0 0
    %2229 = vmatpush1.bf16.msra.mxu0 0
    %2230 = vmatprep.subr.bf16.mxu0 0
    %2231 = vmatpush1.bf16.msra.mxu0 0
    %2232 = vmatprep.subr.bf16.mxu0 0
    %2233 = vmatpush1.bf16.msra.mxu0 0
    %2234 = vmatprep.subr.bf16.mxu0 0
    %2235 = vmatpush1.bf16.msra.mxu0 0
    %2236 = vmatprep.subr.bf16.mxu0 0
    %2237 = vmatpush1.bf16.msra.mxu0 0
    %2238 = vmatprep.subr.bf16.mxu0 0
    %2239 = vmatpush1.bf16.msra.mxu0 0
    %2240 = vmatprep.subr.bf16.mxu0 0
    %2241 = vmatpush1.bf16.msra.mxu0 0
    %2242 = vmatprep.subr.bf16.mxu0 0
    %2243 = vmatpush1.bf16.msra.mxu0 0
    %2244 = vmatprep.mubr.bf16.mxu0 0
    %2245 = vmatmul.mubr.bf16.gmra.mrb[0].mxu0 %v2207
    %v2246 = vpop.f32.mrb[0].mxu0
    %v2247 = vadd.f32 %v2201, %v2246
    %v2248 = vpop.f32.mrb[0].mxu0
    %v2249 = vpop.f32.mrb[0].mxu0
    %v2250 = vpop.f32.mrb[0].mxu0
    %2251 = vdwg.mxu0
    %v2252 = vld [vmem:[%s839] sm:$0xf]
    %v2253 = vld [vmem:[%s839 + $0x4] sm:$0xf]
    %v2254 = vld [vmem:[%s839 + $0x8] sm:$0xf]
    %v2255 = vld [vmem:[%s839 + $0xc] sm:$0xf]
    %v2256 = vld [vmem:[%s844] sm:$0x1]
    %v2258 = vlaneseq
    %v2259 = vshrl.u32 %v2258, 7
    %v2260 = vsub.s32 0, %v2259
    %v2261 = vrot.slane %v2256, %v2260
    %v2267 = vunpack.c.l.b16 %v2252
    %v2268 = vunpack.c.l.b16 %v2253
    %v2269 = vunpack.c.l.b16 %v2254
    %v2270 = vunpack.c.l.b16 %v2255
    %v2271 = vpack.c.b16 %v2268, %v2267
    %v2272 = vpack.c.b16 %v2270, %v2269
    %2275 = vmatprep.subr.bf16.mxu0 0
    %2276 = vmatpush1.bf16.msra.mxu0 %v2271
    %2277 = vmatprep.subr.bf16.mxu0 0
    %2278 = vmatpush1.bf16.msra.mxu0 %v2272
    %2279 = vmatprep.subr.bf16.mxu0 0
    %2280 = vmatpush1.bf16.msra.mxu0 0
    %2281 = vmatprep.subr.bf16.mxu0 0
    %2282 = vmatpush1.bf16.msra.mxu0 0
    %2283 = vmatprep.subr.bf16.mxu0 0
    %2284 = vmatpush1.bf16.msra.mxu0 0
    %2285 = vmatprep.subr.bf16.mxu0 0
    %2286 = vmatpush1.bf16.msra.mxu0 0
    %2287 = vmatprep.subr.bf16.mxu0 0
    %2288 = vmatpush1.bf16.msra.mxu0 0
    %2289 = vmatprep.subr.bf16.mxu0 0
    %2290 = vmatpush1.bf16.msra.mxu0 0
    %2291 = vmatprep.subr.bf16.mxu0 0
    %2292 = vmatpush1.bf16.msra.mxu0 0
    %2293 = vmatprep.subr.bf16.mxu0 0
    %2294 = vmatpush1.bf16.msra.mxu0 0
    %2295 = vmatprep.subr.bf16.mxu0 0
    %2296 = vmatpush1.bf16.msra.mxu0 0
    %2297 = vmatprep.subr.bf16.mxu0 0
    %2298 = vmatpush1.bf16.msra.mxu0 0
    %2299 = vmatprep.subr.bf16.mxu0 0
    %2300 = vmatpush1.bf16.msra.mxu0 0
    %2301 = vmatprep.subr.bf16.mxu0 0
    %2302 = vmatpush1.bf16.msra.mxu0 0
    %2303 = vmatprep.subr.bf16.mxu0 0
    %2304 = vmatpush1.bf16.msra.mxu0 0
    %2305 = vmatprep.subr.bf16.mxu0 0
    %2306 = vmatpush1.bf16.msra.mxu0 0
    %2307 = vmatprep.mubr.bf16.mxu0 0
    %2308 = vmatmul.mubr.bf16.gmra.mrb[0].mxu0 %v1575
    %v2309 = vpop.f32.mrb[0].mxu0
    %v2310 = vadd.f32 %v2261, %v2309
    %v2311 = vpop.f32.mrb[0].mxu0
    %v2312 = vpop.f32.mrb[0].mxu0
    %v2313 = vpop.f32.mrb[0].mxu0
    %2314 = vdwg.mxu0
    %v2315 = vld [vmem:[%s904] sm:$0xf]
    %v2316 = vld [vmem:[%s904 + $0x4] sm:$0xf]
    %v2317 = vld [vmem:[%s904 + $0x8] sm:$0xf]
    %v2318 = vld [vmem:[%s904 + $0xc] sm:$0xf]
    %v2319 = vld [vmem:[%s909] sm:$0x1]
    %v2321 = vlaneseq
    %v2322 = vshrl.u32 %v2321, 7
    %v2323 = vsub.s32 0, %v2322
    %v2324 = vrot.slane %v2319, %v2323
    %v2330 = vunpack.c.l.b16 %v2315
    %v2331 = vunpack.c.l.b16 %v2316
    %v2332 = vunpack.c.l.b16 %v2317
    %v2333 = vunpack.c.l.b16 %v2318
    %v2334 = vpack.c.b16 %v2331, %v2330
    %v2335 = vpack.c.b16 %v2333, %v2332
    %2338 = vmatprep.subr.bf16.mxu0 0
    %2339 = vmatpush1.bf16.msra.mxu0 %v2334
    %2340 = vmatprep.subr.bf16.mxu0 0
    %2341 = vmatpush1.bf16.msra.mxu0 %v2335
    %2342 = vmatprep.subr.bf16.mxu0 0
    %2343 = vmatpush1.bf16.msra.mxu0 0
    %2344 = vmatprep.subr.bf16.mxu0 0
    %2345 = vmatpush1.bf16.msra.mxu0 0
    %2346 = vmatprep.subr.bf16.mxu0 0
    %2347 = vmatpush1.bf16.msra.mxu0 0
    %2348 = vmatprep.subr.bf16.mxu0 0
    %2349 = vmatpush1.bf16.msra.mxu0 0
    %2350 = vmatprep.subr.bf16.mxu0 0
    %2351 = vmatpush1.bf16.msra.mxu0 0
    %2352 = vmatprep.subr.bf16.mxu0 0
    %2353 = vmatpush1.bf16.msra.mxu0 0
    %2354 = vmatprep.subr.bf16.mxu0 0
    %2355 = vmatpush1.bf16.msra.mxu0 0
    %2356 = vmatprep.subr.bf16.mxu0 0
    %2357 = vmatpush1.bf16.msra.mxu0 0
    %2358 = vmatprep.subr.bf16.mxu0 0
    %2359 = vmatpush1.bf16.msra.mxu0 0
    %2360 = vmatprep.subr.bf16.mxu0 0
    %2361 = vmatpush1.bf16.msra.mxu0 0
    %2362 = vmatprep.subr.bf16.mxu0 0
    %2363 = vmatpush1.bf16.msra.mxu0 0
    %2364 = vmatprep.subr.bf16.mxu0 0
    %2365 = vmatpush1.bf16.msra.mxu0 0
    %2366 = vmatprep.subr.bf16.mxu0 0
    %2367 = vmatpush1.bf16.msra.mxu0 0
    %2368 = vmatprep.subr.bf16.mxu0 0
    %2369 = vmatpush1.bf16.msra.mxu0 0
    %2370 = vmatprep.mubr.bf16.mxu0 0
    %2371 = vmatmul.mubr.bf16.gmra.mrb[0].mxu0 %v1575
    %v2372 = vpop.f32.mrb[0].mxu0
    %v2373 = vadd.f32 %v2324, %v2372
    %v2374 = vpop.f32.mrb[0].mxu0
    %v2375 = vpop.f32.mrb[0].mxu0
    %v2376 = vpop.f32.mrb[0].mxu0
    %2377 = vdwg.mxu0
    %v2378 = vld [vmem:[%s969] sm:$0xf]
    %v2379 = vld [vmem:[%s969 + $0x4] sm:$0xf]
    %v2380 = vld [vmem:[%s969 + $0x8] sm:$0xf]
    %v2381 = vld [vmem:[%s969 + $0xc] sm:$0xf]
    %v2382 = vld [vmem:[%s974] sm:$0x1]
    %v2384 = vlaneseq
    %v2385 = vshrl.u32 %v2384, 7
    %v2386 = vsub.s32 0, %v2385
    %v2387 = vrot.slane %v2382, %v2386
    %v2393 = vunpack.c.l.b16 %v2378
    %v2394 = vunpack.c.l.b16 %v2379
    %v2395 = vunpack.c.l.b16 %v2380
    %v2396 = vunpack.c.l.b16 %v2381
    %v2397 = vpack.c.b16 %v2394, %v2393
    %v2398 = vpack.c.b16 %v2396, %v2395
    %2401 = vmatprep.subr.bf16.mxu0 0
    %2402 = vmatpush1.bf16.msra.mxu0 %v2397
    %2403 = vmatprep.subr.bf16.mxu0 0
    %2404 = vmatpush1.bf16.msra.mxu0 %v2398
    %2405 = vmatprep.subr.bf16.mxu0 0
    %2406 = vmatpush1.bf16.msra.mxu0 0
    %2407 = vmatprep.subr.bf16.mxu0 0
    %2408 = vmatpush1.bf16.msra.mxu0 0
    %2409 = vmatprep.subr.bf16.mxu0 0
    %2410 = vmatpush1.bf16.msra.mxu0 0
    %2411 = vmatprep.subr.bf16.mxu0 0
    %2412 = vmatpush1.bf16.msra.mxu0 0
    %2413 = vmatprep.subr.bf16.mxu0 0
    %2414 = vmatpush1.bf16.msra.mxu0 0
    %2415 = vmatprep.subr.bf16.mxu0 0
    %2416 = vmatpush1.bf16.msra.mxu0 0
    %2417 = vmatprep.subr.bf16.mxu0 0
    %2418 = vmatpush1.bf16.msra.mxu0 0
    %2419 = vmatprep.subr.bf16.mxu0 0
    %2420 = vmatpush1.bf16.msra.mxu0 0
    %2421 = vmatprep.subr.bf16.mxu0 0
    %2422 = vmatpush1.bf16.msra.mxu0 0
    %2423 = vmatprep.subr.bf16.mxu0 0
    %2424 = vmatpush1.bf16.msra.mxu0 0
    %2425 = vmatprep.subr.bf16.mxu0 0
    %2426 = vmatpush1.bf16.msra.mxu0 0
    %2427 = vmatprep.subr.bf16.mxu0 0
    %2428 = vmatpush1.bf16.msra.mxu0 0
    %2429 = vmatprep.subr.bf16.mxu0 0
    %2430 = vmatpush1.bf16.msra.mxu0 0
    %2431 = vmatprep.subr.bf16.mxu0 0
    %2432 = vmatpush1.bf16.msra.mxu0 0
    %2433 = vmatprep.mubr.bf16.mxu0 0
    %2434 = vmatmul.mubr.bf16.gmra.mrb[0].mxu0 %v1575
    %v2435 = vpop.f32.mrb[0].mxu0
    %v2436 = vadd.f32 %v2387, %v2435
    %v2437 = vpop.f32.mrb[0].mxu0
    %v2438 = vpop.f32.mrb[0].mxu0
    %v2439 = vpop.f32.mrb[0].mxu0
    %2440 = vdwg.mxu0
    %v2441 = vpack.c.bf16 %v2310, %v2310
    %v2442 = vpack.c.bf16 %v2373, %v2373
    %v2444 = vsel %vm323, %v2441, 0
    %v2447 = vsel %vm323, %v2442, 0
    %2449 = vmatprep.subr.bf16.mxu0 0
    %2450 = vmatpush1.bf16.xpose.msra.mxu0 %v2447
    %2451 = vmatprep.subr.bf16.mxu0 0
    %2452 = vmatpush1.bf16.xpose.msra.mxu0 0
    %2453 = vmatprep.subr.bf16.mxu0 0
    %2454 = vmatpush1.bf16.xpose.msra.mxu0 0
    %2455 = vmatprep.subr.bf16.mxu0 0
    %2456 = vmatpush1.bf16.xpose.msra.mxu0 0
    %2457 = vmatprep.subr.bf16.mxu0 0
    %2458 = vmatpush1.bf16.xpose.msra.mxu0 0
    %2459 = vmatprep.subr.bf16.mxu0 0
    %2460 = vmatpush1.bf16.xpose.msra.mxu0 0
    %2461 = vmatprep.subr.bf16.mxu0 0
    %2462 = vmatpush1.bf16.xpose.msra.mxu0 0
    %2463 = vmatprep.subr.bf16.mxu0 0
    %2464 = vmatpush1.bf16.xpose.msra.mxu0 0
    %2465 = vmatprep.subr.bf16.mxu0 0
    %2466 = vmatpush1.bf16.xpose.msra.mxu0 0
    %2467 = vmatprep.subr.bf16.mxu0 0
    %2468 = vmatpush1.bf16.xpose.msra.mxu0 0
    %2469 = vmatprep.subr.bf16.mxu0 0
    %2470 = vmatpush1.bf16.xpose.msra.mxu0 0
    %2471 = vmatprep.subr.bf16.mxu0 0
    %2472 = vmatpush1.bf16.xpose.msra.mxu0 0
    %2473 = vmatprep.subr.bf16.mxu0 0
    %2474 = vmatpush1.bf16.xpose.msra.mxu0 0
    %2475 = vmatprep.subr.bf16.mxu0 0
    %2476 = vmatpush1.bf16.xpose.msra.mxu0 0
    %2477 = vmatprep.subr.bf16.mxu0 0
    %2478 = vmatpush1.bf16.xpose.msra.mxu0 0
    %2479 = vmatprep.subr.bf16.mxu0 0
    %2480 = vmatpush1.bf16.xpose.msra.mxu0 0
    %2481 = vmatprep.mubr.bf16.mxu0 0
    %2482 = vmatmul.mubr.bf16.gmra.mrb[0].mxu0 %v2444
    %v2483 = vpop.f32.mrb[0].mxu0
    %v2484 = vadd.f32 0.0, %v2483
    %v2485 = vpop.f32.mrb[0].mxu0
    %v2486 = vpop.f32.mrb[0].mxu0
    %v2487 = vpop.f32.mrb[0].mxu0
    %2488 = vdwg.mxu0
    %v2489 = vmul.f32 %v2484, 0.35355338
    %v2490 = vadd.f32 %v2489, %v1796
    %v2491 = vsel %vm323, %v2490, -inf
    %2492 = vmax.xlane.f32.xlu0 %v2491
    %v2493 = vpop.xlane.xlu0 %2492
    %v2494 = vsub.f32 %v2490, %v2493
    %v2495 = vmul.f32 %v2494, 1.442695
    %v2496 = vpow.pop %v2495
    %v2497 = vsel %vm323, %v2496, 0.0
    %2498 = vadd.xlane.f32.xlu0 %v2497
    %v2499 = vpop.xlane.xlu0 %2498
    %v2500 = vrcp.pop %v2499
    %v2501 = vmul.f32 %v2496, %v2500
    %v2502 = vpack.c.bf16 %v2501, %v2501
    %v2503 = vpack.c.bf16 %v2436, %v2436
    %v2505 = vsel %vm323, %v2502, 0
    %v2508 = vsel %vm394, %v2503, 0
    %2510 = vmatprep.subr.bf16.mxu0 0
    %2511 = vmatpush1.bf16.msra.mxu0 %v2508
    %2512 = vmatprep.subr.bf16.mxu0 0
    %2513 = vmatpush1.bf16.msra.mxu0 0
    %2514 = vmatprep.subr.bf16.mxu0 0
    %2515 = vmatpush1.bf16.msra.mxu0 0
    %2516 = vmatprep.subr.bf16.mxu0 0
    %2517 = vmatpush1.bf16.msra.mxu0 0
    %2518 = vmatprep.subr.bf16.mxu0 0
    %2519 = vmatpush1.bf16.msra.mxu0 0
    %2520 = vmatprep.subr.bf16.mxu0 0
    %2521 = vmatpush1.bf16.msra.mxu0 0
    %2522 = vmatprep.subr.bf16.mxu0 0
    %2523 = vmatpush1.bf16.msra.mxu0 0
    %2524 = vmatprep.subr.bf16.mxu0 0
    %2525 = vmatpush1.bf16.msra.mxu0 0
    %2526 = vmatprep.subr.bf16.mxu0 0
    %2527 = vmatpush1.bf16.msra.mxu0 0
    %2528 = vmatprep.subr.bf16.mxu0 0
    %2529 = vmatpush1.bf16.msra.mxu0 0
    %2530 = vmatprep.subr.bf16.mxu0 0
    %2531 = vmatpush1.bf16.msra.mxu0 0
    %2532 = vmatprep.subr.bf16.mxu0 0
    %2533 = vmatpush1.bf16.msra.mxu0 0
    %2534 = vmatprep.subr.bf16.mxu0 0
    %2535 = vmatpush1.bf16.msra.mxu0 0
    %2536 = vmatprep.subr.bf16.mxu0 0
    %2537 = vmatpush1.bf16.msra.mxu0 0
    %2538 = vmatprep.subr.bf16.mxu0 0
    %2539 = vmatpush1.bf16.msra.mxu0 0
    %2540 = vmatprep.subr.bf16.mxu0 0
    %2541 = vmatpush1.bf16.msra.mxu0 0
    %2542 = vmatprep.mubr.bf16.mxu0 0
    %2543 = vmatmul.mubr.bf16.gmra.mrb[0].mxu0 %v2505
    %v2544 = vpop.f32.mrb[0].mxu0
    %v2545 = vadd.f32 0.0, %v2544
    %v2546 = vpop.f32.mrb[0].mxu0
    %v2547 = vpop.f32.mrb[0].mxu0
    %v2548 = vpop.f32.mrb[0].mxu0
    %2549 = vdwg.mxu0
    %v2550 = vpack.c.bf16 %v2545, %v2545
    %v2551 = vld [vmem:[%s1144] sm:$0xf]
    %v2553 = vsel %vm323, %v2550, 0
    %v2556 = vsel %vm394, %v2551, 0
    %2558 = vmatprep.subr.bf16.mxu0 0
    %2559 = vmatpush1.bf16.msra.mxu0 %v2556
    %2560 = vmatprep.subr.bf16.mxu0 0
    %2561 = vmatpush1.bf16.msra.mxu0 0
    %2562 = vmatprep.subr.bf16.mxu0 0
    %2563 = vmatpush1.bf16.msra.mxu0 0
    %2564 = vmatprep.subr.bf16.mxu0 0
    %2565 = vmatpush1.bf16.msra.mxu0 0
    %2566 = vmatprep.subr.bf16.mxu0 0
    %2567 = vmatpush1.bf16.msra.mxu0 0
    %2568 = vmatprep.subr.bf16.mxu0 0
    %2569 = vmatpush1.bf16.msra.mxu0 0
    %2570 = vmatprep.subr.bf16.mxu0 0
    %2571 = vmatpush1.bf16.msra.mxu0 0
    %2572 = vmatprep.subr.bf16.mxu0 0
    %2573 = vmatpush1.bf16.msra.mxu0 0
    %2574 = vmatprep.subr.bf16.mxu0 0
    %2575 = vmatpush1.bf16.msra.mxu0 0
    %2576 = vmatprep.subr.bf16.mxu0 0
    %2577 = vmatpush1.bf16.msra.mxu0 0
    %2578 = vmatprep.subr.bf16.mxu0 0
    %2579 = vmatpush1.bf16.msra.mxu0 0
    %2580 = vmatprep.subr.bf16.mxu0 0
    %2581 = vmatpush1.bf16.msra.mxu0 0
    %2582 = vmatprep.subr.bf16.mxu0 0
    %2583 = vmatpush1.bf16.msra.mxu0 0
    %2584 = vmatprep.subr.bf16.mxu0 0
    %2585 = vmatpush1.bf16.msra.mxu0 0
    %2586 = vmatprep.subr.bf16.mxu0 0
    %2587 = vmatpush1.bf16.msra.mxu0 0
    %2588 = vmatprep.subr.bf16.mxu0 0
    %2589 = vmatpush1.bf16.msra.mxu0 0
    %2590 = vmatprep.mubr.bf16.mxu0 0
    %2591 = vmatmul.mubr.bf16.gmra.mrb[0].mxu0 %v2553
    %v2592 = vpop.f32.mrb[0].mxu0
    %v2593 = vadd.f32 0.0, %v2592
    %v2594 = vpop.f32.mrb[0].mxu0
    %v2595 = vpop.f32.mrb[0].mxu0
    %v2596 = vpop.f32.mrb[0].mxu0
    %2597 = vdwg.mxu0
    %v2598 = vadd.f32 %v2247, %v2593
    %v2599 = vld [vmem:[%s1193] sm:$0xf]
    %v2600 = vld [vmem:[%s1193 + $0x4] sm:$0xf]
    %v2601 = vld [vmem:[%s1193 + $0x8] sm:$0xf]
    %v2602 = vld [vmem:[%s1193 + $0xc] sm:$0xf]
    %v2603 = vld [vmem:[%s1198] sm:$0x1]
    %v2605 = vlaneseq
    %v2606 = vshrl.u32 %v2605, 7
    %v2607 = vsub.s32 0, %v2606
    %v2608 = vrot.slane %v2603, %v2607
    %v2614 = vunpack.c.l.b16 %v2599
    %v2615 = vunpack.c.l.b16 %v2600
    %v2616 = vunpack.c.l.b16 %v2601
    %v2617 = vunpack.c.l.b16 %v2602
    %v2618 = vpack.c.b16 %v2615, %v2614
    %v2619 = vpack.c.b16 %v2617, %v2616
    %2622 = vmatprep.subr.bf16.mxu0 0
    %2623 = vmatpush1.bf16.msra.mxu0 %v2618
    %2624 = vmatprep.subr.bf16.mxu0 0
    %2625 = vmatpush1.bf16.msra.mxu0 %v2619
    %2626 = vmatprep.subr.bf16.mxu0 0
    %2627 = vmatpush1.bf16.msra.mxu0 0
    %2628 = vmatprep.subr.bf16.mxu0 0
    %2629 = vmatpush1.bf16.msra.mxu0 0
    %2630 = vmatprep.subr.bf16.mxu0 0
    %2631 = vmatpush1.bf16.msra.mxu0 0
    %2632 = vmatprep.subr.bf16.mxu0 0
    %2633 = vmatpush1.bf16.msra.mxu0 0
    %2634 = vmatprep.subr.bf16.mxu0 0
    %2635 = vmatpush1.bf16.msra.mxu0 0
    %2636 = vmatprep.subr.bf16.mxu0 0
    %2637 = vmatpush1.bf16.msra.mxu0 0
    %2638 = vmatprep.subr.bf16.mxu0 0
    %2639 = vmatpush1.bf16.msra.mxu0 0
    %2640 = vmatprep.subr.bf16.mxu0 0
    %2641 = vmatpush1.bf16.msra.mxu0 0
    %2642 = vmatprep.subr.bf16.mxu0 0
    %2643 = vmatpush1.bf16.msra.mxu0 0
    %2644 = vmatprep.subr.bf16.mxu0 0
    %2645 = vmatpush1.bf16.msra.mxu0 0
    %2646 = vmatprep.subr.bf16.mxu0 0
    %2647 = vmatpush1.bf16.msra.mxu0 0
    %2648 = vmatprep.subr.bf16.mxu0 0
    %2649 = vmatpush1.bf16.msra.mxu0 0
    %2650 = vmatprep.subr.bf16.mxu0 0
    %2651 = vmatpush1.bf16.msra.mxu0 0
    %2652 = vmatprep.subr.bf16.mxu0 0
    %2653 = vmatpush1.bf16.msra.mxu0 0
    %2654 = vmatprep.mubr.bf16.mxu0 0
    %2655 = vmatmul.mubr.bf16.gmra.mrb[0].mxu0 %v1575
    %v2656 = vpop.f32.mrb[0].mxu0
    %v2657 = vadd.f32 %v2608, %v2656
    %v2658 = vpop.f32.mrb[0].mxu0
    %v2659 = vpop.f32.mrb[0].mxu0
    %v2660 = vpop.f32.mrb[0].mxu0
    %2661 = vdwg.mxu0
    %v2662 = vld [vmem:[%s1258] sm:$0xf]
    %v2663 = vld [vmem:[%s1258 + $0x4] sm:$0xf]
    %v2664 = vld [vmem:[%s1258 + $0x8] sm:$0xf]
    %v2665 = vld [vmem:[%s1258 + $0xc] sm:$0xf]
    %v2666 = vld [vmem:[%s1263] sm:$0x1]
    %v2668 = vlaneseq
    %v2669 = vshrl.u32 %v2668, 7
    %v2670 = vsub.s32 0, %v2669
    %v2671 = vrot.slane %v2666, %v2670
    %v2677 = vunpack.c.l.b16 %v2662
    %v2678 = vunpack.c.l.b16 %v2663
    %v2679 = vunpack.c.l.b16 %v2664
    %v2680 = vunpack.c.l.b16 %v2665
    %v2681 = vpack.c.b16 %v2678, %v2677
    %v2682 = vpack.c.b16 %v2680, %v2679
    %2685 = vmatprep.subr.bf16.mxu0 0
    %2686 = vmatpush1.bf16.msra.mxu0 %v2681
    %2687 = vmatprep.subr.bf16.mxu0 0
    %2688 = vmatpush1.bf16.msra.mxu0 %v2682
    %2689 = vmatprep.subr.bf16.mxu0 0
    %2690 = vmatpush1.bf16.msra.mxu0 0
    %2691 = vmatprep.subr.bf16.mxu0 0
    %2692 = vmatpush1.bf16.msra.mxu0 0
    %2693 = vmatprep.subr.bf16.mxu0 0
    %2694 = vmatpush1.bf16.msra.mxu0 0
    %2695 = vmatprep.subr.bf16.mxu0 0
    %2696 = vmatpush1.bf16.msra.mxu0 0
    %2697 = vmatprep.subr.bf16.mxu0 0
    %2698 = vmatpush1.bf16.msra.mxu0 0
    %2699 = vmatprep.subr.bf16.mxu0 0
    %2700 = vmatpush1.bf16.msra.mxu0 0
    %2701 = vmatprep.subr.bf16.mxu0 0
    %2702 = vmatpush1.bf16.msra.mxu0 0
    %2703 = vmatprep.subr.bf16.mxu0 0
    %2704 = vmatpush1.bf16.msra.mxu0 0
    %2705 = vmatprep.subr.bf16.mxu0 0
    %2706 = vmatpush1.bf16.msra.mxu0 0
    %2707 = vmatprep.subr.bf16.mxu0 0
    %2708 = vmatpush1.bf16.msra.mxu0 0
    %2709 = vmatprep.subr.bf16.mxu0 0
    %2710 = vmatpush1.bf16.msra.mxu0 0
    %2711 = vmatprep.subr.bf16.mxu0 0
    %2712 = vmatpush1.bf16.msra.mxu0 0
    %2713 = vmatprep.subr.bf16.mxu0 0
    %2714 = vmatpush1.bf16.msra.mxu0 0
    %2715 = vmatprep.subr.bf16.mxu0 0
    %2716 = vmatpush1.bf16.msra.mxu0 0
    %2717 = vmatprep.mubr.bf16.mxu0 0
    %2718 = vmatmul.mubr.bf16.gmra.mrb[0].mxu0 %v1575
    %v2719 = vpop.f32.mrb[0].mxu0
    %v2720 = vadd.f32 %v2671, %v2719
    %v2721 = vpop.f32.mrb[0].mxu0
    %v2722 = vpop.f32.mrb[0].mxu0
    %v2723 = vpop.f32.mrb[0].mxu0
    %2724 = vdwg.mxu0
    %v2725 = vld [vmem:[%s1323] sm:$0xf]
    %v2726 = vld [vmem:[%s1323 + $0x4] sm:$0xf]
    %v2727 = vld [vmem:[%s1323 + $0x8] sm:$0xf]
    %v2728 = vld [vmem:[%s1323 + $0xc] sm:$0xf]
    %v2729 = vld [vmem:[%s1328] sm:$0x1]
    %v2731 = vlaneseq
    %v2732 = vshrl.u32 %v2731, 7
    %v2733 = vsub.s32 0, %v2732
    %v2734 = vrot.slane %v2729, %v2733
    %v2740 = vunpack.c.l.b16 %v2725
    %v2741 = vunpack.c.l.b16 %v2726
    %v2742 = vunpack.c.l.b16 %v2727
    %v2743 = vunpack.c.l.b16 %v2728
    %v2744 = vpack.c.b16 %v2741, %v2740
    %v2745 = vpack.c.b16 %v2743, %v2742
    %2748 = vmatprep.subr.bf16.mxu0 0
    %2749 = vmatpush1.bf16.msra.mxu0 %v2744
    %2750 = vmatprep.subr.bf16.mxu0 0
    %2751 = vmatpush1.bf16.msra.mxu0 %v2745
    %2752 = vmatprep.subr.bf16.mxu0 0
    %2753 = vmatpush1.bf16.msra.mxu0 0
    %2754 = vmatprep.subr.bf16.mxu0 0
    %2755 = vmatpush1.bf16.msra.mxu0 0
    %2756 = vmatprep.subr.bf16.mxu0 0
    %2757 = vmatpush1.bf16.msra.mxu0 0
    %2758 = vmatprep.subr.bf16.mxu0 0
    %2759 = vmatpush1.bf16.msra.mxu0 0
    %2760 = vmatprep.subr.bf16.mxu0 0
    %2761 = vmatpush1.bf16.msra.mxu0 0
    %2762 = vmatprep.subr.bf16.mxu0 0
    %2763 = vmatpush1.bf16.msra.mxu0 0
    %2764 = vmatprep.subr.bf16.mxu0 0
    %2765 = vmatpush1.bf16.msra.mxu0 0
    %2766 = vmatprep.subr.bf16.mxu0 0
    %2767 = vmatpush1.bf16.msra.mxu0 0
    %2768 = vmatprep.subr.bf16.mxu0 0
    %2769 = vmatpush1.bf16.msra.mxu0 0
    %2770 = vmatprep.subr.bf16.mxu0 0
    %2771 = vmatpush1.bf16.msra.mxu0 0
    %2772 = vmatprep.subr.bf16.mxu0 0
    %2773 = vmatpush1.bf16.msra.mxu0 0
    %2774 = vmatprep.subr.bf16.mxu0 0
    %2775 = vmatpush1.bf16.msra.mxu0 0
    %2776 = vmatprep.subr.bf16.mxu0 0
    %2777 = vmatpush1.bf16.msra.mxu0 0
    %2778 = vmatprep.subr.bf16.mxu0 0
    %2779 = vmatpush1.bf16.msra.mxu0 0
    %2780 = vmatprep.mubr.bf16.mxu0 0
    %2781 = vmatmul.mubr.bf16.gmra.mrb[0].mxu0 %v1575
    %v2782 = vpop.f32.mrb[0].mxu0
    %v2783 = vadd.f32 %v2734, %v2782
    %v2784 = vpop.f32.mrb[0].mxu0
    %v2785 = vpop.f32.mrb[0].mxu0
    %v2786 = vpop.f32.mrb[0].mxu0
    %2787 = vdwg.mxu0
    %v2788 = vpack.c.bf16 %v2657, %v2657
    %v2789 = vpack.c.bf16 %v2720, %v2720
    %v2791 = vsel %vm323, %v2788, 0
    %v2794 = vsel %vm323, %v2789, 0
    %2796 = vmatprep.subr.bf16.mxu0 0
    %2797 = vmatpush1.bf16.xpose.msra.mxu0 %v2794
    %2798 = vmatprep.subr.bf16.mxu0 0
    %2799 = vmatpush1.bf16.xpose.msra.mxu0 0
    %2800 = vmatprep.subr.bf16.mxu0 0
    %2801 = vmatpush1.bf16.xpose.msra.mxu0 0
    %2802 = vmatprep.subr.bf16.mxu0 0
    %2803 = vmatpush1.bf16.xpose.msra.mxu0 0
    %2804 = vmatprep.subr.bf16.mxu0 0
    %2805 = vmatpush1.bf16.xpose.msra.mxu0 0
    %2806 = vmatprep.subr.bf16.mxu0 0
    %2807 = vmatpush1.bf16.xpose.msra.mxu0 0
    %2808 = vmatprep.subr.bf16.mxu0 0
    %2809 = vmatpush1.bf16.xpose.msra.mxu0 0
    %2810 = vmatprep.subr.bf16.mxu0 0
    %2811 = vmatpush1.bf16.xpose.msra.mxu0 0
    %2812 = vmatprep.subr.bf16.mxu0 0
    %2813 = vmatpush1.bf16.xpose.msra.mxu0 0
    %2814 = vmatprep.subr.bf16.mxu0 0
    %2815 = vmatpush1.bf16.xpose.msra.mxu0 0
    %2816 = vmatprep.subr.bf16.mxu0 0
    %2817 = vmatpush1.bf16.xpose.msra.mxu0 0
    %2818 = vmatprep.subr.bf16.mxu0 0
    %2819 = vmatpush1.bf16.xpose.msra.mxu0 0
    %2820 = vmatprep.subr.bf16.mxu0 0
    %2821 = vmatpush1.bf16.xpose.msra.mxu0 0
    %2822 = vmatprep.subr.bf16.mxu0 0
    %2823 = vmatpush1.bf16.xpose.msra.mxu0 0
    %2824 = vmatprep.subr.bf16.mxu0 0
    %2825 = vmatpush1.bf16.xpose.msra.mxu0 0
    %2826 = vmatprep.subr.bf16.mxu0 0
    %2827 = vmatpush1.bf16.xpose.msra.mxu0 0
    %2828 = vmatprep.mubr.bf16.mxu0 0
    %2829 = vmatmul.mubr.bf16.gmra.mrb[0].mxu0 %v2791
    %v2830 = vpop.f32.mrb[0].mxu0
    %v2831 = vadd.f32 0.0, %v2830
    %v2832 = vpop.f32.mrb[0].mxu0
    %v2833 = vpop.f32.mrb[0].mxu0
    %v2834 = vpop.f32.mrb[0].mxu0
    %2835 = vdwg.mxu0
    %v2836 = vmul.f32 %v2831, 0.35355338
    %v2837 = vadd.f32 %v2836, %v1796
    %v2838 = vsel %vm323, %v2837, -inf
    %2839 = vmax.xlane.f32.xlu0 %v2838
    %v2840 = vpop.xlane.xlu0 %2839
    %v2841 = vsub.f32 %v2837, %v2840
    %v2842 = vmul.f32 %v2841, 1.442695
    %v2843 = vpow.pop %v2842
    %v2844 = vsel %vm323, %v2843, 0.0
    %2845 = vadd.xlane.f32.xlu0 %v2844
    %v2846 = vpop.xlane.xlu0 %2845
    %v2847 = vrcp.pop %v2846
    %v2848 = vmul.f32 %v2843, %v2847
    %v2849 = vpack.c.bf16 %v2848, %v2848
    %v2850 = vpack.c.bf16 %v2783, %v2783
    %v2852 = vsel %vm323, %v2849, 0
    %v2855 = vsel %vm394, %v2850, 0
    %2857 = vmatprep.subr.bf16.mxu0 0
    %2858 = vmatpush1.bf16.msra.mxu0 %v2855
    %2859 = vmatprep.subr.bf16.mxu0 0
    %2860 = vmatpush1.bf16.msra.mxu0 0
    %2861 = vmatprep.subr.bf16.mxu0 0
    %2862 = vmatpush1.bf16.msra.mxu0 0
    %2863 = vmatprep.subr.bf16.mxu0 0
    %2864 = vmatpush1.bf16.msra.mxu0 0
    %2865 = vmatprep.subr.bf16.mxu0 0
    %2866 = vmatpush1.bf16.msra.mxu0 0
    %2867 = vmatprep.subr.bf16.mxu0 0
    %2868 = vmatpush1.bf16.msra.mxu0 0
    %2869 = vmatprep.subr.bf16.mxu0 0
    %2870 = vmatpush1.bf16.msra.mxu0 0
    %2871 = vmatprep.subr.bf16.mxu0 0
    %2872 = vmatpush1.bf16.msra.mxu0 0
    %2873 = vmatprep.subr.bf16.mxu0 0
    %2874 = vmatpush1.bf16.msra.mxu0 0
    %2875 = vmatprep.subr.bf16.mxu0 0
    %2876 = vmatpush1.bf16.msra.mxu0 0
    %2877 = vmatprep.subr.bf16.mxu0 0
    %2878 = vmatpush1.bf16.msra.mxu0 0
    %2879 = vmatprep.subr.bf16.mxu0 0
    %2880 = vmatpush1.bf16.msra.mxu0 0
    %2881 = vmatprep.subr.bf16.mxu0 0
    %2882 = vmatpush1.bf16.msra.mxu0 0
    %2883 = vmatprep.subr.bf16.mxu0 0
    %2884 = vmatpush1.bf16.msra.mxu0 0
    %2885 = vmatprep.subr.bf16.mxu0 0
    %2886 = vmatpush1.bf16.msra.mxu0 0
    %2887 = vmatprep.subr.bf16.mxu0 0
    %2888 = vmatpush1.bf16.msra.mxu0 0
    %2889 = vmatprep.mubr.bf16.mxu0 0
    %2890 = vmatmul.mubr.bf16.gmra.mrb[0].mxu0 %v2852
    %v2891 = vpop.f32.mrb[0].mxu0
    %v2892 = vadd.f32 0.0, %v2891
    %v2893 = vpop.f32.mrb[0].mxu0
    %v2894 = vpop.f32.mrb[0].mxu0
    %v2895 = vpop.f32.mrb[0].mxu0
    %2896 = vdwg.mxu0
    %v2897 = vpack.c.bf16 %v2892, %v2892
    %v2898 = vld [vmem:[%s1498] sm:$0xf]
    %v2900 = vsel %vm323, %v2897, 0
    %v2903 = vsel %vm394, %v2898, 0
    %2905 = vmatprep.subr.bf16.mxu0 0
    %2906 = vmatpush1.bf16.msra.mxu0 %v2903
    %2907 = vmatprep.subr.bf16.mxu0 0
    %2908 = vmatpush1.bf16.msra.mxu0 0
    %2909 = vmatprep.subr.bf16.mxu0 0
    %2910 = vmatpush1.bf16.msra.mxu0 0
    %2911 = vmatprep.subr.bf16.mxu0 0
    %2912 = vmatpush1.bf16.msra.mxu0 0
    %2913 = vmatprep.subr.bf16.mxu0 0
    %2914 = vmatpush1.bf16.msra.mxu0 0
    %2915 = vmatprep.subr.bf16.mxu0 0
    %2916 = vmatpush1.bf16.msra.mxu0 0
    %2917 = vmatprep.subr.bf16.mxu0 0
    %2918 = vmatpush1.bf16.msra.mxu0 0
    %2919 = vmatprep.subr.bf16.mxu0 0
    %2920 = vmatpush1.bf16.msra.mxu0 0
    %2921 = vmatprep.subr.bf16.mxu0 0
    %2922 = vmatpush1.bf16.msra.mxu0 0
    %2923 = vmatprep.subr.bf16.mxu0 0
    %2924 = vmatpush1.bf16.msra.mxu0 0
    %2925 = vmatprep.subr.bf16.mxu0 0
    %2926 = vmatpush1.bf16.msra.mxu0 0
    %2927 = vmatprep.subr.bf16.mxu0 0
    %2928 = vmatpush1.bf16.msra.mxu0 0
    %2929 = vmatprep.subr.bf16.mxu0 0
    %2930 = vmatpush1.bf16.msra.mxu0 0
    %2931 = vmatprep.subr.bf16.mxu0 0
    %2932 = vmatpush1.bf16.msra.mxu0 0
    %2933 = vmatprep.subr.bf16.mxu0 0
    %2934 = vmatpush1.bf16.msra.mxu0 0
    %2935 = vmatprep.subr.bf16.mxu0 0
    %2936 = vmatpush1.bf16.msra.mxu0 0
    %2937 = vmatprep.mubr.bf16.mxu0 0
    %2938 = vmatmul.mubr.bf16.gmra.mrb[0].mxu0 %v2900
    %v2939 = vpop.f32.mrb[0].mxu0
    %v2940 = vadd.f32 0.0, %v2939
    %v2941 = vpop.f32.mrb[0].mxu0
    %v2942 = vpop.f32.mrb[0].mxu0
    %v2943 = vpop.f32.mrb[0].mxu0
    %2944 = vdwg.mxu0
    %v2945 = vadd.f32 %v2598, %v2940
    %2946 = vst.msk [vmem:[#allocation2 + $0x8] sm:$0xff] %vm83, %v2945
    %v2947 = vld [vmem:[#allocation2] sm:$0xff]
    %v2948 = vld [vmem:[#allocation2 + $0x8] sm:$0xff]
    %v2949 = vld [vmem:[%s11] sm:$0x1]
    %v2951 = vlaneseq
    %v2952 = vshrl.u32 %v2951, 7
    %v2953 = vsub.s32 0, %v2952
    %v2954 = vrot.slane %v2949, %v2953
    %v2956 = vadd.f32 %v2947, %v2954
    %v2957 = vadd.f32 %v2948, %v2954
    %v2958 = vadd.f32 %v2956, %v125
    %v2959 = vadd.f32 %v2957, %v126
    %v2960 = vld [vmem:[%s12] sm:$0x1]
    %v2961 = vld [vmem:[%s13] sm:$0x1]
    %v2962 = vsel %vm83, %v2958, 0.0
    %2963 = vadd.xlane.f32.xlu0 %v2962
    %v2964 = vpop.xlane.xlu0 %2963
    %v2965 = vsel %vm83, %v2959, 0.0
    %2966 = vadd.xlane.f32.xlu0 %v2965
    %v2967 = vpop.xlane.xlu0 %2966
    %v2968 = vmul.f32 %v2964, %v90
    %v2969 = vmul.f32 %v2967, %v90
    %v2970 = vsub.f32 %v2958, %v2968
    %v2971 = vsub.f32 %v2959, %v2969
    %v2972 = vmul.f32 %v2970, %v2970
    %v2973 = vmul.f32 %v2971, %v2971
    %v2974 = vsel %vm83, %v2972, 0.0
    %2975 = vadd.xlane.f32.xlu0 %v2974
    %v2976 = vpop.xlane.xlu0 %2975
    %v2977 = vsel %vm83, %v2973, 0.0
    %2978 = vadd.xlane.f32.xlu0 %v2977
    %v2979 = vpop.xlane.xlu0 %2978
    %v2980 = vmul.f32 %v2976, %v90
    %v2981 = vmul.f32 %v2979, %v90
    %v2982 = vadd.f32 %v2980, 1e-12
    %v2983 = vadd.f32 %v2981, 1e-12
    %v2984 = vrsqrt.pop %v2982
    %v2985 = vrsqrt.pop %v2983
    %v2986 = vmul.f32 %v2970, %v2984
    %v2987 = vmul.f32 %v2971, %v2985
    %v2989 = vlaneseq
    %v2990 = vshrl.u32 %v2989, 7
    %v2991 = vsub.s32 0, %v2990
    %v2992 = vrot.slane %v2960, %v2991
    %v2994 = vmul.f32 %v2986, %v2992
    %v2995 = vmul.f32 %v2987, %v2992
    %v2997 = vlaneseq
    %v2998 = vshrl.u32 %v2997, 7
    %v2999 = vsub.s32 0, %v2998
    %v3000 = vrot.slane %v2961, %v2999
    %v3002 = vadd.f32 %v2994, %v3000
    %v3003 = vadd.f32 %v2995, %v3000
    %v3004 = vpack.c.bf16 %v3003, %v3002
    %v3005 = vld [vmem:[%s14] sm:$0xf]
    %v3006 = vld [vmem:[%s14 + $0x4] sm:$0xf]
    %v3007 = vld [vmem:[%s14 + $0x8] sm:$0xf]
    %v3008 = vld [vmem:[%s14 + $0xc] sm:$0xf]
    %v3009 = vld [vmem:[%s15] sm:$0x1]
    %v3011 = vlaneseq
    %v3012 = vshrl.u32 %v3011, 7
    %v3013 = vsub.s32 0, %v3012
    %v3014 = vrot.slane %v3009, %v3013
    %v3020 = vunpack.c.l.b16 %v3005
    %v3021 = vunpack.c.l.b16 %v3006
    %v3022 = vunpack.c.l.b16 %v3007
    %v3023 = vunpack.c.l.b16 %v3008
    %v3024 = vpack.c.b16 %v3021, %v3020
    %v3025 = vpack.c.b16 %v3023, %v3022
    %v3029 = vsel %vm83, %v3004, 0
    %3031 = vmatprep.subr.bf16.mxu0 0
    %3032 = vmatpush1.bf16.msra.mxu0 %v3024
    %3033 = vmatprep.subr.bf16.mxu0 0
    %3034 = vmatpush1.bf16.msra.mxu0 %v3025
    %3035 = vmatprep.subr.bf16.mxu0 0
    %3036 = vmatpush1.bf16.msra.mxu0 0
    %3037 = vmatprep.subr.bf16.mxu0 0
    %3038 = vmatpush1.bf16.msra.mxu0 0
    %3039 = vmatprep.subr.bf16.mxu0 0
    %3040 = vmatpush1.bf16.msra.mxu0 0
    %3041 = vmatprep.subr.bf16.mxu0 0
    %3042 = vmatpush1.bf16.msra.mxu0 0
    %3043 = vmatprep.subr.bf16.mxu0 0
    %3044 = vmatpush1.bf16.msra.mxu0 0
    %3045 = vmatprep.subr.bf16.mxu0 0
    %3046 = vmatpush1.bf16.msra.mxu0 0
    %3047 = vmatprep.subr.bf16.mxu0 0
    %3048 = vmatpush1.bf16.msra.mxu0 0
    %3049 = vmatprep.subr.bf16.mxu0 0
    %3050 = vmatpush1.bf16.msra.mxu0 0
    %3051 = vmatprep.subr.bf16.mxu0 0
    %3052 = vmatpush1.bf16.msra.mxu0 0
    %3053 = vmatprep.subr.bf16.mxu0 0
    %3054 = vmatpush1.bf16.msra.mxu0 0
    %3055 = vmatprep.subr.bf16.mxu0 0
    %3056 = vmatpush1.bf16.msra.mxu0 0
    %3057 = vmatprep.subr.bf16.mxu0 0
    %3058 = vmatpush1.bf16.msra.mxu0 0
    %3059 = vmatprep.subr.bf16.mxu0 0
    %3060 = vmatpush1.bf16.msra.mxu0 0
    %3061 = vmatprep.subr.bf16.mxu0 0
    %3062 = vmatpush1.bf16.msra.mxu0 0
    %3063 = vmatprep.mubr.bf16.mxu0 0
    %3064 = vmatmul.mubr.bf16.gmra.mrb[0].mxu0 %v3029
    %v3065 = vpop.f32.mrb[0].mxu0
    %v3066 = vadd.f32 %v3014, %v3065
    %v3067 = vpop.f32.mrb[0].mxu0
    %v3068 = vpop.f32.mrb[0].mxu0
    %v3069 = vadd.f32 %v3014, %v3068
    %v3070 = vpop.f32.mrb[0].mxu0
    %3071 = vdwg.mxu0
    %v3072 = vmul.f32 %v3066, %v3066
    %v3073 = vmul.f32 %v3069, %v3069
    %v3074 = vmul.f32 %v3066, %v3072
    %v3075 = vmul.f32 %v3069, %v3073
    %v3076 = vmul.f32 %v3074, 0.044715
    %v3077 = vmul.f32 %v3075, 0.044715
    %v3078 = vadd.f32 %v3066, %v3076
    %v3079 = vadd.f32 %v3069, %v3077
    %v3080 = vmul.f32 %v3078, 0.7978846
    %v3081 = vmul.f32 %v3079, 0.7978846
    %v3082 = vtanh.pop %v3080
    %v3083 = vtanh.pop %v3081
    %v3084 = vadd.f32 %v3082, 1.0
    %v3085 = vadd.f32 %v3083, 1.0
    %v3086 = vmul.f32 %v3084, 0.5
    %v3087 = vmul.f32 %v3085, 0.5
    %v3088 = vmul.f32 %v3066, %v3086
    %v3089 = vmul.f32 %v3069, %v3087
    %v3090 = vpack.c.bf16 %v3089, %v3088
    %v3091 = vld [vmem:[%s16] sm:$0xf]
    %v3092 = vld [vmem:[%s16 + $0x4] sm:$0xf]
    %v3093 = vld [vmem:[%s16 + $0x8] sm:$0xf]
    %v3094 = vld [vmem:[%s16 + $0xc] sm:$0xf]
    %v3095 = vld [vmem:[%s16 + $0x10] sm:$0xf]
    %v3096 = vld [vmem:[%s16 + $0x14] sm:$0xf]
    %v3097 = vld [vmem:[%s16 + $0x18] sm:$0xf]
    %v3098 = vld [vmem:[%s16 + $0x1c] sm:$0xf]
    %v3099 = vld [vmem:[%s17] sm:$0x1]
    %v3101 = vlaneseq
    %v3102 = vshrl.u32 %v3101, 7
    %v3103 = vsub.s32 0, %v3102
    %v3104 = vrot.slane %v3099, %v3103
    %v3114 = vunpack.c.l.b16 %v3091
    %v3115 = vunpack.c.l.b16 %v3092
    %v3116 = vunpack.c.l.b16 %v3093
    %v3117 = vunpack.c.l.b16 %v3094
    %v3118 = vunpack.c.l.b16 %v3095
    %v3119 = vunpack.c.l.b16 %v3096
    %v3120 = vunpack.c.l.b16 %v3097
    %v3121 = vunpack.c.l.b16 %v3098
    %v3122 = vpack.c.b16 %v3115, %v3114
    %v3123 = vpack.c.b16 %v3117, %v3116
    %v3124 = vpack.c.b16 %v3119, %v3118
    %v3125 = vpack.c.b16 %v3121, %v3120
    %vm3130 = vcmask 523264
    %v3132 = vsel %vm3130, %v3090, 0
    %3134 = vmatprep.subr.bf16.mxu0 0
    %3135 = vmatpush1.bf16.msra.mxu0 %v3122
    %3136 = vmatprep.subr.bf16.mxu0 0
    %3137 = vmatpush1.bf16.msra.mxu0 %v3123
    %3138 = vmatprep.subr.bf16.mxu0 0
    %3139 = vmatpush1.bf16.msra.mxu0 %v3124
    %3140 = vmatprep.subr.bf16.mxu0 0
    %3141 = vmatpush1.bf16.msra.mxu0 %v3125
    %3142 = vmatprep.subr.bf16.mxu0 0
    %3143 = vmatpush1.bf16.msra.mxu0 0
    %3144 = vmatprep.subr.bf16.mxu0 0
    %3145 = vmatpush1.bf16.msra.mxu0 0
    %3146 = vmatprep.subr.bf16.mxu0 0
    %3147 = vmatpush1.bf16.msra.mxu0 0
    %3148 = vmatprep.subr.bf16.mxu0 0
    %3149 = vmatpush1.bf16.msra.mxu0 0
    %3150 = vmatprep.subr.bf16.mxu0 0
    %3151 = vmatpush1.bf16.msra.mxu0 0
    %3152 = vmatprep.subr.bf16.mxu0 0
    %3153 = vmatpush1.bf16.msra.mxu0 0
    %3154 = vmatprep.subr.bf16.mxu0 0
    %3155 = vmatpush1.bf16.msra.mxu0 0
    %3156 = vmatprep.subr.bf16.mxu0 0
    %3157 = vmatpush1.bf16.msra.mxu0 0
    %3158 = vmatprep.subr.bf16.mxu0 0
    %3159 = vmatpush1.bf16.msra.mxu0 0
    %3160 = vmatprep.subr.bf16.mxu0 0
    %3161 = vmatpush1.bf16.msra.mxu0 0
    %3162 = vmatprep.subr.bf16.mxu0 0
    %3163 = vmatpush1.bf16.msra.mxu0 0
    %3164 = vmatprep.subr.bf16.mxu0 0
    %3165 = vmatpush1.bf16.msra.mxu0 0
    %3166 = vmatprep.mubr.bf16.mxu0 0
    %3167 = vmatmul.mubr.bf16.gmra.mrb[0].mxu0 %v3132
    %v3168 = vpop.f32.mrb[0].mxu0
    %v3169 = vadd.f32 %v3104, %v3168
    %v3170 = vpop.f32.mrb[0].mxu0
    %v3171 = vpop.f32.mrb[0].mxu0
    %v3172 = vadd.f32 %v3104, %v3171
    %v3173 = vpop.f32.mrb[0].mxu0
    %3174 = vdwg.mxu0
    %v3175 = vadd.f32 %v3169, %v3002
    %v3176 = vadd.f32 %v3172, %v3003
    %v3177 = vld [vmem:[%s18] sm:$0x1]
    %v3178 = vld [vmem:[%s19] sm:$0x1]
    %v3179 = vsel %vm83, %v3175, 0.0
    %3180 = vadd.xlane.f32.xlu0 %v3179
    %v3181 = vpop.xlane.xlu0 %3180
    %v3182 = vsel %vm83, %v3176, 0.0
    %3183 = vadd.xlane.f32.xlu0 %v3182
    %v3184 = vpop.xlane.xlu0 %3183
    %v3185 = vmul.f32 %v3181, %v90
    %v3186 = vmul.f32 %v3184, %v90
    %v3187 = vsub.f32 %v3175, %v3185
    %v3188 = vsub.f32 %v3176, %v3186
    %v3189 = vmul.f32 %v3187, %v3187
    %v3190 = vmul.f32 %v3188, %v3188
    %v3191 = vsel %vm83, %v3189, 0.0
    %3192 = vadd.xlane.f32.xlu0 %v3191
    %v3193 = vpop.xlane.xlu0 %3192
    %v3194 = vsel %vm83, %v3190, 0.0
    %3195 = vadd.xlane.f32.xlu0 %v3194
    %v3196 = vpop.xlane.xlu0 %3195
    %v3197 = vmul.f32 %v3193, %v90
    %v3198 = vmul.f32 %v3196, %v90
    %v3199 = vadd.f32 %v3197, 1e-12
    %v3200 = vadd.f32 %v3198, 1e-12
    %v3201 = vrsqrt.pop %v3199
    %v3202 = vrsqrt.pop %v3200
    %v3203 = vmul.f32 %v3187, %v3201
    %v3204 = vmul.f32 %v3188, %v3202
    %v3206 = vlaneseq
    %v3207 = vshrl.u32 %v3206, 7
    %v3208 = vsub.s32 0, %v3207
    %v3209 = vrot.slane %v3177, %v3208
    %v3211 = vmul.f32 %v3203, %v3209
    %v3212 = vmul.f32 %v3204, %v3209
    %v3214 = vlaneseq
    %v3215 = vshrl.u32 %v3214, 7
    %v3216 = vsub.s32 0, %v3215
    %v3217 = vrot.slane %v3178, %v3216
    %v3219 = vadd.f32 %v3211, %v3217
    %v3220 = vadd.f32 %v3212, %v3217
    %v3221 = vpack.c.bf16 %v3219, %v3219
    %v3222 = vld [vmem:[%s1] sm:$0x1]
    %s3223 = scalar_lea.vmem %s4, 64
    %v3224 = vld [vmem:[%s3223] sm:$0xf]
    %v3225 = vld [vmem:[%s3223 + $0x4] sm:$0xf]
    %v3226 = vld [vmem:[%s3223 + $0x8] sm:$0xf]
    %v3227 = vld [vmem:[%s3223 + $0xc] sm:$0xf]
    %s3228 = scalar_lea.vmem %s5, 4
    %v3229 = vld [vmem:[%s3228] sm:$0x1]
    %v3231 = vlaneseq
    %v3232 = vshrl.u32 %v3231, 7
    %v3233 = vsub.s32 0, %v3232
    %v3234 = vrot.slane %v3229, %v3233
    %v3240 = vunpack.c.l.b16 %v3224
    %v3241 = vunpack.c.l.b16 %v3225
    %v3242 = vunpack.c.l.b16 %v3226
    %v3243 = vunpack.c.l.b16 %v3227
    %v3244 = vpack.c.b16 %v3241, %v3240
    %v3245 = vpack.c.b16 %v3243, %v3242
    %v3249 = vsel %vm83, %v3221, 0
    %3251 = vmatprep.subr.bf16.mxu0 0
    %3252 = vmatpush1.bf16.msra.mxu0 %v3244
    %3253 = vmatprep.subr.bf16.mxu0 0
    %3254 = vmatpush1.bf16.msra.mxu0 %v3245
    %3255 = vmatprep.subr.bf16.mxu0 0
    %3256 = vmatpush1.bf16.msra.mxu0 0
    %3257 = vmatprep.subr.bf16.mxu0 0
    %3258 = vmatpush1.bf16.msra.mxu0 0
    %3259 = vmatprep.subr.bf16.mxu0 0
    %3260 = vmatpush1.bf16.msra.mxu0 0
    %3261 = vmatprep.subr.bf16.mxu0 0
    %3262 = vmatpush1.bf16.msra.mxu0 0
    %3263 = vmatprep.subr.bf16.mxu0 0
    %3264 = vmatpush1.bf16.msra.mxu0 0
    %3265 = vmatprep.subr.bf16.mxu0 0
    %3266 = vmatpush1.bf16.msra.mxu0 0
    %3267 = vmatprep.subr.bf16.mxu0 0
    %3268 = vmatpush1.bf16.msra.mxu0 0
    %3269 = vmatprep.subr.bf16.mxu0 0
    %3270 = vmatpush1.bf16.msra.mxu0 0
    %3271 = vmatprep.subr.bf16.mxu0 0
    %3272 = vmatpush1.bf16.msra.mxu0 0
    %3273 = vmatprep.subr.bf16.mxu0 0
    %3274 = vmatpush1.bf16.msra.mxu0 0
    %3275 = vmatprep.subr.bf16.mxu0 0
    %3276 = vmatpush1.bf16.msra.mxu0 0
    %3277 = vmatprep.subr.bf16.mxu0 0
    %3278 = vmatpush1.bf16.msra.mxu0 0
    %3279 = vmatprep.subr.bf16.mxu0 0
    %3280 = vmatpush1.bf16.msra.mxu0 0
    %3281 = vmatprep.subr.bf16.mxu0 0
    %3282 = vmatpush1.bf16.msra.mxu0 0
    %3283 = vmatprep.mubr.bf16.mxu0 0
    %3284 = vmatmul.mubr.bf16.gmra.mrb[0].mxu0 %v3249
    %v3285 = vpop.f32.mrb[0].mxu0
    %v3286 = vadd.f32 %v3234, %v3285
    %v3287 = vpop.f32.mrb[0].mxu0
    %v3288 = vpop.f32.mrb[0].mxu0
    %v3289 = vpop.f32.mrb[0].mxu0
    %3290 = vdwg.mxu0
    %s3291 = scalar_lea.vmem %s6, 64
    %v3292 = vld [vmem:[%s3291] sm:$0xf]
    %v3293 = vld [vmem:[%s3291 + $0x4] sm:$0xf]
    %v3294 = vld [vmem:[%s3291 + $0x8] sm:$0xf]
    %v3295 = vld [vmem:[%s3291 + $0xc] sm:$0xf]
    %s3296 = scalar_lea.vmem %s7, 4
    %v3297 = vld [vmem:[%s3296] sm:$0x1]
    %v3299 = vlaneseq
    %v3300 = vshrl.u32 %v3299, 7
    %v3301 = vsub.s32 0, %v3300
    %v3302 = vrot.slane %v3297, %v3301
    %v3308 = vunpack.c.l.b16 %v3292
    %v3309 = vunpack.c.l.b16 %v3293
    %v3310 = vunpack.c.l.b16 %v3294
    %v3311 = vunpack.c.l.b16 %v3295
    %v3312 = vpack.c.b16 %v3309, %v3308
    %v3313 = vpack.c.b16 %v3311, %v3310
    %3316 = vmatprep.subr.bf16.mxu0 0
    %3317 = vmatpush1.bf16.msra.mxu0 %v3312
    %3318 = vmatprep.subr.bf16.mxu0 0
    %3319 = vmatpush1.bf16.msra.mxu0 %v3313
    %3320 = vmatprep.subr.bf16.mxu0 0
    %3321 = vmatpush1.bf16.msra.mxu0 0
    %3322 = vmatprep.subr.bf16.mxu0 0
    %3323 = vmatpush1.bf16.msra.mxu0 0
    %3324 = vmatprep.subr.bf16.mxu0 0
    %3325 = vmatpush1.bf16.msra.mxu0 0
    %3326 = vmatprep.subr.bf16.mxu0 0
    %3327 = vmatpush1.bf16.msra.mxu0 0
    %3328 = vmatprep.subr.bf16.mxu0 0
    %3329 = vmatpush1.bf16.msra.mxu0 0
    %3330 = vmatprep.subr.bf16.mxu0 0
    %3331 = vmatpush1.bf16.msra.mxu0 0
    %3332 = vmatprep.subr.bf16.mxu0 0
    %3333 = vmatpush1.bf16.msra.mxu0 0
    %3334 = vmatprep.subr.bf16.mxu0 0
    %3335 = vmatpush1.bf16.msra.mxu0 0
    %3336 = vmatprep.subr.bf16.mxu0 0
    %3337 = vmatpush1.bf16.msra.mxu0 0
    %3338 = vmatprep.subr.bf16.mxu0 0
    %3339 = vmatpush1.bf16.msra.mxu0 0
    %3340 = vmatprep.subr.bf16.mxu0 0
    %3341 = vmatpush1.bf16.msra.mxu0 0
    %3342 = vmatprep.subr.bf16.mxu0 0
    %3343 = vmatpush1.bf16.msra.mxu0 0
    %3344 = vmatprep.subr.bf16.mxu0 0
    %3345 = vmatpush1.bf16.msra.mxu0 0
    %3346 = vmatprep.subr.bf16.mxu0 0
    %3347 = vmatpush1.bf16.msra.mxu0 0
    %3348 = vmatprep.mubr.bf16.mxu0 0
    %3349 = vmatmul.mubr.bf16.gmra.mrb[0].mxu0 %v3249
    %v3350 = vpop.f32.mrb[0].mxu0
    %v3351 = vadd.f32 %v3302, %v3350
    %v3352 = vpop.f32.mrb[0].mxu0
    %v3353 = vpop.f32.mrb[0].mxu0
    %v3354 = vpop.f32.mrb[0].mxu0
    %3355 = vdwg.mxu0
    %s3356 = scalar_lea.vmem %s8, 64
    %v3357 = vld [vmem:[%s3356] sm:$0xf]
    %v3358 = vld [vmem:[%s3356 + $0x4] sm:$0xf]
    %v3359 = vld [vmem:[%s3356 + $0x8] sm:$0xf]
    %v3360 = vld [vmem:[%s3356 + $0xc] sm:$0xf]
    %s3361 = scalar_lea.vmem %s9, 4
    %v3362 = vld [vmem:[%s3361] sm:$0x1]
    %v3364 = vlaneseq
    %v3365 = vshrl.u32 %v3364, 7
    %v3366 = vsub.s32 0, %v3365
    %v3367 = vrot.slane %v3362, %v3366
    %v3373 = vunpack.c.l.b16 %v3357
    %v3374 = vunpack.c.l.b16 %v3358
    %v3375 = vunpack.c.l.b16 %v3359
    %v3376 = vunpack.c.l.b16 %v3360
    %v3377 = vpack.c.b16 %v3374, %v3373
    %v3378 = vpack.c.b16 %v3376, %v3375
    %3381 = vmatprep.subr.bf16.mxu0 0
    %3382 = vmatpush1.bf16.msra.mxu0 %v3377
    %3383 = vmatprep.subr.bf16.mxu0 0
    %3384 = vmatpush1.bf16.msra.mxu0 %v3378
    %3385 = vmatprep.subr.bf16.mxu0 0
    %3386 = vmatpush1.bf16.msra.mxu0 0
    %3387 = vmatprep.subr.bf16.mxu0 0
    %3388 = vmatpush1.bf16.msra.mxu0 0
    %3389 = vmatprep.subr.bf16.mxu0 0
    %3390 = vmatpush1.bf16.msra.mxu0 0
    %3391 = vmatprep.subr.bf16.mxu0 0
    %3392 = vmatpush1.bf16.msra.mxu0 0
    %3393 = vmatprep.subr.bf16.mxu0 0
    %3394 = vmatpush1.bf16.msra.mxu0 0
    %3395 = vmatprep.subr.bf16.mxu0 0
    %3396 = vmatpush1.bf16.msra.mxu0 0
    %3397 = vmatprep.subr.bf16.mxu0 0
    %3398 = vmatpush1.bf16.msra.mxu0 0
    %3399 = vmatprep.subr.bf16.mxu0 0
    %3400 = vmatpush1.bf16.msra.mxu0 0
    %3401 = vmatprep.subr.bf16.mxu0 0
    %3402 = vmatpush1.bf16.msra.mxu0 0
    %3403 = vmatprep.subr.bf16.mxu0 0
    %3404 = vmatpush1.bf16.msra.mxu0 0
    %3405 = vmatprep.subr.bf16.mxu0 0
    %3406 = vmatpush1.bf16.msra.mxu0 0
    %3407 = vmatprep.subr.bf16.mxu0 0
    %3408 = vmatpush1.bf16.msra.mxu0 0
    %3409 = vmatprep.subr.bf16.mxu0 0
    %3410 = vmatpush1.bf16.msra.mxu0 0
    %3411 = vmatprep.subr.bf16.mxu0 0
    %3412 = vmatpush1.bf16.msra.mxu0 0
    %3413 = vmatprep.mubr.bf16.mxu0 0
    %3414 = vmatmul.mubr.bf16.gmra.mrb[0].mxu0 %v3249
    %v3415 = vpop.f32.mrb[0].mxu0
    %v3416 = vadd.f32 %v3367, %v3415
    %v3417 = vpop.f32.mrb[0].mxu0
    %v3418 = vpop.f32.mrb[0].mxu0
    %v3419 = vpop.f32.mrb[0].mxu0
    %3420 = vdwg.mxu0
    %v3421 = vpack.c.bf16 %v3286, %v3286
    %v3422 = vpack.c.bf16 %v3351, %v3351
    %v3424 = vsel %vm323, %v3421, 0
    %v3427 = vsel %vm323, %v3422, 0
    %3429 = vmatprep.subr.bf16.mxu0 0
    %3430 = vmatpush1.bf16.xpose.msra.mxu0 %v3427
    %3431 = vmatprep.subr.bf16.mxu0 0
    %3432 = vmatpush1.bf16.xpose.msra.mxu0 0
    %3433 = vmatprep.subr.bf16.mxu0 0
    %3434 = vmatpush1.bf16.xpose.msra.mxu0 0
    %3435 = vmatprep.subr.bf16.mxu0 0
    %3436 = vmatpush1.bf16.xpose.msra.mxu0 0
    %3437 = vmatprep.subr.bf16.mxu0 0
    %3438 = vmatpush1.bf16.xpose.msra.mxu0 0
    %3439 = vmatprep.subr.bf16.mxu0 0
    %3440 = vmatpush1.bf16.xpose.msra.mxu0 0
    %3441 = vmatprep.subr.bf16.mxu0 0
    %3442 = vmatpush1.bf16.xpose.msra.mxu0 0
    %3443 = vmatprep.subr.bf16.mxu0 0
    %3444 = vmatpush1.bf16.xpose.msra.mxu0 0
    %3445 = vmatprep.subr.bf16.mxu0 0
    %3446 = vmatpush1.bf16.xpose.msra.mxu0 0
    %3447 = vmatprep.subr.bf16.mxu0 0
    %3448 = vmatpush1.bf16.xpose.msra.mxu0 0
    %3449 = vmatprep.subr.bf16.mxu0 0
    %3450 = vmatpush1.bf16.xpose.msra.mxu0 0
    %3451 = vmatprep.subr.bf16.mxu0 0
    %3452 = vmatpush1.bf16.xpose.msra.mxu0 0
    %3453 = vmatprep.subr.bf16.mxu0 0
    %3454 = vmatpush1.bf16.xpose.msra.mxu0 0
    %3455 = vmatprep.subr.bf16.mxu0 0
    %3456 = vmatpush1.bf16.xpose.msra.mxu0 0
    %3457 = vmatprep.subr.bf16.mxu0 0
    %3458 = vmatpush1.bf16.xpose.msra.mxu0 0
    %3459 = vmatprep.subr.bf16.mxu0 0
    %3460 = vmatpush1.bf16.xpose.msra.mxu0 0
    %3461 = vmatprep.mubr.bf16.mxu0 0
    %3462 = vmatmul.mubr.bf16.gmra.mrb[0].mxu0 %v3424
    %v3463 = vpop.f32.mrb[0].mxu0
    %v3464 = vadd.f32 0.0, %v3463
    %v3465 = vpop.f32.mrb[0].mxu0
    %v3466 = vpop.f32.mrb[0].mxu0
    %v3467 = vpop.f32.mrb[0].mxu0
    %3468 = vdwg.mxu0
    %v3469 = vmul.f32 %v3464, 0.35355338
    %v3471 = vlaneseq
    %v3472 = vshrl.u32 %v3471, 7
    %v3473 = vsub.s32 0, %v3472
    %v3474 = vrot.slane %v3222, %v3473
    %v3476 = vadd.f32 %v3469, %v3474
    %v3477 = vsel %vm323, %v3476, -inf
    %3478 = vmax.xlane.f32.xlu0 %v3477
    %v3479 = vpop.xlane.xlu0 %3478
    %v3480 = vsub.f32 %v3476, %v3479
    %v3481 = vmul.f32 %v3480, 1.442695
    %v3482 = vpow.pop %v3481
    %v3483 = vsel %vm323, %v3482, 0.0
    %3484 = vadd.xlane.f32.xlu0 %v3483
    %v3485 = vpop.xlane.xlu0 %3484
    %v3486 = vrcp.pop %v3485
    %v3487 = vmul.f32 %v3482, %v3486
    %v3488 = vpack.c.bf16 %v3487, %v3487
    %v3489 = vpack.c.bf16 %v3416, %v3416
    %v3491 = vsel %vm323, %v3488, 0
    %v3494 = vsel %vm394, %v3489, 0
    %3496 = vmatprep.subr.bf16.mxu0 0
    %3497 = vmatpush1.bf16.msra.mxu0 %v3494
    %3498 = vmatprep.subr.bf16.mxu0 0
    %3499 = vmatpush1.bf16.msra.mxu0 0
    %3500 = vmatprep.subr.bf16.mxu0 0
    %3501 = vmatpush1.bf16.msra.mxu0 0
    %3502 = vmatprep.subr.bf16.mxu0 0
    %3503 = vmatpush1.bf16.msra.mxu0 0
    %3504 = vmatprep.subr.bf16.mxu0 0
    %3505 = vmatpush1.bf16.msra.mxu0 0
    %3506 = vmatprep.subr.bf16.mxu0 0
    %3507 = vmatpush1.bf16.msra.mxu0 0
    %3508 = vmatprep.subr.bf16.mxu0 0
    %3509 = vmatpush1.bf16.msra.mxu0 0
    %3510 = vmatprep.subr.bf16.mxu0 0
    %3511 = vmatpush1.bf16.msra.mxu0 0
    %3512 = vmatprep.subr.bf16.mxu0 0
    %3513 = vmatpush1.bf16.msra.mxu0 0
    %3514 = vmatprep.subr.bf16.mxu0 0
    %3515 = vmatpush1.bf16.msra.mxu0 0
    %3516 = vmatprep.subr.bf16.mxu0 0
    %3517 = vmatpush1.bf16.msra.mxu0 0
    %3518 = vmatprep.subr.bf16.mxu0 0
    %3519 = vmatpush1.bf16.msra.mxu0 0
    %3520 = vmatprep.subr.bf16.mxu0 0
    %3521 = vmatpush1.bf16.msra.mxu0 0
    %3522 = vmatprep.subr.bf16.mxu0 0
    %3523 = vmatpush1.bf16.msra.mxu0 0
    %3524 = vmatprep.subr.bf16.mxu0 0
    %3525 = vmatpush1.bf16.msra.mxu0 0
    %3526 = vmatprep.subr.bf16.mxu0 0
    %3527 = vmatpush1.bf16.msra.mxu0 0
    %3528 = vmatprep.mubr.bf16.mxu0 0
    %3529 = vmatmul.mubr.bf16.gmra.mrb[0].mxu0 %v3491
    %v3530 = vpop.f32.mrb[0].mxu0
    %v3531 = vadd.f32 0.0, %v3530
    %v3532 = vpop.f32.mrb[0].mxu0
    %v3533 = vpop.f32.mrb[0].mxu0
    %v3534 = vpop.f32.mrb[0].mxu0
    %3535 = vdwg.mxu0
    %v3536 = vpack.c.bf16 %v3531, %v3531
    %s3537 = scalar_lea.vmem %s10, 16
    %v3538 = vld [vmem:[%s3537] sm:$0xf]
    %s3539 = scalar_lea.vmem %s4, 80
    %v3540 = vld [vmem:[%s3539] sm:$0xf]
    %v3541 = vld [vmem:[%s3539 + $0x4] sm:$0xf]
    %v3542 = vld [vmem:[%s3539 + $0x8] sm:$0xf]
    %v3543 = vld [vmem:[%s3539 + $0xc] sm:$0xf]
    %s3544 = scalar_lea.vmem %s5, 5
    %v3545 = vld [vmem:[%s3544] sm:$0x1]
    %v3547 = vlaneseq
    %v3548 = vshrl.u32 %v3547, 7
    %v3549 = vsub.s32 0, %v3548
    %v3550 = vrot.slane %v3545, %v3549
    %v3556 = vunpack.c.l.b16 %v3540
    %v3557 = vunpack.c.l.b16 %v3541
    %v3558 = vunpack.c.l.b16 %v3542
    %v3559 = vunpack.c.l.b16 %v3543
    %v3560 = vpack.c.b16 %v3557, %v3556
    %v3561 = vpack.c.b16 %v3559, %v3558
    %3564 = vmatprep.subr.bf16.mxu0 0
    %3565 = vmatpush1.bf16.msra.mxu0 %v3560
    %3566 = vmatprep.subr.bf16.mxu0 0
    %3567 = vmatpush1.bf16.msra.mxu0 %v3561
    %3568 = vmatprep.subr.bf16.mxu0 0
    %3569 = vmatpush1.bf16.msra.mxu0 0
    %3570 = vmatprep.subr.bf16.mxu0 0
    %3571 = vmatpush1.bf16.msra.mxu0 0
    %3572 = vmatprep.subr.bf16.mxu0 0
    %3573 = vmatpush1.bf16.msra.mxu0 0
    %3574 = vmatprep.subr.bf16.mxu0 0
    %3575 = vmatpush1.bf16.msra.mxu0 0
    %3576 = vmatprep.subr.bf16.mxu0 0
    %3577 = vmatpush1.bf16.msra.mxu0 0
    %3578 = vmatprep.subr.bf16.mxu0 0
    %3579 = vmatpush1.bf16.msra.mxu0 0
    %3580 = vmatprep.subr.bf16.mxu0 0
    %3581 = vmatpush1.bf16.msra.mxu0 0
    %3582 = vmatprep.subr.bf16.mxu0 0
    %3583 = vmatpush1.bf16.msra.mxu0 0
    %3584 = vmatprep.subr.bf16.mxu0 0
    %3585 = vmatpush1.bf16.msra.mxu0 0
    %3586 = vmatprep.subr.bf16.mxu0 0
    %3587 = vmatpush1.bf16.msra.mxu0 0
    %3588 = vmatprep.subr.bf16.mxu0 0
    %3589 = vmatpush1.bf16.msra.mxu0 0
    %3590 = vmatprep.subr.bf16.mxu0 0
    %3591 = vmatpush1.bf16.msra.mxu0 0
    %3592 = vmatprep.subr.bf16.mxu0 0
    %3593 = vmatpush1.bf16.msra.mxu0 0
    %3594 = vmatprep.subr.bf16.mxu0 0
    %3595 = vmatpush1.bf16.msra.mxu0 0
    %3596 = vmatprep.mubr.bf16.mxu0 0
    %3597 = vmatmul.mubr.bf16.gmra.mrb[0].mxu0 %v3249
    %v3598 = vpop.f32.mrb[0].mxu0
    %v3599 = vadd.f32 %v3550, %v3598
    %v3600 = vpop.f32.mrb[0].mxu0
    %v3601 = vpop.f32.mrb[0].mxu0
    %v3602 = vpop.f32.mrb[0].mxu0
    %3603 = vdwg.mxu0
    %s3604 = scalar_lea.vmem %s6, 80
    %v3605 = vld [vmem:[%s3604] sm:$0xf]
    %v3606 = vld [vmem:[%s3604 + $0x4] sm:$0xf]
    %v3607 = vld [vmem:[%s3604 + $0x8] sm:$0xf]
    %v3608 = vld [vmem:[%s3604 + $0xc] sm:$0xf]
    %s3609 = scalar_lea.vmem %s7, 5
    %v3610 = vld [vmem:[%s3609] sm:$0x1]
    %v3612 = vlaneseq
    %v3613 = vshrl.u32 %v3612, 7
    %v3614 = vsub.s32 0, %v3613
    %v3615 = vrot.slane %v3610, %v3614
    %v3621 = vunpack.c.l.b16 %v3605
    %v3622 = vunpack.c.l.b16 %v3606
    %v3623 = vunpack.c.l.b16 %v3607
    %v3624 = vunpack.c.l.b16 %v3608
    %v3625 = vpack.c.b16 %v3622, %v3621
    %v3626 = vpack.c.b16 %v3624, %v3623
    %3629 = vmatprep.subr.bf16.mxu0 0
    %3630 = vmatpush1.bf16.msra.mxu0 %v3625
    %3631 = vmatprep.subr.bf16.mxu0 0
    %3632 = vmatpush1.bf16.msra.mxu0 %v3626
    %3633 = vmatprep.subr.bf16.mxu0 0
    %3634 = vmatpush1.bf16.msra.mxu0 0
    %3635 = vmatprep.subr.bf16.mxu0 0
    %3636 = vmatpush1.bf16.msra.mxu0 0
    %3637 = vmatprep.subr.bf16.mxu0 0
    %3638 = vmatpush1.bf16.msra.mxu0 0
    %3639 = vmatprep.subr.bf16.mxu0 0
    %3640 = vmatpush1.bf16.msra.mxu0 0
    %3641 = vmatprep.subr.bf16.mxu0 0
    %3642 = vmatpush1.bf16.msra.mxu0 0
    %3643 = vmatprep.subr.bf16.mxu0 0
    %3644 = vmatpush1.bf16.msra.mxu0 0
    %3645 = vmatprep.subr.bf16.mxu0 0
    %3646 = vmatpush1.bf16.msra.mxu0 0
    %3647 = vmatprep.subr.bf16.mxu0 0
    %3648 = vmatpush1.bf16.msra.mxu0 0
    %3649 = vmatprep.subr.bf16.mxu0 0
    %3650 = vmatpush1.bf16.msra.mxu0 0
    %3651 = vmatprep.subr.bf16.mxu0 0
    %3652 = vmatpush1.bf16.msra.mxu0 0
    %3653 = vmatprep.subr.bf16.mxu0 0
    %3654 = vmatpush1.bf16.msra.mxu0 0
    %3655 = vmatprep.subr.bf16.mxu0 0
    %3656 = vmatpush1.bf16.msra.mxu0 0
    %3657 = vmatprep.subr.bf16.mxu0 0
    %3658 = vmatpush1.bf16.msra.mxu0 0
    %3659 = vmatprep.subr.bf16.mxu0 0
    %3660 = vmatpush1.bf16.msra.mxu0 0
    %3661 = vmatprep.mubr.bf16.mxu0 0
    %3662 = vmatmul.mubr.bf16.gmra.mrb[0].mxu0 %v3249
    %v3663 = vpop.f32.mrb[0].mxu0
    %v3664 = vadd.f32 %v3615, %v3663
    %v3665 = vpop.f32.mrb[0].mxu0
    %v3666 = vpop.f32.mrb[0].mxu0
    %v3667 = vpop.f32.mrb[0].mxu0
    %3668 = vdwg.mxu0
    %s3669 = scalar_lea.vmem %s8, 80
    %v3670 = vld [vmem:[%s3669] sm:$0xf]
    %v3671 = vld [vmem:[%s3669 + $0x4] sm:$0xf]
    %v3672 = vld [vmem:[%s3669 + $0x8] sm:$0xf]
    %v3673 = vld [vmem:[%s3669 + $0xc] sm:$0xf]
    %s3674 = scalar_lea.vmem %s9, 5
    %v3675 = vld [vmem:[%s3674] sm:$0x1]
    %v3677 = vlaneseq
    %v3678 = vshrl.u32 %v3677, 7
    %v3679 = vsub.s32 0, %v3678
    %v3680 = vrot.slane %v3675, %v3679
    %v3686 = vunpack.c.l.b16 %v3670
    %v3687 = vunpack.c.l.b16 %v3671
    %v3688 = vunpack.c.l.b16 %v3672
    %v3689 = vunpack.c.l.b16 %v3673
    %v3690 = vpack.c.b16 %v3687, %v3686
    %v3691 = vpack.c.b16 %v3689, %v3688
    %3694 = vmatprep.subr.bf16.mxu0 0
    %3695 = vmatpush1.bf16.msra.mxu0 %v3690
    %3696 = vmatprep.subr.bf16.mxu0 0
    %3697 = vmatpush1.bf16.msra.mxu0 %v3691
    %3698 = vmatprep.subr.bf16.mxu0 0
    %3699 = vmatpush1.bf16.msra.mxu0 0
    %3700 = vmatprep.subr.bf16.mxu0 0
    %3701 = vmatpush1.bf16.msra.mxu0 0
    %3702 = vmatprep.subr.bf16.mxu0 0
    %3703 = vmatpush1.bf16.msra.mxu0 0
    %3704 = vmatprep.subr.bf16.mxu0 0
    %3705 = vmatpush1.bf16.msra.mxu0 0
    %3706 = vmatprep.subr.bf16.mxu0 0
    %3707 = vmatpush1.bf16.msra.mxu0 0
    %3708 = vmatprep.subr.bf16.mxu0 0
    %3709 = vmatpush1.bf16.msra.mxu0 0
    %3710 = vmatprep.subr.bf16.mxu0 0
    %3711 = vmatpush1.bf16.msra.mxu0 0
    %3712 = vmatprep.subr.bf16.mxu0 0
    %3713 = vmatpush1.bf16.msra.mxu0 0
    %3714 = vmatprep.subr.bf16.mxu0 0
    %3715 = vmatpush1.bf16.msra.mxu0 0
    %3716 = vmatprep.subr.bf16.mxu0 0
    %3717 = vmatpush1.bf16.msra.mxu0 0
    %3718 = vmatprep.subr.bf16.mxu0 0
    %3719 = vmatpush1.bf16.msra.mxu0 0
    %3720 = vmatprep.subr.bf16.mxu0 0
    %3721 = vmatpush1.bf16.msra.mxu0 0
    %3722 = vmatprep.subr.bf16.mxu0 0
    %3723 = vmatpush1.bf16.msra.mxu0 0
    %3724 = vmatprep.subr.bf16.mxu0 0
    %3725 = vmatpush1.bf16.msra.mxu0 0
    %3726 = vmatprep.mubr.bf16.mxu0 0
    %3727 = vmatmul.mubr.bf16.gmra.mrb[0].mxu0 %v3249
    %v3728 = vpop.f32.mrb[0].mxu0
    %v3729 = vadd.f32 %v3680, %v3728
    %v3730 = vpop.f32.mrb[0].mxu0
    %v3731 = vpop.f32.mrb[0].mxu0
    %v3732 = vpop.f32.mrb[0].mxu0
    %3733 = vdwg.mxu0
    %v3734 = vpack.c.bf16 %v3599, %v3599
    %v3735 = vpack.c.bf16 %v3664, %v3664
    %v3737 = vsel %vm323, %v3734, 0
    %v3740 = vsel %vm323, %v3735, 0
    %3742 = vmatprep.subr.bf16.mxu0 0
    %3743 = vmatpush1.bf16.xpose.msra.mxu0 %v3740
    %3744 = vmatprep.subr.bf16.mxu0 0
    %3745 = vmatpush1.bf16.xpose.msra.mxu0 0
    %3746 = vmatprep.subr.bf16.mxu0 0
    %3747 = vmatpush1.bf16.xpose.msra.mxu0 0
    %3748 = vmatprep.subr.bf16.mxu0 0
    %3749 = vmatpush1.bf16.xpose.msra.mxu0 0
    %3750 = vmatprep.subr.bf16.mxu0 0
    %3751 = vmatpush1.bf16.xpose.msra.mxu0 0
    %3752 = vmatprep.subr.bf16.mxu0 0
    %3753 = vmatpush1.bf16.xpose.msra.mxu0 0
    %3754 = vmatprep.subr.bf16.mxu0 0
    %3755 = vmatpush1.bf16.xpose.msra.mxu0 0
    %3756 = vmatprep.subr.bf16.mxu0 0
    %3757 = vmatpush1.bf16.xpose.msra.mxu0 0
    %3758 = vmatprep.subr.bf16.mxu0 0
    %3759 = vmatpush1.bf16.xpose.msra.mxu0 0
    %3760 = vmatprep.subr.bf16.mxu0 0
    %3761 = vmatpush1.bf16.xpose.msra.mxu0 0
    %3762 = vmatprep.subr.bf16.mxu0 0
    %3763 = vmatpush1.bf16.xpose.msra.mxu0 0
    %3764 = vmatprep.subr.bf16.mxu0 0
    %3765 = vmatpush1.bf16.xpose.msra.mxu0 0
    %3766 = vmatprep.subr.bf16.mxu0 0
    %3767 = vmatpush1.bf16.xpose.msra.mxu0 0
    %3768 = vmatprep.subr.bf16.mxu0 0
    %3769 = vmatpush1.bf16.xpose.msra.mxu0 0
    %3770 = vmatprep.subr.bf16.mxu0 0
    %3771 = vmatpush1.bf16.xpose.msra.mxu0 0
    %3772 = vmatprep.subr.bf16.mxu0 0
    %3773 = vmatpush1.bf16.xpose.msra.mxu0 0
    %3774 = vmatprep.mubr.bf16.mxu0 0
    %3775 = vmatmul.mubr.bf16.gmra.mrb[0].mxu0 %v3737
    %v3776 = vpop.f32.mrb[0].mxu0
    %v3777 = vadd.f32 0.0, %v3776
    %v3778 = vpop.f32.mrb[0].mxu0
    %v3779 = vpop.f32.mrb[0].mxu0
    %v3780 = vpop.f32.mrb[0].mxu0
    %3781 = vdwg.mxu0
    %v3782 = vmul.f32 %v3777, 0.35355338
    %v3783 = vadd.f32 %v3782, %v3474
    %v3784 = vsel %vm323, %v3783, -inf
    %3785 = vmax.xlane.f32.xlu0 %v3784
    %v3786 = vpop.xlane.xlu0 %3785
    %v3787 = vsub.f32 %v3783, %v3786
    %v3788 = vmul.f32 %v3787, 1.442695
    %v3789 = vpow.pop %v3788
    %v3790 = vsel %vm323, %v3789, 0.0
    %3791 = vadd.xlane.f32.xlu0 %v3790
    %v3792 = vpop.xlane.xlu0 %3791
    %v3793 = vrcp.pop %v3792
    %v3794 = vmul.f32 %v3789, %v3793
    %v3795 = vpack.c.bf16 %v3794, %v3794
    %v3796 = vpack.c.bf16 %v3729, %v3729
    %v3798 = vsel %vm323, %v3795, 0
    %v3801 = vsel %vm394, %v3796, 0
    %3803 = vmatprep.subr.bf16.mxu0 0
    %3804 = vmatpush1.bf16.msra.mxu0 %v3801
    %3805 = vmatprep.subr.bf16.mxu0 0
    %3806 = vmatpush1.bf16.msra.mxu0 0
    %3807 = vmatprep.subr.bf16.mxu0 0
    %3808 = vmatpush1.bf16.msra.mxu0 0
    %3809 = vmatprep.subr.bf16.mxu0 0
    %3810 = vmatpush1.bf16.msra.mxu0 0
    %3811 = vmatprep.subr.bf16.mxu0 0
    %3812 = vmatpush1.bf16.msra.mxu0 0
    %3813 = vmatprep.subr.bf16.mxu0 0
    %3814 = vmatpush1.bf16.msra.mxu0 0
    %3815 = vmatprep.subr.bf16.mxu0 0
    %3816 = vmatpush1.bf16.msra.mxu0 0
    %3817 = vmatprep.subr.bf16.mxu0 0
    %3818 = vmatpush1.bf16.msra.mxu0 0
    %3819 = vmatprep.subr.bf16.mxu0 0
    %3820 = vmatpush1.bf16.msra.mxu0 0
    %3821 = vmatprep.subr.bf16.mxu0 0
    %3822 = vmatpush1.bf16.msra.mxu0 0
    %3823 = vmatprep.subr.bf16.mxu0 0
    %3824 = vmatpush1.bf16.msra.mxu0 0
    %3825 = vmatprep.subr.bf16.mxu0 0
    %3826 = vmatpush1.bf16.msra.mxu0 0
    %3827 = vmatprep.subr.bf16.mxu0 0
    %3828 = vmatpush1.bf16.msra.mxu0 0
    %3829 = vmatprep.subr.bf16.mxu0 0
    %3830 = vmatpush1.bf16.msra.mxu0 0
    %3831 = vmatprep.subr.bf16.mxu0 0
    %3832 = vmatpush1.bf16.msra.mxu0 0
    %3833 = vmatprep.subr.bf16.mxu0 0
    %3834 = vmatpush1.bf16.msra.mxu0 0
    %3835 = vmatprep.mubr.bf16.mxu0 0
    %3836 = vmatmul.mubr.bf16.gmra.mrb[0].mxu0 %v3798
    %v3837 = vpop.f32.mrb[0].mxu0
    %v3838 = vadd.f32 0.0, %v3837
    %v3839 = vpop.f32.mrb[0].mxu0
    %v3840 = vpop.f32.mrb[0].mxu0
    %v3841 = vpop.f32.mrb[0].mxu0
    %3842 = vdwg.mxu0
    %v3843 = vpack.c.bf16 %v3838, %v3838
    %s3844 = scalar_lea.vmem %s10, 20
    %v3845 = vld [vmem:[%s3844] sm:$0xf]
    %v3847 = vsel %vm323, %v3843, 0
    %v3850 = vsel %vm394, %v3845, 0
    %3852 = vmatprep.subr.bf16.mxu0 0
    %3853 = vmatpush1.bf16.msra.mxu0 %v3850
    %3854 = vmatprep.subr.bf16.mxu0 0
    %3855 = vmatpush1.bf16.msra.mxu0 0
    %3856 = vmatprep.subr.bf16.mxu0 0
    %3857 = vmatpush1.bf16.msra.mxu0 0
    %3858 = vmatprep.subr.bf16.mxu0 0
    %3859 = vmatpush1.bf16.msra.mxu0 0
    %3860 = vmatprep.subr.bf16.mxu0 0
    %3861 = vmatpush1.bf16.msra.mxu0 0
    %3862 = vmatprep.subr.bf16.mxu0 0
    %3863 = vmatpush1.bf16.msra.mxu0 0
    %3864 = vmatprep.subr.bf16.mxu0 0
    %3865 = vmatpush1.bf16.msra.mxu0 0
    %3866 = vmatprep.subr.bf16.mxu0 0
    %3867 = vmatpush1.bf16.msra.mxu0 0
    %3868 = vmatprep.subr.bf16.mxu0 0
    %3869 = vmatpush1.bf16.msra.mxu0 0
    %3870 = vmatprep.subr.bf16.mxu0 0
    %3871 = vmatpush1.bf16.msra.mxu0 0
    %3872 = vmatprep.subr.bf16.mxu0 0
    %3873 = vmatpush1.bf16.msra.mxu0 0
    %3874 = vmatprep.subr.bf16.mxu0 0
    %3875 = vmatpush1.bf16.msra.mxu0 0
    %3876 = vmatprep.subr.bf16.mxu0 0
    %3877 = vmatpush1.bf16.msra.mxu0 0
    %3878 = vmatprep.subr.bf16.mxu0 0
    %3879 = vmatpush1.bf16.msra.mxu0 0
    %3880 = vmatprep.subr.bf16.mxu0 0
    %3881 = vmatpush1.bf16.msra.mxu0 0
    %3882 = vmatprep.subr.bf16.mxu0 0
    %3883 = vmatpush1.bf16.msra.mxu0 0
    %3884 = vmatprep.mubr.bf16.mxu0 0
    %3885 = vmatmul.mubr.bf16.gmra.mrb[0].mxu0 %v3847
    %v3886 = vpop.f32.mrb[0].mxu0
    %v3887 = vadd.f32 0.0, %v3886
    %v3888 = vpop.f32.mrb[0].mxu0
    %v3889 = vpop.f32.mrb[0].mxu0
    %v3890 = vpop.f32.mrb[0].mxu0
    %3891 = vdwg.mxu0
    %v3893 = vsel %vm323, %v3536, 0
    %v3896 = vsel %vm394, %v3538, 0
    %3898 = vmatprep.subr.bf16.mxu0 0
    %3899 = vmatpush1.bf16.msra.mxu0 %v3896
    %3900 = vmatprep.subr.bf16.mxu0 0
    %3901 = vmatpush1.bf16.msra.mxu0 0
    %3902 = vmatprep.subr.bf16.mxu0 0
    %3903 = vmatpush1.bf16.msra.mxu0 0
    %3904 = vmatprep.subr.bf16.mxu0 0
    %3905 = vmatpush1.bf16.msra.mxu0 0
    %3906 = vmatprep.subr.bf16.mxu0 0
    %3907 = vmatpush1.bf16.msra.mxu0 0
    %3908 = vmatprep.subr.bf16.mxu0 0
    %3909 = vmatpush1.bf16.msra.mxu0 0
    %3910 = vmatprep.subr.bf16.mxu0 0
    %3911 = vmatpush1.bf16.msra.mxu0 0
    %3912 = vmatprep.subr.bf16.mxu0 0
    %3913 = vmatpush1.bf16.msra.mxu0 0
    %3914 = vmatprep.subr.bf16.mxu0 0
    %3915 = vmatpush1.bf16.msra.mxu0 0
    %3916 = vmatprep.subr.bf16.mxu0 0
    %3917 = vmatpush1.bf16.msra.mxu0 0
    %3918 = vmatprep.subr.bf16.mxu0 0
    %3919 = vmatpush1.bf16.msra.mxu0 0
    %3920 = vmatprep.subr.bf16.mxu0 0
    %3921 = vmatpush1.bf16.msra.mxu0 0
    %3922 = vmatprep.subr.bf16.mxu0 0
    %3923 = vmatpush1.bf16.msra.mxu0 0
    %3924 = vmatprep.subr.bf16.mxu0 0
    %3925 = vmatpush1.bf16.msra.mxu0 0
    %3926 = vmatprep.subr.bf16.mxu0 0
    %3927 = vmatpush1.bf16.msra.mxu0 0
    %3928 = vmatprep.subr.bf16.mxu0 0
    %3929 = vmatpush1.bf16.msra.mxu0 0
    %3930 = vmatprep.mubr.bf16.mxu0 0
    %3931 = vmatmul.mubr.bf16.gmra.mrb[0].mxu0 %v3893
    %v3932 = vpop.f32.mrb[0].mxu0
    %v3933 = vadd.f32 %v3887, %v3932
    %v3934 = vpop.f32.mrb[0].mxu0
    %v3935 = vpop.f32.mrb[0].mxu0
    %v3936 = vpop.f32.mrb[0].mxu0
    %3937 = vdwg.mxu0
    %s3938 = scalar_lea.vmem %s4, 96
    %v3939 = vld [vmem:[%s3938] sm:$0xf]
    %v3940 = vld [vmem:[%s3938 + $0x4] sm:$0xf]
    %v3941 = vld [vmem:[%s3938 + $0x8] sm:$0xf]
    %v3942 = vld [vmem:[%s3938 + $0xc] sm:$0xf]
    %s3943 = scalar_lea.vmem %s5, 6
    %v3944 = vld [vmem:[%s3943] sm:$0x1]
    %v3946 = vlaneseq
    %v3947 = vshrl.u32 %v3946, 7
    %v3948 = vsub.s32 0, %v3947
    %v3949 = vrot.slane %v3944, %v3948
    %v3955 = vunpack.c.l.b16 %v3939
    %v3956 = vunpack.c.l.b16 %v3940
    %v3957 = vunpack.c.l.b16 %v3941
    %v3958 = vunpack.c.l.b16 %v3942
    %v3959 = vpack.c.b16 %v3956, %v3955
    %v3960 = vpack.c.b16 %v3958, %v3957
    %3963 = vmatprep.subr.bf16.mxu0 0
    %3964 = vmatpush1.bf16.msra.mxu0 %v3959
    %3965 = vmatprep.subr.bf16.mxu0 0
    %3966 = vmatpush1.bf16.msra.mxu0 %v3960
    %3967 = vmatprep.subr.bf16.mxu0 0
    %3968 = vmatpush1.bf16.msra.mxu0 0
    %3969 = vmatprep.subr.bf16.mxu0 0
    %3970 = vmatpush1.bf16.msra.mxu0 0
    %3971 = vmatprep.subr.bf16.mxu0 0
    %3972 = vmatpush1.bf16.msra.mxu0 0
    %3973 = vmatprep.subr.bf16.mxu0 0
    %3974 = vmatpush1.bf16.msra.mxu0 0
    %3975 = vmatprep.subr.bf16.mxu0 0
    %3976 = vmatpush1.bf16.msra.mxu0 0
    %3977 = vmatprep.subr.bf16.mxu0 0
    %3978 = vmatpush1.bf16.msra.mxu0 0
    %3979 = vmatprep.subr.bf16.mxu0 0
    %3980 = vmatpush1.bf16.msra.mxu0 0
    %3981 = vmatprep.subr.bf16.mxu0 0
    %3982 = vmatpush1.bf16.msra.mxu0 0
    %3983 = vmatprep.subr.bf16.mxu0 0
    %3984 = vmatpush1.bf16.msra.mxu0 0
    %3985 = vmatprep.subr.bf16.mxu0 0
    %3986 = vmatpush1.bf16.msra.mxu0 0
    %3987 = vmatprep.subr.bf16.mxu0 0
    %3988 = vmatpush1.bf16.msra.mxu0 0
    %3989 = vmatprep.subr.bf16.mxu0 0
    %3990 = vmatpush1.bf16.msra.mxu0 0
    %3991 = vmatprep.subr.bf16.mxu0 0
    %3992 = vmatpush1.bf16.msra.mxu0 0
    %3993 = vmatprep.subr.bf16.mxu0 0
    %3994 = vmatpush1.bf16.msra.mxu0 0
    %3995 = vmatprep.mubr.bf16.mxu0 0
    %3996 = vmatmul.mubr.bf16.gmra.mrb[0].mxu0 %v3249
    %v3997 = vpop.f32.mrb[0].mxu0
    %v3998 = vadd.f32 %v3949, %v3997
    %v3999 = vpop.f32.mrb[0].mxu0
    %v4000 = vpop.f32.mrb[0].mxu0
    %v4001 = vpop.f32.mrb[0].mxu0
    %4002 = vdwg.mxu0
    %s4003 = scalar_lea.vmem %s6, 96
    %v4004 = vld [vmem:[%s4003] sm:$0xf]
    %v4005 = vld [vmem:[%s4003 + $0x4] sm:$0xf]
    %v4006 = vld [vmem:[%s4003 + $0x8] sm:$0xf]
    %v4007 = vld [vmem:[%s4003 + $0xc] sm:$0xf]
    %s4008 = scalar_lea.vmem %s7, 6
    %v4009 = vld [vmem:[%s4008] sm:$0x1]
    %v4011 = vlaneseq
    %v4012 = vshrl.u32 %v4011, 7
    %v4013 = vsub.s32 0, %v4012
    %v4014 = vrot.slane %v4009, %v4013
    %v4020 = vunpack.c.l.b16 %v4004
    %v4021 = vunpack.c.l.b16 %v4005
    %v4022 = vunpack.c.l.b16 %v4006
    %v4023 = vunpack.c.l.b16 %v4007
    %v4024 = vpack.c.b16 %v4021, %v4020
    %v4025 = vpack.c.b16 %v4023, %v4022
    %4028 = vmatprep.subr.bf16.mxu0 0
    %4029 = vmatpush1.bf16.msra.mxu0 %v4024
    %4030 = vmatprep.subr.bf16.mxu0 0
    %4031 = vmatpush1.bf16.msra.mxu0 %v4025
    %4032 = vmatprep.subr.bf16.mxu0 0
    %4033 = vmatpush1.bf16.msra.mxu0 0
    %4034 = vmatprep.subr.bf16.mxu0 0
    %4035 = vmatpush1.bf16.msra.mxu0 0
    %4036 = vmatprep.subr.bf16.mxu0 0
    %4037 = vmatpush1.bf16.msra.mxu0 0
    %4038 = vmatprep.subr.bf16.mxu0 0
    %4039 = vmatpush1.bf16.msra.mxu0 0
    %4040 = vmatprep.subr.bf16.mxu0 0
    %4041 = vmatpush1.bf16.msra.mxu0 0
    %4042 = vmatprep.subr.bf16.mxu0 0
    %4043 = vmatpush1.bf16.msra.mxu0 0
    %4044 = vmatprep.subr.bf16.mxu0 0
    %4045 = vmatpush1.bf16.msra.mxu0 0
    %4046 = vmatprep.subr.bf16.mxu0 0
    %4047 = vmatpush1.bf16.msra.mxu0 0
    %4048 = vmatprep.subr.bf16.mxu0 0
    %4049 = vmatpush1.bf16.msra.mxu0 0
    %4050 = vmatprep.subr.bf16.mxu0 0
    %4051 = vmatpush1.bf16.msra.mxu0 0
    %4052 = vmatprep.subr.bf16.mxu0 0
    %4053 = vmatpush1.bf16.msra.mxu0 0
    %4054 = vmatprep.subr.bf16.mxu0 0
    %4055 = vmatpush1.bf16.msra.mxu0 0
    %4056 = vmatprep.subr.bf16.mxu0 0
    %4057 = vmatpush1.bf16.msra.mxu0 0
    %4058 = vmatprep.subr.bf16.mxu0 0
    %4059 = vmatpush1.bf16.msra.mxu0 0
    %4060 = vmatprep.mubr.bf16.mxu0 0
    %4061 = vmatmul.mubr.bf16.gmra.mrb[0].mxu0 %v3249
    %v4062 = vpop.f32.mrb[0].mxu0
    %v4063 = vadd.f32 %v4014, %v4062
    %v4064 = vpop.f32.mrb[0].mxu0
    %v4065 = vpop.f32.mrb[0].mxu0
    %v4066 = vpop.f32.mrb[0].mxu0
    %4067 = vdwg.mxu0
    %s4068 = scalar_lea.vmem %s8, 96
    %v4069 = vld [vmem:[%s4068] sm:$0xf]
    %v4070 = vld [vmem:[%s4068 + $0x4] sm:$0xf]
    %v4071 = vld [vmem:[%s4068 + $0x8] sm:$0xf]
    %v4072 = vld [vmem:[%s4068 + $0xc] sm:$0xf]
    %s4073 = scalar_lea.vmem %s9, 6
    %v4074 = vld [vmem:[%s4073] sm:$0x1]
    %v4076 = vlaneseq
    %v4077 = vshrl.u32 %v4076, 7
    %v4078 = vsub.s32 0, %v4077
    %v4079 = vrot.slane %v4074, %v4078
    %v4085 = vunpack.c.l.b16 %v4069
    %v4086 = vunpack.c.l.b16 %v4070
    %v4087 = vunpack.c.l.b16 %v4071
    %v4088 = vunpack.c.l.b16 %v4072
    %v4089 = vpack.c.b16 %v4086, %v4085
    %v4090 = vpack.c.b16 %v4088, %v4087
    %4093 = vmatprep.subr.bf16.mxu0 0
    %4094 = vmatpush1.bf16.msra.mxu0 %v4089
    %4095 = vmatprep.subr.bf16.mxu0 0
    %4096 = vmatpush1.bf16.msra.mxu0 %v4090
    %4097 = vmatprep.subr.bf16.mxu0 0
    %4098 = vmatpush1.bf16.msra.mxu0 0
    %4099 = vmatprep.subr.bf16.mxu0 0
    %4100 = vmatpush1.bf16.msra.mxu0 0
    %4101 = vmatprep.subr.bf16.mxu0 0
    %4102 = vmatpush1.bf16.msra.mxu0 0
    %4103 = vmatprep.subr.bf16.mxu0 0
    %4104 = vmatpush1.bf16.msra.mxu0 0
    %4105 = vmatprep.subr.bf16.mxu0 0
    %4106 = vmatpush1.bf16.msra.mxu0 0
    %4107 = vmatprep.subr.bf16.mxu0 0
    %4108 = vmatpush1.bf16.msra.mxu0 0
    %4109 = vmatprep.subr.bf16.mxu0 0
    %4110 = vmatpush1.bf16.msra.mxu0 0
    %4111 = vmatprep.subr.bf16.mxu0 0
    %4112 = vmatpush1.bf16.msra.mxu0 0
    %4113 = vmatprep.subr.bf16.mxu0 0
    %4114 = vmatpush1.bf16.msra.mxu0 0
    %4115 = vmatprep.subr.bf16.mxu0 0
    %4116 = vmatpush1.bf16.msra.mxu0 0
    %4117 = vmatprep.subr.bf16.mxu0 0
    %4118 = vmatpush1.bf16.msra.mxu0 0
    %4119 = vmatprep.subr.bf16.mxu0 0
    %4120 = vmatpush1.bf16.msra.mxu0 0
    %4121 = vmatprep.subr.bf16.mxu0 0
    %4122 = vmatpush1.bf16.msra.mxu0 0
    %4123 = vmatprep.subr.bf16.mxu0 0
    %4124 = vmatpush1.bf16.msra.mxu0 0
    %4125 = vmatprep.mubr.bf16.mxu0 0
    %4126 = vmatmul.mubr.bf16.gmra.mrb[0].mxu0 %v3249
    %v4127 = vpop.f32.mrb[0].mxu0
    %v4128 = vadd.f32 %v4079, %v4127
    %v4129 = vpop.f32.mrb[0].mxu0
    %v4130 = vpop.f32.mrb[0].mxu0
    %v4131 = vpop.f32.mrb[0].mxu0
    %4132 = vdwg.mxu0
    %v4133 = vpack.c.bf16 %v3998, %v3998
    %v4134 = vpack.c.bf16 %v4063, %v4063
    %v4136 = vsel %vm323, %v4133, 0
    %v4139 = vsel %vm323, %v4134, 0
    %4141 = vmatprep.subr.bf16.mxu0 0
    %4142 = vmatpush1.bf16.xpose.msra.mxu0 %v4139
    %4143 = vmatprep.subr.bf16.mxu0 0
    %4144 = vmatpush1.bf16.xpose.msra.mxu0 0
    %4145 = vmatprep.subr.bf16.mxu0 0
    %4146 = vmatpush1.bf16.xpose.msra.mxu0 0
    %4147 = vmatprep.subr.bf16.mxu0 0
    %4148 = vmatpush1.bf16.xpose.msra.mxu0 0
    %4149 = vmatprep.subr.bf16.mxu0 0
    %4150 = vmatpush1.bf16.xpose.msra.mxu0 0
    %4151 = vmatprep.subr.bf16.mxu0 0
    %4152 = vmatpush1.bf16.xpose.msra.mxu0 0
    %4153 = vmatprep.subr.bf16.mxu0 0
    %4154 = vmatpush1.bf16.xpose.msra.mxu0 0
    %4155 = vmatprep.subr.bf16.mxu0 0
    %4156 = vmatpush1.bf16.xpose.msra.mxu0 0
    %4157 = vmatprep.subr.bf16.mxu0 0
    %4158 = vmatpush1.bf16.xpose.msra.mxu0 0
    %4159 = vmatprep.subr.bf16.mxu0 0
    %4160 = vmatpush1.bf16.xpose.msra.mxu0 0
    %4161 = vmatprep.subr.bf16.mxu0 0
    %4162 = vmatpush1.bf16.xpose.msra.mxu0 0
    %4163 = vmatprep.subr.bf16.mxu0 0
    %4164 = vmatpush1.bf16.xpose.msra.mxu0 0
    %4165 = vmatprep.subr.bf16.mxu0 0
    %4166 = vmatpush1.bf16.xpose.msra.mxu0 0
    %4167 = vmatprep.subr.bf16.mxu0 0
    %4168 = vmatpush1.bf16.xpose.msra.mxu0 0
    %4169 = vmatprep.subr.bf16.mxu0 0
    %4170 = vmatpush1.bf16.xpose.msra.mxu0 0
    %4171 = vmatprep.subr.bf16.mxu0 0
    %4172 = vmatpush1.bf16.xpose.msra.mxu0 0
    %4173 = vmatprep.mubr.bf16.mxu0 0
    %4174 = vmatmul.mubr.bf16.gmra.mrb[0].mxu0 %v4136
    %v4175 = vpop.f32.mrb[0].mxu0
    %v4176 = vadd.f32 0.0, %v4175
    %v4177 = vpop.f32.mrb[0].mxu0
    %v4178 = vpop.f32.mrb[0].mxu0
    %v4179 = vpop.f32.mrb[0].mxu0
    %4180 = vdwg.mxu0
    %v4181 = vmul.f32 %v4176, 0.35355338
    %v4182 = vadd.f32 %v4181, %v3474
    %v4183 = vsel %vm323, %v4182, -inf
    %4184 = vmax.xlane.f32.xlu0 %v4183
    %v4185 = vpop.xlane.xlu0 %4184
    %v4186 = vsub.f32 %v4182, %v4185
    %v4187 = vmul.f32 %v4186, 1.442695
    %v4188 = vpow.pop %v4187
    %v4189 = vsel %vm323, %v4188, 0.0
    %4190 = vadd.xlane.f32.xlu0 %v4189
    %v4191 = vpop.xlane.xlu0 %4190
    %v4192 = vrcp.pop %v4191
    %v4193 = vmul.f32 %v4188, %v4192
    %v4194 = vpack.c.bf16 %v4193, %v4193
    %v4195 = vpack.c.bf16 %v4128, %v4128
    %v4197 = vsel %vm323, %v4194, 0
    %v4200 = vsel %vm394, %v4195, 0
    %4202 = vmatprep.subr.bf16.mxu0 0
    %4203 = vmatpush1.bf16.msra.mxu0 %v4200
    %4204 = vmatprep.subr.bf16.mxu0 0
    %4205 = vmatpush1.bf16.msra.mxu0 0
    %4206 = vmatprep.subr.bf16.mxu0 0
    %4207 = vmatpush1.bf16.msra.mxu0 0
    %4208 = vmatprep.subr.bf16.mxu0 0
    %4209 = vmatpush1.bf16.msra.mxu0 0
    %4210 = vmatprep.subr.bf16.mxu0 0
    %4211 = vmatpush1.bf16.msra.mxu0 0
    %4212 = vmatprep.subr.bf16.mxu0 0
    %4213 = vmatpush1.bf16.msra.mxu0 0
    %4214 = vmatprep.subr.bf16.mxu0 0
    %4215 = vmatpush1.bf16.msra.mxu0 0
    %4216 = vmatprep.subr.bf16.mxu0 0
    %4217 = vmatpush1.bf16.msra.mxu0 0
    %4218 = vmatprep.subr.bf16.mxu0 0
    %4219 = vmatpush1.bf16.msra.mxu0 0
    %4220 = vmatprep.subr.bf16.mxu0 0
    %4221 = vmatpush1.bf16.msra.mxu0 0
    %4222 = vmatprep.subr.bf16.mxu0 0
    %4223 = vmatpush1.bf16.msra.mxu0 0
    %4224 = vmatprep.subr.bf16.mxu0 0
    %4225 = vmatpush1.bf16.msra.mxu0 0
    %4226 = vmatprep.subr.bf16.mxu0 0
    %4227 = vmatpush1.bf16.msra.mxu0 0
    %4228 = vmatprep.subr.bf16.mxu0 0
    %4229 = vmatpush1.bf16.msra.mxu0 0
    %4230 = vmatprep.subr.bf16.mxu0 0
    %4231 = vmatpush1.bf16.msra.mxu0 0
    %4232 = vmatprep.subr.bf16.mxu0 0
    %4233 = vmatpush1.bf16.msra.mxu0 0
    %4234 = vmatprep.mubr.bf16.mxu0 0
    %4235 = vmatmul.mubr.bf16.gmra.mrb[0].mxu0 %v4197
    %v4236 = vpop.f32.mrb[0].mxu0
    %v4237 = vadd.f32 0.0, %v4236
    %v4238 = vpop.f32.mrb[0].mxu0
    %v4239 = vpop.f32.mrb[0].mxu0
    %v4240 = vpop.f32.mrb[0].mxu0
    %4241 = vdwg.mxu0
    %v4242 = vpack.c.bf16 %v4237, %v4237
    %s4243 = scalar_lea.vmem %s10, 24
    %v4244 = vld [vmem:[%s4243] sm:$0xf]
    %v4246 = vsel %vm323, %v4242, 0
    %v4249 = vsel %vm394, %v4244, 0
    %4251 = vmatprep.subr.bf16.mxu0 0
    %4252 = vmatpush1.bf16.msra.mxu0 %v4249
    %4253 = vmatprep.subr.bf16.mxu0 0
    %4254 = vmatpush1.bf16.msra.mxu0 0
    %4255 = vmatprep.subr.bf16.mxu0 0
    %4256 = vmatpush1.bf16.msra.mxu0 0
    %4257 = vmatprep.subr.bf16.mxu0 0
    %4258 = vmatpush1.bf16.msra.mxu0 0
    %4259 = vmatprep.subr.bf16.mxu0 0
    %4260 = vmatpush1.bf16.msra.mxu0 0
    %4261 = vmatprep.subr.bf16.mxu0 0
    %4262 = vmatpush1.bf16.msra.mxu0 0
    %4263 = vmatprep.subr.bf16.mxu0 0
    %4264 = vmatpush1.bf16.msra.mxu0 0
    %4265 = vmatprep.subr.bf16.mxu0 0
    %4266 = vmatpush1.bf16.msra.mxu0 0
    %4267 = vmatprep.subr.bf16.mxu0 0
    %4268 = vmatpush1.bf16.msra.mxu0 0
    %4269 = vmatprep.subr.bf16.mxu0 0
    %4270 = vmatpush1.bf16.msra.mxu0 0
    %4271 = vmatprep.subr.bf16.mxu0 0
    %4272 = vmatpush1.bf16.msra.mxu0 0
    %4273 = vmatprep.subr.bf16.mxu0 0
    %4274 = vmatpush1.bf16.msra.mxu0 0
    %4275 = vmatprep.subr.bf16.mxu0 0
    %4276 = vmatpush1.bf16.msra.mxu0 0
    %4277 = vmatprep.subr.bf16.mxu0 0
    %4278 = vmatpush1.bf16.msra.mxu0 0
    %4279 = vmatprep.subr.bf16.mxu0 0
    %4280 = vmatpush1.bf16.msra.mxu0 0
    %4281 = vmatprep.subr.bf16.mxu0 0
    %4282 = vmatpush1.bf16.msra.mxu0 0
    %4283 = vmatprep.mubr.bf16.mxu0 0
    %4284 = vmatmul.mubr.bf16.gmra.mrb[0].mxu0 %v4246
    %v4285 = vpop.f32.mrb[0].mxu0
    %v4286 = vadd.f32 0.0, %v4285
    %v4287 = vpop.f32.mrb[0].mxu0
    %v4288 = vpop.f32.mrb[0].mxu0
    %v4289 = vpop.f32.mrb[0].mxu0
    %4290 = vdwg.mxu0
    %v4291 = vadd.f32 %v3933, %v4286
    %s4292 = scalar_lea.vmem %s4, 112
    %v4293 = vld [vmem:[%s4292] sm:$0xf]
    %v4294 = vld [vmem:[%s4292 + $0x4] sm:$0xf]
    %v4295 = vld [vmem:[%s4292 + $0x8] sm:$0xf]
    %v4296 = vld [vmem:[%s4292 + $0xc] sm:$0xf]
    %s4297 = scalar_lea.vmem %s5, 7
    %v4298 = vld [vmem:[%s4297] sm:$0x1]
    %v4300 = vlaneseq
    %v4301 = vshrl.u32 %v4300, 7
    %v4302 = vsub.s32 0, %v4301
    %v4303 = vrot.slane %v4298, %v4302
    %v4309 = vunpack.c.l.b16 %v4293
    %v4310 = vunpack.c.l.b16 %v4294
    %v4311 = vunpack.c.l.b16 %v4295
    %v4312 = vunpack.c.l.b16 %v4296
    %v4313 = vpack.c.b16 %v4310, %v4309
    %v4314 = vpack.c.b16 %v4312, %v4311
    %4317 = vmatprep.subr.bf16.mxu0 0
    %4318 = vmatpush1.bf16.msra.mxu0 %v4313
    %4319 = vmatprep.subr.bf16.mxu0 0
    %4320 = vmatpush1.bf16.msra.mxu0 %v4314
    %4321 = vmatprep.subr.bf16.mxu0 0
    %4322 = vmatpush1.bf16.msra.mxu0 0
    %4323 = vmatprep.subr.bf16.mxu0 0
    %4324 = vmatpush1.bf16.msra.mxu0 0
    %4325 = vmatprep.subr.bf16.mxu0 0
    %4326 = vmatpush1.bf16.msra.mxu0 0
    %4327 = vmatprep.subr.bf16.mxu0 0
    %4328 = vmatpush1.bf16.msra.mxu0 0
    %4329 = vmatprep.subr.bf16.mxu0 0
    %4330 = vmatpush1.bf16.msra.mxu0 0
    %4331 = vmatprep.subr.bf16.mxu0 0
    %4332 = vmatpush1.bf16.msra.mxu0 0
    %4333 = vmatprep.subr.bf16.mxu0 0
    %4334 = vmatpush1.bf16.msra.mxu0 0
    %4335 = vmatprep.subr.bf16.mxu0 0
    %4336 = vmatpush1.bf16.msra.mxu0 0
    %4337 = vmatprep.subr.bf16.mxu0 0
    %4338 = vmatpush1.bf16.msra.mxu0 0
    %4339 = vmatprep.subr.bf16.mxu0 0
    %4340 = vmatpush1.bf16.msra.mxu0 0
    %4341 = vmatprep.subr.bf16.mxu0 0
    %4342 = vmatpush1.bf16.msra.mxu0 0
    %4343 = vmatprep.subr.bf16.mxu0 0
    %4344 = vmatpush1.bf16.msra.mxu0 0
    %4345 = vmatprep.subr.bf16.mxu0 0
    %4346 = vmatpush1.bf16.msra.mxu0 0
    %4347 = vmatprep.subr.bf16.mxu0 0
    %4348 = vmatpush1.bf16.msra.mxu0 0
    %4349 = vmatprep.mubr.bf16.mxu0 0
    %4350 = vmatmul.mubr.bf16.gmra.mrb[0].mxu0 %v3249
    %v4351 = vpop.f32.mrb[0].mxu0
    %v4352 = vadd.f32 %v4303, %v4351
    %v4353 = vpop.f32.mrb[0].mxu0
    %v4354 = vpop.f32.mrb[0].mxu0
    %v4355 = vpop.f32.mrb[0].mxu0
    %4356 = vdwg.mxu0
    %s4357 = scalar_lea.vmem %s6, 112
    %v4358 = vld [vmem:[%s4357] sm:$0xf]
    %v4359 = vld [vmem:[%s4357 + $0x4] sm:$0xf]
    %v4360 = vld [vmem:[%s4357 + $0x8] sm:$0xf]
    %v4361 = vld [vmem:[%s4357 + $0xc] sm:$0xf]
    %s4362 = scalar_lea.vmem %s7, 7
    %v4363 = vld [vmem:[%s4362] sm:$0x1]
    %v4365 = vlaneseq
    %v4366 = vshrl.u32 %v4365, 7
    %v4367 = vsub.s32 0, %v4366
    %v4368 = vrot.slane %v4363, %v4367
    %v4374 = vunpack.c.l.b16 %v4358
    %v4375 = vunpack.c.l.b16 %v4359
    %v4376 = vunpack.c.l.b16 %v4360
    %v4377 = vunpack.c.l.b16 %v4361
    %v4378 = vpack.c.b16 %v4375, %v4374
    %v4379 = vpack.c.b16 %v4377, %v4376
    %4382 = vmatprep.subr.bf16.mxu0 0
    %4383 = vmatpush1.bf16.msra.mxu0 %v4378
    %4384 = vmatprep.subr.bf16.mxu0 0
    %4385 = vmatpush1.bf16.msra.mxu0 %v4379
    %4386 = vmatprep.subr.bf16.mxu0 0
    %4387 = vmatpush1.bf16.msra.mxu0 0
    %4388 = vmatprep.subr.bf16.mxu0 0
    %4389 = vmatpush1.bf16.msra.mxu0 0
    %4390 = vmatprep.subr.bf16.mxu0 0
    %4391 = vmatpush1.bf16.msra.mxu0 0
    %4392 = vmatprep.subr.bf16.mxu0 0
    %4393 = vmatpush1.bf16.msra.mxu0 0
    %4394 = vmatprep.subr.bf16.mxu0 0
    %4395 = vmatpush1.bf16.msra.mxu0 0
    %4396 = vmatprep.subr.bf16.mxu0 0
    %4397 = vmatpush1.bf16.msra.mxu0 0
    %4398 = vmatprep.subr.bf16.mxu0 0
    %4399 = vmatpush1.bf16.msra.mxu0 0
    %4400 = vmatprep.subr.bf16.mxu0 0
    %4401 = vmatpush1.bf16.msra.mxu0 0
    %4402 = vmatprep.subr.bf16.mxu0 0
    %4403 = vmatpush1.bf16.msra.mxu0 0
    %4404 = vmatprep.subr.bf16.mxu0 0
    %4405 = vmatpush1.bf16.msra.mxu0 0
    %4406 = vmatprep.subr.bf16.mxu0 0
    %4407 = vmatpush1.bf16.msra.mxu0 0
    %4408 = vmatprep.subr.bf16.mxu0 0
    %4409 = vmatpush1.bf16.msra.mxu0 0
    %4410 = vmatprep.subr.bf16.mxu0 0
    %4411 = vmatpush1.bf16.msra.mxu0 0
    %4412 = vmatprep.subr.bf16.mxu0 0
    %4413 = vmatpush1.bf16.msra.mxu0 0
    %4414 = vmatprep.mubr.bf16.mxu0 0
    %4415 = vmatmul.mubr.bf16.gmra.mrb[0].mxu0 %v3249
    %v4416 = vpop.f32.mrb[0].mxu0
    %v4417 = vadd.f32 %v4368, %v4416
    %v4418 = vpop.f32.mrb[0].mxu0
    %v4419 = vpop.f32.mrb[0].mxu0
    %v4420 = vpop.f32.mrb[0].mxu0
    %4421 = vdwg.mxu0
    %s4422 = scalar_lea.vmem %s8, 112
    %v4423 = vld [vmem:[%s4422] sm:$0xf]
    %v4424 = vld [vmem:[%s4422 + $0x4] sm:$0xf]
    %v4425 = vld [vmem:[%s4422 + $0x8] sm:$0xf]
    %v4426 = vld [vmem:[%s4422 + $0xc] sm:$0xf]
    %s4427 = scalar_lea.vmem %s9, 7
    %v4428 = vld [vmem:[%s4427] sm:$0x1]
    %v4430 = vlaneseq
    %v4431 = vshrl.u32 %v4430, 7
    %v4432 = vsub.s32 0, %v4431
    %v4433 = vrot.slane %v4428, %v4432
    %v4439 = vunpack.c.l.b16 %v4423
    %v4440 = vunpack.c.l.b16 %v4424
    %v4441 = vunpack.c.l.b16 %v4425
    %v4442 = vunpack.c.l.b16 %v4426
    %v4443 = vpack.c.b16 %v4440, %v4439
    %v4444 = vpack.c.b16 %v4442, %v4441
    %4447 = vmatprep.subr.bf16.mxu0 0
    %4448 = vmatpush1.bf16.msra.mxu0 %v4443
    %4449 = vmatprep.subr.bf16.mxu0 0
    %4450 = vmatpush1.bf16.msra.mxu0 %v4444
    %4451 = vmatprep.subr.bf16.mxu0 0
    %4452 = vmatpush1.bf16.msra.mxu0 0
    %4453 = vmatprep.subr.bf16.mxu0 0
    %4454 = vmatpush1.bf16.msra.mxu0 0
    %4455 = vmatprep.subr.bf16.mxu0 0
    %4456 = vmatpush1.bf16.msra.mxu0 0
    %4457 = vmatprep.subr.bf16.mxu0 0
    %4458 = vmatpush1.bf16.msra.mxu0 0
    %4459 = vmatprep.subr.bf16.mxu0 0
    %4460 = vmatpush1.bf16.msra.mxu0 0
    %4461 = vmatprep.subr.bf16.mxu0 0
    %4462 = vmatpush1.bf16.msra.mxu0 0
    %4463 = vmatprep.subr.bf16.mxu0 0
    %4464 = vmatpush1.bf16.msra.mxu0 0
    %4465 = vmatprep.subr.bf16.mxu0 0
    %4466 = vmatpush1.bf16.msra.mxu0 0
    %4467 = vmatprep.subr.bf16.mxu0 0
    %4468 = vmatpush1.bf16.msra.mxu0 0
    %4469 = vmatprep.subr.bf16.mxu0 0
    %4470 = vmatpush1.bf16.msra.mxu0 0
    %4471 = vmatprep.subr.bf16.mxu0 0
    %4472 = vmatpush1.bf16.msra.mxu0 0
    %4473 = vmatprep.subr.bf16.mxu0 0
    %4474 = vmatpush1.bf16.msra.mxu0 0
    %4475 = vmatprep.subr.bf16.mxu0 0
    %4476 = vmatpush1.bf16.msra.mxu0 0
    %4477 = vmatprep.subr.bf16.mxu0 0
    %4478 = vmatpush1.bf16.msra.mxu0 0
    %4479 = vmatprep.mubr.bf16.mxu0 0
    %4480 = vmatmul.mubr.bf16.gmra.mrb[0].mxu0 %v3249
    %v4481 = vpop.f32.mrb[0].mxu0
    %v4482 = vadd.f32 %v4433, %v4481
    %v4483 = vpop.f32.mrb[0].mxu0
    %v4484 = vpop.f32.mrb[0].mxu0
    %v4485 = vpop.f32.mrb[0].mxu0
    %4486 = vdwg.mxu0
    %v4487 = vpack.c.bf16 %v4352, %v4352
    %v4488 = vpack.c.bf16 %v4417, %v4417
    %v4490 = vsel %vm323, %v4487, 0
    %v4493 = vsel %vm323, %v4488, 0
    %4495 = vmatprep.subr.bf16.mxu0 0
    %4496 = vmatpush1.bf16.xpose.msra.mxu0 %v4493
    %4497 = vmatprep.subr.bf16.mxu0 0
    %4498 = vmatpush1.bf16.xpose.msra.mxu0 0
    %4499 = vmatprep.subr.bf16.mxu0 0
    %4500 = vmatpush1.bf16.xpose.msra.mxu0 0
    %4501 = vmatprep.subr.bf16.mxu0 0
    %4502 = vmatpush1.bf16.xpose.msra.mxu0 0
    %4503 = vmatprep.subr.bf16.mxu0 0
    %4504 = vmatpush1.bf16.xpose.msra.mxu0 0
    %4505 = vmatprep.subr.bf16.mxu0 0
    %4506 = vmatpush1.bf16.xpose.msra.mxu0 0
    %4507 = vmatprep.subr.bf16.mxu0 0
    %4508 = vmatpush1.bf16.xpose.msra.mxu0 0
    %4509 = vmatprep.subr.bf16.mxu0 0
    %4510 = vmatpush1.bf16.xpose.msra.mxu0 0
    %4511 = vmatprep.subr.bf16.mxu0 0
    %4512 = vmatpush1.bf16.xpose.msra.mxu0 0
    %4513 = vmatprep.subr.bf16.mxu0 0
    %4514 = vmatpush1.bf16.xpose.msra.mxu0 0
    %4515 = vmatprep.subr.bf16.mxu0 0
    %4516 = vmatpush1.bf16.xpose.msra.mxu0 0
    %4517 = vmatprep.subr.bf16.mxu0 0
    %4518 = vmatpush1.bf16.xpose.msra.mxu0 0
    %4519 = vmatprep.subr.bf16.mxu0 0
    %4520 = vmatpush1.bf16.xpose.msra.mxu0 0
    %4521 = vmatprep.subr.bf16.mxu0 0
    %4522 = vmatpush1.bf16.xpose.msra.mxu0 0
    %4523 = vmatprep.subr.bf16.mxu0 0
    %4524 = vmatpush1.bf16.xpose.msra.mxu0 0
    %4525 = vmatprep.subr.bf16.mxu0 0
    %4526 = vmatpush1.bf16.xpose.msra.mxu0 0
    %4527 = vmatprep.mubr.bf16.mxu0 0
    %4528 = vmatmul.mubr.bf16.gmra.mrb[0].mxu0 %v4490
    %v4529 = vpop.f32.mrb[0].mxu0
    %v4530 = vadd.f32 0.0, %v4529
    %v4531 = vpop.f32.mrb[0].mxu0
    %v4532 = vpop.f32.mrb[0].mxu0
    %v4533 = vpop.f32.mrb[0].mxu0
    %4534 = vdwg.mxu0
    %v4535 = vmul.f32 %v4530, 0.35355338
    %v4536 = vadd.f32 %v4535, %v3474
    %v4537 = vsel %vm323, %v4536, -inf
    %4538 = vmax.xlane.f32.xlu0 %v4537
    %v4539 = vpop.xlane.xlu0 %4538
    %v4540 = vsub.f32 %v4536, %v4539
    %v4541 = vmul.f32 %v4540, 1.442695
    %v4542 = vpow.pop %v4541
    %v4543 = vsel %vm323, %v4542, 0.0
    %4544 = vadd.xlane.f32.xlu0 %v4543
    %v4545 = vpop.xlane.xlu0 %4544
    %v4546 = vrcp.pop %v4545
    %v4547 = vmul.f32 %v4542, %v4546
    %v4548 = vpack.c.bf16 %v4547, %v4547
    %v4549 = vpack.c.bf16 %v4482, %v4482
    %v4551 = vsel %vm323, %v4548, 0
    %v4554 = vsel %vm394, %v4549, 0
    %4556 = vmatprep.subr.bf16.mxu0 0
    %4557 = vmatpush1.bf16.msra.mxu0 %v4554
    %4558 = vmatprep.subr.bf16.mxu0 0
    %4559 = vmatpush1.bf16.msra.mxu0 0
    %4560 = vmatprep.subr.bf16.mxu0 0
    %4561 = vmatpush1.bf16.msra.mxu0 0
    %4562 = vmatprep.subr.bf16.mxu0 0
    %4563 = vmatpush1.bf16.msra.mxu0 0
    %4564 = vmatprep.subr.bf16.mxu0 0
    %4565 = vmatpush1.bf16.msra.mxu0 0
    %4566 = vmatprep.subr.bf16.mxu0 0
    %4567 = vmatpush1.bf16.msra.mxu0 0
    %4568 = vmatprep.subr.bf16.mxu0 0
    %4569 = vmatpush1.bf16.msra.mxu0 0
    %4570 = vmatprep.subr.bf16.mxu0 0
    %4571 = vmatpush1.bf16.msra.mxu0 0
    %4572 = vmatprep.subr.bf16.mxu0 0
    %4573 = vmatpush1.bf16.msra.mxu0 0
    %4574 = vmatprep.subr.bf16.mxu0 0
    %4575 = vmatpush1.bf16.msra.mxu0 0
    %4576 = vmatprep.subr.bf16.mxu0 0
    %4577 = vmatpush1.bf16.msra.mxu0 0
    %4578 = vmatprep.subr.bf16.mxu0 0
    %4579 = vmatpush1.bf16.msra.mxu0 0
    %4580 = vmatprep.subr.bf16.mxu0 0
    %4581 = vmatpush1.bf16.msra.mxu0 0
    %4582 = vmatprep.subr.bf16.mxu0 0
    %4583 = vmatpush1.bf16.msra.mxu0 0
    %4584 = vmatprep.subr.bf16.mxu0 0
    %4585 = vmatpush1.bf16.msra.mxu0 0
    %4586 = vmatprep.subr.bf16.mxu0 0
    %4587 = vmatpush1.bf16.msra.mxu0 0
    %4588 = vmatprep.mubr.bf16.mxu0 0
    %4589 = vmatmul.mubr.bf16.gmra.mrb[0].mxu0 %v4551
    %v4590 = vpop.f32.mrb[0].mxu0
    %v4591 = vadd.f32 0.0, %v4590
    %v4592 = vpop.f32.mrb[0].mxu0
    %v4593 = vpop.f32.mrb[0].mxu0
    %v4594 = vpop.f32.mrb[0].mxu0
    %4595 = vdwg.mxu0
    %v4596 = vpack.c.bf16 %v4591, %v4591
    %s4597 = scalar_lea.vmem %s10, 28
    %v4598 = vld [vmem:[%s4597] sm:$0xf]
    %v4600 = vsel %vm323, %v4596, 0
    %v4603 = vsel %vm394, %v4598, 0
    %4605 = vmatprep.subr.bf16.mxu0 0
    %4606 = vmatpush1.bf16.msra.mxu0 %v4603
    %4607 = vmatprep.subr.bf16.mxu0 0
    %4608 = vmatpush1.bf16.msra.mxu0 0
    %4609 = vmatprep.subr.bf16.mxu0 0
    %4610 = vmatpush1.bf16.msra.mxu0 0
    %4611 = vmatprep.subr.bf16.mxu0 0
    %4612 = vmatpush1.bf16.msra.mxu0 0
    %4613 = vmatprep.subr.bf16.mxu0 0
    %4614 = vmatpush1.bf16.msra.mxu0 0
    %4615 = vmatprep.subr.bf16.mxu0 0
    %4616 = vmatpush1.bf16.msra.mxu0 0
    %4617 = vmatprep.subr.bf16.mxu0 0
    %4618 = vmatpush1.bf16.msra.mxu0 0
    %4619 = vmatprep.subr.bf16.mxu0 0
    %4620 = vmatpush1.bf16.msra.mxu0 0
    %4621 = vmatprep.subr.bf16.mxu0 0
    %4622 = vmatpush1.bf16.msra.mxu0 0
    %4623 = vmatprep.subr.bf16.mxu0 0
    %4624 = vmatpush1.bf16.msra.mxu0 0
    %4625 = vmatprep.subr.bf16.mxu0 0
    %4626 = vmatpush1.bf16.msra.mxu0 0
    %4627 = vmatprep.subr.bf16.mxu0 0
    %4628 = vmatpush1.bf16.msra.mxu0 0
    %4629 = vmatprep.subr.bf16.mxu0 0
    %4630 = vmatpush1.bf16.msra.mxu0 0
    %4631 = vmatprep.subr.bf16.mxu0 0
    %4632 = vmatpush1.bf16.msra.mxu0 0
    %4633 = vmatprep.subr.bf16.mxu0 0
    %4634 = vmatpush1.bf16.msra.mxu0 0
    %4635 = vmatprep.subr.bf16.mxu0 0
    %4636 = vmatpush1.bf16.msra.mxu0 0
    %4637 = vmatprep.mubr.bf16.mxu0 0
    %4638 = vmatmul.mubr.bf16.gmra.mrb[0].mxu0 %v4600
    %v4639 = vpop.f32.mrb[0].mxu0
    %v4640 = vadd.f32 0.0, %v4639
    %v4641 = vpop.f32.mrb[0].mxu0
    %v4642 = vpop.f32.mrb[0].mxu0
    %v4643 = vpop.f32.mrb[0].mxu0
    %4644 = vdwg.mxu0
    %v4645 = vadd.f32 %v4291, %v4640
    %4646 = vst.msk [vmem:[#allocation2] sm:$0xff] %vm83, %v4645
    %v4647 = vpack.c.bf16 %v3220, %v3220
    %v4648 = vld [vmem:[%s1549] sm:$0x1]
    %v4649 = vld [vmem:[%s3223] sm:$0xf]
    %v4650 = vld [vmem:[%s3223 + $0x4] sm:$0xf]
    %v4651 = vld [vmem:[%s3223 + $0x8] sm:$0xf]
    %v4652 = vld [vmem:[%s3223 + $0xc] sm:$0xf]
    %v4653 = vld [vmem:[%s3228] sm:$0x1]
    %v4655 = vlaneseq
    %v4656 = vshrl.u32 %v4655, 7
    %v4657 = vsub.s32 0, %v4656
    %v4658 = vrot.slane %v4653, %v4657
    %v4664 = vunpack.c.l.b16 %v4649
    %v4665 = vunpack.c.l.b16 %v4650
    %v4666 = vunpack.c.l.b16 %v4651
    %v4667 = vunpack.c.l.b16 %v4652
    %v4668 = vpack.c.b16 %v4665, %v4664
    %v4669 = vpack.c.b16 %v4667, %v4666
    %v4673 = vsel %vm83, %v4647, 0
    %4675 = vmatprep.subr.bf16.mxu0 0
    %4676 = vmatpush1.bf16.msra.mxu0 %v4668
    %4677 = vmatprep.subr.bf16.mxu0 0
    %4678 = vmatpush1.bf16.msra.mxu0 %v4669
    %4679 = vmatprep.subr.bf16.mxu0 0
    %4680 = vmatpush1.bf16.msra.mxu0 0
    %4681 = vmatprep.subr.bf16.mxu0 0
    %4682 = vmatpush1.bf16.msra.mxu0 0
    %4683 = vmatprep.subr.bf16.mxu0 0
    %4684 = vmatpush1.bf16.msra.mxu0 0
    %4685 = vmatprep.subr.bf16.mxu0 0
    %4686 = vmatpush1.bf16.msra.mxu0 0
    %4687 = vmatprep.subr.bf16.mxu0 0
    %4688 = vmatpush1.bf16.msra.mxu0 0
    %4689 = vmatprep.subr.bf16.mxu0 0
    %4690 = vmatpush1.bf16.msra.mxu0 0
    %4691 = vmatprep.subr.bf16.mxu0 0
    %4692 = vmatpush1.bf16.msra.mxu0 0
    %4693 = vmatprep.subr.bf16.mxu0 0
    %4694 = vmatpush1.bf16.msra.mxu0 0
    %4695 = vmatprep.subr.bf16.mxu0 0
    %4696 = vmatpush1.bf16.msra.mxu0 0
    %4697 = vmatprep.subr.bf16.mxu0 0
    %4698 = vmatpush1.bf16.msra.mxu0 0
    %4699 = vmatprep.subr.bf16.mxu0 0
    %4700 = vmatpush1.bf16.msra.mxu0 0
    %4701 = vmatprep.subr.bf16.mxu0 0
    %4702 = vmatpush1.bf16.msra.mxu0 0
    %4703 = vmatprep.subr.bf16.mxu0 0
    %4704 = vmatpush1.bf16.msra.mxu0 0
    %4705 = vmatprep.subr.bf16.mxu0 0
    %4706 = vmatpush1.bf16.msra.mxu0 0
    %4707 = vmatprep.mubr.bf16.mxu0 0
    %4708 = vmatmul.mubr.bf16.gmra.mrb[0].mxu0 %v4673
    %v4709 = vpop.f32.mrb[0].mxu0
    %v4710 = vadd.f32 %v4658, %v4709
    %v4711 = vpop.f32.mrb[0].mxu0
    %v4712 = vpop.f32.mrb[0].mxu0
    %v4713 = vpop.f32.mrb[0].mxu0
    %4714 = vdwg.mxu0
    %v4715 = vld [vmem:[%s3291] sm:$0xf]
    %v4716 = vld [vmem:[%s3291 + $0x4] sm:$0xf]
    %v4717 = vld [vmem:[%s3291 + $0x8] sm:$0xf]
    %v4718 = vld [vmem:[%s3291 + $0xc] sm:$0xf]
    %v4719 = vld [vmem:[%s3296] sm:$0x1]
    %v4721 = vlaneseq
    %v4722 = vshrl.u32 %v4721, 7
    %v4723 = vsub.s32 0, %v4722
    %v4724 = vrot.slane %v4719, %v4723
    %v4730 = vunpack.c.l.b16 %v4715
    %v4731 = vunpack.c.l.b16 %v4716
    %v4732 = vunpack.c.l.b16 %v4717
    %v4733 = vunpack.c.l.b16 %v4718
    %v4734 = vpack.c.b16 %v4731, %v4730
    %v4735 = vpack.c.b16 %v4733, %v4732
    %4738 = vmatprep.subr.bf16.mxu0 0
    %4739 = vmatpush1.bf16.msra.mxu0 %v4734
    %4740 = vmatprep.subr.bf16.mxu0 0
    %4741 = vmatpush1.bf16.msra.mxu0 %v4735
    %4742 = vmatprep.subr.bf16.mxu0 0
    %4743 = vmatpush1.bf16.msra.mxu0 0
    %4744 = vmatprep.subr.bf16.mxu0 0
    %4745 = vmatpush1.bf16.msra.mxu0 0
    %4746 = vmatprep.subr.bf16.mxu0 0
    %4747 = vmatpush1.bf16.msra.mxu0 0
    %4748 = vmatprep.subr.bf16.mxu0 0
    %4749 = vmatpush1.bf16.msra.mxu0 0
    %4750 = vmatprep.subr.bf16.mxu0 0
    %4751 = vmatpush1.bf16.msra.mxu0 0
    %4752 = vmatprep.subr.bf16.mxu0 0
    %4753 = vmatpush1.bf16.msra.mxu0 0
    %4754 = vmatprep.subr.bf16.mxu0 0
    %4755 = vmatpush1.bf16.msra.mxu0 0
    %4756 = vmatprep.subr.bf16.mxu0 0
    %4757 = vmatpush1.bf16.msra.mxu0 0
    %4758 = vmatprep.subr.bf16.mxu0 0
    %4759 = vmatpush1.bf16.msra.mxu0 0
    %4760 = vmatprep.subr.bf16.mxu0 0
    %4761 = vmatpush1.bf16.msra.mxu0 0
    %4762 = vmatprep.subr.bf16.mxu0 0
    %4763 = vmatpush1.bf16.msra.mxu0 0
    %4764 = vmatprep.subr.bf16.mxu0 0
    %4765 = vmatpush1.bf16.msra.mxu0 0
    %4766 = vmatprep.subr.bf16.mxu0 0
    %4767 = vmatpush1.bf16.msra.mxu0 0
    %4768 = vmatprep.subr.bf16.mxu0 0
    %4769 = vmatpush1.bf16.msra.mxu0 0
    %4770 = vmatprep.mubr.bf16.mxu0 0
    %4771 = vmatmul.mubr.bf16.gmra.mrb[0].mxu0 %v4673
    %v4772 = vpop.f32.mrb[0].mxu0
    %v4773 = vadd.f32 %v4724, %v4772
    %v4774 = vpop.f32.mrb[0].mxu0
    %v4775 = vpop.f32.mrb[0].mxu0
    %v4776 = vpop.f32.mrb[0].mxu0
    %4777 = vdwg.mxu0
    %v4778 = vld [vmem:[%s3356] sm:$0xf]
    %v4779 = vld [vmem:[%s3356 + $0x4] sm:$0xf]
    %v4780 = vld [vmem:[%s3356 + $0x8] sm:$0xf]
    %v4781 = vld [vmem:[%s3356 + $0xc] sm:$0xf]
    %v4782 = vld [vmem:[%s3361] sm:$0x1]
    %v4784 = vlaneseq
    %v4785 = vshrl.u32 %v4784, 7
    %v4786 = vsub.s32 0, %v4785
    %v4787 = vrot.slane %v4782, %v4786
    %v4793 = vunpack.c.l.b16 %v4778
    %v4794 = vunpack.c.l.b16 %v4779
    %v4795 = vunpack.c.l.b16 %v4780
    %v4796 = vunpack.c.l.b16 %v4781
    %v4797 = vpack.c.b16 %v4794, %v4793
    %v4798 = vpack.c.b16 %v4796, %v4795
    %4801 = vmatprep.subr.bf16.mxu0 0
    %4802 = vmatpush1.bf16.msra.mxu0 %v4797
    %4803 = vmatprep.subr.bf16.mxu0 0
    %4804 = vmatpush1.bf16.msra.mxu0 %v4798
    %4805 = vmatprep.subr.bf16.mxu0 0
    %4806 = vmatpush1.bf16.msra.mxu0 0
    %4807 = vmatprep.subr.bf16.mxu0 0
    %4808 = vmatpush1.bf16.msra.mxu0 0
    %4809 = vmatprep.subr.bf16.mxu0 0
    %4810 = vmatpush1.bf16.msra.mxu0 0
    %4811 = vmatprep.subr.bf16.mxu0 0
    %4812 = vmatpush1.bf16.msra.mxu0 0
    %4813 = vmatprep.subr.bf16.mxu0 0
    %4814 = vmatpush1.bf16.msra.mxu0 0
    %4815 = vmatprep.subr.bf16.mxu0 0
    %4816 = vmatpush1.bf16.msra.mxu0 0
    %4817 = vmatprep.subr.bf16.mxu0 0
    %4818 = vmatpush1.bf16.msra.mxu0 0
    %4819 = vmatprep.subr.bf16.mxu0 0
    %4820 = vmatpush1.bf16.msra.mxu0 0
    %4821 = vmatprep.subr.bf16.mxu0 0
    %4822 = vmatpush1.bf16.msra.mxu0 0
    %4823 = vmatprep.subr.bf16.mxu0 0
    %4824 = vmatpush1.bf16.msra.mxu0 0
    %4825 = vmatprep.subr.bf16.mxu0 0
    %4826 = vmatpush1.bf16.msra.mxu0 0
    %4827 = vmatprep.subr.bf16.mxu0 0
    %4828 = vmatpush1.bf16.msra.mxu0 0
    %4829 = vmatprep.subr.bf16.mxu0 0
    %4830 = vmatpush1.bf16.msra.mxu0 0
    %4831 = vmatprep.subr.bf16.mxu0 0
    %4832 = vmatpush1.bf16.msra.mxu0 0
    %4833 = vmatprep.mubr.bf16.mxu0 0
    %4834 = vmatmul.mubr.bf16.gmra.mrb[0].mxu0 %v4673
    %v4835 = vpop.f32.mrb[0].mxu0
    %v4836 = vadd.f32 %v4787, %v4835
    %v4837 = vpop.f32.mrb[0].mxu0
    %v4838 = vpop.f32.mrb[0].mxu0
    %v4839 = vpop.f32.mrb[0].mxu0
    %4840 = vdwg.mxu0
    %v4841 = vpack.c.bf16 %v4710, %v4710
    %v4842 = vpack.c.bf16 %v4773, %v4773
    %v4844 = vsel %vm323, %v4841, 0
    %v4847 = vsel %vm323, %v4842, 0
    %4849 = vmatprep.subr.bf16.mxu0 0
    %4850 = vmatpush1.bf16.xpose.msra.mxu0 %v4847
    %4851 = vmatprep.subr.bf16.mxu0 0
    %4852 = vmatpush1.bf16.xpose.msra.mxu0 0
    %4853 = vmatprep.subr.bf16.mxu0 0
    %4854 = vmatpush1.bf16.xpose.msra.mxu0 0
    %4855 = vmatprep.subr.bf16.mxu0 0
    %4856 = vmatpush1.bf16.xpose.msra.mxu0 0
    %4857 = vmatprep.subr.bf16.mxu0 0
    %4858 = vmatpush1.bf16.xpose.msra.mxu0 0
    %4859 = vmatprep.subr.bf16.mxu0 0
    %4860 = vmatpush1.bf16.xpose.msra.mxu0 0
    %4861 = vmatprep.subr.bf16.mxu0 0
    %4862 = vmatpush1.bf16.xpose.msra.mxu0 0
    %4863 = vmatprep.subr.bf16.mxu0 0
    %4864 = vmatpush1.bf16.xpose.msra.mxu0 0
    %4865 = vmatprep.subr.bf16.mxu0 0
    %4866 = vmatpush1.bf16.xpose.msra.mxu0 0
    %4867 = vmatprep.subr.bf16.mxu0 0
    %4868 = vmatpush1.bf16.xpose.msra.mxu0 0
    %4869 = vmatprep.subr.bf16.mxu0 0
    %4870 = vmatpush1.bf16.xpose.msra.mxu0 0
    %4871 = vmatprep.subr.bf16.mxu0 0
    %4872 = vmatpush1.bf16.xpose.msra.mxu0 0
    %4873 = vmatprep.subr.bf16.mxu0 0
    %4874 = vmatpush1.bf16.xpose.msra.mxu0 0
    %4875 = vmatprep.subr.bf16.mxu0 0
    %4876 = vmatpush1.bf16.xpose.msra.mxu0 0
    %4877 = vmatprep.subr.bf16.mxu0 0
    %4878 = vmatpush1.bf16.xpose.msra.mxu0 0
    %4879 = vmatprep.subr.bf16.mxu0 0
    %4880 = vmatpush1.bf16.xpose.msra.mxu0 0
    %4881 = vmatprep.mubr.bf16.mxu0 0
    %4882 = vmatmul.mubr.bf16.gmra.mrb[0].mxu0 %v4844
    %v4883 = vpop.f32.mrb[0].mxu0
    %v4884 = vadd.f32 0.0, %v4883
    %v4885 = vpop.f32.mrb[0].mxu0
    %v4886 = vpop.f32.mrb[0].mxu0
    %v4887 = vpop.f32.mrb[0].mxu0
    %4888 = vdwg.mxu0
    %v4889 = vmul.f32 %v4884, 0.35355338
    %v4891 = vlaneseq
    %v4892 = vshrl.u32 %v4891, 7
    %v4893 = vsub.s32 0, %v4892
    %v4894 = vrot.slane %v4648, %v4893
    %v4896 = vadd.f32 %v4889, %v4894
    %v4897 = vsel %vm323, %v4896, -inf
    %4898 = vmax.xlane.f32.xlu0 %v4897
    %v4899 = vpop.xlane.xlu0 %4898
    %v4900 = vsub.f32 %v4896, %v4899
    %v4901 = vmul.f32 %v4900, 1.442695
    %v4902 = vpow.pop %v4901
    %v4903 = vsel %vm323, %v4902, 0.0
    %4904 = vadd.xlane.f32.xlu0 %v4903
    %v4905 = vpop.xlane.xlu0 %4904
    %v4906 = vrcp.pop %v4905
    %v4907 = vmul.f32 %v4902, %v4906
    %v4908 = vpack.c.bf16 %v4907, %v4907
    %v4909 = vpack.c.bf16 %v4836, %v4836
    %v4911 = vsel %vm323, %v4908, 0
    %v4914 = vsel %vm394, %v4909, 0
    %4916 = vmatprep.subr.bf16.mxu0 0
    %4917 = vmatpush1.bf16.msra.mxu0 %v4914
    %4918 = vmatprep.subr.bf16.mxu0 0
    %4919 = vmatpush1.bf16.msra.mxu0 0
    %4920 = vmatprep.subr.bf16.mxu0 0
    %4921 = vmatpush1.bf16.msra.mxu0 0
    %4922 = vmatprep.subr.bf16.mxu0 0
    %4923 = vmatpush1.bf16.msra.mxu0 0
    %4924 = vmatprep.subr.bf16.mxu0 0
    %4925 = vmatpush1.bf16.msra.mxu0 0
    %4926 = vmatprep.subr.bf16.mxu0 0
    %4927 = vmatpush1.bf16.msra.mxu0 0
    %4928 = vmatprep.subr.bf16.mxu0 0
    %4929 = vmatpush1.bf16.msra.mxu0 0
    %4930 = vmatprep.subr.bf16.mxu0 0
    %4931 = vmatpush1.bf16.msra.mxu0 0
    %4932 = vmatprep.subr.bf16.mxu0 0
    %4933 = vmatpush1.bf16.msra.mxu0 0
    %4934 = vmatprep.subr.bf16.mxu0 0
    %4935 = vmatpush1.bf16.msra.mxu0 0
    %4936 = vmatprep.subr.bf16.mxu0 0
    %4937 = vmatpush1.bf16.msra.mxu0 0
    %4938 = vmatprep.subr.bf16.mxu0 0
    %4939 = vmatpush1.bf16.msra.mxu0 0
    %4940 = vmatprep.subr.bf16.mxu0 0
    %4941 = vmatpush1.bf16.msra.mxu0 0
    %4942 = vmatprep.subr.bf16.mxu0 0
    %4943 = vmatpush1.bf16.msra.mxu0 0
    %4944 = vmatprep.subr.bf16.mxu0 0
    %4945 = vmatpush1.bf16.msra.mxu0 0
    %4946 = vmatprep.subr.bf16.mxu0 0
    %4947 = vmatpush1.bf16.msra.mxu0 0
    %4948 = vmatprep.mubr.bf16.mxu0 0
    %4949 = vmatmul.mubr.bf16.gmra.mrb[0].mxu0 %v4911
    %v4950 = vpop.f32.mrb[0].mxu0
    %v4951 = vadd.f32 0.0, %v4950
    %v4952 = vpop.f32.mrb[0].mxu0
    %v4953 = vpop.f32.mrb[0].mxu0
    %v4954 = vpop.f32.mrb[0].mxu0
    %4955 = vdwg.mxu0
    %v4956 = vpack.c.bf16 %v4951, %v4951
    %v4957 = vld [vmem:[%s3537] sm:$0xf]
    %v4958 = vld [vmem:[%s3539] sm:$0xf]
    %v4959 = vld [vmem:[%s3539 + $0x4] sm:$0xf]
    %v4960 = vld [vmem:[%s3539 + $0x8] sm:$0xf]
    %v4961 = vld [vmem:[%s3539 + $0xc] sm:$0xf]
    %v4962 = vld [vmem:[%s3544] sm:$0x1]
    %v4964 = vlaneseq
    %v4965 = vshrl.u32 %v4964, 7
    %v4966 = vsub.s32 0, %v4965
    %v4967 = vrot.slane %v4962, %v4966
    %v4973 = vunpack.c.l.b16 %v4958
    %v4974 = vunpack.c.l.b16 %v4959
    %v4975 = vunpack.c.l.b16 %v4960
    %v4976 = vunpack.c.l.b16 %v4961
    %v4977 = vpack.c.b16 %v4974, %v4973
    %v4978 = vpack.c.b16 %v4976, %v4975
    %4981 = vmatprep.subr.bf16.mxu0 0
    %4982 = vmatpush1.bf16.msra.mxu0 %v4977
    %4983 = vmatprep.subr.bf16.mxu0 0
    %4984 = vmatpush1.bf16.msra.mxu0 %v4978
    %4985 = vmatprep.subr.bf16.mxu0 0
    %4986 = vmatpush1.bf16.msra.mxu0 0
    %4987 = vmatprep.subr.bf16.mxu0 0
    %4988 = vmatpush1.bf16.msra.mxu0 0
    %4989 = vmatprep.subr.bf16.mxu0 0
    %4990 = vmatpush1.bf16.msra.mxu0 0
    %4991 = vmatprep.subr.bf16.mxu0 0
    %4992 = vmatpush1.bf16.msra.mxu0 0
    %4993 = vmatprep.subr.bf16.mxu0 0
    %4994 = vmatpush1.bf16.msra.mxu0 0
    %4995 = vmatprep.subr.bf16.mxu0 0
    %4996 = vmatpush1.bf16.msra.mxu0 0
    %4997 = vmatprep.subr.bf16.mxu0 0
    %4998 = vmatpush1.bf16.msra.mxu0 0
    %4999 = vmatprep.subr.bf16.mxu0 0
    %5000 = vmatpush1.bf16.msra.mxu0 0
    %5001 = vmatprep.subr.bf16.mxu0 0
    %5002 = vmatpush1.bf16.msra.mxu0 0
    %5003 = vmatprep.subr.bf16.mxu0 0
    %5004 = vmatpush1.bf16.msra.mxu0 0
    %5005 = vmatprep.subr.bf16.mxu0 0
    %5006 = vmatpush1.bf16.msra.mxu0 0
    %5007 = vmatprep.subr.bf16.mxu0 0
    %5008 = vmatpush1.bf16.msra.mxu0 0
    %5009 = vmatprep.subr.bf16.mxu0 0
    %5010 = vmatpush1.bf16.msra.mxu0 0
    %5011 = vmatprep.subr.bf16.mxu0 0
    %5012 = vmatpush1.bf16.msra.mxu0 0
    %5013 = vmatprep.mubr.bf16.mxu0 0
    %5014 = vmatmul.mubr.bf16.gmra.mrb[0].mxu0 %v4673
    %v5015 = vpop.f32.mrb[0].mxu0
    %v5016 = vadd.f32 %v4967, %v5015
    %v5017 = vpop.f32.mrb[0].mxu0
    %v5018 = vpop.f32.mrb[0].mxu0
    %v5019 = vpop.f32.mrb[0].mxu0
    %5020 = vdwg.mxu0
    %v5021 = vld [vmem:[%s3604] sm:$0xf]
    %v5022 = vld [vmem:[%s3604 + $0x4] sm:$0xf]
    %v5023 = vld [vmem:[%s3604 + $0x8] sm:$0xf]
    %v5024 = vld [vmem:[%s3604 + $0xc] sm:$0xf]
    %v5025 = vld [vmem:[%s3609] sm:$0x1]
    %v5027 = vlaneseq
    %v5028 = vshrl.u32 %v5027, 7
    %v5029 = vsub.s32 0, %v5028
    %v5030 = vrot.slane %v5025, %v5029
    %v5036 = vunpack.c.l.b16 %v5021
    %v5037 = vunpack.c.l.b16 %v5022
    %v5038 = vunpack.c.l.b16 %v5023
    %v5039 = vunpack.c.l.b16 %v5024
    %v5040 = vpack.c.b16 %v5037, %v5036
    %v5041 = vpack.c.b16 %v5039, %v5038
    %5044 = vmatprep.subr.bf16.mxu0 0
    %5045 = vmatpush1.bf16.msra.mxu0 %v5040
    %5046 = vmatprep.subr.bf16.mxu0 0
    %5047 = vmatpush1.bf16.msra.mxu0 %v5041
    %5048 = vmatprep.subr.bf16.mxu0 0
    %5049 = vmatpush1.bf16.msra.mxu0 0
    %5050 = vmatprep.subr.bf16.mxu0 0
    %5051 = vmatpush1.bf16.msra.mxu0 0
    %5052 = vmatprep.subr.bf16.mxu0 0
    %5053 = vmatpush1.bf16.msra.mxu0 0
    %5054 = vmatprep.subr.bf16.mxu0 0
    %5055 = vmatpush1.bf16.msra.mxu0 0
    %5056 = vmatprep.subr.bf16.mxu0 0
    %5057 = vmatpush1.bf16.msra.mxu0 0
    %5058 = vmatprep.subr.bf16.mxu0 0
    %5059 = vmatpush1.bf16.msra.mxu0 0
    %5060 = vmatprep.subr.bf16.mxu0 0
    %5061 = vmatpush1.bf16.msra.mxu0 0
    %5062 = vmatprep.subr.bf16.mxu0 0
    %5063 = vmatpush1.bf16.msra.mxu0 0
    %5064 = vmatprep.subr.bf16.mxu0 0
    %5065 = vmatpush1.bf16.msra.mxu0 0
    %5066 = vmatprep.subr.bf16.mxu0 0
    %5067 = vmatpush1.bf16.msra.mxu0 0
    %5068 = vmatprep.subr.bf16.mxu0 0
    %5069 = vmatpush1.bf16.msra.mxu0 0
    %5070 = vmatprep.subr.bf16.mxu0 0
    %5071 = vmatpush1.bf16.msra.mxu0 0
    %5072 = vmatprep.subr.bf16.mxu0 0
    %5073 = vmatpush1.bf16.msra.mxu0 0
    %5074 = vmatprep.subr.bf16.mxu0 0
    %5075 = vmatpush1.bf16.msra.mxu0 0
    %5076 = vmatprep.mubr.bf16.mxu0 0
    %5077 = vmatmul.mubr.bf16.gmra.mrb[0].mxu0 %v4673
    %v5078 = vpop.f32.mrb[0].mxu0
    %v5079 = vadd.f32 %v5030, %v5078
    %v5080 = vpop.f32.mrb[0].mxu0
    %v5081 = vpop.f32.mrb[0].mxu0
    %v5082 = vpop.f32.mrb[0].mxu0
    %5083 = vdwg.mxu0
    %v5084 = vld [vmem:[%s3669] sm:$0xf]
    %v5085 = vld [vmem:[%s3669 + $0x4] sm:$0xf]
    %v5086 = vld [vmem:[%s3669 + $0x8] sm:$0xf]
    %v5087 = vld [vmem:[%s3669 + $0xc] sm:$0xf]
    %v5088 = vld [vmem:[%s3674] sm:$0x1]
    %v5090 = vlaneseq
    %v5091 = vshrl.u32 %v5090, 7
    %v5092 = vsub.s32 0, %v5091
    %v5093 = vrot.slane %v5088, %v5092
    %v5099 = vunpack.c.l.b16 %v5084
    %v5100 = vunpack.c.l.b16 %v5085
    %v5101 = vunpack.c.l.b16 %v5086
    %v5102 = vunpack.c.l.b16 %v5087
    %v5103 = vpack.c.b16 %v5100, %v5099
    %v5104 = vpack.c.b16 %v5102, %v5101
    %5107 = vmatprep.subr.bf16.mxu0 0
    %5108 = vmatpush1.bf16.msra.mxu0 %v5103
    %5109 = vmatprep.subr.bf16.mxu0 0
    %5110 = vmatpush1.bf16.msra.mxu0 %v5104
    %5111 = vmatprep.subr.bf16.mxu0 0
    %5112 = vmatpush1.bf16.msra.mxu0 0
    %5113 = vmatprep.subr.bf16.mxu0 0
    %5114 = vmatpush1.bf16.msra.mxu0 0
    %5115 = vmatprep.subr.bf16.mxu0 0
    %5116 = vmatpush1.bf16.msra.mxu0 0
    %5117 = vmatprep.subr.bf16.mxu0 0
    %5118 = vmatpush1.bf16.msra.mxu0 0
    %5119 = vmatprep.subr.bf16.mxu0 0
    %5120 = vmatpush1.bf16.msra.mxu0 0
    %5121 = vmatprep.subr.bf16.mxu0 0
    %5122 = vmatpush1.bf16.msra.mxu0 0
    %5123 = vmatprep.subr.bf16.mxu0 0
    %5124 = vmatpush1.bf16.msra.mxu0 0
    %5125 = vmatprep.subr.bf16.mxu0 0
    %5126 = vmatpush1.bf16.msra.mxu0 0
    %5127 = vmatprep.subr.bf16.mxu0 0
    %5128 = vmatpush1.bf16.msra.mxu0 0
    %5129 = vmatprep.subr.bf16.mxu0 0
    %5130 = vmatpush1.bf16.msra.mxu0 0
    %5131 = vmatprep.subr.bf16.mxu0 0
    %5132 = vmatpush1.bf16.msra.mxu0 0
    %5133 = vmatprep.subr.bf16.mxu0 0
    %5134 = vmatpush1.bf16.msra.mxu0 0
    %5135 = vmatprep.subr.bf16.mxu0 0
    %5136 = vmatpush1.bf16.msra.mxu0 0
    %5137 = vmatprep.subr.bf16.mxu0 0
    %5138 = vmatpush1.bf16.msra.mxu0 0
    %5139 = vmatprep.mubr.bf16.mxu0 0
    %5140 = vmatmul.mubr.bf16.gmra.mrb[0].mxu0 %v4673
    %v5141 = vpop.f32.mrb[0].mxu0
    %v5142 = vadd.f32 %v5093, %v5141
    %v5143 = vpop.f32.mrb[0].mxu0
    %v5144 = vpop.f32.mrb[0].mxu0
    %v5145 = vpop.f32.mrb[0].mxu0
    %5146 = vdwg.mxu0
    %v5147 = vpack.c.bf16 %v5016, %v5016
    %v5148 = vpack.c.bf16 %v5079, %v5079
    %v5150 = vsel %vm323, %v5147, 0
    %v5153 = vsel %vm323, %v5148, 0
    %5155 = vmatprep.subr.bf16.mxu0 0
    %5156 = vmatpush1.bf16.xpose.msra.mxu0 %v5153
    %5157 = vmatprep.subr.bf16.mxu0 0
    %5158 = vmatpush1.bf16.xpose.msra.mxu0 0
    %5159 = vmatprep.subr.bf16.mxu0 0
    %5160 = vmatpush1.bf16.xpose.msra.mxu0 0
    %5161 = vmatprep.subr.bf16.mxu0 0
    %5162 = vmatpush1.bf16.xpose.msra.mxu0 0
    %5163 = vmatprep.subr.bf16.mxu0 0
    %5164 = vmatpush1.bf16.xpose.msra.mxu0 0
    %5165 = vmatprep.subr.bf16.mxu0 0
    %5166 = vmatpush1.bf16.xpose.msra.mxu0 0
    %5167 = vmatprep.subr.bf16.mxu0 0
    %5168 = vmatpush1.bf16.xpose.msra.mxu0 0
    %5169 = vmatprep.subr.bf16.mxu0 0
    %5170 = vmatpush1.bf16.xpose.msra.mxu0 0
    %5171 = vmatprep.subr.bf16.mxu0 0
    %5172 = vmatpush1.bf16.xpose.msra.mxu0 0
    %5173 = vmatprep.subr.bf16.mxu0 0
    %5174 = vmatpush1.bf16.xpose.msra.mxu0 0
    %5175 = vmatprep.subr.bf16.mxu0 0
    %5176 = vmatpush1.bf16.xpose.msra.mxu0 0
    %5177 = vmatprep.subr.bf16.mxu0 0
    %5178 = vmatpush1.bf16.xpose.msra.mxu0 0
    %5179 = vmatprep.subr.bf16.mxu0 0
    %5180 = vmatpush1.bf16.xpose.msra.mxu0 0
    %5181 = vmatprep.subr.bf16.mxu0 0
    %5182 = vmatpush1.bf16.xpose.msra.mxu0 0
    %5183 = vmatprep.subr.bf16.mxu0 0
    %5184 = vmatpush1.bf16.xpose.msra.mxu0 0
    %5185 = vmatprep.subr.bf16.mxu0 0
    %5186 = vmatpush1.bf16.xpose.msra.mxu0 0
    %5187 = vmatprep.mubr.bf16.mxu0 0
    %5188 = vmatmul.mubr.bf16.gmra.mrb[0].mxu0 %v5150
    %v5189 = vpop.f32.mrb[0].mxu0
    %v5190 = vadd.f32 0.0, %v5189
    %v5191 = vpop.f32.mrb[0].mxu0
    %v5192 = vpop.f32.mrb[0].mxu0
    %v5193 = vpop.f32.mrb[0].mxu0
    %5194 = vdwg.mxu0
    %v5195 = vmul.f32 %v5190, 0.35355338
    %v5196 = vadd.f32 %v5195, %v4894
    %v5197 = vsel %vm323, %v5196, -inf
    %5198 = vmax.xlane.f32.xlu0 %v5197
    %v5199 = vpop.xlane.xlu0 %5198
    %v5200 = vsub.f32 %v5196, %v5199
    %v5201 = vmul.f32 %v5200, 1.442695
    %v5202 = vpow.pop %v5201
    %v5203 = vsel %vm323, %v5202, 0.0
    %5204 = vadd.xlane.f32.xlu0 %v5203
    %v5205 = vpop.xlane.xlu0 %5204
    %v5206 = vrcp.pop %v5205
    %v5207 = vmul.f32 %v5202, %v5206
    %v5208 = vpack.c.bf16 %v5207, %v5207
    %v5209 = vpack.c.bf16 %v5142, %v5142
    %v5211 = vsel %vm323, %v5208, 0
    %v5214 = vsel %vm394, %v5209, 0
    %5216 = vmatprep.subr.bf16.mxu0 0
    %5217 = vmatpush1.bf16.msra.mxu0 %v5214
    %5218 = vmatprep.subr.bf16.mxu0 0
    %5219 = vmatpush1.bf16.msra.mxu0 0
    %5220 = vmatprep.subr.bf16.mxu0 0
    %5221 = vmatpush1.bf16.msra.mxu0 0
    %5222 = vmatprep.subr.bf16.mxu0 0
    %5223 = vmatpush1.bf16.msra.mxu0 0
    %5224 = vmatprep.subr.bf16.mxu0 0
    %5225 = vmatpush1.bf16.msra.mxu0 0
    %5226 = vmatprep.subr.bf16.mxu0 0
    %5227 = vmatpush1.bf16.msra.mxu0 0
    %5228 = vmatprep.subr.bf16.mxu0 0
    %5229 = vmatpush1.bf16.msra.mxu0 0
    %5230 = vmatprep.subr.bf16.mxu0 0
    %5231 = vmatpush1.bf16.msra.mxu0 0
    %5232 = vmatprep.subr.bf16.mxu0 0
    %5233 = vmatpush1.bf16.msra.mxu0 0
    %5234 = vmatprep.subr.bf16.mxu0 0
    %5235 = vmatpush1.bf16.msra.mxu0 0
    %5236 = vmatprep.subr.bf16.mxu0 0
    %5237 = vmatpush1.bf16.msra.mxu0 0
    %5238 = vmatprep.subr.bf16.mxu0 0
    %5239 = vmatpush1.bf16.msra.mxu0 0
    %5240 = vmatprep.subr.bf16.mxu0 0
    %5241 = vmatpush1.bf16.msra.mxu0 0
    %5242 = vmatprep.subr.bf16.mxu0 0
    %5243 = vmatpush1.bf16.msra.mxu0 0
    %5244 = vmatprep.subr.bf16.mxu0 0
    %5245 = vmatpush1.bf16.msra.mxu0 0
    %5246 = vmatprep.subr.bf16.mxu0 0
    %5247 = vmatpush1.bf16.msra.mxu0 0
    %5248 = vmatprep.mubr.bf16.mxu0 0
    %5249 = vmatmul.mubr.bf16.gmra.mrb[0].mxu0 %v5211
    %v5250 = vpop.f32.mrb[0].mxu0
    %v5251 = vadd.f32 0.0, %v5250
    %v5252 = vpop.f32.mrb[0].mxu0
    %v5253 = vpop.f32.mrb[0].mxu0
    %v5254 = vpop.f32.mrb[0].mxu0
    %5255 = vdwg.mxu0
    %v5256 = vpack.c.bf16 %v5251, %v5251
    %v5257 = vld [vmem:[%s3844] sm:$0xf]
    %v5259 = vsel %vm323, %v5256, 0
    %v5262 = vsel %vm394, %v5257, 0
    %5264 = vmatprep.subr.bf16.mxu0 0
    %5265 = vmatpush1.bf16.msra.mxu0 %v5262
    %5266 = vmatprep.subr.bf16.mxu0 0
    %5267 = vmatpush1.bf16.msra.mxu0 0
    %5268 = vmatprep.subr.bf16.mxu0 0
    %5269 = vmatpush1.bf16.msra.mxu0 0
    %5270 = vmatprep.subr.bf16.mxu0 0
    %5271 = vmatpush1.bf16.msra.mxu0 0
    %5272 = vmatprep.subr.bf16.mxu0 0
    %5273 = vmatpush1.bf16.msra.mxu0 0
    %5274 = vmatprep.subr.bf16.mxu0 0
    %5275 = vmatpush1.bf16.msra.mxu0 0
    %5276 = vmatprep.subr.bf16.mxu0 0
    %5277 = vmatpush1.bf16.msra.mxu0 0
    %5278 = vmatprep.subr.bf16.mxu0 0
    %5279 = vmatpush1.bf16.msra.mxu0 0
    %5280 = vmatprep.subr.bf16.mxu0 0
    %5281 = vmatpush1.bf16.msra.mxu0 0
    %5282 = vmatprep.subr.bf16.mxu0 0
    %5283 = vmatpush1.bf16.msra.mxu0 0
    %5284 = vmatprep.subr.bf16.mxu0 0
    %5285 = vmatpush1.bf16.msra.mxu0 0
    %5286 = vmatprep.subr.bf16.mxu0 0
    %5287 = vmatpush1.bf16.msra.mxu0 0
    %5288 = vmatprep.subr.bf16.mxu0 0
    %5289 = vmatpush1.bf16.msra.mxu0 0
    %5290 = vmatprep.subr.bf16.mxu0 0
    %5291 = vmatpush1.bf16.msra.mxu0 0
    %5292 = vmatprep.subr.bf16.mxu0 0
    %5293 = vmatpush1.bf16.msra.mxu0 0
    %5294 = vmatprep.subr.bf16.mxu0 0
    %5295 = vmatpush1.bf16.msra.mxu0 0
    %5296 = vmatprep.mubr.bf16.mxu0 0
    %5297 = vmatmul.mubr.bf16.gmra.mrb[0].mxu0 %v5259
    %v5298 = vpop.f32.mrb[0].mxu0
    %v5299 = vadd.f32 0.0, %v5298
    %v5300 = vpop.f32.mrb[0].mxu0
    %v5301 = vpop.f32.mrb[0].mxu0
    %v5302 = vpop.f32.mrb[0].mxu0
    %5303 = vdwg.mxu0
    %v5305 = vsel %vm323, %v4956, 0
    %v5308 = vsel %vm394, %v4957, 0
    %5310 = vmatprep.subr.bf16.mxu0 0
    %5311 = vmatpush1.bf16.msra.mxu0 %v5308
    %5312 = vmatprep.subr.bf16.mxu0 0
    %5313 = vmatpush1.bf16.msra.mxu0 0
    %5314 = vmatprep.subr.bf16.mxu0 0
    %5315 = vmatpush1.bf16.msra.mxu0 0
    %5316 = vmatprep.subr.bf16.mxu0 0
    %5317 = vmatpush1.bf16.msra.mxu0 0
    %5318 = vmatprep.subr.bf16.mxu0 0
    %5319 = vmatpush1.bf16.msra.mxu0 0
    %5320 = vmatprep.subr.bf16.mxu0 0
    %5321 = vmatpush1.bf16.msra.mxu0 0
    %5322 = vmatprep.subr.bf16.mxu0 0
    %5323 = vmatpush1.bf16.msra.mxu0 0
    %5324 = vmatprep.subr.bf16.mxu0 0
    %5325 = vmatpush1.bf16.msra.mxu0 0
    %5326 = vmatprep.subr.bf16.mxu0 0
    %5327 = vmatpush1.bf16.msra.mxu0 0
    %5328 = vmatprep.subr.bf16.mxu0 0
    %5329 = vmatpush1.bf16.msra.mxu0 0
    %5330 = vmatprep.subr.bf16.mxu0 0
    %5331 = vmatpush1.bf16.msra.mxu0 0
    %5332 = vmatprep.subr.bf16.mxu0 0
    %5333 = vmatpush1.bf16.msra.mxu0 0
    %5334 = vmatprep.subr.bf16.mxu0 0
    %5335 = vmatpush1.bf16.msra.mxu0 0
    %5336 = vmatprep.subr.bf16.mxu0 0
    %5337 = vmatpush1.bf16.msra.mxu0 0
    %5338 = vmatprep.subr.bf16.mxu0 0
    %5339 = vmatpush1.bf16.msra.mxu0 0
    %5340 = vmatprep.subr.bf16.mxu0 0
    %5341 = vmatpush1.bf16.msra.mxu0 0
    %5342 = vmatprep.mubr.bf16.mxu0 0
    %5343 = vmatmul.mubr.bf16.gmra.mrb[0].mxu0 %v5305
    %v5344 = vpop.f32.mrb[0].mxu0
    %v5345 = vadd.f32 %v5299, %v5344
    %v5346 = vpop.f32.mrb[0].mxu0
    %v5347 = vpop.f32.mrb[0].mxu0
    %v5348 = vpop.f32.mrb[0].mxu0
    %5349 = vdwg.mxu0
    %v5350 = vld [vmem:[%s3938] sm:$0xf]
    %v5351 = vld [vmem:[%s3938 + $0x4] sm:$0xf]
    %v5352 = vld [vmem:[%s3938 + $0x8] sm:$0xf]
    %v5353 = vld [vmem:[%s3938 + $0xc] sm:$0xf]
    %v5354 = vld [vmem:[%s3943] sm:$0x1]
    %v5356 = vlaneseq
    %v5357 = vshrl.u32 %v5356, 7
    %v5358 = vsub.s32 0, %v5357
    %v5359 = vrot.slane %v5354, %v5358
    %v5365 = vunpack.c.l.b16 %v5350
    %v5366 = vunpack.c.l.b16 %v5351
    %v5367 = vunpack.c.l.b16 %v5352
    %v5368 = vunpack.c.l.b16 %v5353
    %v5369 = vpack.c.b16 %v5366, %v5365
    %v5370 = vpack.c.b16 %v5368, %v5367
    %5373 = vmatprep.subr.bf16.mxu0 0
    %5374 = vmatpush1.bf16.msra.mxu0 %v5369
    %5375 = vmatprep.subr.bf16.mxu0 0
    %5376 = vmatpush1.bf16.msra.mxu0 %v5370
    %5377 = vmatprep.subr.bf16.mxu0 0
    %5378 = vmatpush1.bf16.msra.mxu0 0
    %5379 = vmatprep.subr.bf16.mxu0 0
    %5380 = vmatpush1.bf16.msra.mxu0 0
    %5381 = vmatprep.subr.bf16.mxu0 0
    %5382 = vmatpush1.bf16.msra.mxu0 0
    %5383 = vmatprep.subr.bf16.mxu0 0
    %5384 = vmatpush1.bf16.msra.mxu0 0
    %5385 = vmatprep.subr.bf16.mxu0 0
    %5386 = vmatpush1.bf16.msra.mxu0 0
    %5387 = vmatprep.subr.bf16.mxu0 0
    %5388 = vmatpush1.bf16.msra.mxu0 0
    %5389 = vmatprep.subr.bf16.mxu0 0
    %5390 = vmatpush1.bf16.msra.mxu0 0
    %5391 = vmatprep.subr.bf16.mxu0 0
    %5392 = vmatpush1.bf16.msra.mxu0 0
    %5393 = vmatprep.subr.bf16.mxu0 0
    %5394 = vmatpush1.bf16.msra.mxu0 0
    %5395 = vmatprep.subr.bf16.mxu0 0
    %5396 = vmatpush1.bf16.msra.mxu0 0
    %5397 = vmatprep.subr.bf16.mxu0 0
    %5398 = vmatpush1.bf16.msra.mxu0 0
    %5399 = vmatprep.subr.bf16.mxu0 0
    %5400 = vmatpush1.bf16.msra.mxu0 0
    %5401 = vmatprep.subr.bf16.mxu0 0
    %5402 = vmatpush1.bf16.msra.mxu0 0
    %5403 = vmatprep.subr.bf16.mxu0 0
    %5404 = vmatpush1.bf16.msra.mxu0 0
    %5405 = vmatprep.mubr.bf16.mxu0 0
    %5406 = vmatmul.mubr.bf16.gmra.mrb[0].mxu0 %v4673
    %v5407 = vpop.f32.mrb[0].mxu0
    %v5408 = vadd.f32 %v5359, %v5407
    %v5409 = vpop.f32.mrb[0].mxu0
    %v5410 = vpop.f32.mrb[0].mxu0
    %v5411 = vpop.f32.mrb[0].mxu0
    %5412 = vdwg.mxu0
    %v5413 = vld [vmem:[%s4003] sm:$0xf]
    %v5414 = vld [vmem:[%s4003 + $0x4] sm:$0xf]
    %v5415 = vld [vmem:[%s4003 + $0x8] sm:$0xf]
    %v5416 = vld [vmem:[%s4003 + $0xc] sm:$0xf]
    %v5417 = vld [vmem:[%s4008] sm:$0x1]
    %v5419 = vlaneseq
    %v5420 = vshrl.u32 %v5419, 7
    %v5421 = vsub.s32 0, %v5420
    %v5422 = vrot.slane %v5417, %v5421
    %v5428 = vunpack.c.l.b16 %v5413
    %v5429 = vunpack.c.l.b16 %v5414
    %v5430 = vunpack.c.l.b16 %v5415
    %v5431 = vunpack.c.l.b16 %v5416
    %v5432 = vpack.c.b16 %v5429, %v5428
    %v5433 = vpack.c.b16 %v5431, %v5430
    %5436 = vmatprep.subr.bf16.mxu0 0
    %5437 = vmatpush1.bf16.msra.mxu0 %v5432
    %5438 = vmatprep.subr.bf16.mxu0 0
    %5439 = vmatpush1.bf16.msra.mxu0 %v5433
    %5440 = vmatprep.subr.bf16.mxu0 0
    %5441 = vmatpush1.bf16.msra.mxu0 0
    %5442 = vmatprep.subr.bf16.mxu0 0
    %5443 = vmatpush1.bf16.msra.mxu0 0
    %5444 = vmatprep.subr.bf16.mxu0 0
    %5445 = vmatpush1.bf16.msra.mxu0 0
    %5446 = vmatprep.subr.bf16.mxu0 0
    %5447 = vmatpush1.bf16.msra.mxu0 0
    %5448 = vmatprep.subr.bf16.mxu0 0
    %5449 = vmatpush1.bf16.msra.mxu0 0
    %5450 = vmatprep.subr.bf16.mxu0 0
    %5451 = vmatpush1.bf16.msra.mxu0 0
    %5452 = vmatprep.subr.bf16.mxu0 0
    %5453 = vmatpush1.bf16.msra.mxu0 0
    %5454 = vmatprep.subr.bf16.mxu0 0
    %5455 = vmatpush1.bf16.msra.mxu0 0
    %5456 = vmatprep.subr.bf16.mxu0 0
    %5457 = vmatpush1.bf16.msra.mxu0 0
    %5458 = vmatprep.subr.bf16.mxu0 0
    %5459 = vmatpush1.bf16.msra.mxu0 0
    %5460 = vmatprep.subr.bf16.mxu0 0
    %5461 = vmatpush1.bf16.msra.mxu0 0
    %5462 = vmatprep.subr.bf16.mxu0 0
    %5463 = vmatpush1.bf16.msra.mxu0 0
    %5464 = vmatprep.subr.bf16.mxu0 0
    %5465 = vmatpush1.bf16.msra.mxu0 0
    %5466 = vmatprep.subr.bf16.mxu0 0
    %5467 = vmatpush1.bf16.msra.mxu0 0
    %5468 = vmatprep.mubr.bf16.mxu0 0
    %5469 = vmatmul.mubr.bf16.gmra.mrb[0].mxu0 %v4673
    %v5470 = vpop.f32.mrb[0].mxu0
    %v5471 = vadd.f32 %v5422, %v5470
    %v5472 = vpop.f32.mrb[0].mxu0
    %v5473 = vpop.f32.mrb[0].mxu0
    %v5474 = vpop.f32.mrb[0].mxu0
    %5475 = vdwg.mxu0
    %v5476 = vld [vmem:[%s4068] sm:$0xf]
    %v5477 = vld [vmem:[%s4068 + $0x4] sm:$0xf]
    %v5478 = vld [vmem:[%s4068 + $0x8] sm:$0xf]
    %v5479 = vld [vmem:[%s4068 + $0xc] sm:$0xf]
    %v5480 = vld [vmem:[%s4073] sm:$0x1]
    %v5482 = vlaneseq
    %v5483 = vshrl.u32 %v5482, 7
    %v5484 = vsub.s32 0, %v5483
    %v5485 = vrot.slane %v5480, %v5484
    %v5491 = vunpack.c.l.b16 %v5476
    %v5492 = vunpack.c.l.b16 %v5477
    %v5493 = vunpack.c.l.b16 %v5478
    %v5494 = vunpack.c.l.b16 %v5479
    %v5495 = vpack.c.b16 %v5492, %v5491
    %v5496 = vpack.c.b16 %v5494, %v5493
    %5499 = vmatprep.subr.bf16.mxu0 0
    %5500 = vmatpush1.bf16.msra.mxu0 %v5495
    %5501 = vmatprep.subr.bf16.mxu0 0
    %5502 = vmatpush1.bf16.msra.mxu0 %v5496
    %5503 = vmatprep.subr.bf16.mxu0 0
    %5504 = vmatpush1.bf16.msra.mxu0 0
    %5505 = vmatprep.subr.bf16.mxu0 0
    %5506 = vmatpush1.bf16.msra.mxu0 0
    %5507 = vmatprep.subr.bf16.mxu0 0
    %5508 = vmatpush1.bf16.msra.mxu0 0
    %5509 = vmatprep.subr.bf16.mxu0 0
    %5510 = vmatpush1.bf16.msra.mxu0 0
    %5511 = vmatprep.subr.bf16.mxu0 0
    %5512 = vmatpush1.bf16.msra.mxu0 0
    %5513 = vmatprep.subr.bf16.mxu0 0
    %5514 = vmatpush1.bf16.msra.mxu0 0
    %5515 = vmatprep.subr.bf16.mxu0 0
    %5516 = vmatpush1.bf16.msra.mxu0 0
    %5517 = vmatprep.subr.bf16.mxu0 0
    %5518 = vmatpush1.bf16.msra.mxu0 0
    %5519 = vmatprep.subr.bf16.mxu0 0
    %5520 = vmatpush1.bf16.msra.mxu0 0
    %5521 = vmatprep.subr.bf16.mxu0 0
    %5522 = vmatpush1.bf16.msra.mxu0 0
    %5523 = vmatprep.subr.bf16.mxu0 0
    %5524 = vmatpush1.bf16.msra.mxu0 0
    %5525 = vmatprep.subr.bf16.mxu0 0
    %5526 = vmatpush1.bf16.msra.mxu0 0
    %5527 = vmatprep.subr.bf16.mxu0 0
    %5528 = vmatpush1.bf16.msra.mxu0 0
    %5529 = vmatprep.subr.bf16.mxu0 0
    %5530 = vmatpush1.bf16.msra.mxu0 0
    %5531 = vmatprep.mubr.bf16.mxu0 0
    %5532 = vmatmul.mubr.bf16.gmra.mrb[0].mxu0 %v4673
    %v5533 = vpop.f32.mrb[0].mxu0
    %v5534 = vadd.f32 %v5485, %v5533
    %v5535 = vpop.f32.mrb[0].mxu0
    %v5536 = vpop.f32.mrb[0].mxu0
    %v5537 = vpop.f32.mrb[0].mxu0
    %5538 = vdwg.mxu0
    %v5539 = vpack.c.bf16 %v5408, %v5408
    %v5540 = vpack.c.bf16 %v5471, %v5471
    %v5542 = vsel %vm323, %v5539, 0
    %v5545 = vsel %vm323, %v5540, 0
    %5547 = vmatprep.subr.bf16.mxu0 0
    %5548 = vmatpush1.bf16.xpose.msra.mxu0 %v5545
    %5549 = vmatprep.subr.bf16.mxu0 0
    %5550 = vmatpush1.bf16.xpose.msra.mxu0 0
    %5551 = vmatprep.subr.bf16.mxu0 0
    %5552 = vmatpush1.bf16.xpose.msra.mxu0 0
    %5553 = vmatprep.subr.bf16.mxu0 0
    %5554 = vmatpush1.bf16.xpose.msra.mxu0 0
    %5555 = vmatprep.subr.bf16.mxu0 0
    %5556 = vmatpush1.bf16.xpose.msra.mxu0 0
    %5557 = vmatprep.subr.bf16.mxu0 0
    %5558 = vmatpush1.bf16.xpose.msra.mxu0 0
    %5559 = vmatprep.subr.bf16.mxu0 0
    %5560 = vmatpush1.bf16.xpose.msra.mxu0 0
    %5561 = vmatprep.subr.bf16.mxu0 0
    %5562 = vmatpush1.bf16.xpose.msra.mxu0 0
    %5563 = vmatprep.subr.bf16.mxu0 0
    %5564 = vmatpush1.bf16.xpose.msra.mxu0 0
    %5565 = vmatprep.subr.bf16.mxu0 0
    %5566 = vmatpush1.bf16.xpose.msra.mxu0 0
    %5567 = vmatprep.subr.bf16.mxu0 0
    %5568 = vmatpush1.bf16.xpose.msra.mxu0 0
    %5569 = vmatprep.subr.bf16.mxu0 0
    %5570 = vmatpush1.bf16.xpose.msra.mxu0 0
    %5571 = vmatprep.subr.bf16.mxu0 0
    %5572 = vmatpush1.bf16.xpose.msra.mxu0 0
    %5573 = vmatprep.subr.bf16.mxu0 0
    %5574 = vmatpush1.bf16.xpose.msra.mxu0 0
    %5575 = vmatprep.subr.bf16.mxu0 0
    %5576 = vmatpush1.bf16.xpose.msra.mxu0 0
    %5577 = vmatprep.subr.bf16.mxu0 0
    %5578 = vmatpush1.bf16.xpose.msra.mxu0 0
    %5579 = vmatprep.mubr.bf16.mxu0 0
    %5580 = vmatmul.mubr.bf16.gmra.mrb[0].mxu0 %v5542
    %v5581 = vpop.f32.mrb[0].mxu0
    %v5582 = vadd.f32 0.0, %v5581
    %v5583 = vpop.f32.mrb[0].mxu0
    %v5584 = vpop.f32.mrb[0].mxu0
    %v5585 = vpop.f32.mrb[0].mxu0
    %5586 = vdwg.mxu0
    %v5587 = vmul.f32 %v5582, 0.35355338
    %v5588 = vadd.f32 %v5587, %v4894
    %v5589 = vsel %vm323, %v5588, -inf
    %5590 = vmax.xlane.f32.xlu0 %v5589
    %v5591 = vpop.xlane.xlu0 %5590
    %v5592 = vsub.f32 %v5588, %v5591
    %v5593 = vmul.f32 %v5592, 1.442695
    %v5594 = vpow.pop %v5593
    %v5595 = vsel %vm323, %v5594, 0.0
    %5596 = vadd.xlane.f32.xlu0 %v5595
    %v5597 = vpop.xlane.xlu0 %5596
    %v5598 = vrcp.pop %v5597
    %v5599 = vmul.f32 %v5594, %v5598
    %v5600 = vpack.c.bf16 %v5599, %v5599
    %v5601 = vpack.c.bf16 %v5534, %v5534
    %v5603 = vsel %vm323, %v5600, 0
    %v5606 = vsel %vm394, %v5601, 0
    %5608 = vmatprep.subr.bf16.mxu0 0
    %5609 = vmatpush1.bf16.msra.mxu0 %v5606
    %5610 = vmatprep.subr.bf16.mxu0 0
    %5611 = vmatpush1.bf16.msra.mxu0 0
    %5612 = vmatprep.subr.bf16.mxu0 0
    %5613 = vmatpush1.bf16.msra.mxu0 0
    %5614 = vmatprep.subr.bf16.mxu0 0
    %5615 = vmatpush1.bf16.msra.mxu0 0
    %5616 = vmatprep.subr.bf16.mxu0 0
    %5617 = vmatpush1.bf16.msra.mxu0 0
    %5618 = vmatprep.subr.bf16.mxu0 0
    %5619 = vmatpush1.bf16.msra.mxu0 0
    %5620 = vmatprep.subr.bf16.mxu0 0
    %5621 = vmatpush1.bf16.msra.mxu0 0
    %5622 = vmatprep.subr.bf16.mxu0 0
    %5623 = vmatpush1.bf16.msra.mxu0 0
    %5624 = vmatprep.subr.bf16.mxu0 0
    %5625 = vmatpush1.bf16.msra.mxu0 0
    %5626 = vmatprep.subr.bf16.mxu0 0
    %5627 = vmatpush1.bf16.msra.mxu0 0
    %5628 = vmatprep.subr.bf16.mxu0 0
    %5629 = vmatpush1.bf16.msra.mxu0 0
    %5630 = vmatprep.subr.bf16.mxu0 0
    %5631 = vmatpush1.bf16.msra.mxu0 0
    %5632 = vmatprep.subr.bf16.mxu0 0
    %5633 = vmatpush1.bf16.msra.mxu0 0
    %5634 = vmatprep.subr.bf16.mxu0 0
    %5635 = vmatpush1.bf16.msra.mxu0 0
    %5636 = vmatprep.subr.bf16.mxu0 0
    %5637 = vmatpush1.bf16.msra.mxu0 0
    %5638 = vmatprep.subr.bf16.mxu0 0
    %5639 = vmatpush1.bf16.msra.mxu0 0
    %5640 = vmatprep.mubr.bf16.mxu0 0
    %5641 = vmatmul.mubr.bf16.gmra.mrb[0].mxu0 %v5603
    %v5642 = vpop.f32.mrb[0].mxu0
    %v5643 = vadd.f32 0.0, %v5642
    %v5644 = vpop.f32.mrb[0].mxu0
    %v5645 = vpop.f32.mrb[0].mxu0
    %v5646 = vpop.f32.mrb[0].mxu0
    %5647 = vdwg.mxu0
    %v5648 = vpack.c.bf16 %v5643, %v5643
    %v5649 = vld [vmem:[%s4243] sm:$0xf]
    %v5651 = vsel %vm323, %v5648, 0
    %v5654 = vsel %vm394, %v5649, 0
    %5656 = vmatprep.subr.bf16.mxu0 0
    %5657 = vmatpush1.bf16.msra.mxu0 %v5654
    %5658 = vmatprep.subr.bf16.mxu0 0
    %5659 = vmatpush1.bf16.msra.mxu0 0
    %5660 = vmatprep.subr.bf16.mxu0 0
    %5661 = vmatpush1.bf16.msra.mxu0 0
    %5662 = vmatprep.subr.bf16.mxu0 0
    %5663 = vmatpush1.bf16.msra.mxu0 0
    %5664 = vmatprep.subr.bf16.mxu0 0
    %5665 = vmatpush1.bf16.msra.mxu0 0
    %5666 = vmatprep.subr.bf16.mxu0 0
    %5667 = vmatpush1.bf16.msra.mxu0 0
    %5668 = vmatprep.subr.bf16.mxu0 0
    %5669 = vmatpush1.bf16.msra.mxu0 0
    %5670 = vmatprep.subr.bf16.mxu0 0
    %5671 = vmatpush1.bf16.msra.mxu0 0
    %5672 = vmatprep.subr.bf16.mxu0 0
    %5673 = vmatpush1.bf16.msra.mxu0 0
    %5674 = vmatprep.subr.bf16.mxu0 0
    %5675 = vmatpush1.bf16.msra.mxu0 0
    %5676 = vmatprep.subr.bf16.mxu0 0
    %5677 = vmatpush1.bf16.msra.mxu0 0
    %5678 = vmatprep.subr.bf16.mxu0 0
    %5679 = vmatpush1.bf16.msra.mxu0 0
    %5680 = vmatprep.subr.bf16.mxu0 0
    %5681 = vmatpush1.bf16.msra.mxu0 0
    %5682 = vmatprep.subr.bf16.mxu0 0
    %5683 = vmatpush1.bf16.msra.mxu0 0
    %5684 = vmatprep.subr.bf16.mxu0 0
    %5685 = vmatpush1.bf16.msra.mxu0 0
    %5686 = vmatprep.subr.bf16.mxu0 0
    %5687 = vmatpush1.bf16.msra.mxu0 0
    %5688 = vmatprep.mubr.bf16.mxu0 0
    %5689 = vmatmul.mubr.bf16.gmra.mrb[0].mxu0 %v5651
    %v5690 = vpop.f32.mrb[0].mxu0
    %v5691 = vadd.f32 0.0, %v5690
    %v5692 = vpop.f32.mrb[0].mxu0
    %v5693 = vpop.f32.mrb[0].mxu0
    %v5694 = vpop.f32.mrb[0].mxu0
    %5695 = vdwg.mxu0
    %v5696 = vadd.f32 %v5345, %v5691
    %v5697 = vld [vmem:[%s4292] sm:$0xf]
    %v5698 = vld [vmem:[%s4292 + $0x4] sm:$0xf]
    %v5699 = vld [vmem:[%s4292 + $0x8] sm:$0xf]
    %v5700 = vld [vmem:[%s4292 + $0xc] sm:$0xf]
    %v5701 = vld [vmem:[%s4297] sm:$0x1]
    %v5703 = vlaneseq
    %v5704 = vshrl.u32 %v5703, 7
    %v5705 = vsub.s32 0, %v5704
    %v5706 = vrot.slane %v5701, %v5705
    %v5712 = vunpack.c.l.b16 %v5697
    %v5713 = vunpack.c.l.b16 %v5698
    %v5714 = vunpack.c.l.b16 %v5699
    %v5715 = vunpack.c.l.b16 %v5700
    %v5716 = vpack.c.b16 %v5713, %v5712
    %v5717 = vpack.c.b16 %v5715, %v5714
    %5720 = vmatprep.subr.bf16.mxu0 0
    %5721 = vmatpush1.bf16.msra.mxu0 %v5716
    %5722 = vmatprep.subr.bf16.mxu0 0
    %5723 = vmatpush1.bf16.msra.mxu0 %v5717
    %5724 = vmatprep.subr.bf16.mxu0 0
    %5725 = vmatpush1.bf16.msra.mxu0 0
    %5726 = vmatprep.subr.bf16.mxu0 0
    %5727 = vmatpush1.bf16.msra.mxu0 0
    %5728 = vmatprep.subr.bf16.mxu0 0
    %5729 = vmatpush1.bf16.msra.mxu0 0
    %5730 = vmatprep.subr.bf16.mxu0 0
    %5731 = vmatpush1.bf16.msra.mxu0 0
    %5732 = vmatprep.subr.bf16.mxu0 0
    %5733 = vmatpush1.bf16.msra.mxu0 0
    %5734 = vmatprep.subr.bf16.mxu0 0
    %5735 = vmatpush1.bf16.msra.mxu0 0
    %5736 = vmatprep.subr.bf16.mxu0 0
    %5737 = vmatpush1.bf16.msra.mxu0 0
    %5738 = vmatprep.subr.bf16.mxu0 0
    %5739 = vmatpush1.bf16.msra.mxu0 0
    %5740 = vmatprep.subr.bf16.mxu0 0
    %5741 = vmatpush1.bf16.msra.mxu0 0
    %5742 = vmatprep.subr.bf16.mxu0 0
    %5743 = vmatpush1.bf16.msra.mxu0 0
    %5744 = vmatprep.subr.bf16.mxu0 0
    %5745 = vmatpush1.bf16.msra.mxu0 0
    %5746 = vmatprep.subr.bf16.mxu0 0
    %5747 = vmatpush1.bf16.msra.mxu0 0
    %5748 = vmatprep.subr.bf16.mxu0 0
    %5749 = vmatpush1.bf16.msra.mxu0 0
    %5750 = vmatprep.subr.bf16.mxu0 0
    %5751 = vmatpush1.bf16.msra.mxu0 0
    %5752 = vmatprep.mubr.bf16.mxu0 0
    %5753 = vmatmul.mubr.bf16.gmra.mrb[0].mxu0 %v4673
    %v5754 = vpop.f32.mrb[0].mxu0
    %v5755 = vadd.f32 %v5706, %v5754
    %v5756 = vpop.f32.mrb[0].mxu0
    %v5757 = vpop.f32.mrb[0].mxu0
    %v5758 = vpop.f32.mrb[0].mxu0
    %5759 = vdwg.mxu0
    %v5760 = vld [vmem:[%s4357] sm:$0xf]
    %v5761 = vld [vmem:[%s4357 + $0x4] sm:$0xf]
    %v5762 = vld [vmem:[%s4357 + $0x8] sm:$0xf]
    %v5763 = vld [vmem:[%s4357 + $0xc] sm:$0xf]
    %v5764 = vld [vmem:[%s4362] sm:$0x1]
    %v5766 = vlaneseq
    %v5767 = vshrl.u32 %v5766, 7
    %v5768 = vsub.s32 0, %v5767
    %v5769 = vrot.slane %v5764, %v5768
    %v5775 = vunpack.c.l.b16 %v5760
    %v5776 = vunpack.c.l.b16 %v5761
    %v5777 = vunpack.c.l.b16 %v5762
    %v5778 = vunpack.c.l.b16 %v5763
    %v5779 = vpack.c.b16 %v5776, %v5775
    %v5780 = vpack.c.b16 %v5778, %v5777
    %5783 = vmatprep.subr.bf16.mxu0 0
    %5784 = vmatpush1.bf16.msra.mxu0 %v5779
    %5785 = vmatprep.subr.bf16.mxu0 0
    %5786 = vmatpush1.bf16.msra.mxu0 %v5780
    %5787 = vmatprep.subr.bf16.mxu0 0
    %5788 = vmatpush1.bf16.msra.mxu0 0
    %5789 = vmatprep.subr.bf16.mxu0 0
    %5790 = vmatpush1.bf16.msra.mxu0 0
    %5791 = vmatprep.subr.bf16.mxu0 0
    %5792 = vmatpush1.bf16.msra.mxu0 0
    %5793 = vmatprep.subr.bf16.mxu0 0
    %5794 = vmatpush1.bf16.msra.mxu0 0
    %5795 = vmatprep.subr.bf16.mxu0 0
    %5796 = vmatpush1.bf16.msra.mxu0 0
    %5797 = vmatprep.subr.bf16.mxu0 0
    %5798 = vmatpush1.bf16.msra.mxu0 0
    %5799 = vmatprep.subr.bf16.mxu0 0
    %5800 = vmatpush1.bf16.msra.mxu0 0
    %5801 = vmatprep.subr.bf16.mxu0 0
    %5802 = vmatpush1.bf16.msra.mxu0 0
    %5803 = vmatprep.subr.bf16.mxu0 0
    %5804 = vmatpush1.bf16.msra.mxu0 0
    %5805 = vmatprep.subr.bf16.mxu0 0
    %5806 = vmatpush1.bf16.msra.mxu0 0
    %5807 = vmatprep.subr.bf16.mxu0 0
    %5808 = vmatpush1.bf16.msra.mxu0 0
    %5809 = vmatprep.subr.bf16.mxu0 0
    %5810 = vmatpush1.bf16.msra.mxu0 0
    %5811 = vmatprep.subr.bf16.mxu0 0
    %5812 = vmatpush1.bf16.msra.mxu0 0
    %5813 = vmatprep.subr.bf16.mxu0 0
    %5814 = vmatpush1.bf16.msra.mxu0 0
    %5815 = vmatprep.mubr.bf16.mxu0 0
    %5816 = vmatmul.mubr.bf16.gmra.mrb[0].mxu0 %v4673
    %v5817 = vpop.f32.mrb[0].mxu0
    %v5818 = vadd.f32 %v5769, %v5817
    %v5819 = vpop.f32.mrb[0].mxu0
    %v5820 = vpop.f32.mrb[0].mxu0
    %v5821 = vpop.f32.mrb[0].mxu0
    %5822 = vdwg.mxu0
    %v5823 = vld [vmem:[%s4422] sm:$0xf]
    %v5824 = vld [vmem:[%s4422 + $0x4] sm:$0xf]
    %v5825 = vld [vmem:[%s4422 + $0x8] sm:$0xf]
    %v5826 = vld [vmem:[%s4422 + $0xc] sm:$0xf]
    %v5827 = vld [vmem:[%s4427] sm:$0x1]
    %v5829 = vlaneseq
    %v5830 = vshrl.u32 %v5829, 7
    %v5831 = vsub.s32 0, %v5830
    %v5832 = vrot.slane %v5827, %v5831
    %v5838 = vunpack.c.l.b16 %v5823
    %v5839 = vunpack.c.l.b16 %v5824
    %v5840 = vunpack.c.l.b16 %v5825
    %v5841 = vunpack.c.l.b16 %v5826
    %v5842 = vpack.c.b16 %v5839, %v5838
    %v5843 = vpack.c.b16 %v5841, %v5840
    %5846 = vmatprep.subr.bf16.mxu0 0
    %5847 = vmatpush1.bf16.msra.mxu0 %v5842
    %5848 = vmatprep.subr.bf16.mxu0 0
    %5849 = vmatpush1.bf16.msra.mxu0 %v5843
    %5850 = vmatprep.subr.bf16.mxu0 0
    %5851 = vmatpush1.bf16.msra.mxu0 0
    %5852 = vmatprep.subr.bf16.mxu0 0
    %5853 = vmatpush1.bf16.msra.mxu0 0
    %5854 = vmatprep.subr.bf16.mxu0 0
    %5855 = vmatpush1.bf16.msra.mxu0 0
    %5856 = vmatprep.subr.bf16.mxu0 0
    %5857 = vmatpush1.bf16.msra.mxu0 0
    %5858 = vmatprep.subr.bf16.mxu0 0
    %5859 = vmatpush1.bf16.msra.mxu0 0
    %5860 = vmatprep.subr.bf16.mxu0 0
    %5861 = vmatpush1.bf16.msra.mxu0 0
    %5862 = vmatprep.subr.bf16.mxu0 0
    %5863 = vmatpush1.bf16.msra.mxu0 0
    %5864 = vmatprep.subr.bf16.mxu0 0
    %5865 = vmatpush1.bf16.msra.mxu0 0
    %5866 = vmatprep.subr.bf16.mxu0 0
    %5867 = vmatpush1.bf16.msra.mxu0 0
    %5868 = vmatprep.subr.bf16.mxu0 0
    %5869 = vmatpush1.bf16.msra.mxu0 0
    %5870 = vmatprep.subr.bf16.mxu0 0
    %5871 = vmatpush1.bf16.msra.mxu0 0
    %5872 = vmatprep.subr.bf16.mxu0 0
    %5873 = vmatpush1.bf16.msra.mxu0 0
    %5874 = vmatprep.subr.bf16.mxu0 0
    %5875 = vmatpush1.bf16.msra.mxu0 0
    %5876 = vmatprep.subr.bf16.mxu0 0
    %5877 = vmatpush1.bf16.msra.mxu0 0
    %5878 = vmatprep.mubr.bf16.mxu0 0
    %5879 = vmatmul.mubr.bf16.gmra.mrb[0].mxu0 %v4673
    %v5880 = vpop.f32.mrb[0].mxu0
    %v5881 = vadd.f32 %v5832, %v5880
    %v5882 = vpop.f32.mrb[0].mxu0
    %v5883 = vpop.f32.mrb[0].mxu0
    %v5884 = vpop.f32.mrb[0].mxu0
    %5885 = vdwg.mxu0
    %v5886 = vpack.c.bf16 %v5755, %v5755
    %v5887 = vpack.c.bf16 %v5818, %v5818
    %v5889 = vsel %vm323, %v5886, 0
    %v5892 = vsel %vm323, %v5887, 0
    %5894 = vmatprep.subr.bf16.mxu0 0
    %5895 = vmatpush1.bf16.xpose.msra.mxu0 %v5892
    %5896 = vmatprep.subr.bf16.mxu0 0
    %5897 = vmatpush1.bf16.xpose.msra.mxu0 0
    %5898 = vmatprep.subr.bf16.mxu0 0
    %5899 = vmatpush1.bf16.xpose.msra.mxu0 0
    %5900 = vmatprep.subr.bf16.mxu0 0
    %5901 = vmatpush1.bf16.xpose.msra.mxu0 0
    %5902 = vmatprep.subr.bf16.mxu0 0
    %5903 = vmatpush1.bf16.xpose.msra.mxu0 0
    %5904 = vmatprep.subr.bf16.mxu0 0
    %5905 = vmatpush1.bf16.xpose.msra.mxu0 0
    %5906 = vmatprep.subr.bf16.mxu0 0
    %5907 = vmatpush1.bf16.xpose.msra.mxu0 0
    %5908 = vmatprep.subr.bf16.mxu0 0
    %5909 = vmatpush1.bf16.xpose.msra.mxu0 0
    %5910 = vmatprep.subr.bf16.mxu0 0
    %5911 = vmatpush1.bf16.xpose.msra.mxu0 0
    %5912 = vmatprep.subr.bf16.mxu0 0
    %5913 = vmatpush1.bf16.xpose.msra.mxu0 0
    %5914 = vmatprep.subr.bf16.mxu0 0
    %5915 = vmatpush1.bf16.xpose.msra.mxu0 0
    %5916 = vmatprep.subr.bf16.mxu0 0
    %5917 = vmatpush1.bf16.xpose.msra.mxu0 0
    %5918 = vmatprep.subr.bf16.mxu0 0
    %5919 = vmatpush1.bf16.xpose.msra.mxu0 0
    %5920 = vmatprep.subr.bf16.mxu0 0
    %5921 = vmatpush1.bf16.xpose.msra.mxu0 0
    %5922 = vmatprep.subr.bf16.mxu0 0
    %5923 = vmatpush1.bf16.xpose.msra.mxu0 0
    %5924 = vmatprep.subr.bf16.mxu0 0
    %5925 = vmatpush1.bf16.xpose.msra.mxu0 0
    %5926 = vmatprep.mubr.bf16.mxu0 0
    %5927 = vmatmul.mubr.bf16.gmra.mrb[0].mxu0 %v5889
    %v5928 = vpop.f32.mrb[0].mxu0
    %v5929 = vadd.f32 0.0, %v5928
    %v5930 = vpop.f32.mrb[0].mxu0
    %v5931 = vpop.f32.mrb[0].mxu0
    %v5932 = vpop.f32.mrb[0].mxu0
    %5933 = vdwg.mxu0
    %v5934 = vmul.f32 %v5929, 0.35355338
    %v5935 = vadd.f32 %v5934, %v4894
    %v5936 = vsel %vm323, %v5935, -inf
    %5937 = vmax.xlane.f32.xlu0 %v5936
    %v5938 = vpop.xlane.xlu0 %5937
    %v5939 = vsub.f32 %v5935, %v5938
    %v5940 = vmul.f32 %v5939, 1.442695
    %v5941 = vpow.pop %v5940
    %v5942 = vsel %vm323, %v5941, 0.0
    %5943 = vadd.xlane.f32.xlu0 %v5942
    %v5944 = vpop.xlane.xlu0 %5943
    %v5945 = vrcp.pop %v5944
    %v5946 = vmul.f32 %v5941, %v5945
    %v5947 = vpack.c.bf16 %v5946, %v5946
    %v5948 = vpack.c.bf16 %v5881, %v5881
    %v5950 = vsel %vm323, %v5947, 0
    %v5953 = vsel %vm394, %v5948, 0
    %5955 = vmatprep.subr.bf16.mxu0 0
    %5956 = vmatpush1.bf16.msra.mxu0 %v5953
    %5957 = vmatprep.subr.bf16.mxu0 0
    %5958 = vmatpush1.bf16.msra.mxu0 0
    %5959 = vmatprep.subr.bf16.mxu0 0
    %5960 = vmatpush1.bf16.msra.mxu0 0
    %5961 = vmatprep.subr.bf16.mxu0 0
    %5962 = vmatpush1.bf16.msra.mxu0 0
    %5963 = vmatprep.subr.bf16.mxu0 0
    %5964 = vmatpush1.bf16.msra.mxu0 0
    %5965 = vmatprep.subr.bf16.mxu0 0
    %5966 = vmatpush1.bf16.msra.mxu0 0
    %5967 = vmatprep.subr.bf16.mxu0 0
    %5968 = vmatpush1.bf16.msra.mxu0 0
    %5969 = vmatprep.subr.bf16.mxu0 0
    %5970 = vmatpush1.bf16.msra.mxu0 0
    %5971 = vmatprep.subr.bf16.mxu0 0
    %5972 = vmatpush1.bf16.msra.mxu0 0
    %5973 = vmatprep.subr.bf16.mxu0 0
    %5974 = vmatpush1.bf16.msra.mxu0 0
    %5975 = vmatprep.subr.bf16.mxu0 0
    %5976 = vmatpush1.bf16.msra.mxu0 0
    %5977 = vmatprep.subr.bf16.mxu0 0
    %5978 = vmatpush1.bf16.msra.mxu0 0
    %5979 = vmatprep.subr.bf16.mxu0 0
    %5980 = vmatpush1.bf16.msra.mxu0 0
    %5981 = vmatprep.subr.bf16.mxu0 0
    %5982 = vmatpush1.bf16.msra.mxu0 0
    %5983 = vmatprep.subr.bf16.mxu0 0
    %5984 = vmatpush1.bf16.msra.mxu0 0
    %5985 = vmatprep.subr.bf16.mxu0 0
    %5986 = vmatpush1.bf16.msra.mxu0 0
    %5987 = vmatprep.mubr.bf16.mxu0 0
    %5988 = vmatmul.mubr.bf16.gmra.mrb[0].mxu0 %v5950
    %v5989 = vpop.f32.mrb[0].mxu0
    %v5990 = vadd.f32 0.0, %v5989
    %v5991 = vpop.f32.mrb[0].mxu0
    %v5992 = vpop.f32.mrb[0].mxu0
    %v5993 = vpop.f32.mrb[0].mxu0
    %5994 = vdwg.mxu0
    %v5995 = vpack.c.bf16 %v5990, %v5990
    %v5996 = vld [vmem:[%s4597] sm:$0xf]
    %v5998 = vsel %vm323, %v5995, 0
    %v6001 = vsel %vm394, %v5996, 0
    %6003 = vmatprep.subr.bf16.mxu0 0
    %6004 = vmatpush1.bf16.msra.mxu0 %v6001
    %6005 = vmatprep.subr.bf16.mxu0 0
    %6006 = vmatpush1.bf16.msra.mxu0 0
    %6007 = vmatprep.subr.bf16.mxu0 0
    %6008 = vmatpush1.bf16.msra.mxu0 0
    %6009 = vmatprep.subr.bf16.mxu0 0
    %6010 = vmatpush1.bf16.msra.mxu0 0
    %6011 = vmatprep.subr.bf16.mxu0 0
    %6012 = vmatpush1.bf16.msra.mxu0 0
    %6013 = vmatprep.subr.bf16.mxu0 0
    %6014 = vmatpush1.bf16.msra.mxu0 0
    %6015 = vmatprep.subr.bf16.mxu0 0
    %6016 = vmatpush1.bf16.msra.mxu0 0
    %6017 = vmatprep.subr.bf16.mxu0 0
    %6018 = vmatpush1.bf16.msra.mxu0 0
    %6019 = vmatprep.subr.bf16.mxu0 0
    %6020 = vmatpush1.bf16.msra.mxu0 0
    %6021 = vmatprep.subr.bf16.mxu0 0
    %6022 = vmatpush1.bf16.msra.mxu0 0
    %6023 = vmatprep.subr.bf16.mxu0 0
    %6024 = vmatpush1.bf16.msra.mxu0 0
    %6025 = vmatprep.subr.bf16.mxu0 0
    %6026 = vmatpush1.bf16.msra.mxu0 0
    %6027 = vmatprep.subr.bf16.mxu0 0
    %6028 = vmatpush1.bf16.msra.mxu0 0
    %6029 = vmatprep.subr.bf16.mxu0 0
    %6030 = vmatpush1.bf16.msra.mxu0 0
    %6031 = vmatprep.subr.bf16.mxu0 0
    %6032 = vmatpush1.bf16.msra.mxu0 0
    %6033 = vmatprep.subr.bf16.mxu0 0
    %6034 = vmatpush1.bf16.msra.mxu0 0
    %6035 = vmatprep.mubr.bf16.mxu0 0
    %6036 = vmatmul.mubr.bf16.gmra.mrb[0].mxu0 %v5998
    %v6037 = vpop.f32.mrb[0].mxu0
    %v6038 = vadd.f32 0.0, %v6037
    %v6039 = vpop.f32.mrb[0].mxu0
    %v6040 = vpop.f32.mrb[0].mxu0
    %v6041 = vpop.f32.mrb[0].mxu0
    %6042 = vdwg.mxu0
    %v6043 = vadd.f32 %v5696, %v6038
    %6044 = vst.msk [vmem:[#allocation2 + $0x8] sm:$0xff] %vm83, %v6043
    %v6045 = vld [vmem:[#allocation2] sm:$0xff]
    %v6046 = vld [vmem:[#allocation2 + $0x8] sm:$0xff]
    %s6047 = scalar_lea.vmem %s11, 1
    %v6048 = vld [vmem:[%s6047] sm:$0x1]
    %v6050 = vlaneseq
    %v6051 = vshrl.u32 %v6050, 7
    %v6052 = vsub.s32 0, %v6051
    %v6053 = vrot.slane %v6048, %v6052
    %v6055 = vadd.f32 %v6045, %v6053
    %v6056 = vadd.f32 %v6046, %v6053
    %v6057 = vadd.f32 %v6055, %v3219
    %v6058 = vadd.f32 %v6056, %v3220
    %s6059 = scalar_lea.vmem %s12, 1
    %v6060 = vld [vmem:[%s6059] sm:$0x1]
    %s6061 = scalar_lea.vmem %s13, 1
    %v6062 = vld [vmem:[%s6061] sm:$0x1]
    %v6063 = vsel %vm83, %v6057, 0.0
    %6064 = vadd.xlane.f32.xlu0 %v6063
    %v6065 = vpop.xlane.xlu0 %6064
    %v6066 = vsel %vm83, %v6058, 0.0
    %6067 = vadd.xlane.f32.xlu0 %v6066
    %v6068 = vpop.xlane.xlu0 %6067
    %v6069 = vmul.f32 %v6065, %v90
    %v6070 = vmul.f32 %v6068, %v90
    %v6071 = vsub.f32 %v6057, %v6069
    %v6072 = vsub.f32 %v6058, %v6070
    %v6073 = vmul.f32 %v6071, %v6071
    %v6074 = vmul.f32 %v6072, %v6072
    %v6075 = vsel %vm83, %v6073, 0.0
    %6076 = vadd.xlane.f32.xlu0 %v6075
    %v6077 = vpop.xlane.xlu0 %6076
    %v6078 = vsel %vm83, %v6074, 0.0
    %6079 = vadd.xlane.f32.xlu0 %v6078
    %v6080 = vpop.xlane.xlu0 %6079
    %v6081 = vmul.f32 %v6077, %v90
    %v6082 = vmul.f32 %v6080, %v90
    %v6083 = vadd.f32 %v6081, 1e-12
    %v6084 = vadd.f32 %v6082, 1e-12
    %v6085 = vrsqrt.pop %v6083
    %v6086 = vrsqrt.pop %v6084
    %v6087 = vmul.f32 %v6071, %v6085
    %v6088 = vmul.f32 %v6072, %v6086
    %v6090 = vlaneseq
    %v6091 = vshrl.u32 %v6090, 7
    %v6092 = vsub.s32 0, %v6091
    %v6093 = vrot.slane %v6060, %v6092
    %v6095 = vmul.f32 %v6087, %v6093
    %v6096 = vmul.f32 %v6088, %v6093
    %v6098 = vlaneseq
    %v6099 = vshrl.u32 %v6098, 7
    %v6100 = vsub.s32 0, %v6099
    %v6101 = vrot.slane %v6062, %v6100
    %v6103 = vadd.f32 %v6095, %v6101
    %v6104 = vadd.f32 %v6096, %v6101
    %v6105 = vpack.c.bf16 %v6104, %v6103
    %s6106 = scalar_lea.vmem %s14, 16
    %v6107 = vld [vmem:[%s6106] sm:$0xf]
    %v6108 = vld [vmem:[%s6106 + $0x4] sm:$0xf]
    %v6109 = vld [vmem:[%s6106 + $0x8] sm:$0xf]
    %v6110 = vld [vmem:[%s6106 + $0xc] sm:$0xf]
    %s6111 = scalar_lea.vmem %s15, 1
    %v6112 = vld [vmem:[%s6111] sm:$0x1]
    %v6114 = vlaneseq
    %v6115 = vshrl.u32 %v6114, 7
    %v6116 = vsub.s32 0, %v6115
    %v6117 = vrot.slane %v6112, %v6116
    %v6123 = vunpack.c.l.b16 %v6107
    %v6124 = vunpack.c.l.b16 %v6108
    %v6125 = vunpack.c.l.b16 %v6109
    %v6126 = vunpack.c.l.b16 %v6110
    %v6127 = vpack.c.b16 %v6124, %v6123
    %v6128 = vpack.c.b16 %v6126, %v6125
    %v6132 = vsel %vm83, %v6105, 0
    %6134 = vmatprep.subr.bf16.mxu0 0
    %6135 = vmatpush1.bf16.msra.mxu0 %v6127
    %6136 = vmatprep.subr.bf16.mxu0 0
    %6137 = vmatpush1.bf16.msra.mxu0 %v6128
    %6138 = vmatprep.subr.bf16.mxu0 0
    %6139 = vmatpush1.bf16.msra.mxu0 0
    %6140 = vmatprep.subr.bf16.mxu0 0
    %6141 = vmatpush1.bf16.msra.mxu0 0
    %6142 = vmatprep.subr.bf16.mxu0 0
    %6143 = vmatpush1.bf16.msra.mxu0 0
    %6144 = vmatprep.subr.bf16.mxu0 0
    %6145 = vmatpush1.bf16.msra.mxu0 0
    %6146 = vmatprep.subr.bf16.mxu0 0
    %6147 = vmatpush1.bf16.msra.mxu0 0
    %6148 = vmatprep.subr.bf16.mxu0 0
    %6149 = vmatpush1.bf16.msra.mxu0 0
    %6150 = vmatprep.subr.bf16.mxu0 0
    %6151 = vmatpush1.bf16.msra.mxu0 0
    %6152 = vmatprep.subr.bf16.mxu0 0
    %6153 = vmatpush1.bf16.msra.mxu0 0
    %6154 = vmatprep.subr.bf16.mxu0 0
    %6155 = vmatpush1.bf16.msra.mxu0 0
    %6156 = vmatprep.subr.bf16.mxu0 0
    %6157 = vmatpush1.bf16.msra.mxu0 0
    %6158 = vmatprep.subr.bf16.mxu0 0
    %6159 = vmatpush1.bf16.msra.mxu0 0
    %6160 = vmatprep.subr.bf16.mxu0 0
    %6161 = vmatpush1.bf16.msra.mxu0 0
    %6162 = vmatprep.subr.bf16.mxu0 0
    %6163 = vmatpush1.bf16.msra.mxu0 0
    %6164 = vmatprep.subr.bf16.mxu0 0
    %6165 = vmatpush1.bf16.msra.mxu0 0
    %6166 = vmatprep.mubr.bf16.mxu0 0
    %6167 = vmatmul.mubr.bf16.gmra.mrb[0].mxu0 %v6132
    %v6168 = vpop.f32.mrb[0].mxu0
    %v6169 = vadd.f32 %v6117, %v6168
    %v6170 = vpop.f32.mrb[0].mxu0
    %v6171 = vpop.f32.mrb[0].mxu0
    %v6172 = vadd.f32 %v6117, %v6171
    %v6173 = vpop.f32.mrb[0].mxu0
    %6174 = vdwg.mxu0
    %v6175 = vmul.f32 %v6169, %v6169
    %v6176 = vmul.f32 %v6172, %v6172
    %v6177 = vmul.f32 %v6169, %v6175
    %v6178 = vmul.f32 %v6172, %v6176
    %v6179 = vmul.f32 %v6177, 0.044715
    %v6180 = vmul.f32 %v6178, 0.044715
    %v6181 = vadd.f32 %v6169, %v6179
    %v6182 = vadd.f32 %v6172, %v6180
    %v6183 = vmul.f32 %v6181, 0.7978846
    %v6184 = vmul.f32 %v6182, 0.7978846
    %v6185 = vtanh.pop %v6183
    %v6186 = vtanh.pop %v6184
    %v6187 = vadd.f32 %v6185, 1.0
    %v6188 = vadd.f32 %v6186, 1.0
    %v6189 = vmul.f32 %v6187, 0.5
    %v6190 = vmul.f32 %v6188, 0.5
    %v6191 = vmul.f32 %v6169, %v6189
    %v6192 = vmul.f32 %v6172, %v6190
    %v6193 = vpack.c.bf16 %v6192, %v6191
    %s6194 = scalar_lea.vmem %s16, 32
    %v6195 = vld [vmem:[%s6194] sm:$0xf]
    %v6196 = vld [vmem:[%s6194 + $0x4] sm:$0xf]
    %v6197 = vld [vmem:[%s6194 + $0x8] sm:$0xf]
    %v6198 = vld [vmem:[%s6194 + $0xc] sm:$0xf]
    %v6199 = vld [vmem:[%s6194 + $0x10] sm:$0xf]
    %v6200 = vld [vmem:[%s6194 + $0x14] sm:$0xf]
    %v6201 = vld [vmem:[%s6194 + $0x18] sm:$0xf]
    %v6202 = vld [vmem:[%s6194 + $0x1c] sm:$0xf]
    %s6203 = scalar_lea.vmem %s17, 1
    %v6204 = vld [vmem:[%s6203] sm:$0x1]
    %v6206 = vlaneseq
    %v6207 = vshrl.u32 %v6206, 7
    %v6208 = vsub.s32 0, %v6207
    %v6209 = vrot.slane %v6204, %v6208
    %v6219 = vunpack.c.l.b16 %v6195
    %v6220 = vunpack.c.l.b16 %v6196
    %v6221 = vunpack.c.l.b16 %v6197
    %v6222 = vunpack.c.l.b16 %v6198
    %v6223 = vunpack.c.l.b16 %v6199
    %v6224 = vunpack.c.l.b16 %v6200
    %v6225 = vunpack.c.l.b16 %v6201
    %v6226 = vunpack.c.l.b16 %v6202
    %v6227 = vpack.c.b16 %v6220, %v6219
    %v6228 = vpack.c.b16 %v6222, %v6221
    %v6229 = vpack.c.b16 %v6224, %v6223
    %v6230 = vpack.c.b16 %v6226, %v6225
    %v6236 = vsel %vm3130, %v6193, 0
    %6238 = vmatprep.subr.bf16.mxu0 0
    %6239 = vmatpush1.bf16.msra.mxu0 %v6227
    %6240 = vmatprep.subr.bf16.mxu0 0
    %6241 = vmatpush1.bf16.msra.mxu0 %v6228
    %6242 = vmatprep.subr.bf16.mxu0 0
    %6243 = vmatpush1.bf16.msra.mxu0 %v6229
    %6244 = vmatprep.subr.bf16.mxu0 0
    %6245 = vmatpush1.bf16.msra.mxu0 %v6230
    %6246 = vmatprep.subr.bf16.mxu0 0
    %6247 = vmatpush1.bf16.msra.mxu0 0
    %6248 = vmatprep.subr.bf16.mxu0 0
    %6249 = vmatpush1.bf16.msra.mxu0 0
    %6250 = vmatprep.subr.bf16.mxu0 0
    %6251 = vmatpush1.bf16.msra.mxu0 0
    %6252 = vmatprep.subr.bf16.mxu0 0
    %6253 = vmatpush1.bf16.msra.mxu0 0
    %6254 = vmatprep.subr.bf16.mxu0 0
    %6255 = vmatpush1.bf16.msra.mxu0 0
    %6256 = vmatprep.subr.bf16.mxu0 0
    %6257 = vmatpush1.bf16.msra.mxu0 0
    %6258 = vmatprep.subr.bf16.mxu0 0
    %6259 = vmatpush1.bf16.msra.mxu0 0
    %6260 = vmatprep.subr.bf16.mxu0 0
    %6261 = vmatpush1.bf16.msra.mxu0 0
    %6262 = vmatprep.subr.bf16.mxu0 0
    %6263 = vmatpush1.bf16.msra.mxu0 0
    %6264 = vmatprep.subr.bf16.mxu0 0
    %6265 = vmatpush1.bf16.msra.mxu0 0
    %6266 = vmatprep.subr.bf16.mxu0 0
    %6267 = vmatpush1.bf16.msra.mxu0 0
    %6268 = vmatprep.subr.bf16.mxu0 0
    %6269 = vmatpush1.bf16.msra.mxu0 0
    %6270 = vmatprep.mubr.bf16.mxu0 0
    %6271 = vmatmul.mubr.bf16.gmra.mrb[0].mxu0 %v6236
    %v6272 = vpop.f32.mrb[0].mxu0
    %v6273 = vadd.f32 %v6209, %v6272
    %v6274 = vpop.f32.mrb[0].mxu0
    %v6275 = vpop.f32.mrb[0].mxu0
    %v6276 = vadd.f32 %v6209, %v6275
    %v6277 = vpop.f32.mrb[0].mxu0
    %6278 = vdwg.mxu0
    %v6279 = vadd.f32 %v6273, %v6103
    %v6280 = vadd.f32 %v6276, %v6104
    %s6281 = scalar_lea.vmem %s18, 1
    %v6282 = vld [vmem:[%s6281] sm:$0x1]
    %s6283 = scalar_lea.vmem %s19, 1
    %v6284 = vld [vmem:[%s6283] sm:$0x1]
    %v6285 = vsel %vm83, %v6279, 0.0
    %6286 = vadd.xlane.f32.xlu0 %v6285
    %v6287 = vpop.xlane.xlu0 %6286
    %v6288 = vsel %vm83, %v6280, 0.0
    %6289 = vadd.xlane.f32.xlu0 %v6288
    %v6290 = vpop.xlane.xlu0 %6289
    %v6291 = vmul.f32 %v6287, %v90
    %v6292 = vmul.f32 %v6290, %v90
    %v6293 = vsub.f32 %v6279, %v6291
    %v6294 = vsub.f32 %v6280, %v6292
    %v6295 = vmul.f32 %v6293, %v6293
    %v6296 = vmul.f32 %v6294, %v6294
    %v6297 = vsel %vm83, %v6295, 0.0
    %6298 = vadd.xlane.f32.xlu0 %v6297
    %v6299 = vpop.xlane.xlu0 %6298
    %v6300 = vsel %vm83, %v6296, 0.0
    %6301 = vadd.xlane.f32.xlu0 %v6300
    %v6302 = vpop.xlane.xlu0 %6301
    %v6303 = vmul.f32 %v6299, %v90
    %v6304 = vmul.f32 %v6302, %v90
    %v6305 = vadd.f32 %v6303, 1e-12
    %v6306 = vadd.f32 %v6304, 1e-12
    %v6307 = vrsqrt.pop %v6305
    %v6308 = vrsqrt.pop %v6306
    %v6309 = vmul.f32 %v6293, %v6307
    %v6310 = vmul.f32 %v6294, %v6308
    %v6312 = vlaneseq
    %v6313 = vshrl.u32 %v6312, 7
    %v6314 = vsub.s32 0, %v6313
    %v6315 = vrot.slane %v6282, %v6314
    %v6317 = vmul.f32 %v6309, %v6315
    %v6318 = vmul.f32 %v6310, %v6315
    %v6320 = vlaneseq
    %v6321 = vshrl.u32 %v6320, 7
    %v6322 = vsub.s32 0, %v6321
    %v6323 = vrot.slane %v6284, %v6322
    %v6325 = vadd.f32 %v6317, %v6323
    %v6326 = vadd.f32 %v6318, %v6323
    %v6327 = vpack.c.bf16 %v6325, %v6325
    %v6328 = vld [vmem:[%s20] sm:$0xf]
    %v6329 = vld [vmem:[%s20 + $0x4] sm:$0xf]
    %v6330 = vld [vmem:[%s20 + $0x8] sm:$0xf]
    %v6331 = vld [vmem:[%s20 + $0xc] sm:$0xf]
    %v6332 = vld [vmem:[%s21] sm:$0x1]
    %v6337 = vunpack.c.l.b16 %v6328
    %v6338 = vunpack.c.l.b16 %v6329
    %v6339 = vunpack.c.l.b16 %v6330
    %v6340 = vunpack.c.l.b16 %v6331
    %v6341 = vpack.c.b16 %v6338, %v6337
    %v6342 = vpack.c.b16 %v6340, %v6339
    %v6346 = vsel %vm83, %v6327, 0
    %6348 = vmatprep.subr.bf16.mxu0 0
    %6349 = vmatpush1.bf16.msra.mxu0 %v6341
    %6350 = vmatprep.subr.bf16.mxu0 0
    %6351 = vmatpush1.bf16.msra.mxu0 %v6342
    %6352 = vmatprep.subr.bf16.mxu0 0
    %6353 = vmatpush1.bf16.msra.mxu0 0
    %6354 = vmatprep.subr.bf16.mxu0 0
    %6355 = vmatpush1.bf16.msra.mxu0 0
    %6356 = vmatprep.subr.bf16.mxu0 0
    %6357 = vmatpush1.bf16.msra.mxu0 0
    %6358 = vmatprep.subr.bf16.mxu0 0
    %6359 = vmatpush1.bf16.msra.mxu0 0
    %6360 = vmatprep.subr.bf16.mxu0 0
    %6361 = vmatpush1.bf16.msra.mxu0 0
    %6362 = vmatprep.subr.bf16.mxu0 0
    %6363 = vmatpush1.bf16.msra.mxu0 0
    %6364 = vmatprep.subr.bf16.mxu0 0
    %6365 = vmatpush1.bf16.msra.mxu0 0
    %6366 = vmatprep.subr.bf16.mxu0 0
    %6367 = vmatpush1.bf16.msra.mxu0 0
    %6368 = vmatprep.subr.bf16.mxu0 0
    %6369 = vmatpush1.bf16.msra.mxu0 0
    %6370 = vmatprep.subr.bf16.mxu0 0
    %6371 = vmatpush1.bf16.msra.mxu0 0
    %6372 = vmatprep.subr.bf16.mxu0 0
    %6373 = vmatpush1.bf16.msra.mxu0 0
    %6374 = vmatprep.subr.bf16.mxu0 0
    %6375 = vmatpush1.bf16.msra.mxu0 0
    %6376 = vmatprep.subr.bf16.mxu0 0
    %6377 = vmatpush1.bf16.msra.mxu0 0
    %6378 = vmatprep.subr.bf16.mxu0 0
    %6379 = vmatpush1.bf16.msra.mxu0 0
    %6380 = vmatprep.mubr.bf16.mxu0 0
    %6381 = vmatmul.mubr.bf16.gmra.mrb[0].mxu0 %v6346
    %v6382 = vpop.f32.mrb[0].mxu0
    %v6383 = vadd.f32 %v6332, %v6382
    %v6384 = vpop.f32.mrb[0].mxu0
    %v6385 = vpop.f32.mrb[0].mxu0
    %v6386 = vpop.f32.mrb[0].mxu0
    %6387 = vdwg.mxu0
    %v6388 = vtanh.pop %v6383
    %v6389 = vpack.c.bf16 %v6388, %v6388
    %v6390 = vld [vmem:[%s22] sm:$0xf]
    %v6391 = vld [vmem:[%s22 + $0x4] sm:$0xf]
    %v6392 = vld [vmem:[%s22 + $0x8] sm:$0xf]
    %v6393 = vld [vmem:[%s22 + $0xc] sm:$0xf]
    %v6394 = vld [vmem:[%s23] sm:$0x1]
    %v6399 = vunpack.c.l.b16 %v6390
    %v6400 = vunpack.c.l.b16 %v6391
    %v6401 = vunpack.c.l.b16 %v6392
    %v6402 = vunpack.c.l.b16 %v6393
    %v6403 = vpack.c.b16 %v6400, %v6399
    %v6404 = vpack.c.b16 %v6402, %v6401
    %v6408 = vsel %vm83, %v6389, 0
    %6410 = vmatprep.subr.bf16.mxu0 0
    %6411 = vmatpush1.bf16.msra.mxu0 %v6403
    %6412 = vmatprep.subr.bf16.mxu0 0
    %6413 = vmatpush1.bf16.msra.mxu0 %v6404
    %6414 = vmatprep.subr.bf16.mxu0 0
    %6415 = vmatpush1.bf16.msra.mxu0 0
    %6416 = vmatprep.subr.bf16.mxu0 0
    %6417 = vmatpush1.bf16.msra.mxu0 0
    %6418 = vmatprep.subr.bf16.mxu0 0
    %6419 = vmatpush1.bf16.msra.mxu0 0
    %6420 = vmatprep.subr.bf16.mxu0 0
    %6421 = vmatpush1.bf16.msra.mxu0 0
    %6422 = vmatprep.subr.bf16.mxu0 0
    %6423 = vmatpush1.bf16.msra.mxu0 0
    %6424 = vmatprep.subr.bf16.mxu0 0
    %6425 = vmatpush1.bf16.msra.mxu0 0
    %6426 = vmatprep.subr.bf16.mxu0 0
    %6427 = vmatpush1.bf16.msra.mxu0 0
    %6428 = vmatprep.subr.bf16.mxu0 0
    %6429 = vmatpush1.bf16.msra.mxu0 0
    %6430 = vmatprep.subr.bf16.mxu0 0
    %6431 = vmatpush1.bf16.msra.mxu0 0
    %6432 = vmatprep.subr.bf16.mxu0 0
    %6433 = vmatpush1.bf16.msra.mxu0 0
    %6434 = vmatprep.subr.bf16.mxu0 0
    %6435 = vmatpush1.bf16.msra.mxu0 0
    %6436 = vmatprep.subr.bf16.mxu0 0
    %6437 = vmatpush1.bf16.msra.mxu0 0
    %6438 = vmatprep.subr.bf16.mxu0 0
    %6439 = vmatpush1.bf16.msra.mxu0 0
    %6440 = vmatprep.subr.bf16.mxu0 0
    %6441 = vmatpush1.bf16.msra.mxu0 0
    %6442 = vmatprep.mubr.bf16.mxu0 0
    %6443 = vmatmul.mubr.bf16.gmra.mrb[0].mxu0 %v6408
    %v6444 = vpop.f32.mrb[0].mxu0
    %v6445 = vadd.f32 %v6394, %v6444
    %v6446 = vpop.f32.mrb[0].mxu0
    %v6447 = vpop.f32.mrb[0].mxu0
    %v6448 = vpop.f32.mrb[0].mxu0
    %6449 = vdwg.mxu0
    %vm6450 = vcmask 16384
    %6451 = vst.msk [vmem:[#allocation3] sm:$0x1] %vm6450, %v6445
    %v6452 = vpack.c.bf16 %v6326, %v6326
    %v6453 = vld [vmem:[%s20] sm:$0xf]
    %v6454 = vld [vmem:[%s20 + $0x4] sm:$0xf]
    %v6455 = vld [vmem:[%s20 + $0x8] sm:$0xf]
    %v6456 = vld [vmem:[%s20 + $0xc] sm:$0xf]
    %v6457 = vld [vmem:[%s21] sm:$0x1]
    %v6462 = vunpack.c.l.b16 %v6453
    %v6463 = vunpack.c.l.b16 %v6454
    %v6464 = vunpack.c.l.b16 %v6455
    %v6465 = vunpack.c.l.b16 %v6456
    %v6466 = vpack.c.b16 %v6463, %v6462
    %v6467 = vpack.c.b16 %v6465, %v6464
    %v6471 = vsel %vm83, %v6452, 0
    %6473 = vmatprep.subr.bf16.mxu0 0
    %6474 = vmatpush1.bf16.msra.mxu0 %v6466
    %6475 = vmatprep.subr.bf16.mxu0 0
    %6476 = vmatpush1.bf16.msra.mxu0 %v6467
    %6477 = vmatprep.subr.bf16.mxu0 0
    %6478 = vmatpush1.bf16.msra.mxu0 0
    %6479 = vmatprep.subr.bf16.mxu0 0
    %6480 = vmatpush1.bf16.msra.mxu0 0
    %6481 = vmatprep.subr.bf16.mxu0 0
    %6482 = vmatpush1.bf16.msra.mxu0 0
    %6483 = vmatprep.subr.bf16.mxu0 0
    %6484 = vmatpush1.bf16.msra.mxu0 0
    %6485 = vmatprep.subr.bf16.mxu0 0
    %6486 = vmatpush1.bf16.msra.mxu0 0
    %6487 = vmatprep.subr.bf16.mxu0 0
    %6488 = vmatpush1.bf16.msra.mxu0 0
    %6489 = vmatprep.subr.bf16.mxu0 0
    %6490 = vmatpush1.bf16.msra.mxu0 0
    %6491 = vmatprep.subr.bf16.mxu0 0
    %6492 = vmatpush1.bf16.msra.mxu0 0
    %6493 = vmatprep.subr.bf16.mxu0 0
    %6494 = vmatpush1.bf16.msra.mxu0 0
    %6495 = vmatprep.subr.bf16.mxu0 0
    %6496 = vmatpush1.bf16.msra.mxu0 0
    %6497 = vmatprep.subr.bf16.mxu0 0
    %6498 = vmatpush1.bf16.msra.mxu0 0
    %6499 = vmatprep.subr.bf16.mxu0 0
    %6500 = vmatpush1.bf16.msra.mxu0 0
    %6501 = vmatprep.subr.bf16.mxu0 0
    %6502 = vmatpush1.bf16.msra.mxu0 0
    %6503 = vmatprep.subr.bf16.mxu0 0
    %6504 = vmatpush1.bf16.msra.mxu0 0
    %6505 = vmatprep.mubr.bf16.mxu0 0
    %6506 = vmatmul.mubr.bf16.gmra.mrb[0].mxu0 %v6471
    %v6507 = vpop.f32.mrb[0].mxu0
    %v6508 = vadd.f32 %v6457, %v6507
    %v6509 = vpop.f32.mrb[0].mxu0
    %v6510 = vpop.f32.mrb[0].mxu0
    %v6511 = vpop.f32.mrb[0].mxu0
    %6512 = vdwg.mxu0
    %v6513 = vtanh.pop %v6508
    %v6514 = vpack.c.bf16 %v6513, %v6513
    %v6515 = vld [vmem:[%s22] sm:$0xf]
    %v6516 = vld [vmem:[%s22 + $0x4] sm:$0xf]
    %v6517 = vld [vmem:[%s22 + $0x8] sm:$0xf]
    %v6518 = vld [vmem:[%s22 + $0xc] sm:$0xf]
    %v6519 = vld [vmem:[%s23] sm:$0x1]
    %v6524 = vunpack.c.l.b16 %v6515
    %v6525 = vunpack.c.l.b16 %v6516
    %v6526 = vunpack.c.l.b16 %v6517
    %v6527 = vunpack.c.l.b16 %v6518
    %v6528 = vpack.c.b16 %v6525, %v6524
    %v6529 = vpack.c.b16 %v6527, %v6526
    %v6533 = vsel %vm83, %v6514, 0
    %6535 = vmatprep.subr.bf16.mxu0 0
    %6536 = vmatpush1.bf16.msra.mxu0 %v6528
    %6537 = vmatprep.subr.bf16.mxu0 0
    %6538 = vmatpush1.bf16.msra.mxu0 %v6529
    %6539 = vmatprep.subr.bf16.mxu0 0
    %6540 = vmatpush1.bf16.msra.mxu0 0
    %6541 = vmatprep.subr.bf16.mxu0 0
    %6542 = vmatpush1.bf16.msra.mxu0 0
    %6543 = vmatprep.subr.bf16.mxu0 0
    %6544 = vmatpush1.bf16.msra.mxu0 0
    %6545 = vmatprep.subr.bf16.mxu0 0
    %6546 = vmatpush1.bf16.msra.mxu0 0
    %6547 = vmatprep.subr.bf16.mxu0 0
    %6548 = vmatpush1.bf16.msra.mxu0 0
    %6549 = vmatprep.subr.bf16.mxu0 0
    %6550 = vmatpush1.bf16.msra.mxu0 0
    %6551 = vmatprep.subr.bf16.mxu0 0
    %6552 = vmatpush1.bf16.msra.mxu0 0
    %6553 = vmatprep.subr.bf16.mxu0 0
    %6554 = vmatpush1.bf16.msra.mxu0 0
    %6555 = vmatprep.subr.bf16.mxu0 0
    %6556 = vmatpush1.bf16.msra.mxu0 0
    %6557 = vmatprep.subr.bf16.mxu0 0
    %6558 = vmatpush1.bf16.msra.mxu0 0
    %6559 = vmatprep.subr.bf16.mxu0 0
    %6560 = vmatpush1.bf16.msra.mxu0 0
    %6561 = vmatprep.subr.bf16.mxu0 0
    %6562 = vmatpush1.bf16.msra.mxu0 0
    %6563 = vmatprep.subr.bf16.mxu0 0
    %6564 = vmatpush1.bf16.msra.mxu0 0
    %6565 = vmatprep.subr.bf16.mxu0 0
    %6566 = vmatpush1.bf16.msra.mxu0 0
    %6567 = vmatprep.mubr.bf16.mxu0 0
    %6568 = vmatmul.mubr.bf16.gmra.mrb[0].mxu0 %v6533
    %v6569 = vpop.f32.mrb[0].mxu0
    %v6570 = vadd.f32 %v6519, %v6569
    %v6571 = vpop.f32.mrb[0].mxu0
    %v6572 = vpop.f32.mrb[0].mxu0
    %v6573 = vpop.f32.mrb[0].mxu0
    %6574 = vdwg.mxu0
    %6575 = vst.msk [vmem:[#allocation3 + $0x1] sm:$0x1] %vm6450, %v6570
    // Predicated region
    $region98: #{phobert_custom_forward.1} parent=1 // pred_check
      _
    $region99: #{phobert_custom_forward.1} parent=1 // pred_check_branch
      %6577 = sbr.rel (0) target = $region101
    $region100: #{phobert_custom_forward.1} parent=1 // pred_region
      %s6579 = ssub.s32 32, 32
      %6580 = vsyncadd [#allocation4], %s6579
      %s6582 = sshll.u32 [#allocation3], 4
      %s6583 = int_to_ptr.vmem [resolvable:$true] %s6582
      %6585 = dma.vmem_to_hbm [thread:$0]  %s6583, 32, %s24, [#allocation4]
    $region101: #{phobert_custom_forward.1} parent=1 // pred_fallthru
      _
    // Predicated region
    $region102: #{phobert_custom_forward.1} parent=1 // pred_check
      _
    $region103: #{phobert_custom_forward.1} parent=1 // pred_check_branch
      %6587 = sbr.rel (0) target = $region105
    $region104: #{phobert_custom_forward.1} parent=1 // pred_region
      %6588 = dma.done [#allocation4], 32
    $region105: #{phobert_custom_forward.1} parent=1 // pred_fallthru
      _
    %6589 = vsyncpa [#allocation4], 1

</llo_original>
